<compile_context>
chip_gen: v6e
topology: v6e:2x2x1
jax: 0.10.0
libtpu: 0.0.40
codegen_flags: <defaults>
</compile_context>

<pallas_src>
import functools
import numpy as np
import jax
import jax.numpy as jnp
from jax.experimental import pallas as pl
from jax.experimental.pallas import tpu as pltpu

# ----------------------------- KAN constants --------------------------------
GRID_SIZE = 5
SPLINE_ORDER = 3
GRID_RANGE = (-1.0, 1.0)
NUM_BASES = GRID_SIZE + SPLINE_ORDER              # 8
GRID_PTS = GRID_SIZE + 2 * SPLINE_ORDER + 1       # 12
_H = (GRID_RANGE[1] - GRID_RANGE[0]) / GRID_SIZE
# grid rows of KANLinear are identical across in_features -> bake as scalars
GRID = [float(np.float32(j * _H + GRID_RANGE[0]))
        for j in range(-SPLINE_ORDER, GRID_SIZE + SPLINE_ORDER + 1)]

# ----------------------------- model config ---------------------------------
N_TIME_IN = 16
N_TIME_OUT = 8
BATCH = 4
N_THETA_HIDDEN = [32, 32]
POOL_K = [2, 4]                 # n_pool_kernel_size per stack
FREQ_DOWNSAMPLE = [4, 1]        # n_freq_downsample per stack
N_STACKS = 2                    # n_blocks = [1, 1]

POOLED_LENS = [int(np.ceil(N_TIME_IN / k)) for k in POOL_K]      # [8, 4]
POOL_MAX = max(POOLED_LENS)                                      # 8
FIN_MAX = max(POOLED_LENS + N_THETA_HIDDEN)                      # 32


# ============================ fused Pallas kernel ============================
def nhits_fused_kernel(res_ref, mask_ref, level_ref, *refs,
                       pool_ks, layers_per_stack, backcast_size):
    """Entire N-HiTS forward: pooling -> KAN stacks -> residual/forecast."""
    n_weights = sum(layers_per_stack)
    w_refs = refs[:n_weights]          # fused (9*Fin, Fout) weights, per layer
    out_ref = refs[n_weights]          # (B, H) forecast
    pool_buf = refs[n_weights + 1]     # VMEM scratch (B, POOL_MAX)
    feat_buf = refs[n_weights + 2]     # VMEM scratch (B, 9*FIN_MAX)

    residuals = res_ref[...]           # (B, L) f32, already time-flipped
    mask = mask_ref[...]               # (B, L) f32, already time-flipped
    forecast = level_ref[...]          # (B, H) f32, level broadcast
    L = residuals.shape[1]

    wi = 0
    for pool_k, n_layers in zip(pool_ks, layers_per_stack):
        # ---- MaxPool1d(kernel=pool_k, stride=pool_k, ceil_mode=True) -------
        n_windows = -(-L // pool_k)
        for w in range(n_windows):
            lo = w * pool_k
            hi = min(lo + pool_k, L)
            pool_buf[:, w:w + 1] = jnp.max(residuals[:, lo:hi], axis=-1,
                                           keepdims=True)
        h = pool_buf[:, :n_windows]                      # (B, n_windows)

        # ---- KAN layers: one fused (B,9*Fin)@(9*Fin,Fout) MXU matmul each --
        for _ in range(n_layers):
            fin = h.shape[1]
            # base branch feature: SiLU(x)
            feat_buf[:, :fin] = h * (1.0 / (1.0 + jnp.exp(-h)))
            # spline branch features: Cox-de Boor recursion (grid baked in)
            bases = [jnp.logical_and(h >= GRID[j], h < GRID[j + 1]).astype(h.dtype)
                     for j in range(GRID_PTS - 1)]               # 11 x (B, fin)
            for k in range(1, SPLINE_ORDER + 1):
                bases = [
                    (h - GRID[j]) / (GRID[j + k] - GRID[j]) * bases[j]
                    + (GRID[j + k + 1] - h)
                    / (GRID[j + k + 1] - GRID[j + 1]) * bases[j + 1]
                    for j in range(len(bases) - 1)]              # final: 8
            for c in range(NUM_BASES):
                feat_buf[:, (c + 1) * fin:(c + 2) * fin] = bases[c]
            # single MXU matmul over the fused contraction dim 9*fin
            h = jnp.dot(feat_buf[:, :(NUM_BASES + 1) * fin], w_refs[wi][...],
                        preferred_element_type=jnp.float32)      # (B, Fout)
            wi += 1

        # ---- IdentityBasis (interp folded into last-layer weights) ---------
        backcast = h[:, :backcast_size]                  # (B, L)
        block_forecast = h[:, backcast_size:]            # (B, H)
        residuals = (residuals - backcast) * mask
        forecast = forecast + block_forecast

    out_ref[...] = forecast


# ============================ init / weight fusion ===========================
def linear_interp_matrix(in_size, out_size):
    """Matrix M (in, out) s.t. knots @ M == F.interpolate(mode='linear')."""
    M = np.zeros((in_size, out_size), np.float32)
    scale = in_size / out_size
    for j in range(out_size):
        src = scale * (j + 0.5) - 0.5
        if src < 0.0:
            src = 0.0
        i0 = min(int(np.floor(src)), in_size - 1)
        i1 = i0 + 1 if i0 < in_size - 1 else i0
        lam = min(max(src - i0, 0.0), 1.0)
        M[i0, j] += 1.0 - lam
        M[i1, j] += lam
    return M


def init_kan_fused_weight(key, fin, fout):
    """Build the fused KANLinear weight of shape (9*fin, fout).

    Row layout matches the in-kernel feature layout:
      rows [0, fin)                      -> base (SiLU) weights
      rows [(c+1)*fin, (c+2)*fin)        -> scaled spline weights of basis c
    so  out = [silu(x), b_0(x), ..., b_7(x)] @ W  ==  KANLinear.forward(x).
    """
    k1, k2, k3 = jax.random.split(key, 3)
    scale = 1.0 / np.sqrt(fin)
    base_w = jax.random.uniform(k1, (fout, fin), jnp.float32, -scale, scale)
    spline_w = 0.1 * jax.random.uniform(
        k2, (fout, fin, NUM_BASES), jnp.float32, -scale, scale)
    spline_scaler = jax.random.uniform(
        k3, (fout, fin), jnp.float32, -scale, scale)
    scaled = spline_w * spline_scaler[:, :, None]            # (out, in, 8)
    spl_wt = jnp.transpose(scaled, (2, 1, 0)).reshape(NUM_BASES * fin, fout)
    return jnp.concatenate([base_w.T, spl_wt], axis=0)       # (9*in, out)


def init_nhits_params(key):
    """Per-stack list of fused KAN weights; interp folded into the last layer."""
    stacks = []
    for i in range(N_STACKS):
        n_knots = max(N_TIME_OUT // FREQ_DOWNSAMPLE[i], 1)
        n_theta = N_TIME_IN + n_knots
        n_in_pooled = POOLED_LENS[i]
        dims = [n_in_pooled] + N_THETA_HIDDEN + [n_theta]
        interp = jnp.asarray(linear_interp_matrix(n_knots, N_TIME_OUT))
        weights = []
        for li, (fin, fout) in enumerate(zip(dims[:-1], dims[1:])):
            key, sub = jax.random.split(key)
            w = init_kan_fused_weight(sub, fin, fout)
            if li == len(dims) - 2:
                # Fold IdentityBasis linear interpolation into the last layer:
                # theta[:, L:] @ M == x @ (W[:, L:] @ M)  (exact: no bias).
                w = jnp.concatenate(
                    [w[:, :N_TIME_IN], w[:, N_TIME_IN:] @ interp], axis=1)
            weights.append(w)
        stacks.append(weights)
    return stacks


# ============================ forward wrapper ================================
_VMEM_SPEC = pl.BlockSpec(memory_space=pltpu.MemorySpace.VMEM)


@jax.jit
def nhits_forward(stack_weights, S, Y, X, insample_mask, outsample_mask):
    """_NHITS.forward (return_decomposition=False)."""
    insample_y = Y[:, :-N_TIME_OUT]
    outsample_y = Y[:, -N_TIME_OUT:]
    in_mask = insample_mask[:, :-N_TIME_OUT]
    out_mask = outsample_mask[:, -N_TIME_OUT:]
    # insample_x_t / outsample_x_t / x_s branches are no-ops since n_x=n_s=0.

    B = insample_y.shape[0]
    residuals0 = jnp.flip(insample_y, axis=-1)
    mask_f = jnp.flip(in_mask, axis=-1)
    # level: broadcast (B,1) -> (B, H); identical to PyTorch broadcasting.
    level = jnp.broadcast_to(insample_y[:, -1:], (B, N_TIME_OUT))

    w_flat = [w for ws in stack_weights for w in ws]
    layers_per_stack = tuple(len(ws) for ws in stack_weights)

    kern = functools.partial(
        nhits_fused_kernel,
        pool_ks=tuple(POOL_K),
        layers_per_stack=layers_per_stack,
        backcast_size=N_TIME_IN)

    forecast = pl.pallas_call(
        kern,
        out_shape=jax.ShapeDtypeStruct((B, N_TIME_OUT), jnp.float32),
        in_specs=[_VMEM_SPEC] * (3 + len(w_flat)),
        out_specs=_VMEM_SPEC,
        scratch_shapes=[
            pltpu.VMEM((B, POOL_MAX), jnp.float32),                  # pooled x
            pltpu.VMEM((B, (NUM_BASES + 1) * FIN_MAX), jnp.float32),  # X_fused
        ],
    )(residuals0, mask_f, level, *w_flat)

    return outsample_y, forecast, out_mask


# ================================== main =====================================
if __name__ == "__main__":
    key = jax.random.PRNGKey(0)
    pkey, ykey = jax.random.split(key)

    stack_weights = init_nhits_params(pkey)

    Y = jax.random.normal(ykey, (BATCH, N_TIME_IN + N_TIME_OUT), jnp.float32)
    X = jnp.zeros((BATCH, 0, N_TIME_IN + N_TIME_OUT), jnp.float32)   # n_x = 0
    S = jnp.zeros((BATCH, 0), jnp.float32)                           # n_s = 0
    insample_mask = jnp.ones((BATCH, N_TIME_IN + N_TIME_OUT), jnp.float32)
    outsample_mask = jnp.ones((BATCH, N_TIME_IN + N_TIME_OUT), jnp.float32)

    outsample_y, forecast, out_mask = nhits_forward(
        stack_weights, S, Y, X, insample_mask, outsample_mask)
    jax.block_until_ready((outsample_y, forecast, out_mask))

    assert outsample_y.shape == (BATCH, N_TIME_OUT)
    assert forecast.shape == (BATCH, N_TIME_OUT)
    assert out_mask.shape == (BATCH, N_TIME_OUT)
    assert bool(jnp.all(jnp.isfinite(forecast)))
    print("KERNEL_OK")
</pallas_src>

<mosaic_0001>
module attributes {stable_mosaic.version = 11 : i64} {
  func.func @nhits_fused_kernel(%arg0: memref<4x16xf32, #tpu.memory_space<vmem>>, %arg1: memref<4x16xf32, #tpu.memory_space<vmem>>, %arg2: memref<4x8xf32, #tpu.memory_space<vmem>>, %arg3: memref<72x32xf32, #tpu.memory_space<vmem>>, %arg4: memref<288x32xf32, #tpu.memory_space<vmem>>, %arg5: memref<288x24xf32, #tpu.memory_space<vmem>>, %arg6: memref<36x32xf32, #tpu.memory_space<vmem>>, %arg7: memref<288x32xf32, #tpu.memory_space<vmem>>, %arg8: memref<288x24xf32, #tpu.memory_space<vmem>>, %arg9: memref<4x8xf32, #tpu.memory_space<vmem>>, %arg10: memref<4x8xf32, #tpu.memory_space<vmem>>, %arg11: memref<4x288xf32, #tpu.memory_space<vmem>>) attributes {dimension_semantics = [], scalar_prefetch = 0 : i64, scratch_operands = 2 : i64, tpu.core_type = #tpu.core_type<tc>} {
    %c0 = arith.constant 0 : index
    %c0_0 = arith.constant 0 : index
    %0 = vector.load %arg0[%c0, %c0_0] : memref<4x16xf32, #tpu.memory_space<vmem>>, vector<4x16xf32>
    %c0_1 = arith.constant 0 : index
    %c0_2 = arith.constant 0 : index
    %1 = vector.load %arg1[%c0_1, %c0_2] : memref<4x16xf32, #tpu.memory_space<vmem>>, vector<4x16xf32>
    %c0_3 = arith.constant 0 : index
    %c0_4 = arith.constant 0 : index
    %2 = vector.load %arg2[%c0_3, %c0_4] : memref<4x8xf32, #tpu.memory_space<vmem>>, vector<4x8xf32>
    %3 = vector.extract_strided_slice %0 {offsets = [0, 0], sizes = [4, 2], strides = [1, 1]} : vector<4x16xf32> to vector<4x2xf32>
    %cst = arith.constant dense<0xFF800000> : vector<4xf32>
    %4 = vector.multi_reduction <maximumf>, %3, %cst [1] : vector<4x2xf32> to vector<4xf32>
    %5 = vector.shape_cast %4 : vector<4xf32> to vector<4x1xf32>
    %c0_5 = arith.constant 0 : index
    %c0_6 = arith.constant 0 : index
    %6 = vector.load %arg10[%c0_5, %c0_6] : memref<4x8xf32, #tpu.memory_space<vmem>>, vector<4x1xf32>
    tpu.vector_store %arg10[%c0_5, %c0_6], %5 {strides = array<i32>} : memref<4x8xf32, #tpu.memory_space<vmem>>, vector<4x1xf32>,
    %7 = vector.extract_strided_slice %0 {offsets = [0, 2], sizes = [4, 2], strides = [1, 1]} : vector<4x16xf32> to vector<4x2xf32>
    %cst_7 = arith.constant dense<0xFF800000> : vector<4xf32>
    %8 = vector.multi_reduction <maximumf>, %7, %cst_7 [1] : vector<4x2xf32> to vector<4xf32>
    %9 = vector.shape_cast %8 : vector<4xf32> to vector<4x1xf32>
    %c0_8 = arith.constant 0 : index
    %c1 = arith.constant 1 : index
    %10 = vector.load %arg10[%c0_8, %c1] : memref<4x8xf32, #tpu.memory_space<vmem>>, vector<4x1xf32>
    tpu.vector_store %arg10[%c0_8, %c1], %9 {strides = array<i32>} : memref<4x8xf32, #tpu.memory_space<vmem>>, vector<4x1xf32>,
    %11 = vector.extract_strided_slice %0 {offsets = [0, 4], sizes = [4, 2], strides = [1, 1]} : vector<4x16xf32> to vector<4x2xf32>
    %cst_9 = arith.constant dense<0xFF800000> : vector<4xf32>
    %12 = vector.multi_reduction <maximumf>, %11, %cst_9 [1] : vector<4x2xf32> to vector<4xf32>
    %13 = vector.shape_cast %12 : vector<4xf32> to vector<4x1xf32>
    %c0_10 = arith.constant 0 : index
    %c2 = arith.constant 2 : index
    %14 = vector.load %arg10[%c0_10, %c2] : memref<4x8xf32, #tpu.memory_space<vmem>>, vector<4x1xf32>
    tpu.vector_store %arg10[%c0_10, %c2], %13 {strides = array<i32>} : memref<4x8xf32, #tpu.memory_space<vmem>>, vector<4x1xf32>,
    %15 = vector.extract_strided_slice %0 {offsets = [0, 6], sizes = [4, 2], strides = [1, 1]} : vector<4x16xf32> to vector<4x2xf32>
    %cst_11 = arith.constant dense<0xFF800000> : vector<4xf32>
    %16 = vector.multi_reduction <maximumf>, %15, %cst_11 [1] : vector<4x2xf32> to vector<4xf32>
    %17 = vector.shape_cast %16 : vector<4xf32> to vector<4x1xf32>
    %c0_12 = arith.constant 0 : index
    %c3 = arith.constant 3 : index
    %18 = vector.load %arg10[%c0_12, %c3] : memref<4x8xf32, #tpu.memory_space<vmem>>, vector<4x1xf32>
    tpu.vector_store %arg10[%c0_12, %c3], %17 {strides = array<i32>} : memref<4x8xf32, #tpu.memory_space<vmem>>, vector<4x1xf32>,
    %19 = vector.extract_strided_slice %0 {offsets = [0, 8], sizes = [4, 2], strides = [1, 1]} : vector<4x16xf32> to vector<4x2xf32>
    %cst_13 = arith.constant dense<0xFF800000> : vector<4xf32>
    %20 = vector.multi_reduction <maximumf>, %19, %cst_13 [1] : vector<4x2xf32> to vector<4xf32>
    %21 = vector.shape_cast %20 : vector<4xf32> to vector<4x1xf32>
    %c0_14 = arith.constant 0 : index
    %c4 = arith.constant 4 : index
    %22 = vector.load %arg10[%c0_14, %c4] : memref<4x8xf32, #tpu.memory_space<vmem>>, vector<4x1xf32>
    tpu.vector_store %arg10[%c0_14, %c4], %21 {strides = array<i32>} : memref<4x8xf32, #tpu.memory_space<vmem>>, vector<4x1xf32>,
    %23 = vector.extract_strided_slice %0 {offsets = [0, 10], sizes = [4, 2], strides = [1, 1]} : vector<4x16xf32> to vector<4x2xf32>
    %cst_15 = arith.constant dense<0xFF800000> : vector<4xf32>
    %24 = vector.multi_reduction <maximumf>, %23, %cst_15 [1] : vector<4x2xf32> to vector<4xf32>
    %25 = vector.shape_cast %24 : vector<4xf32> to vector<4x1xf32>
    %c0_16 = arith.constant 0 : index
    %c5 = arith.constant 5 : index
    %26 = vector.load %arg10[%c0_16, %c5] : memref<4x8xf32, #tpu.memory_space<vmem>>, vector<4x1xf32>
    tpu.vector_store %arg10[%c0_16, %c5], %25 {strides = array<i32>} : memref<4x8xf32, #tpu.memory_space<vmem>>, vector<4x1xf32>,
    %27 = vector.extract_strided_slice %0 {offsets = [0, 12], sizes = [4, 2], strides = [1, 1]} : vector<4x16xf32> to vector<4x2xf32>
    %cst_17 = arith.constant dense<0xFF800000> : vector<4xf32>
    %28 = vector.multi_reduction <maximumf>, %27, %cst_17 [1] : vector<4x2xf32> to vector<4xf32>
    %29 = vector.shape_cast %28 : vector<4xf32> to vector<4x1xf32>
    %c0_18 = arith.constant 0 : index
    %c6 = arith.constant 6 : index
    %30 = vector.load %arg10[%c0_18, %c6] : memref<4x8xf32, #tpu.memory_space<vmem>>, vector<4x1xf32>
    tpu.vector_store %arg10[%c0_18, %c6], %29 {strides = array<i32>} : memref<4x8xf32, #tpu.memory_space<vmem>>, vector<4x1xf32>,
    %31 = vector.extract_strided_slice %0 {offsets = [0, 14], sizes = [4, 2], strides = [1, 1]} : vector<4x16xf32> to vector<4x2xf32>
    %cst_19 = arith.constant dense<0xFF800000> : vector<4xf32>
    %32 = vector.multi_reduction <maximumf>, %31, %cst_19 [1] : vector<4x2xf32> to vector<4xf32>
    %33 = vector.shape_cast %32 : vector<4xf32> to vector<4x1xf32>
    %c0_20 = arith.constant 0 : index
    %c7 = arith.constant 7 : index
    %34 = vector.load %arg10[%c0_20, %c7] : memref<4x8xf32, #tpu.memory_space<vmem>>, vector<4x1xf32>
    tpu.vector_store %arg10[%c0_20, %c7], %33 {strides = array<i32>} : memref<4x8xf32, #tpu.memory_space<vmem>>, vector<4x1xf32>,
    %c0_21 = arith.constant 0 : index
    %c0_22 = arith.constant 0 : index
    %35 = vector.load %arg10[%c0_21, %c0_22] : memref<4x8xf32, #tpu.memory_space<vmem>>, vector<4x8xf32>
    %cst_23 = arith.constant 0.000000e+00 : f32
    %36 = vector.broadcast %cst_23 : f32 to vector<4x8xf32>
    %37 = arith.subf %36, %35 : vector<4x8xf32>
    %38 = math.exp %37 : vector<4x8xf32>
    %cst_24 = arith.constant 1.000000e+00 : f32
    %39 = vector.broadcast %cst_24 : f32 to vector<4x8xf32>
    %40 = arith.addf %39, %38 : vector<4x8xf32>
    %cst_25 = arith.constant 1.000000e+00 : f32
    %41 = vector.broadcast %cst_25 : f32 to vector<4x8xf32>
    %42 = arith.divf %41, %40 : vector<4x8xf32>
    %43 = arith.mulf %35, %42 : vector<4x8xf32>
    %c0_26 = arith.constant 0 : index
    %c0_27 = arith.constant 0 : index
    %44 = vector.load %arg11[%c0_26, %c0_27] : memref<4x288xf32, #tpu.memory_space<vmem>>, vector<4x8xf32>
    tpu.vector_store %arg11[%c0_26, %c0_27], %43 {strides = array<i32>} : memref<4x288xf32, #tpu.memory_space<vmem>>, vector<4x8xf32>,
    %cst_28 = arith.constant -2.200000e+00 : f32
    %45 = vector.broadcast %cst_28 : f32 to vector<4x8xf32>
    %46 = arith.cmpf oge, %35, %45 : vector<4x8xf32>
    %cst_29 = arith.constant -1.800000e+00 : f32
    %47 = vector.broadcast %cst_29 : f32 to vector<4x8xf32>
    %48 = arith.cmpf olt, %35, %47 : vector<4x8xf32>
    %49 = arith.andi %46, %48 : vector<4x8xi1>
    %50 = arith.extui %49 : vector<4x8xi1> to vector<4x8xi32>
    %51 = arith.sitofp %50 : vector<4x8xi32> to vector<4x8xf32>
    %cst_30 = arith.constant -1.800000e+00 : f32
    %52 = vector.broadcast %cst_30 : f32 to vector<4x8xf32>
    %53 = arith.cmpf oge, %35, %52 : vector<4x8xf32>
    %cst_31 = arith.constant -1.400000e+00 : f32
    %54 = vector.broadcast %cst_31 : f32 to vector<4x8xf32>
    %55 = arith.cmpf olt, %35, %54 : vector<4x8xf32>
    %56 = arith.andi %53, %55 : vector<4x8xi1>
    %57 = arith.extui %56 : vector<4x8xi1> to vector<4x8xi32>
    %58 = arith.sitofp %57 : vector<4x8xi32> to vector<4x8xf32>
    %cst_32 = arith.constant -1.400000e+00 : f32
    %59 = vector.broadcast %cst_32 : f32 to vector<4x8xf32>
    %60 = arith.cmpf oge, %35, %59 : vector<4x8xf32>
    %cst_33 = arith.constant -1.000000e+00 : f32
    %61 = vector.broadcast %cst_33 : f32 to vector<4x8xf32>
    %62 = arith.cmpf olt, %35, %61 : vector<4x8xf32>
    %63 = arith.andi %60, %62 : vector<4x8xi1>
    %64 = arith.extui %63 : vector<4x8xi1> to vector<4x8xi32>
    %65 = arith.sitofp %64 : vector<4x8xi32> to vector<4x8xf32>
    %cst_34 = arith.constant -1.000000e+00 : f32
    %66 = vector.broadcast %cst_34 : f32 to vector<4x8xf32>
    %67 = arith.cmpf oge, %35, %66 : vector<4x8xf32>
    %cst_35 = arith.constant -6.000000e-01 : f32
    %68 = vector.broadcast %cst_35 : f32 to vector<4x8xf32>
    %69 = arith.cmpf olt, %35, %68 : vector<4x8xf32>
    %70 = arith.andi %67, %69 : vector<4x8xi1>
    %71 = arith.extui %70 : vector<4x8xi1> to vector<4x8xi32>
    %72 = arith.sitofp %71 : vector<4x8xi32> to vector<4x8xf32>
    %cst_36 = arith.constant -6.000000e-01 : f32
    %73 = vector.broadcast %cst_36 : f32 to vector<4x8xf32>
    %74 = arith.cmpf oge, %35, %73 : vector<4x8xf32>
    %cst_37 = arith.constant -2.000000e-01 : f32
    %75 = vector.broadcast %cst_37 : f32 to vector<4x8xf32>
    %76 = arith.cmpf olt, %35, %75 : vector<4x8xf32>
    %77 = arith.andi %74, %76 : vector<4x8xi1>
    %78 = arith.extui %77 : vector<4x8xi1> to vector<4x8xi32>
    %79 = arith.sitofp %78 : vector<4x8xi32> to vector<4x8xf32>
    %cst_38 = arith.constant -2.000000e-01 : f32
    %80 = vector.broadcast %cst_38 : f32 to vector<4x8xf32>
    %81 = arith.cmpf oge, %35, %80 : vector<4x8xf32>
    %cst_39 = arith.constant 2.000000e-01 : f32
    %82 = vector.broadcast %cst_39 : f32 to vector<4x8xf32>
    %83 = arith.cmpf olt, %35, %82 : vector<4x8xf32>
    %84 = arith.andi %81, %83 : vector<4x8xi1>
    %85 = arith.extui %84 : vector<4x8xi1> to vector<4x8xi32>
    %86 = arith.sitofp %85 : vector<4x8xi32> to vector<4x8xf32>
    %cst_40 = arith.constant 2.000000e-01 : f32
    %87 = vector.broadcast %cst_40 : f32 to vector<4x8xf32>
    %88 = arith.cmpf oge, %35, %87 : vector<4x8xf32>
    %cst_41 = arith.constant 6.000000e-01 : f32
    %89 = vector.broadcast %cst_41 : f32 to vector<4x8xf32>
    %90 = arith.cmpf olt, %35, %89 : vector<4x8xf32>
    %91 = arith.andi %88, %90 : vector<4x8xi1>
    %92 = arith.extui %91 : vector<4x8xi1> to vector<4x8xi32>
    %93 = arith.sitofp %92 : vector<4x8xi32> to vector<4x8xf32>
    %cst_42 = arith.constant 6.000000e-01 : f32
    %94 = vector.broadcast %cst_42 : f32 to vector<4x8xf32>
    %95 = arith.cmpf oge, %35, %94 : vector<4x8xf32>
    %cst_43 = arith.constant 1.000000e+00 : f32
    %96 = vector.broadcast %cst_43 : f32 to vector<4x8xf32>
    %97 = arith.cmpf olt, %35, %96 : vector<4x8xf32>
    %98 = arith.andi %95, %97 : vector<4x8xi1>
    %99 = arith.extui %98 : vector<4x8xi1> to vector<4x8xi32>
    %100 = arith.sitofp %99 : vector<4x8xi32> to vector<4x8xf32>
    %cst_44 = arith.constant 1.000000e+00 : f32
    %101 = vector.broadcast %cst_44 : f32 to vector<4x8xf32>
    %102 = arith.cmpf oge, %35, %101 : vector<4x8xf32>
    %cst_45 = arith.constant 1.400000e+00 : f32
    %103 = vector.broadcast %cst_45 : f32 to vector<4x8xf32>
    %104 = arith.cmpf olt, %35, %103 : vector<4x8xf32>
    %105 = arith.andi %102, %104 : vector<4x8xi1>
    %106 = arith.extui %105 : vector<4x8xi1> to vector<4x8xi32>
    %107 = arith.sitofp %106 : vector<4x8xi32> to vector<4x8xf32>
    %cst_46 = arith.constant 1.400000e+00 : f32
    %108 = vector.broadcast %cst_46 : f32 to vector<4x8xf32>
    %109 = arith.cmpf oge, %35, %108 : vector<4x8xf32>
    %cst_47 = arith.constant 1.800000e+00 : f32
    %110 = vector.broadcast %cst_47 : f32 to vector<4x8xf32>
    %111 = arith.cmpf olt, %35, %110 : vector<4x8xf32>
    %112 = arith.andi %109, %111 : vector<4x8xi1>
    %113 = arith.extui %112 : vector<4x8xi1> to vector<4x8xi32>
    %114 = arith.sitofp %113 : vector<4x8xi32> to vector<4x8xf32>
    %cst_48 = arith.constant 1.800000e+00 : f32
    %115 = vector.broadcast %cst_48 : f32 to vector<4x8xf32>
    %116 = arith.cmpf oge, %35, %115 : vector<4x8xf32>
    %cst_49 = arith.constant 2.200000e+00 : f32
    %117 = vector.broadcast %cst_49 : f32 to vector<4x8xf32>
    %118 = arith.cmpf olt, %35, %117 : vector<4x8xf32>
    %119 = arith.andi %116, %118 : vector<4x8xi1>
    %120 = arith.extui %119 : vector<4x8xi1> to vector<4x8xi32>
    %121 = arith.sitofp %120 : vector<4x8xi32> to vector<4x8xf32>
    %cst_50 = arith.constant -2.200000e+00 : f32
    %122 = vector.broadcast %cst_50 : f32 to vector<4x8xf32>
    %123 = arith.subf %35, %122 : vector<4x8xf32>
    %cst_51 = arith.constant 0.400000095 : f32
    %124 = vector.broadcast %cst_51 : f32 to vector<4x8xf32>
    %125 = arith.divf %123, %124 : vector<4x8xf32>
    %126 = arith.mulf %125, %51 : vector<4x8xf32>
    %cst_52 = arith.constant -1.400000e+00 : f32
    %127 = vector.broadcast %cst_52 : f32 to vector<4x8xf32>
    %128 = arith.subf %127, %35 : vector<4x8xf32>
    %cst_53 = arith.constant 0.399999976 : f32
    %129 = vector.broadcast %cst_53 : f32 to vector<4x8xf32>
    %130 = arith.divf %128, %129 : vector<4x8xf32>
    %131 = arith.mulf %130, %58 : vector<4x8xf32>
    %132 = arith.addf %126, %131 : vector<4x8xf32>
    %cst_54 = arith.constant -1.800000e+00 : f32
    %133 = vector.broadcast %cst_54 : f32 to vector<4x8xf32>
    %134 = arith.subf %35, %133 : vector<4x8xf32>
    %cst_55 = arith.constant 0.399999976 : f32
    %135 = vector.broadcast %cst_55 : f32 to vector<4x8xf32>
    %136 = arith.divf %134, %135 : vector<4x8xf32>
    %137 = arith.mulf %136, %58 : vector<4x8xf32>
    %cst_56 = arith.constant -1.000000e+00 : f32
    %138 = vector.broadcast %cst_56 : f32 to vector<4x8xf32>
    %139 = arith.subf %138, %35 : vector<4x8xf32>
    %cst_57 = arith.constant 0.399999976 : f32
    %140 = vector.broadcast %cst_57 : f32 to vector<4x8xf32>
    %141 = arith.divf %139, %140 : vector<4x8xf32>
    %142 = arith.mulf %141, %65 : vector<4x8xf32>
    %143 = arith.addf %137, %142 : vector<4x8xf32>
    %cst_58 = arith.constant -1.400000e+00 : f32
    %144 = vector.broadcast %cst_58 : f32 to vector<4x8xf32>
    %145 = arith.subf %35, %144 : vector<4x8xf32>
    %cst_59 = arith.constant 0.399999976 : f32
    %146 = vector.broadcast %cst_59 : f32 to vector<4x8xf32>
    %147 = arith.divf %145, %146 : vector<4x8xf32>
    %148 = arith.mulf %147, %65 : vector<4x8xf32>
    %cst_60 = arith.constant -6.000000e-01 : f32
    %149 = vector.broadcast %cst_60 : f32 to vector<4x8xf32>
    %150 = arith.subf %149, %35 : vector<4x8xf32>
    %cst_61 = arith.constant 0.399999976 : f32
    %151 = vector.broadcast %cst_61 : f32 to vector<4x8xf32>
    %152 = arith.divf %150, %151 : vector<4x8xf32>
    %153 = arith.mulf %152, %72 : vector<4x8xf32>
    %154 = arith.addf %148, %153 : vector<4x8xf32>
    %cst_62 = arith.constant -1.000000e+00 : f32
    %155 = vector.broadcast %cst_62 : f32 to vector<4x8xf32>
    %156 = arith.subf %35, %155 : vector<4x8xf32>
    %cst_63 = arith.constant 0.399999976 : f32
    %157 = vector.broadcast %cst_63 : f32 to vector<4x8xf32>
    %158 = arith.divf %156, %157 : vector<4x8xf32>
    %159 = arith.mulf %158, %72 : vector<4x8xf32>
    %cst_64 = arith.constant -2.000000e-01 : f32
    %160 = vector.broadcast %cst_64 : f32 to vector<4x8xf32>
    %161 = arith.subf %160, %35 : vector<4x8xf32>
    %cst_65 = arith.constant 0.400000036 : f32
    %162 = vector.broadcast %cst_65 : f32 to vector<4x8xf32>
    %163 = arith.divf %161, %162 : vector<4x8xf32>
    %164 = arith.mulf %163, %79 : vector<4x8xf32>
    %165 = arith.addf %159, %164 : vector<4x8xf32>
    %cst_66 = arith.constant -6.000000e-01 : f32
    %166 = vector.broadcast %cst_66 : f32 to vector<4x8xf32>
    %167 = arith.subf %35, %166 : vector<4x8xf32>
    %cst_67 = arith.constant 0.400000036 : f32
    %168 = vector.broadcast %cst_67 : f32 to vector<4x8xf32>
    %169 = arith.divf %167, %168 : vector<4x8xf32>
    %170 = arith.mulf %169, %79 : vector<4x8xf32>
    %cst_68 = arith.constant 2.000000e-01 : f32
    %171 = vector.broadcast %cst_68 : f32 to vector<4x8xf32>
    %172 = arith.subf %171, %35 : vector<4x8xf32>
    %cst_69 = arith.constant 4.000000e-01 : f32
    %173 = vector.broadcast %cst_69 : f32 to vector<4x8xf32>
    %174 = arith.divf %172, %173 : vector<4x8xf32>
    %175 = arith.mulf %174, %86 : vector<4x8xf32>
    %176 = arith.addf %170, %175 : vector<4x8xf32>
    %cst_70 = arith.constant -2.000000e-01 : f32
    %177 = vector.broadcast %cst_70 : f32 to vector<4x8xf32>
    %178 = arith.subf %35, %177 : vector<4x8xf32>
    %cst_71 = arith.constant 4.000000e-01 : f32
    %179 = vector.broadcast %cst_71 : f32 to vector<4x8xf32>
    %180 = arith.divf %178, %179 : vector<4x8xf32>
    %181 = arith.mulf %180, %86 : vector<4x8xf32>
    %cst_72 = arith.constant 6.000000e-01 : f32
    %182 = vector.broadcast %cst_72 : f32 to vector<4x8xf32>
    %183 = arith.subf %182, %35 : vector<4x8xf32>
    %cst_73 = arith.constant 0.400000036 : f32
    %184 = vector.broadcast %cst_73 : f32 to vector<4x8xf32>
    %185 = arith.divf %183, %184 : vector<4x8xf32>
    %186 = arith.mulf %185, %93 : vector<4x8xf32>
    %187 = arith.addf %181, %186 : vector<4x8xf32>
    %cst_74 = arith.constant 2.000000e-01 : f32
    %188 = vector.broadcast %cst_74 : f32 to vector<4x8xf32>
    %189 = arith.subf %35, %188 : vector<4x8xf32>
    %cst_75 = arith.constant 0.400000036 : f32
    %190 = vector.broadcast %cst_75 : f32 to vector<4x8xf32>
    %191 = arith.divf %189, %190 : vector<4x8xf32>
    %192 = arith.mulf %191, %93 : vector<4x8xf32>
    %cst_76 = arith.constant 1.000000e+00 : f32
    %193 = vector.broadcast %cst_76 : f32 to vector<4x8xf32>
    %194 = arith.subf %193, %35 : vector<4x8xf32>
    %cst_77 = arith.constant 0.399999976 : f32
    %195 = vector.broadcast %cst_77 : f32 to vector<4x8xf32>
    %196 = arith.divf %194, %195 : vector<4x8xf32>
    %197 = arith.mulf %196, %100 : vector<4x8xf32>
    %198 = arith.addf %192, %197 : vector<4x8xf32>
    %cst_78 = arith.constant 6.000000e-01 : f32
    %199 = vector.broadcast %cst_78 : f32 to vector<4x8xf32>
    %200 = arith.subf %35, %199 : vector<4x8xf32>
    %cst_79 = arith.constant 0.399999976 : f32
    %201 = vector.broadcast %cst_79 : f32 to vector<4x8xf32>
    %202 = arith.divf %200, %201 : vector<4x8xf32>
    %203 = arith.mulf %202, %100 : vector<4x8xf32>
    %cst_80 = arith.constant 1.400000e+00 : f32
    %204 = vector.broadcast %cst_80 : f32 to vector<4x8xf32>
    %205 = arith.subf %204, %35 : vector<4x8xf32>
    %cst_81 = arith.constant 0.399999976 : f32
    %206 = vector.broadcast %cst_81 : f32 to vector<4x8xf32>
    %207 = arith.divf %205, %206 : vector<4x8xf32>
    %208 = arith.mulf %207, %107 : vector<4x8xf32>
    %209 = arith.addf %203, %208 : vector<4x8xf32>
    %cst_82 = arith.constant 1.000000e+00 : f32
    %210 = vector.broadcast %cst_82 : f32 to vector<4x8xf32>
    %211 = arith.subf %35, %210 : vector<4x8xf32>
    %cst_83 = arith.constant 0.399999976 : f32
    %212 = vector.broadcast %cst_83 : f32 to vector<4x8xf32>
    %213 = arith.divf %211, %212 : vector<4x8xf32>
    %214 = arith.mulf %213, %107 : vector<4x8xf32>
    %cst_84 = arith.constant 1.800000e+00 : f32
    %215 = vector.broadcast %cst_84 : f32 to vector<4x8xf32>
    %216 = arith.subf %215, %35 : vector<4x8xf32>
    %cst_85 = arith.constant 0.399999976 : f32
    %217 = vector.broadcast %cst_85 : f32 to vector<4x8xf32>
    %218 = arith.divf %216, %217 : vector<4x8xf32>
    %219 = arith.mulf %218, %114 : vector<4x8xf32>
    %220 = arith.addf %214, %219 : vector<4x8xf32>
    %cst_86 = arith.constant 1.400000e+00 : f32
    %221 = vector.broadcast %cst_86 : f32 to vector<4x8xf32>
    %222 = arith.subf %35, %221 : vector<4x8xf32>
    %cst_87 = arith.constant 0.399999976 : f32
    %223 = vector.broadcast %cst_87 : f32 to vector<4x8xf32>
    %224 = arith.divf %222, %223 : vector<4x8xf32>
    %225 = arith.mulf %224, %114 : vector<4x8xf32>
    %cst_88 = arith.constant 2.200000e+00 : f32
    %226 = vector.broadcast %cst_88 : f32 to vector<4x8xf32>
    %227 = arith.subf %226, %35 : vector<4x8xf32>
    %cst_89 = arith.constant 0.400000095 : f32
    %228 = vector.broadcast %cst_89 : f32 to vector<4x8xf32>
    %229 = arith.divf %227, %228 : vector<4x8xf32>
    %230 = arith.mulf %229, %121 : vector<4x8xf32>
    %231 = arith.addf %225, %230 : vector<4x8xf32>
    %cst_90 = arith.constant -2.200000e+00 : f32
    %232 = vector.broadcast %cst_90 : f32 to vector<4x8xf32>
    %233 = arith.subf %35, %232 : vector<4x8xf32>
    %cst_91 = arith.constant 0.800000071 : f32
    %234 = vector.broadcast %cst_91 : f32 to vector<4x8xf32>
    %235 = arith.divf %233, %234 : vector<4x8xf32>
    %236 = arith.mulf %235, %132 : vector<4x8xf32>
    %cst_92 = arith.constant -1.000000e+00 : f32
    %237 = vector.broadcast %cst_92 : f32 to vector<4x8xf32>
    %238 = arith.subf %237, %35 : vector<4x8xf32>
    %cst_93 = arith.constant 0.799999952 : f32
    %239 = vector.broadcast %cst_93 : f32 to vector<4x8xf32>
    %240 = arith.divf %238, %239 : vector<4x8xf32>
    %241 = arith.mulf %240, %143 : vector<4x8xf32>
    %242 = arith.addf %236, %241 : vector<4x8xf32>
    %cst_94 = arith.constant -1.800000e+00 : f32
    %243 = vector.broadcast %cst_94 : f32 to vector<4x8xf32>
    %244 = arith.subf %35, %243 : vector<4x8xf32>
    %cst_95 = arith.constant 0.799999952 : f32
    %245 = vector.broadcast %cst_95 : f32 to vector<4x8xf32>
    %246 = arith.divf %244, %245 : vector<4x8xf32>
    %247 = arith.mulf %246, %143 : vector<4x8xf32>
    %cst_96 = arith.constant -6.000000e-01 : f32
    %248 = vector.broadcast %cst_96 : f32 to vector<4x8xf32>
    %249 = arith.subf %248, %35 : vector<4x8xf32>
    %cst_97 = arith.constant 0.799999952 : f32
    %250 = vector.broadcast %cst_97 : f32 to vector<4x8xf32>
    %251 = arith.divf %249, %250 : vector<4x8xf32>
    %252 = arith.mulf %251, %154 : vector<4x8xf32>
    %253 = arith.addf %247, %252 : vector<4x8xf32>
    %cst_98 = arith.constant -1.400000e+00 : f32
    %254 = vector.broadcast %cst_98 : f32 to vector<4x8xf32>
    %255 = arith.subf %35, %254 : vector<4x8xf32>
    %cst_99 = arith.constant 0.799999952 : f32
    %256 = vector.broadcast %cst_99 : f32 to vector<4x8xf32>
    %257 = arith.divf %255, %256 : vector<4x8xf32>
    %258 = arith.mulf %257, %154 : vector<4x8xf32>
    %cst_100 = arith.constant -2.000000e-01 : f32
    %259 = vector.broadcast %cst_100 : f32 to vector<4x8xf32>
    %260 = arith.subf %259, %35 : vector<4x8xf32>
    %cst_101 = arith.constant 8.000000e-01 : f32
    %261 = vector.broadcast %cst_101 : f32 to vector<4x8xf32>
    %262 = arith.divf %260, %261 : vector<4x8xf32>
    %263 = arith.mulf %262, %165 : vector<4x8xf32>
    %264 = arith.addf %258, %263 : vector<4x8xf32>
    %cst_102 = arith.constant -1.000000e+00 : f32
    %265 = vector.broadcast %cst_102 : f32 to vector<4x8xf32>
    %266 = arith.subf %35, %265 : vector<4x8xf32>
    %cst_103 = arith.constant 8.000000e-01 : f32
    %267 = vector.broadcast %cst_103 : f32 to vector<4x8xf32>
    %268 = arith.divf %266, %267 : vector<4x8xf32>
    %269 = arith.mulf %268, %165 : vector<4x8xf32>
    %cst_104 = arith.constant 2.000000e-01 : f32
    %270 = vector.broadcast %cst_104 : f32 to vector<4x8xf32>
    %271 = arith.subf %270, %35 : vector<4x8xf32>
    %cst_105 = arith.constant 8.000000e-01 : f32
    %272 = vector.broadcast %cst_105 : f32 to vector<4x8xf32>
    %273 = arith.divf %271, %272 : vector<4x8xf32>
    %274 = arith.mulf %273, %176 : vector<4x8xf32>
    %275 = arith.addf %269, %274 : vector<4x8xf32>
    %cst_106 = arith.constant -6.000000e-01 : f32
    %276 = vector.broadcast %cst_106 : f32 to vector<4x8xf32>
    %277 = arith.subf %35, %276 : vector<4x8xf32>
    %cst_107 = arith.constant 8.000000e-01 : f32
    %278 = vector.broadcast %cst_107 : f32 to vector<4x8xf32>
    %279 = arith.divf %277, %278 : vector<4x8xf32>
    %280 = arith.mulf %279, %176 : vector<4x8xf32>
    %cst_108 = arith.constant 6.000000e-01 : f32
    %281 = vector.broadcast %cst_108 : f32 to vector<4x8xf32>
    %282 = arith.subf %281, %35 : vector<4x8xf32>
    %cst_109 = arith.constant 8.000000e-01 : f32
    %283 = vector.broadcast %cst_109 : f32 to vector<4x8xf32>
    %284 = arith.divf %282, %283 : vector<4x8xf32>
    %285 = arith.mulf %284, %187 : vector<4x8xf32>
    %286 = arith.addf %280, %285 : vector<4x8xf32>
    %cst_110 = arith.constant -2.000000e-01 : f32
    %287 = vector.broadcast %cst_110 : f32 to vector<4x8xf32>
    %288 = arith.subf %35, %287 : vector<4x8xf32>
    %cst_111 = arith.constant 8.000000e-01 : f32
    %289 = vector.broadcast %cst_111 : f32 to vector<4x8xf32>
    %290 = arith.divf %288, %289 : vector<4x8xf32>
    %291 = arith.mulf %290, %187 : vector<4x8xf32>
    %cst_112 = arith.constant 1.000000e+00 : f32
    %292 = vector.broadcast %cst_112 : f32 to vector<4x8xf32>
    %293 = arith.subf %292, %35 : vector<4x8xf32>
    %cst_113 = arith.constant 8.000000e-01 : f32
    %294 = vector.broadcast %cst_113 : f32 to vector<4x8xf32>
    %295 = arith.divf %293, %294 : vector<4x8xf32>
    %296 = arith.mulf %295, %198 : vector<4x8xf32>
    %297 = arith.addf %291, %296 : vector<4x8xf32>
    %cst_114 = arith.constant 2.000000e-01 : f32
    %298 = vector.broadcast %cst_114 : f32 to vector<4x8xf32>
    %299 = arith.subf %35, %298 : vector<4x8xf32>
    %cst_115 = arith.constant 8.000000e-01 : f32
    %300 = vector.broadcast %cst_115 : f32 to vector<4x8xf32>
    %301 = arith.divf %299, %300 : vector<4x8xf32>
    %302 = arith.mulf %301, %198 : vector<4x8xf32>
    %cst_116 = arith.constant 1.400000e+00 : f32
    %303 = vector.broadcast %cst_116 : f32 to vector<4x8xf32>
    %304 = arith.subf %303, %35 : vector<4x8xf32>
    %cst_117 = arith.constant 0.799999952 : f32
    %305 = vector.broadcast %cst_117 : f32 to vector<4x8xf32>
    %306 = arith.divf %304, %305 : vector<4x8xf32>
    %307 = arith.mulf %306, %209 : vector<4x8xf32>
    %308 = arith.addf %302, %307 : vector<4x8xf32>
    %cst_118 = arith.constant 6.000000e-01 : f32
    %309 = vector.broadcast %cst_118 : f32 to vector<4x8xf32>
    %310 = arith.subf %35, %309 : vector<4x8xf32>
    %cst_119 = arith.constant 0.799999952 : f32
    %311 = vector.broadcast %cst_119 : f32 to vector<4x8xf32>
    %312 = arith.divf %310, %311 : vector<4x8xf32>
    %313 = arith.mulf %312, %209 : vector<4x8xf32>
    %cst_120 = arith.constant 1.800000e+00 : f32
    %314 = vector.broadcast %cst_120 : f32 to vector<4x8xf32>
    %315 = arith.subf %314, %35 : vector<4x8xf32>
    %cst_121 = arith.constant 0.799999952 : f32
    %316 = vector.broadcast %cst_121 : f32 to vector<4x8xf32>
    %317 = arith.divf %315, %316 : vector<4x8xf32>
    %318 = arith.mulf %317, %220 : vector<4x8xf32>
    %319 = arith.addf %313, %318 : vector<4x8xf32>
    %cst_122 = arith.constant 1.000000e+00 : f32
    %320 = vector.broadcast %cst_122 : f32 to vector<4x8xf32>
    %321 = arith.subf %35, %320 : vector<4x8xf32>
    %cst_123 = arith.constant 0.799999952 : f32
    %322 = vector.broadcast %cst_123 : f32 to vector<4x8xf32>
    %323 = arith.divf %321, %322 : vector<4x8xf32>
    %324 = arith.mulf %323, %220 : vector<4x8xf32>
    %cst_124 = arith.constant 2.200000e+00 : f32
    %325 = vector.broadcast %cst_124 : f32 to vector<4x8xf32>
    %326 = arith.subf %325, %35 : vector<4x8xf32>
    %cst_125 = arith.constant 0.800000071 : f32
    %327 = vector.broadcast %cst_125 : f32 to vector<4x8xf32>
    %328 = arith.divf %326, %327 : vector<4x8xf32>
    %329 = arith.mulf %328, %231 : vector<4x8xf32>
    %330 = arith.addf %324, %329 : vector<4x8xf32>
    %cst_126 = arith.constant -2.200000e+00 : f32
    %331 = vector.broadcast %cst_126 : f32 to vector<4x8xf32>
    %332 = arith.subf %35, %331 : vector<4x8xf32>
    %cst_127 = arith.constant 1.200000e+00 : f32
    %333 = vector.broadcast %cst_127 : f32 to vector<4x8xf32>
    %334 = arith.divf %332, %333 : vector<4x8xf32>
    %335 = arith.mulf %334, %242 : vector<4x8xf32>
    %cst_128 = arith.constant -6.000000e-01 : f32
    %336 = vector.broadcast %cst_128 : f32 to vector<4x8xf32>
    %337 = arith.subf %336, %35 : vector<4x8xf32>
    %cst_129 = arith.constant 1.19999993 : f32
    %338 = vector.broadcast %cst_129 : f32 to vector<4x8xf32>
    %339 = arith.divf %337, %338 : vector<4x8xf32>
    %340 = arith.mulf %339, %253 : vector<4x8xf32>
    %341 = arith.addf %335, %340 : vector<4x8xf32>
    %cst_130 = arith.constant -1.800000e+00 : f32
    %342 = vector.broadcast %cst_130 : f32 to vector<4x8xf32>
    %343 = arith.subf %35, %342 : vector<4x8xf32>
    %cst_131 = arith.constant 1.19999993 : f32
    %344 = vector.broadcast %cst_131 : f32 to vector<4x8xf32>
    %345 = arith.divf %343, %344 : vector<4x8xf32>
    %346 = arith.mulf %345, %253 : vector<4x8xf32>
    %cst_132 = arith.constant -2.000000e-01 : f32
    %347 = vector.broadcast %cst_132 : f32 to vector<4x8xf32>
    %348 = arith.subf %347, %35 : vector<4x8xf32>
    %cst_133 = arith.constant 1.19999993 : f32
    %349 = vector.broadcast %cst_133 : f32 to vector<4x8xf32>
    %350 = arith.divf %348, %349 : vector<4x8xf32>
    %351 = arith.mulf %350, %264 : vector<4x8xf32>
    %352 = arith.addf %346, %351 : vector<4x8xf32>
    %cst_134 = arith.constant -1.400000e+00 : f32
    %353 = vector.broadcast %cst_134 : f32 to vector<4x8xf32>
    %354 = arith.subf %35, %353 : vector<4x8xf32>
    %cst_135 = arith.constant 1.19999993 : f32
    %355 = vector.broadcast %cst_135 : f32 to vector<4x8xf32>
    %356 = arith.divf %354, %355 : vector<4x8xf32>
    %357 = arith.mulf %356, %264 : vector<4x8xf32>
    %cst_136 = arith.constant 2.000000e-01 : f32
    %358 = vector.broadcast %cst_136 : f32 to vector<4x8xf32>
    %359 = arith.subf %358, %35 : vector<4x8xf32>
    %cst_137 = arith.constant 1.200000e+00 : f32
    %360 = vector.broadcast %cst_137 : f32 to vector<4x8xf32>
    %361 = arith.divf %359, %360 : vector<4x8xf32>
    %362 = arith.mulf %361, %275 : vector<4x8xf32>
    %363 = arith.addf %357, %362 : vector<4x8xf32>
    %cst_138 = arith.constant -1.000000e+00 : f32
    %364 = vector.broadcast %cst_138 : f32 to vector<4x8xf32>
    %365 = arith.subf %35, %364 : vector<4x8xf32>
    %cst_139 = arith.constant 1.200000e+00 : f32
    %366 = vector.broadcast %cst_139 : f32 to vector<4x8xf32>
    %367 = arith.divf %365, %366 : vector<4x8xf32>
    %368 = arith.mulf %367, %275 : vector<4x8xf32>
    %cst_140 = arith.constant 6.000000e-01 : f32
    %369 = vector.broadcast %cst_140 : f32 to vector<4x8xf32>
    %370 = arith.subf %369, %35 : vector<4x8xf32>
    %cst_141 = arith.constant 1.200000e+00 : f32
    %371 = vector.broadcast %cst_141 : f32 to vector<4x8xf32>
    %372 = arith.divf %370, %371 : vector<4x8xf32>
    %373 = arith.mulf %372, %286 : vector<4x8xf32>
    %374 = arith.addf %368, %373 : vector<4x8xf32>
    %cst_142 = arith.constant -6.000000e-01 : f32
    %375 = vector.broadcast %cst_142 : f32 to vector<4x8xf32>
    %376 = arith.subf %35, %375 : vector<4x8xf32>
    %cst_143 = arith.constant 1.200000e+00 : f32
    %377 = vector.broadcast %cst_143 : f32 to vector<4x8xf32>
    %378 = arith.divf %376, %377 : vector<4x8xf32>
    %379 = arith.mulf %378, %286 : vector<4x8xf32>
    %cst_144 = arith.constant 1.000000e+00 : f32
    %380 = vector.broadcast %cst_144 : f32 to vector<4x8xf32>
    %381 = arith.subf %380, %35 : vector<4x8xf32>
    %cst_145 = arith.constant 1.200000e+00 : f32
    %382 = vector.broadcast %cst_145 : f32 to vector<4x8xf32>
    %383 = arith.divf %381, %382 : vector<4x8xf32>
    %384 = arith.mulf %383, %297 : vector<4x8xf32>
    %385 = arith.addf %379, %384 : vector<4x8xf32>
    %cst_146 = arith.constant -2.000000e-01 : f32
    %386 = vector.broadcast %cst_146 : f32 to vector<4x8xf32>
    %387 = arith.subf %35, %386 : vector<4x8xf32>
    %cst_147 = arith.constant 1.200000e+00 : f32
    %388 = vector.broadcast %cst_147 : f32 to vector<4x8xf32>
    %389 = arith.divf %387, %388 : vector<4x8xf32>
    %390 = arith.mulf %389, %297 : vector<4x8xf32>
    %cst_148 = arith.constant 1.400000e+00 : f32
    %391 = vector.broadcast %cst_148 : f32 to vector<4x8xf32>
    %392 = arith.subf %391, %35 : vector<4x8xf32>
    %cst_149 = arith.constant 1.19999993 : f32
    %393 = vector.broadcast %cst_149 : f32 to vector<4x8xf32>
    %394 = arith.divf %392, %393 : vector<4x8xf32>
    %395 = arith.mulf %394, %308 : vector<4x8xf32>
    %396 = arith.addf %390, %395 : vector<4x8xf32>
    %cst_150 = arith.constant 2.000000e-01 : f32
    %397 = vector.broadcast %cst_150 : f32 to vector<4x8xf32>
    %398 = arith.subf %35, %397 : vector<4x8xf32>
    %cst_151 = arith.constant 1.19999993 : f32
    %399 = vector.broadcast %cst_151 : f32 to vector<4x8xf32>
    %400 = arith.divf %398, %399 : vector<4x8xf32>
    %401 = arith.mulf %400, %308 : vector<4x8xf32>
    %cst_152 = arith.constant 1.800000e+00 : f32
    %402 = vector.broadcast %cst_152 : f32 to vector<4x8xf32>
    %403 = arith.subf %402, %35 : vector<4x8xf32>
    %cst_153 = arith.constant 1.19999993 : f32
    %404 = vector.broadcast %cst_153 : f32 to vector<4x8xf32>
    %405 = arith.divf %403, %404 : vector<4x8xf32>
    %406 = arith.mulf %405, %319 : vector<4x8xf32>
    %407 = arith.addf %401, %406 : vector<4x8xf32>
    %cst_154 = arith.constant 6.000000e-01 : f32
    %408 = vector.broadcast %cst_154 : f32 to vector<4x8xf32>
    %409 = arith.subf %35, %408 : vector<4x8xf32>
    %cst_155 = arith.constant 1.19999993 : f32
    %410 = vector.broadcast %cst_155 : f32 to vector<4x8xf32>
    %411 = arith.divf %409, %410 : vector<4x8xf32>
    %412 = arith.mulf %411, %319 : vector<4x8xf32>
    %cst_156 = arith.constant 2.200000e+00 : f32
    %413 = vector.broadcast %cst_156 : f32 to vector<4x8xf32>
    %414 = arith.subf %413, %35 : vector<4x8xf32>
    %cst_157 = arith.constant 1.200000e+00 : f32
    %415 = vector.broadcast %cst_157 : f32 to vector<4x8xf32>
    %416 = arith.divf %414, %415 : vector<4x8xf32>
    %417 = arith.mulf %416, %330 : vector<4x8xf32>
    %418 = arith.addf %412, %417 : vector<4x8xf32>
    %c0_158 = arith.constant 0 : index
    %c8 = arith.constant 8 : index
    %419 = vector.load %arg11[%c0_158, %c8] : memref<4x288xf32, #tpu.memory_space<vmem>>, vector<4x8xf32>
    tpu.vector_store %arg11[%c0_158, %c8], %341 {strides = array<i32>} : memref<4x288xf32, #tpu.memory_space<vmem>>, vector<4x8xf32>,
    %c0_159 = arith.constant 0 : index
    %c16 = arith.constant 16 : index
    %420 = vector.load %arg11[%c0_159, %c16] : memref<4x288xf32, #tpu.memory_space<vmem>>, vector<4x8xf32>
    tpu.vector_store %arg11[%c0_159, %c16], %352 {strides = array<i32>} : memref<4x288xf32, #tpu.memory_space<vmem>>, vector<4x8xf32>,
    %c0_160 = arith.constant 0 : index
    %c24 = arith.constant 24 : index
    %421 = vector.load %arg11[%c0_160, %c24] : memref<4x288xf32, #tpu.memory_space<vmem>>, vector<4x8xf32>
    tpu.vector_store %arg11[%c0_160, %c24], %363 {strides = array<i32>} : memref<4x288xf32, #tpu.memory_space<vmem>>, vector<4x8xf32>,
    %c0_161 = arith.constant 0 : index
    %c32 = arith.constant 32 : index
    %422 = vector.load %arg11[%c0_161, %c32] : memref<4x288xf32, #tpu.memory_space<vmem>>, vector<4x8xf32>
    tpu.vector_store %arg11[%c0_161, %c32], %374 {strides = array<i32>} : memref<4x288xf32, #tpu.memory_space<vmem>>, vector<4x8xf32>,
    %c0_162 = arith.constant 0 : index
    %c40 = arith.constant 40 : index
    %423 = vector.load %arg11[%c0_162, %c40] : memref<4x288xf32, #tpu.memory_space<vmem>>, vector<4x8xf32>
    tpu.vector_store %arg11[%c0_162, %c40], %385 {strides = array<i32>} : memref<4x288xf32, #tpu.memory_space<vmem>>, vector<4x8xf32>,
    %c0_163 = arith.constant 0 : index
    %c48 = arith.constant 48 : index
    %424 = vector.load %arg11[%c0_163, %c48] : memref<4x288xf32, #tpu.memory_space<vmem>>, vector<4x8xf32>
    tpu.vector_store %arg11[%c0_163, %c48], %396 {strides = array<i32>} : memref<4x288xf32, #tpu.memory_space<vmem>>, vector<4x8xf32>,
    %c0_164 = arith.constant 0 : index
    %c56 = arith.constant 56 : index
    %425 = vector.load %arg11[%c0_164, %c56] : memref<4x288xf32, #tpu.memory_space<vmem>>, vector<4x8xf32>
    tpu.vector_store %arg11[%c0_164, %c56], %407 {strides = array<i32>} : memref<4x288xf32, #tpu.memory_space<vmem>>, vector<4x8xf32>,
    %c0_165 = arith.constant 0 : index
    %c64 = arith.constant 64 : index
    %426 = vector.load %arg11[%c0_165, %c64] : memref<4x288xf32, #tpu.memory_space<vmem>>, vector<4x8xf32>
    tpu.vector_store %arg11[%c0_165, %c64], %418 {strides = array<i32>} : memref<4x288xf32, #tpu.memory_space<vmem>>, vector<4x8xf32>,
    %c0_166 = arith.constant 0 : index
    %c0_167 = arith.constant 0 : index
    %427 = vector.load %arg11[%c0_166, %c0_167] : memref<4x288xf32, #tpu.memory_space<vmem>>, vector<4x72xf32>
    %c0_168 = arith.constant 0 : index
    %c0_169 = arith.constant 0 : index
    %428 = vector.load %arg3[%c0_168, %c0_169] : memref<72x32xf32, #tpu.memory_space<vmem>>, vector<72x32xf32>
    %cst_170 = arith.constant dense<0.000000e+00> : vector<4x32xf32>
    %429 = tpu.matmul %427, %428, %cst_170 {dimension_numbers = #tpu.dot_dimension_numbers<[1], [0], [0], [1], [0, 0, 1, 1], [], []>} : vector<4x72xf32>, vector<72x32xf32>, vector<4x32xf32> -> vector<4x32xf32>
    %cst_171 = arith.constant 0.000000e+00 : f32
    %430 = vector.broadcast %cst_171 : f32 to vector<4x32xf32>
    %431 = arith.subf %430, %429 : vector<4x32xf32>
    %432 = math.exp %431 : vector<4x32xf32>
    %cst_172 = arith.constant 1.000000e+00 : f32
    %433 = vector.broadcast %cst_172 : f32 to vector<4x32xf32>
    %434 = arith.addf %433, %432 : vector<4x32xf32>
    %cst_173 = arith.constant 1.000000e+00 : f32
    %435 = vector.broadcast %cst_173 : f32 to vector<4x32xf32>
    %436 = arith.divf %435, %434 : vector<4x32xf32>
    %437 = arith.mulf %429, %436 : vector<4x32xf32>
    %c0_174 = arith.constant 0 : index
    %c0_175 = arith.constant 0 : index
    %438 = vector.load %arg11[%c0_174, %c0_175] : memref<4x288xf32, #tpu.memory_space<vmem>>, vector<4x32xf32>
    tpu.vector_store %arg11[%c0_174, %c0_175], %437 {strides = array<i32>} : memref<4x288xf32, #tpu.memory_space<vmem>>, vector<4x32xf32>,
    %cst_176 = arith.constant -2.200000e+00 : f32
    %439 = vector.broadcast %cst_176 : f32 to vector<4x32xf32>
    %440 = arith.cmpf oge, %429, %439 : vector<4x32xf32>
    %cst_177 = arith.constant -1.800000e+00 : f32
    %441 = vector.broadcast %cst_177 : f32 to vector<4x32xf32>
    %442 = arith.cmpf olt, %429, %441 : vector<4x32xf32>
    %443 = arith.andi %440, %442 : vector<4x32xi1>
    %444 = arith.extui %443 : vector<4x32xi1> to vector<4x32xi32>
    %445 = arith.sitofp %444 : vector<4x32xi32> to vector<4x32xf32>
    %cst_178 = arith.constant -1.800000e+00 : f32
    %446 = vector.broadcast %cst_178 : f32 to vector<4x32xf32>
    %447 = arith.cmpf oge, %429, %446 : vector<4x32xf32>
    %cst_179 = arith.constant -1.400000e+00 : f32
    %448 = vector.broadcast %cst_179 : f32 to vector<4x32xf32>
    %449 = arith.cmpf olt, %429, %448 : vector<4x32xf32>
    %450 = arith.andi %447, %449 : vector<4x32xi1>
    %451 = arith.extui %450 : vector<4x32xi1> to vector<4x32xi32>
    %452 = arith.sitofp %451 : vector<4x32xi32> to vector<4x32xf32>
    %cst_180 = arith.constant -1.400000e+00 : f32
    %453 = vector.broadcast %cst_180 : f32 to vector<4x32xf32>
    %454 = arith.cmpf oge, %429, %453 : vector<4x32xf32>
    %cst_181 = arith.constant -1.000000e+00 : f32
    %455 = vector.broadcast %cst_181 : f32 to vector<4x32xf32>
    %456 = arith.cmpf olt, %429, %455 : vector<4x32xf32>
    %457 = arith.andi %454, %456 : vector<4x32xi1>
    %458 = arith.extui %457 : vector<4x32xi1> to vector<4x32xi32>
    %459 = arith.sitofp %458 : vector<4x32xi32> to vector<4x32xf32>
    %cst_182 = arith.constant -1.000000e+00 : f32
    %460 = vector.broadcast %cst_182 : f32 to vector<4x32xf32>
    %461 = arith.cmpf oge, %429, %460 : vector<4x32xf32>
    %cst_183 = arith.constant -6.000000e-01 : f32
    %462 = vector.broadcast %cst_183 : f32 to vector<4x32xf32>
    %463 = arith.cmpf olt, %429, %462 : vector<4x32xf32>
    %464 = arith.andi %461, %463 : vector<4x32xi1>
    %465 = arith.extui %464 : vector<4x32xi1> to vector<4x32xi32>
    %466 = arith.sitofp %465 : vector<4x32xi32> to vector<4x32xf32>
    %cst_184 = arith.constant -6.000000e-01 : f32
    %467 = vector.broadcast %cst_184 : f32 to vector<4x32xf32>
    %468 = arith.cmpf oge, %429, %467 : vector<4x32xf32>
    %cst_185 = arith.constant -2.000000e-01 : f32
    %469 = vector.broadcast %cst_185 : f32 to vector<4x32xf32>
    %470 = arith.cmpf olt, %429, %469 : vector<4x32xf32>
    %471 = arith.andi %468, %470 : vector<4x32xi1>
    %472 = arith.extui %471 : vector<4x32xi1> to vector<4x32xi32>
    %473 = arith.sitofp %472 : vector<4x32xi32> to vector<4x32xf32>
    %cst_186 = arith.constant -2.000000e-01 : f32
    %474 = vector.broadcast %cst_186 : f32 to vector<4x32xf32>
    %475 = arith.cmpf oge, %429, %474 : vector<4x32xf32>
    %cst_187 = arith.constant 2.000000e-01 : f32
    %476 = vector.broadcast %cst_187 : f32 to vector<4x32xf32>
    %477 = arith.cmpf olt, %429, %476 : vector<4x32xf32>
    %478 = arith.andi %475, %477 : vector<4x32xi1>
    %479 = arith.extui %478 : vector<4x32xi1> to vector<4x32xi32>
    %480 = arith.sitofp %479 : vector<4x32xi32> to vector<4x32xf32>
    %cst_188 = arith.constant 2.000000e-01 : f32
    %481 = vector.broadcast %cst_188 : f32 to vector<4x32xf32>
    %482 = arith.cmpf oge, %429, %481 : vector<4x32xf32>
    %cst_189 = arith.constant 6.000000e-01 : f32
    %483 = vector.broadcast %cst_189 : f32 to vector<4x32xf32>
    %484 = arith.cmpf olt, %429, %483 : vector<4x32xf32>
    %485 = arith.andi %482, %484 : vector<4x32xi1>
    %486 = arith.extui %485 : vector<4x32xi1> to vector<4x32xi32>
    %487 = arith.sitofp %486 : vector<4x32xi32> to vector<4x32xf32>
    %cst_190 = arith.constant 6.000000e-01 : f32
    %488 = vector.broadcast %cst_190 : f32 to vector<4x32xf32>
    %489 = arith.cmpf oge, %429, %488 : vector<4x32xf32>
    %cst_191 = arith.constant 1.000000e+00 : f32
    %490 = vector.broadcast %cst_191 : f32 to vector<4x32xf32>
    %491 = arith.cmpf olt, %429, %490 : vector<4x32xf32>
    %492 = arith.andi %489, %491 : vector<4x32xi1>
    %493 = arith.extui %492 : vector<4x32xi1> to vector<4x32xi32>
    %494 = arith.sitofp %493 : vector<4x32xi32> to vector<4x32xf32>
    %cst_192 = arith.constant 1.000000e+00 : f32
    %495 = vector.broadcast %cst_192 : f32 to vector<4x32xf32>
    %496 = arith.cmpf oge, %429, %495 : vector<4x32xf32>
    %cst_193 = arith.constant 1.400000e+00 : f32
    %497 = vector.broadcast %cst_193 : f32 to vector<4x32xf32>
    %498 = arith.cmpf olt, %429, %497 : vector<4x32xf32>
    %499 = arith.andi %496, %498 : vector<4x32xi1>
    %500 = arith.extui %499 : vector<4x32xi1> to vector<4x32xi32>
    %501 = arith.sitofp %500 : vector<4x32xi32> to vector<4x32xf32>
    %cst_194 = arith.constant 1.400000e+00 : f32
    %502 = vector.broadcast %cst_194 : f32 to vector<4x32xf32>
    %503 = arith.cmpf oge, %429, %502 : vector<4x32xf32>
    %cst_195 = arith.constant 1.800000e+00 : f32
    %504 = vector.broadcast %cst_195 : f32 to vector<4x32xf32>
    %505 = arith.cmpf olt, %429, %504 : vector<4x32xf32>
    %506 = arith.andi %503, %505 : vector<4x32xi1>
    %507 = arith.extui %506 : vector<4x32xi1> to vector<4x32xi32>
    %508 = arith.sitofp %507 : vector<4x32xi32> to vector<4x32xf32>
    %cst_196 = arith.constant 1.800000e+00 : f32
    %509 = vector.broadcast %cst_196 : f32 to vector<4x32xf32>
    %510 = arith.cmpf oge, %429, %509 : vector<4x32xf32>
    %cst_197 = arith.constant 2.200000e+00 : f32
    %511 = vector.broadcast %cst_197 : f32 to vector<4x32xf32>
    %512 = arith.cmpf olt, %429, %511 : vector<4x32xf32>
    %513 = arith.andi %510, %512 : vector<4x32xi1>
    %514 = arith.extui %513 : vector<4x32xi1> to vector<4x32xi32>
    %515 = arith.sitofp %514 : vector<4x32xi32> to vector<4x32xf32>
    %cst_198 = arith.constant -2.200000e+00 : f32
    %516 = vector.broadcast %cst_198 : f32 to vector<4x32xf32>
    %517 = arith.subf %429, %516 : vector<4x32xf32>
    %cst_199 = arith.constant 0.400000095 : f32
    %518 = vector.broadcast %cst_199 : f32 to vector<4x32xf32>
    %519 = arith.divf %517, %518 : vector<4x32xf32>
    %520 = arith.mulf %519, %445 : vector<4x32xf32>
    %cst_200 = arith.constant -1.400000e+00 : f32
    %521 = vector.broadcast %cst_200 : f32 to vector<4x32xf32>
    %522 = arith.subf %521, %429 : vector<4x32xf32>
    %cst_201 = arith.constant 0.399999976 : f32
    %523 = vector.broadcast %cst_201 : f32 to vector<4x32xf32>
    %524 = arith.divf %522, %523 : vector<4x32xf32>
    %525 = arith.mulf %524, %452 : vector<4x32xf32>
    %526 = arith.addf %520, %525 : vector<4x32xf32>
    %cst_202 = arith.constant -1.800000e+00 : f32
    %527 = vector.broadcast %cst_202 : f32 to vector<4x32xf32>
    %528 = arith.subf %429, %527 : vector<4x32xf32>
    %cst_203 = arith.constant 0.399999976 : f32
    %529 = vector.broadcast %cst_203 : f32 to vector<4x32xf32>
    %530 = arith.divf %528, %529 : vector<4x32xf32>
    %531 = arith.mulf %530, %452 : vector<4x32xf32>
    %cst_204 = arith.constant -1.000000e+00 : f32
    %532 = vector.broadcast %cst_204 : f32 to vector<4x32xf32>
    %533 = arith.subf %532, %429 : vector<4x32xf32>
    %cst_205 = arith.constant 0.399999976 : f32
    %534 = vector.broadcast %cst_205 : f32 to vector<4x32xf32>
    %535 = arith.divf %533, %534 : vector<4x32xf32>
    %536 = arith.mulf %535, %459 : vector<4x32xf32>
    %537 = arith.addf %531, %536 : vector<4x32xf32>
    %cst_206 = arith.constant -1.400000e+00 : f32
    %538 = vector.broadcast %cst_206 : f32 to vector<4x32xf32>
    %539 = arith.subf %429, %538 : vector<4x32xf32>
    %cst_207 = arith.constant 0.399999976 : f32
    %540 = vector.broadcast %cst_207 : f32 to vector<4x32xf32>
    %541 = arith.divf %539, %540 : vector<4x32xf32>
    %542 = arith.mulf %541, %459 : vector<4x32xf32>
    %cst_208 = arith.constant -6.000000e-01 : f32
    %543 = vector.broadcast %cst_208 : f32 to vector<4x32xf32>
    %544 = arith.subf %543, %429 : vector<4x32xf32>
    %cst_209 = arith.constant 0.399999976 : f32
    %545 = vector.broadcast %cst_209 : f32 to vector<4x32xf32>
    %546 = arith.divf %544, %545 : vector<4x32xf32>
    %547 = arith.mulf %546, %466 : vector<4x32xf32>
    %548 = arith.addf %542, %547 : vector<4x32xf32>
    %cst_210 = arith.constant -1.000000e+00 : f32
    %549 = vector.broadcast %cst_210 : f32 to vector<4x32xf32>
    %550 = arith.subf %429, %549 : vector<4x32xf32>
    %cst_211 = arith.constant 0.399999976 : f32
    %551 = vector.broadcast %cst_211 : f32 to vector<4x32xf32>
    %552 = arith.divf %550, %551 : vector<4x32xf32>
    %553 = arith.mulf %552, %466 : vector<4x32xf32>
    %cst_212 = arith.constant -2.000000e-01 : f32
    %554 = vector.broadcast %cst_212 : f32 to vector<4x32xf32>
    %555 = arith.subf %554, %429 : vector<4x32xf32>
    %cst_213 = arith.constant 0.400000036 : f32
    %556 = vector.broadcast %cst_213 : f32 to vector<4x32xf32>
    %557 = arith.divf %555, %556 : vector<4x32xf32>
    %558 = arith.mulf %557, %473 : vector<4x32xf32>
    %559 = arith.addf %553, %558 : vector<4x32xf32>
    %cst_214 = arith.constant -6.000000e-01 : f32
    %560 = vector.broadcast %cst_214 : f32 to vector<4x32xf32>
    %561 = arith.subf %429, %560 : vector<4x32xf32>
    %cst_215 = arith.constant 0.400000036 : f32
    %562 = vector.broadcast %cst_215 : f32 to vector<4x32xf32>
    %563 = arith.divf %561, %562 : vector<4x32xf32>
    %564 = arith.mulf %563, %473 : vector<4x32xf32>
    %cst_216 = arith.constant 2.000000e-01 : f32
    %565 = vector.broadcast %cst_216 : f32 to vector<4x32xf32>
    %566 = arith.subf %565, %429 : vector<4x32xf32>
    %cst_217 = arith.constant 4.000000e-01 : f32
    %567 = vector.broadcast %cst_217 : f32 to vector<4x32xf32>
    %568 = arith.divf %566, %567 : vector<4x32xf32>
    %569 = arith.mulf %568, %480 : vector<4x32xf32>
    %570 = arith.addf %564, %569 : vector<4x32xf32>
    %cst_218 = arith.constant -2.000000e-01 : f32
    %571 = vector.broadcast %cst_218 : f32 to vector<4x32xf32>
    %572 = arith.subf %429, %571 : vector<4x32xf32>
    %cst_219 = arith.constant 4.000000e-01 : f32
    %573 = vector.broadcast %cst_219 : f32 to vector<4x32xf32>
    %574 = arith.divf %572, %573 : vector<4x32xf32>
    %575 = arith.mulf %574, %480 : vector<4x32xf32>
    %cst_220 = arith.constant 6.000000e-01 : f32
    %576 = vector.broadcast %cst_220 : f32 to vector<4x32xf32>
    %577 = arith.subf %576, %429 : vector<4x32xf32>
    %cst_221 = arith.constant 0.400000036 : f32
    %578 = vector.broadcast %cst_221 : f32 to vector<4x32xf32>
    %579 = arith.divf %577, %578 : vector<4x32xf32>
    %580 = arith.mulf %579, %487 : vector<4x32xf32>
    %581 = arith.addf %575, %580 : vector<4x32xf32>
    %cst_222 = arith.constant 2.000000e-01 : f32
    %582 = vector.broadcast %cst_222 : f32 to vector<4x32xf32>
    %583 = arith.subf %429, %582 : vector<4x32xf32>
    %cst_223 = arith.constant 0.400000036 : f32
    %584 = vector.broadcast %cst_223 : f32 to vector<4x32xf32>
    %585 = arith.divf %583, %584 : vector<4x32xf32>
    %586 = arith.mulf %585, %487 : vector<4x32xf32>
    %cst_224 = arith.constant 1.000000e+00 : f32
    %587 = vector.broadcast %cst_224 : f32 to vector<4x32xf32>
    %588 = arith.subf %587, %429 : vector<4x32xf32>
    %cst_225 = arith.constant 0.399999976 : f32
    %589 = vector.broadcast %cst_225 : f32 to vector<4x32xf32>
    %590 = arith.divf %588, %589 : vector<4x32xf32>
    %591 = arith.mulf %590, %494 : vector<4x32xf32>
    %592 = arith.addf %586, %591 : vector<4x32xf32>
    %cst_226 = arith.constant 6.000000e-01 : f32
    %593 = vector.broadcast %cst_226 : f32 to vector<4x32xf32>
    %594 = arith.subf %429, %593 : vector<4x32xf32>
    %cst_227 = arith.constant 0.399999976 : f32
    %595 = vector.broadcast %cst_227 : f32 to vector<4x32xf32>
    %596 = arith.divf %594, %595 : vector<4x32xf32>
    %597 = arith.mulf %596, %494 : vector<4x32xf32>
    %cst_228 = arith.constant 1.400000e+00 : f32
    %598 = vector.broadcast %cst_228 : f32 to vector<4x32xf32>
    %599 = arith.subf %598, %429 : vector<4x32xf32>
    %cst_229 = arith.constant 0.399999976 : f32
    %600 = vector.broadcast %cst_229 : f32 to vector<4x32xf32>
    %601 = arith.divf %599, %600 : vector<4x32xf32>
    %602 = arith.mulf %601, %501 : vector<4x32xf32>
    %603 = arith.addf %597, %602 : vector<4x32xf32>
    %cst_230 = arith.constant 1.000000e+00 : f32
    %604 = vector.broadcast %cst_230 : f32 to vector<4x32xf32>
    %605 = arith.subf %429, %604 : vector<4x32xf32>
    %cst_231 = arith.constant 0.399999976 : f32
    %606 = vector.broadcast %cst_231 : f32 to vector<4x32xf32>
    %607 = arith.divf %605, %606 : vector<4x32xf32>
    %608 = arith.mulf %607, %501 : vector<4x32xf32>
    %cst_232 = arith.constant 1.800000e+00 : f32
    %609 = vector.broadcast %cst_232 : f32 to vector<4x32xf32>
    %610 = arith.subf %609, %429 : vector<4x32xf32>
    %cst_233 = arith.constant 0.399999976 : f32
    %611 = vector.broadcast %cst_233 : f32 to vector<4x32xf32>
    %612 = arith.divf %610, %611 : vector<4x32xf32>
    %613 = arith.mulf %612, %508 : vector<4x32xf32>
    %614 = arith.addf %608, %613 : vector<4x32xf32>
    %cst_234 = arith.constant 1.400000e+00 : f32
    %615 = vector.broadcast %cst_234 : f32 to vector<4x32xf32>
    %616 = arith.subf %429, %615 : vector<4x32xf32>
    %cst_235 = arith.constant 0.399999976 : f32
    %617 = vector.broadcast %cst_235 : f32 to vector<4x32xf32>
    %618 = arith.divf %616, %617 : vector<4x32xf32>
    %619 = arith.mulf %618, %508 : vector<4x32xf32>
    %cst_236 = arith.constant 2.200000e+00 : f32
    %620 = vector.broadcast %cst_236 : f32 to vector<4x32xf32>
    %621 = arith.subf %620, %429 : vector<4x32xf32>
    %cst_237 = arith.constant 0.400000095 : f32
    %622 = vector.broadcast %cst_237 : f32 to vector<4x32xf32>
    %623 = arith.divf %621, %622 : vector<4x32xf32>
    %624 = arith.mulf %623, %515 : vector<4x32xf32>
    %625 = arith.addf %619, %624 : vector<4x32xf32>
    %cst_238 = arith.constant -2.200000e+00 : f32
    %626 = vector.broadcast %cst_238 : f32 to vector<4x32xf32>
    %627 = arith.subf %429, %626 : vector<4x32xf32>
    %cst_239 = arith.constant 0.800000071 : f32
    %628 = vector.broadcast %cst_239 : f32 to vector<4x32xf32>
    %629 = arith.divf %627, %628 : vector<4x32xf32>
    %630 = arith.mulf %629, %526 : vector<4x32xf32>
    %cst_240 = arith.constant -1.000000e+00 : f32
    %631 = vector.broadcast %cst_240 : f32 to vector<4x32xf32>
    %632 = arith.subf %631, %429 : vector<4x32xf32>
    %cst_241 = arith.constant 0.799999952 : f32
    %633 = vector.broadcast %cst_241 : f32 to vector<4x32xf32>
    %634 = arith.divf %632, %633 : vector<4x32xf32>
    %635 = arith.mulf %634, %537 : vector<4x32xf32>
    %636 = arith.addf %630, %635 : vector<4x32xf32>
    %cst_242 = arith.constant -1.800000e+00 : f32
    %637 = vector.broadcast %cst_242 : f32 to vector<4x32xf32>
    %638 = arith.subf %429, %637 : vector<4x32xf32>
    %cst_243 = arith.constant 0.799999952 : f32
    %639 = vector.broadcast %cst_243 : f32 to vector<4x32xf32>
    %640 = arith.divf %638, %639 : vector<4x32xf32>
    %641 = arith.mulf %640, %537 : vector<4x32xf32>
    %cst_244 = arith.constant -6.000000e-01 : f32
    %642 = vector.broadcast %cst_244 : f32 to vector<4x32xf32>
    %643 = arith.subf %642, %429 : vector<4x32xf32>
    %cst_245 = arith.constant 0.799999952 : f32
    %644 = vector.broadcast %cst_245 : f32 to vector<4x32xf32>
    %645 = arith.divf %643, %644 : vector<4x32xf32>
    %646 = arith.mulf %645, %548 : vector<4x32xf32>
    %647 = arith.addf %641, %646 : vector<4x32xf32>
    %cst_246 = arith.constant -1.400000e+00 : f32
    %648 = vector.broadcast %cst_246 : f32 to vector<4x32xf32>
    %649 = arith.subf %429, %648 : vector<4x32xf32>
    %cst_247 = arith.constant 0.799999952 : f32
    %650 = vector.broadcast %cst_247 : f32 to vector<4x32xf32>
    %651 = arith.divf %649, %650 : vector<4x32xf32>
    %652 = arith.mulf %651, %548 : vector<4x32xf32>
    %cst_248 = arith.constant -2.000000e-01 : f32
    %653 = vector.broadcast %cst_248 : f32 to vector<4x32xf32>
    %654 = arith.subf %653, %429 : vector<4x32xf32>
    %cst_249 = arith.constant 8.000000e-01 : f32
    %655 = vector.broadcast %cst_249 : f32 to vector<4x32xf32>
    %656 = arith.divf %654, %655 : vector<4x32xf32>
    %657 = arith.mulf %656, %559 : vector<4x32xf32>
    %658 = arith.addf %652, %657 : vector<4x32xf32>
    %cst_250 = arith.constant -1.000000e+00 : f32
    %659 = vector.broadcast %cst_250 : f32 to vector<4x32xf32>
    %660 = arith.subf %429, %659 : vector<4x32xf32>
    %cst_251 = arith.constant 8.000000e-01 : f32
    %661 = vector.broadcast %cst_251 : f32 to vector<4x32xf32>
    %662 = arith.divf %660, %661 : vector<4x32xf32>
    %663 = arith.mulf %662, %559 : vector<4x32xf32>
    %cst_252 = arith.constant 2.000000e-01 : f32
    %664 = vector.broadcast %cst_252 : f32 to vector<4x32xf32>
    %665 = arith.subf %664, %429 : vector<4x32xf32>
    %cst_253 = arith.constant 8.000000e-01 : f32
    %666 = vector.broadcast %cst_253 : f32 to vector<4x32xf32>
    %667 = arith.divf %665, %666 : vector<4x32xf32>
    %668 = arith.mulf %667, %570 : vector<4x32xf32>
    %669 = arith.addf %663, %668 : vector<4x32xf32>
    %cst_254 = arith.constant -6.000000e-01 : f32
    %670 = vector.broadcast %cst_254 : f32 to vector<4x32xf32>
    %671 = arith.subf %429, %670 : vector<4x32xf32>
    %cst_255 = arith.constant 8.000000e-01 : f32
    %672 = vector.broadcast %cst_255 : f32 to vector<4x32xf32>
    %673 = arith.divf %671, %672 : vector<4x32xf32>
    %674 = arith.mulf %673, %570 : vector<4x32xf32>
    %cst_256 = arith.constant 6.000000e-01 : f32
    %675 = vector.broadcast %cst_256 : f32 to vector<4x32xf32>
    %676 = arith.subf %675, %429 : vector<4x32xf32>
    %cst_257 = arith.constant 8.000000e-01 : f32
    %677 = vector.broadcast %cst_257 : f32 to vector<4x32xf32>
    %678 = arith.divf %676, %677 : vector<4x32xf32>
    %679 = arith.mulf %678, %581 : vector<4x32xf32>
    %680 = arith.addf %674, %679 : vector<4x32xf32>
    %cst_258 = arith.constant -2.000000e-01 : f32
    %681 = vector.broadcast %cst_258 : f32 to vector<4x32xf32>
    %682 = arith.subf %429, %681 : vector<4x32xf32>
    %cst_259 = arith.constant 8.000000e-01 : f32
    %683 = vector.broadcast %cst_259 : f32 to vector<4x32xf32>
    %684 = arith.divf %682, %683 : vector<4x32xf32>
    %685 = arith.mulf %684, %581 : vector<4x32xf32>
    %cst_260 = arith.constant 1.000000e+00 : f32
    %686 = vector.broadcast %cst_260 : f32 to vector<4x32xf32>
    %687 = arith.subf %686, %429 : vector<4x32xf32>
    %cst_261 = arith.constant 8.000000e-01 : f32
    %688 = vector.broadcast %cst_261 : f32 to vector<4x32xf32>
    %689 = arith.divf %687, %688 : vector<4x32xf32>
    %690 = arith.mulf %689, %592 : vector<4x32xf32>
    %691 = arith.addf %685, %690 : vector<4x32xf32>
    %cst_262 = arith.constant 2.000000e-01 : f32
    %692 = vector.broadcast %cst_262 : f32 to vector<4x32xf32>
    %693 = arith.subf %429, %692 : vector<4x32xf32>
    %cst_263 = arith.constant 8.000000e-01 : f32
    %694 = vector.broadcast %cst_263 : f32 to vector<4x32xf32>
    %695 = arith.divf %693, %694 : vector<4x32xf32>
    %696 = arith.mulf %695, %592 : vector<4x32xf32>
    %cst_264 = arith.constant 1.400000e+00 : f32
    %697 = vector.broadcast %cst_264 : f32 to vector<4x32xf32>
    %698 = arith.subf %697, %429 : vector<4x32xf32>
    %cst_265 = arith.constant 0.799999952 : f32
    %699 = vector.broadcast %cst_265 : f32 to vector<4x32xf32>
    %700 = arith.divf %698, %699 : vector<4x32xf32>
    %701 = arith.mulf %700, %603 : vector<4x32xf32>
    %702 = arith.addf %696, %701 : vector<4x32xf32>
    %cst_266 = arith.constant 6.000000e-01 : f32
    %703 = vector.broadcast %cst_266 : f32 to vector<4x32xf32>
    %704 = arith.subf %429, %703 : vector<4x32xf32>
    %cst_267 = arith.constant 0.799999952 : f32
    %705 = vector.broadcast %cst_267 : f32 to vector<4x32xf32>
    %706 = arith.divf %704, %705 : vector<4x32xf32>
    %707 = arith.mulf %706, %603 : vector<4x32xf32>
    %cst_268 = arith.constant 1.800000e+00 : f32
    %708 = vector.broadcast %cst_268 : f32 to vector<4x32xf32>
    %709 = arith.subf %708, %429 : vector<4x32xf32>
    %cst_269 = arith.constant 0.799999952 : f32
    %710 = vector.broadcast %cst_269 : f32 to vector<4x32xf32>
    %711 = arith.divf %709, %710 : vector<4x32xf32>
    %712 = arith.mulf %711, %614 : vector<4x32xf32>
    %713 = arith.addf %707, %712 : vector<4x32xf32>
    %cst_270 = arith.constant 1.000000e+00 : f32
    %714 = vector.broadcast %cst_270 : f32 to vector<4x32xf32>
    %715 = arith.subf %429, %714 : vector<4x32xf32>
    %cst_271 = arith.constant 0.799999952 : f32
    %716 = vector.broadcast %cst_271 : f32 to vector<4x32xf32>
    %717 = arith.divf %715, %716 : vector<4x32xf32>
    %718 = arith.mulf %717, %614 : vector<4x32xf32>
    %cst_272 = arith.constant 2.200000e+00 : f32
    %719 = vector.broadcast %cst_272 : f32 to vector<4x32xf32>
    %720 = arith.subf %719, %429 : vector<4x32xf32>
    %cst_273 = arith.constant 0.800000071 : f32
    %721 = vector.broadcast %cst_273 : f32 to vector<4x32xf32>
    %722 = arith.divf %720, %721 : vector<4x32xf32>
    %723 = arith.mulf %722, %625 : vector<4x32xf32>
    %724 = arith.addf %718, %723 : vector<4x32xf32>
    %cst_274 = arith.constant -2.200000e+00 : f32
    %725 = vector.broadcast %cst_274 : f32 to vector<4x32xf32>
    %726 = arith.subf %429, %725 : vector<4x32xf32>
    %cst_275 = arith.constant 1.200000e+00 : f32
    %727 = vector.broadcast %cst_275 : f32 to vector<4x32xf32>
    %728 = arith.divf %726, %727 : vector<4x32xf32>
    %729 = arith.mulf %728, %636 : vector<4x32xf32>
    %cst_276 = arith.constant -6.000000e-01 : f32
    %730 = vector.broadcast %cst_276 : f32 to vector<4x32xf32>
    %731 = arith.subf %730, %429 : vector<4x32xf32>
    %cst_277 = arith.constant 1.19999993 : f32
    %732 = vector.broadcast %cst_277 : f32 to vector<4x32xf32>
    %733 = arith.divf %731, %732 : vector<4x32xf32>
    %734 = arith.mulf %733, %647 : vector<4x32xf32>
    %735 = arith.addf %729, %734 : vector<4x32xf32>
    %cst_278 = arith.constant -1.800000e+00 : f32
    %736 = vector.broadcast %cst_278 : f32 to vector<4x32xf32>
    %737 = arith.subf %429, %736 : vector<4x32xf32>
    %cst_279 = arith.constant 1.19999993 : f32
    %738 = vector.broadcast %cst_279 : f32 to vector<4x32xf32>
    %739 = arith.divf %737, %738 : vector<4x32xf32>
    %740 = arith.mulf %739, %647 : vector<4x32xf32>
    %cst_280 = arith.constant -2.000000e-01 : f32
    %741 = vector.broadcast %cst_280 : f32 to vector<4x32xf32>
    %742 = arith.subf %741, %429 : vector<4x32xf32>
    %cst_281 = arith.constant 1.19999993 : f32
    %743 = vector.broadcast %cst_281 : f32 to vector<4x32xf32>
    %744 = arith.divf %742, %743 : vector<4x32xf32>
    %745 = arith.mulf %744, %658 : vector<4x32xf32>
    %746 = arith.addf %740, %745 : vector<4x32xf32>
    %cst_282 = arith.constant -1.400000e+00 : f32
    %747 = vector.broadcast %cst_282 : f32 to vector<4x32xf32>
    %748 = arith.subf %429, %747 : vector<4x32xf32>
    %cst_283 = arith.constant 1.19999993 : f32
    %749 = vector.broadcast %cst_283 : f32 to vector<4x32xf32>
    %750 = arith.divf %748, %749 : vector<4x32xf32>
    %751 = arith.mulf %750, %658 : vector<4x32xf32>
    %cst_284 = arith.constant 2.000000e-01 : f32
    %752 = vector.broadcast %cst_284 : f32 to vector<4x32xf32>
    %753 = arith.subf %752, %429 : vector<4x32xf32>
    %cst_285 = arith.constant 1.200000e+00 : f32
    %754 = vector.broadcast %cst_285 : f32 to vector<4x32xf32>
    %755 = arith.divf %753, %754 : vector<4x32xf32>
    %756 = arith.mulf %755, %669 : vector<4x32xf32>
    %757 = arith.addf %751, %756 : vector<4x32xf32>
    %cst_286 = arith.constant -1.000000e+00 : f32
    %758 = vector.broadcast %cst_286 : f32 to vector<4x32xf32>
    %759 = arith.subf %429, %758 : vector<4x32xf32>
    %cst_287 = arith.constant 1.200000e+00 : f32
    %760 = vector.broadcast %cst_287 : f32 to vector<4x32xf32>
    %761 = arith.divf %759, %760 : vector<4x32xf32>
    %762 = arith.mulf %761, %669 : vector<4x32xf32>
    %cst_288 = arith.constant 6.000000e-01 : f32
    %763 = vector.broadcast %cst_288 : f32 to vector<4x32xf32>
    %764 = arith.subf %763, %429 : vector<4x32xf32>
    %cst_289 = arith.constant 1.200000e+00 : f32
    %765 = vector.broadcast %cst_289 : f32 to vector<4x32xf32>
    %766 = arith.divf %764, %765 : vector<4x32xf32>
    %767 = arith.mulf %766, %680 : vector<4x32xf32>
    %768 = arith.addf %762, %767 : vector<4x32xf32>
    %cst_290 = arith.constant -6.000000e-01 : f32
    %769 = vector.broadcast %cst_290 : f32 to vector<4x32xf32>
    %770 = arith.subf %429, %769 : vector<4x32xf32>
    %cst_291 = arith.constant 1.200000e+00 : f32
    %771 = vector.broadcast %cst_291 : f32 to vector<4x32xf32>
    %772 = arith.divf %770, %771 : vector<4x32xf32>
    %773 = arith.mulf %772, %680 : vector<4x32xf32>
    %cst_292 = arith.constant 1.000000e+00 : f32
    %774 = vector.broadcast %cst_292 : f32 to vector<4x32xf32>
    %775 = arith.subf %774, %429 : vector<4x32xf32>
    %cst_293 = arith.constant 1.200000e+00 : f32
    %776 = vector.broadcast %cst_293 : f32 to vector<4x32xf32>
    %777 = arith.divf %775, %776 : vector<4x32xf32>
    %778 = arith.mulf %777, %691 : vector<4x32xf32>
    %779 = arith.addf %773, %778 : vector<4x32xf32>
    %cst_294 = arith.constant -2.000000e-01 : f32
    %780 = vector.broadcast %cst_294 : f32 to vector<4x32xf32>
    %781 = arith.subf %429, %780 : vector<4x32xf32>
    %cst_295 = arith.constant 1.200000e+00 : f32
    %782 = vector.broadcast %cst_295 : f32 to vector<4x32xf32>
    %783 = arith.divf %781, %782 : vector<4x32xf32>
    %784 = arith.mulf %783, %691 : vector<4x32xf32>
    %cst_296 = arith.constant 1.400000e+00 : f32
    %785 = vector.broadcast %cst_296 : f32 to vector<4x32xf32>
    %786 = arith.subf %785, %429 : vector<4x32xf32>
    %cst_297 = arith.constant 1.19999993 : f32
    %787 = vector.broadcast %cst_297 : f32 to vector<4x32xf32>
    %788 = arith.divf %786, %787 : vector<4x32xf32>
    %789 = arith.mulf %788, %702 : vector<4x32xf32>
    %790 = arith.addf %784, %789 : vector<4x32xf32>
    %cst_298 = arith.constant 2.000000e-01 : f32
    %791 = vector.broadcast %cst_298 : f32 to vector<4x32xf32>
    %792 = arith.subf %429, %791 : vector<4x32xf32>
    %cst_299 = arith.constant 1.19999993 : f32
    %793 = vector.broadcast %cst_299 : f32 to vector<4x32xf32>
    %794 = arith.divf %792, %793 : vector<4x32xf32>
    %795 = arith.mulf %794, %702 : vector<4x32xf32>
    %cst_300 = arith.constant 1.800000e+00 : f32
    %796 = vector.broadcast %cst_300 : f32 to vector<4x32xf32>
    %797 = arith.subf %796, %429 : vector<4x32xf32>
    %cst_301 = arith.constant 1.19999993 : f32
    %798 = vector.broadcast %cst_301 : f32 to vector<4x32xf32>
    %799 = arith.divf %797, %798 : vector<4x32xf32>
    %800 = arith.mulf %799, %713 : vector<4x32xf32>
    %801 = arith.addf %795, %800 : vector<4x32xf32>
    %cst_302 = arith.constant 6.000000e-01 : f32
    %802 = vector.broadcast %cst_302 : f32 to vector<4x32xf32>
    %803 = arith.subf %429, %802 : vector<4x32xf32>
    %cst_303 = arith.constant 1.19999993 : f32
    %804 = vector.broadcast %cst_303 : f32 to vector<4x32xf32>
    %805 = arith.divf %803, %804 : vector<4x32xf32>
    %806 = arith.mulf %805, %713 : vector<4x32xf32>
    %cst_304 = arith.constant 2.200000e+00 : f32
    %807 = vector.broadcast %cst_304 : f32 to vector<4x32xf32>
    %808 = arith.subf %807, %429 : vector<4x32xf32>
    %cst_305 = arith.constant 1.200000e+00 : f32
    %809 = vector.broadcast %cst_305 : f32 to vector<4x32xf32>
    %810 = arith.divf %808, %809 : vector<4x32xf32>
    %811 = arith.mulf %810, %724 : vector<4x32xf32>
    %812 = arith.addf %806, %811 : vector<4x32xf32>
    %c0_306 = arith.constant 0 : index
    %c32_307 = arith.constant 32 : index
    %813 = vector.load %arg11[%c0_306, %c32_307] : memref<4x288xf32, #tpu.memory_space<vmem>>, vector<4x32xf32>
    tpu.vector_store %arg11[%c0_306, %c32_307], %735 {strides = array<i32>} : memref<4x288xf32, #tpu.memory_space<vmem>>, vector<4x32xf32>,
    %c0_308 = arith.constant 0 : index
    %c64_309 = arith.constant 64 : index
    %814 = vector.load %arg11[%c0_308, %c64_309] : memref<4x288xf32, #tpu.memory_space<vmem>>, vector<4x32xf32>
    tpu.vector_store %arg11[%c0_308, %c64_309], %746 {strides = array<i32>} : memref<4x288xf32, #tpu.memory_space<vmem>>, vector<4x32xf32>,
    %c0_310 = arith.constant 0 : index
    %c96 = arith.constant 96 : index
    %815 = vector.load %arg11[%c0_310, %c96] : memref<4x288xf32, #tpu.memory_space<vmem>>, vector<4x32xf32>
    tpu.vector_store %arg11[%c0_310, %c96], %757 {strides = array<i32>} : memref<4x288xf32, #tpu.memory_space<vmem>>, vector<4x32xf32>,
    %c0_311 = arith.constant 0 : index
    %c128 = arith.constant 128 : index
    %816 = vector.load %arg11[%c0_311, %c128] : memref<4x288xf32, #tpu.memory_space<vmem>>, vector<4x32xf32>
    tpu.vector_store %arg11[%c0_311, %c128], %768 {strides = array<i32>} : memref<4x288xf32, #tpu.memory_space<vmem>>, vector<4x32xf32>,
    %c0_312 = arith.constant 0 : index
    %c160 = arith.constant 160 : index
    %817 = vector.load %arg11[%c0_312, %c160] : memref<4x288xf32, #tpu.memory_space<vmem>>, vector<4x32xf32>
    tpu.vector_store %arg11[%c0_312, %c160], %779 {strides = array<i32>} : memref<4x288xf32, #tpu.memory_space<vmem>>, vector<4x32xf32>,
    %c0_313 = arith.constant 0 : index
    %c192 = arith.constant 192 : index
    %818 = vector.load %arg11[%c0_313, %c192] : memref<4x288xf32, #tpu.memory_space<vmem>>, vector<4x32xf32>
    tpu.vector_store %arg11[%c0_313, %c192], %790 {strides = array<i32>} : memref<4x288xf32, #tpu.memory_space<vmem>>, vector<4x32xf32>,
    %c0_314 = arith.constant 0 : index
    %c224 = arith.constant 224 : index
    %819 = vector.load %arg11[%c0_314, %c224] : memref<4x288xf32, #tpu.memory_space<vmem>>, vector<4x32xf32>
    tpu.vector_store %arg11[%c0_314, %c224], %801 {strides = array<i32>} : memref<4x288xf32, #tpu.memory_space<vmem>>, vector<4x32xf32>,
    %c0_315 = arith.constant 0 : index
    %c256 = arith.constant 256 : index
    %820 = vector.load %arg11[%c0_315, %c256] : memref<4x288xf32, #tpu.memory_space<vmem>>, vector<4x32xf32>
    tpu.vector_store %arg11[%c0_315, %c256], %812 {strides = array<i32>} : memref<4x288xf32, #tpu.memory_space<vmem>>, vector<4x32xf32>,
    %c0_316 = arith.constant 0 : index
    %c0_317 = arith.constant 0 : index
    %821 = vector.load %arg11[%c0_316, %c0_317] : memref<4x288xf32, #tpu.memory_space<vmem>>, vector<4x288xf32>
    %c0_318 = arith.constant 0 : index
    %c0_319 = arith.constant 0 : index
    %822 = vector.load %arg4[%c0_318, %c0_319] : memref<288x32xf32, #tpu.memory_space<vmem>>, vector<288x32xf32>
    %cst_320 = arith.constant dense<0.000000e+00> : vector<4x32xf32>
    %823 = tpu.matmul %821, %822, %cst_320 {dimension_numbers = #tpu.dot_dimension_numbers<[1], [0], [0], [1], [0, 0, 1, 1], [], []>} : vector<4x288xf32>, vector<288x32xf32>, vector<4x32xf32> -> vector<4x32xf32>
    %cst_321 = arith.constant 0.000000e+00 : f32
    %824 = vector.broadcast %cst_321 : f32 to vector<4x32xf32>
    %825 = arith.subf %824, %823 : vector<4x32xf32>
    %826 = math.exp %825 : vector<4x32xf32>
    %cst_322 = arith.constant 1.000000e+00 : f32
    %827 = vector.broadcast %cst_322 : f32 to vector<4x32xf32>
    %828 = arith.addf %827, %826 : vector<4x32xf32>
    %cst_323 = arith.constant 1.000000e+00 : f32
    %829 = vector.broadcast %cst_323 : f32 to vector<4x32xf32>
    %830 = arith.divf %829, %828 : vector<4x32xf32>
    %831 = arith.mulf %823, %830 : vector<4x32xf32>
    %c0_324 = arith.constant 0 : index
    %c0_325 = arith.constant 0 : index
    %832 = vector.load %arg11[%c0_324, %c0_325] : memref<4x288xf32, #tpu.memory_space<vmem>>, vector<4x32xf32>
    tpu.vector_store %arg11[%c0_324, %c0_325], %831 {strides = array<i32>} : memref<4x288xf32, #tpu.memory_space<vmem>>, vector<4x32xf32>,
    %cst_326 = arith.constant -2.200000e+00 : f32
    %833 = vector.broadcast %cst_326 : f32 to vector<4x32xf32>
    %834 = arith.cmpf oge, %823, %833 : vector<4x32xf32>
    %cst_327 = arith.constant -1.800000e+00 : f32
    %835 = vector.broadcast %cst_327 : f32 to vector<4x32xf32>
    %836 = arith.cmpf olt, %823, %835 : vector<4x32xf32>
    %837 = arith.andi %834, %836 : vector<4x32xi1>
    %838 = arith.extui %837 : vector<4x32xi1> to vector<4x32xi32>
    %839 = arith.sitofp %838 : vector<4x32xi32> to vector<4x32xf32>
    %cst_328 = arith.constant -1.800000e+00 : f32
    %840 = vector.broadcast %cst_328 : f32 to vector<4x32xf32>
    %841 = arith.cmpf oge, %823, %840 : vector<4x32xf32>
    %cst_329 = arith.constant -1.400000e+00 : f32
    %842 = vector.broadcast %cst_329 : f32 to vector<4x32xf32>
    %843 = arith.cmpf olt, %823, %842 : vector<4x32xf32>
    %844 = arith.andi %841, %843 : vector<4x32xi1>
    %845 = arith.extui %844 : vector<4x32xi1> to vector<4x32xi32>
    %846 = arith.sitofp %845 : vector<4x32xi32> to vector<4x32xf32>
    %cst_330 = arith.constant -1.400000e+00 : f32
    %847 = vector.broadcast %cst_330 : f32 to vector<4x32xf32>
    %848 = arith.cmpf oge, %823, %847 : vector<4x32xf32>
    %cst_331 = arith.constant -1.000000e+00 : f32
    %849 = vector.broadcast %cst_331 : f32 to vector<4x32xf32>
    %850 = arith.cmpf olt, %823, %849 : vector<4x32xf32>
    %851 = arith.andi %848, %850 : vector<4x32xi1>
    %852 = arith.extui %851 : vector<4x32xi1> to vector<4x32xi32>
    %853 = arith.sitofp %852 : vector<4x32xi32> to vector<4x32xf32>
    %cst_332 = arith.constant -1.000000e+00 : f32
    %854 = vector.broadcast %cst_332 : f32 to vector<4x32xf32>
    %855 = arith.cmpf oge, %823, %854 : vector<4x32xf32>
    %cst_333 = arith.constant -6.000000e-01 : f32
    %856 = vector.broadcast %cst_333 : f32 to vector<4x32xf32>
    %857 = arith.cmpf olt, %823, %856 : vector<4x32xf32>
    %858 = arith.andi %855, %857 : vector<4x32xi1>
    %859 = arith.extui %858 : vector<4x32xi1> to vector<4x32xi32>
    %860 = arith.sitofp %859 : vector<4x32xi32> to vector<4x32xf32>
    %cst_334 = arith.constant -6.000000e-01 : f32
    %861 = vector.broadcast %cst_334 : f32 to vector<4x32xf32>
    %862 = arith.cmpf oge, %823, %861 : vector<4x32xf32>
    %cst_335 = arith.constant -2.000000e-01 : f32
    %863 = vector.broadcast %cst_335 : f32 to vector<4x32xf32>
    %864 = arith.cmpf olt, %823, %863 : vector<4x32xf32>
    %865 = arith.andi %862, %864 : vector<4x32xi1>
    %866 = arith.extui %865 : vector<4x32xi1> to vector<4x32xi32>
    %867 = arith.sitofp %866 : vector<4x32xi32> to vector<4x32xf32>
    %cst_336 = arith.constant -2.000000e-01 : f32
    %868 = vector.broadcast %cst_336 : f32 to vector<4x32xf32>
    %869 = arith.cmpf oge, %823, %868 : vector<4x32xf32>
    %cst_337 = arith.constant 2.000000e-01 : f32
    %870 = vector.broadcast %cst_337 : f32 to vector<4x32xf32>
    %871 = arith.cmpf olt, %823, %870 : vector<4x32xf32>
    %872 = arith.andi %869, %871 : vector<4x32xi1>
    %873 = arith.extui %872 : vector<4x32xi1> to vector<4x32xi32>
    %874 = arith.sitofp %873 : vector<4x32xi32> to vector<4x32xf32>
    %cst_338 = arith.constant 2.000000e-01 : f32
    %875 = vector.broadcast %cst_338 : f32 to vector<4x32xf32>
    %876 = arith.cmpf oge, %823, %875 : vector<4x32xf32>
    %cst_339 = arith.constant 6.000000e-01 : f32
    %877 = vector.broadcast %cst_339 : f32 to vector<4x32xf32>
    %878 = arith.cmpf olt, %823, %877 : vector<4x32xf32>
    %879 = arith.andi %876, %878 : vector<4x32xi1>
    %880 = arith.extui %879 : vector<4x32xi1> to vector<4x32xi32>
    %881 = arith.sitofp %880 : vector<4x32xi32> to vector<4x32xf32>
    %cst_340 = arith.constant 6.000000e-01 : f32
    %882 = vector.broadcast %cst_340 : f32 to vector<4x32xf32>
    %883 = arith.cmpf oge, %823, %882 : vector<4x32xf32>
    %cst_341 = arith.constant 1.000000e+00 : f32
    %884 = vector.broadcast %cst_341 : f32 to vector<4x32xf32>
    %885 = arith.cmpf olt, %823, %884 : vector<4x32xf32>
    %886 = arith.andi %883, %885 : vector<4x32xi1>
    %887 = arith.extui %886 : vector<4x32xi1> to vector<4x32xi32>
    %888 = arith.sitofp %887 : vector<4x32xi32> to vector<4x32xf32>
    %cst_342 = arith.constant 1.000000e+00 : f32
    %889 = vector.broadcast %cst_342 : f32 to vector<4x32xf32>
    %890 = arith.cmpf oge, %823, %889 : vector<4x32xf32>
    %cst_343 = arith.constant 1.400000e+00 : f32
    %891 = vector.broadcast %cst_343 : f32 to vector<4x32xf32>
    %892 = arith.cmpf olt, %823, %891 : vector<4x32xf32>
    %893 = arith.andi %890, %892 : vector<4x32xi1>
    %894 = arith.extui %893 : vector<4x32xi1> to vector<4x32xi32>
    %895 = arith.sitofp %894 : vector<4x32xi32> to vector<4x32xf32>
    %cst_344 = arith.constant 1.400000e+00 : f32
    %896 = vector.broadcast %cst_344 : f32 to vector<4x32xf32>
    %897 = arith.cmpf oge, %823, %896 : vector<4x32xf32>
    %cst_345 = arith.constant 1.800000e+00 : f32
    %898 = vector.broadcast %cst_345 : f32 to vector<4x32xf32>
    %899 = arith.cmpf olt, %823, %898 : vector<4x32xf32>
    %900 = arith.andi %897, %899 : vector<4x32xi1>
    %901 = arith.extui %900 : vector<4x32xi1> to vector<4x32xi32>
    %902 = arith.sitofp %901 : vector<4x32xi32> to vector<4x32xf32>
    %cst_346 = arith.constant 1.800000e+00 : f32
    %903 = vector.broadcast %cst_346 : f32 to vector<4x32xf32>
    %904 = arith.cmpf oge, %823, %903 : vector<4x32xf32>
    %cst_347 = arith.constant 2.200000e+00 : f32
    %905 = vector.broadcast %cst_347 : f32 to vector<4x32xf32>
    %906 = arith.cmpf olt, %823, %905 : vector<4x32xf32>
    %907 = arith.andi %904, %906 : vector<4x32xi1>
    %908 = arith.extui %907 : vector<4x32xi1> to vector<4x32xi32>
    %909 = arith.sitofp %908 : vector<4x32xi32> to vector<4x32xf32>
    %cst_348 = arith.constant -2.200000e+00 : f32
    %910 = vector.broadcast %cst_348 : f32 to vector<4x32xf32>
    %911 = arith.subf %823, %910 : vector<4x32xf32>
    %cst_349 = arith.constant 0.400000095 : f32
    %912 = vector.broadcast %cst_349 : f32 to vector<4x32xf32>
    %913 = arith.divf %911, %912 : vector<4x32xf32>
    %914 = arith.mulf %913, %839 : vector<4x32xf32>
    %cst_350 = arith.constant -1.400000e+00 : f32
    %915 = vector.broadcast %cst_350 : f32 to vector<4x32xf32>
    %916 = arith.subf %915, %823 : vector<4x32xf32>
    %cst_351 = arith.constant 0.399999976 : f32
    %917 = vector.broadcast %cst_351 : f32 to vector<4x32xf32>
    %918 = arith.divf %916, %917 : vector<4x32xf32>
    %919 = arith.mulf %918, %846 : vector<4x32xf32>
    %920 = arith.addf %914, %919 : vector<4x32xf32>
    %cst_352 = arith.constant -1.800000e+00 : f32
    %921 = vector.broadcast %cst_352 : f32 to vector<4x32xf32>
    %922 = arith.subf %823, %921 : vector<4x32xf32>
    %cst_353 = arith.constant 0.399999976 : f32
    %923 = vector.broadcast %cst_353 : f32 to vector<4x32xf32>
    %924 = arith.divf %922, %923 : vector<4x32xf32>
    %925 = arith.mulf %924, %846 : vector<4x32xf32>
    %cst_354 = arith.constant -1.000000e+00 : f32
    %926 = vector.broadcast %cst_354 : f32 to vector<4x32xf32>
    %927 = arith.subf %926, %823 : vector<4x32xf32>
    %cst_355 = arith.constant 0.399999976 : f32
    %928 = vector.broadcast %cst_355 : f32 to vector<4x32xf32>
    %929 = arith.divf %927, %928 : vector<4x32xf32>
    %930 = arith.mulf %929, %853 : vector<4x32xf32>
    %931 = arith.addf %925, %930 : vector<4x32xf32>
    %cst_356 = arith.constant -1.400000e+00 : f32
    %932 = vector.broadcast %cst_356 : f32 to vector<4x32xf32>
    %933 = arith.subf %823, %932 : vector<4x32xf32>
    %cst_357 = arith.constant 0.399999976 : f32
    %934 = vector.broadcast %cst_357 : f32 to vector<4x32xf32>
    %935 = arith.divf %933, %934 : vector<4x32xf32>
    %936 = arith.mulf %935, %853 : vector<4x32xf32>
    %cst_358 = arith.constant -6.000000e-01 : f32
    %937 = vector.broadcast %cst_358 : f32 to vector<4x32xf32>
    %938 = arith.subf %937, %823 : vector<4x32xf32>
    %cst_359 = arith.constant 0.399999976 : f32
    %939 = vector.broadcast %cst_359 : f32 to vector<4x32xf32>
    %940 = arith.divf %938, %939 : vector<4x32xf32>
    %941 = arith.mulf %940, %860 : vector<4x32xf32>
    %942 = arith.addf %936, %941 : vector<4x32xf32>
    %cst_360 = arith.constant -1.000000e+00 : f32
    %943 = vector.broadcast %cst_360 : f32 to vector<4x32xf32>
    %944 = arith.subf %823, %943 : vector<4x32xf32>
    %cst_361 = arith.constant 0.399999976 : f32
    %945 = vector.broadcast %cst_361 : f32 to vector<4x32xf32>
    %946 = arith.divf %944, %945 : vector<4x32xf32>
    %947 = arith.mulf %946, %860 : vector<4x32xf32>
    %cst_362 = arith.constant -2.000000e-01 : f32
    %948 = vector.broadcast %cst_362 : f32 to vector<4x32xf32>
    %949 = arith.subf %948, %823 : vector<4x32xf32>
    %cst_363 = arith.constant 0.400000036 : f32
    %950 = vector.broadcast %cst_363 : f32 to vector<4x32xf32>
    %951 = arith.divf %949, %950 : vector<4x32xf32>
    %952 = arith.mulf %951, %867 : vector<4x32xf32>
    %953 = arith.addf %947, %952 : vector<4x32xf32>
    %cst_364 = arith.constant -6.000000e-01 : f32
    %954 = vector.broadcast %cst_364 : f32 to vector<4x32xf32>
    %955 = arith.subf %823, %954 : vector<4x32xf32>
    %cst_365 = arith.constant 0.400000036 : f32
    %956 = vector.broadcast %cst_365 : f32 to vector<4x32xf32>
    %957 = arith.divf %955, %956 : vector<4x32xf32>
    %958 = arith.mulf %957, %867 : vector<4x32xf32>
    %cst_366 = arith.constant 2.000000e-01 : f32
    %959 = vector.broadcast %cst_366 : f32 to vector<4x32xf32>
    %960 = arith.subf %959, %823 : vector<4x32xf32>
    %cst_367 = arith.constant 4.000000e-01 : f32
    %961 = vector.broadcast %cst_367 : f32 to vector<4x32xf32>
    %962 = arith.divf %960, %961 : vector<4x32xf32>
    %963 = arith.mulf %962, %874 : vector<4x32xf32>
    %964 = arith.addf %958, %963 : vector<4x32xf32>
    %cst_368 = arith.constant -2.000000e-01 : f32
    %965 = vector.broadcast %cst_368 : f32 to vector<4x32xf32>
    %966 = arith.subf %823, %965 : vector<4x32xf32>
    %cst_369 = arith.constant 4.000000e-01 : f32
    %967 = vector.broadcast %cst_369 : f32 to vector<4x32xf32>
    %968 = arith.divf %966, %967 : vector<4x32xf32>
    %969 = arith.mulf %968, %874 : vector<4x32xf32>
    %cst_370 = arith.constant 6.000000e-01 : f32
    %970 = vector.broadcast %cst_370 : f32 to vector<4x32xf32>
    %971 = arith.subf %970, %823 : vector<4x32xf32>
    %cst_371 = arith.constant 0.400000036 : f32
    %972 = vector.broadcast %cst_371 : f32 to vector<4x32xf32>
    %973 = arith.divf %971, %972 : vector<4x32xf32>
    %974 = arith.mulf %973, %881 : vector<4x32xf32>
    %975 = arith.addf %969, %974 : vector<4x32xf32>
    %cst_372 = arith.constant 2.000000e-01 : f32
    %976 = vector.broadcast %cst_372 : f32 to vector<4x32xf32>
    %977 = arith.subf %823, %976 : vector<4x32xf32>
    %cst_373 = arith.constant 0.400000036 : f32
    %978 = vector.broadcast %cst_373 : f32 to vector<4x32xf32>
    %979 = arith.divf %977, %978 : vector<4x32xf32>
    %980 = arith.mulf %979, %881 : vector<4x32xf32>
    %cst_374 = arith.constant 1.000000e+00 : f32
    %981 = vector.broadcast %cst_374 : f32 to vector<4x32xf32>
    %982 = arith.subf %981, %823 : vector<4x32xf32>
    %cst_375 = arith.constant 0.399999976 : f32
    %983 = vector.broadcast %cst_375 : f32 to vector<4x32xf32>
    %984 = arith.divf %982, %983 : vector<4x32xf32>
    %985 = arith.mulf %984, %888 : vector<4x32xf32>
    %986 = arith.addf %980, %985 : vector<4x32xf32>
    %cst_376 = arith.constant 6.000000e-01 : f32
    %987 = vector.broadcast %cst_376 : f32 to vector<4x32xf32>
    %988 = arith.subf %823, %987 : vector<4x32xf32>
    %cst_377 = arith.constant 0.399999976 : f32
    %989 = vector.broadcast %cst_377 : f32 to vector<4x32xf32>
    %990 = arith.divf %988, %989 : vector<4x32xf32>
    %991 = arith.mulf %990, %888 : vector<4x32xf32>
    %cst_378 = arith.constant 1.400000e+00 : f32
    %992 = vector.broadcast %cst_378 : f32 to vector<4x32xf32>
    %993 = arith.subf %992, %823 : vector<4x32xf32>
    %cst_379 = arith.constant 0.399999976 : f32
    %994 = vector.broadcast %cst_379 : f32 to vector<4x32xf32>
    %995 = arith.divf %993, %994 : vector<4x32xf32>
    %996 = arith.mulf %995, %895 : vector<4x32xf32>
    %997 = arith.addf %991, %996 : vector<4x32xf32>
    %cst_380 = arith.constant 1.000000e+00 : f32
    %998 = vector.broadcast %cst_380 : f32 to vector<4x32xf32>
    %999 = arith.subf %823, %998 : vector<4x32xf32>
    %cst_381 = arith.constant 0.399999976 : f32
    %1000 = vector.broadcast %cst_381 : f32 to vector<4x32xf32>
    %1001 = arith.divf %999, %1000 : vector<4x32xf32>
    %1002 = arith.mulf %1001, %895 : vector<4x32xf32>
    %cst_382 = arith.constant 1.800000e+00 : f32
    %1003 = vector.broadcast %cst_382 : f32 to vector<4x32xf32>
    %1004 = arith.subf %1003, %823 : vector<4x32xf32>
    %cst_383 = arith.constant 0.399999976 : f32
    %1005 = vector.broadcast %cst_383 : f32 to vector<4x32xf32>
    %1006 = arith.divf %1004, %1005 : vector<4x32xf32>
    %1007 = arith.mulf %1006, %902 : vector<4x32xf32>
    %1008 = arith.addf %1002, %1007 : vector<4x32xf32>
    %cst_384 = arith.constant 1.400000e+00 : f32
    %1009 = vector.broadcast %cst_384 : f32 to vector<4x32xf32>
    %1010 = arith.subf %823, %1009 : vector<4x32xf32>
    %cst_385 = arith.constant 0.399999976 : f32
    %1011 = vector.broadcast %cst_385 : f32 to vector<4x32xf32>
    %1012 = arith.divf %1010, %1011 : vector<4x32xf32>
    %1013 = arith.mulf %1012, %902 : vector<4x32xf32>
    %cst_386 = arith.constant 2.200000e+00 : f32
    %1014 = vector.broadcast %cst_386 : f32 to vector<4x32xf32>
    %1015 = arith.subf %1014, %823 : vector<4x32xf32>
    %cst_387 = arith.constant 0.400000095 : f32
    %1016 = vector.broadcast %cst_387 : f32 to vector<4x32xf32>
    %1017 = arith.divf %1015, %1016 : vector<4x32xf32>
    %1018 = arith.mulf %1017, %909 : vector<4x32xf32>
    %1019 = arith.addf %1013, %1018 : vector<4x32xf32>
    %cst_388 = arith.constant -2.200000e+00 : f32
    %1020 = vector.broadcast %cst_388 : f32 to vector<4x32xf32>
    %1021 = arith.subf %823, %1020 : vector<4x32xf32>
    %cst_389 = arith.constant 0.800000071 : f32
    %1022 = vector.broadcast %cst_389 : f32 to vector<4x32xf32>
    %1023 = arith.divf %1021, %1022 : vector<4x32xf32>
    %1024 = arith.mulf %1023, %920 : vector<4x32xf32>
    %cst_390 = arith.constant -1.000000e+00 : f32
    %1025 = vector.broadcast %cst_390 : f32 to vector<4x32xf32>
    %1026 = arith.subf %1025, %823 : vector<4x32xf32>
    %cst_391 = arith.constant 0.799999952 : f32
    %1027 = vector.broadcast %cst_391 : f32 to vector<4x32xf32>
    %1028 = arith.divf %1026, %1027 : vector<4x32xf32>
    %1029 = arith.mulf %1028, %931 : vector<4x32xf32>
    %1030 = arith.addf %1024, %1029 : vector<4x32xf32>
    %cst_392 = arith.constant -1.800000e+00 : f32
    %1031 = vector.broadcast %cst_392 : f32 to vector<4x32xf32>
    %1032 = arith.subf %823, %1031 : vector<4x32xf32>
    %cst_393 = arith.constant 0.799999952 : f32
    %1033 = vector.broadcast %cst_393 : f32 to vector<4x32xf32>
    %1034 = arith.divf %1032, %1033 : vector<4x32xf32>
    %1035 = arith.mulf %1034, %931 : vector<4x32xf32>
    %cst_394 = arith.constant -6.000000e-01 : f32
    %1036 = vector.broadcast %cst_394 : f32 to vector<4x32xf32>
    %1037 = arith.subf %1036, %823 : vector<4x32xf32>
    %cst_395 = arith.constant 0.799999952 : f32
    %1038 = vector.broadcast %cst_395 : f32 to vector<4x32xf32>
    %1039 = arith.divf %1037, %1038 : vector<4x32xf32>
    %1040 = arith.mulf %1039, %942 : vector<4x32xf32>
    %1041 = arith.addf %1035, %1040 : vector<4x32xf32>
    %cst_396 = arith.constant -1.400000e+00 : f32
    %1042 = vector.broadcast %cst_396 : f32 to vector<4x32xf32>
    %1043 = arith.subf %823, %1042 : vector<4x32xf32>
    %cst_397 = arith.constant 0.799999952 : f32
    %1044 = vector.broadcast %cst_397 : f32 to vector<4x32xf32>
    %1045 = arith.divf %1043, %1044 : vector<4x32xf32>
    %1046 = arith.mulf %1045, %942 : vector<4x32xf32>
    %cst_398 = arith.constant -2.000000e-01 : f32
    %1047 = vector.broadcast %cst_398 : f32 to vector<4x32xf32>
    %1048 = arith.subf %1047, %823 : vector<4x32xf32>
    %cst_399 = arith.constant 8.000000e-01 : f32
    %1049 = vector.broadcast %cst_399 : f32 to vector<4x32xf32>
    %1050 = arith.divf %1048, %1049 : vector<4x32xf32>
    %1051 = arith.mulf %1050, %953 : vector<4x32xf32>
    %1052 = arith.addf %1046, %1051 : vector<4x32xf32>
    %cst_400 = arith.constant -1.000000e+00 : f32
    %1053 = vector.broadcast %cst_400 : f32 to vector<4x32xf32>
    %1054 = arith.subf %823, %1053 : vector<4x32xf32>
    %cst_401 = arith.constant 8.000000e-01 : f32
    %1055 = vector.broadcast %cst_401 : f32 to vector<4x32xf32>
    %1056 = arith.divf %1054, %1055 : vector<4x32xf32>
    %1057 = arith.mulf %1056, %953 : vector<4x32xf32>
    %cst_402 = arith.constant 2.000000e-01 : f32
    %1058 = vector.broadcast %cst_402 : f32 to vector<4x32xf32>
    %1059 = arith.subf %1058, %823 : vector<4x32xf32>
    %cst_403 = arith.constant 8.000000e-01 : f32
    %1060 = vector.broadcast %cst_403 : f32 to vector<4x32xf32>
    %1061 = arith.divf %1059, %1060 : vector<4x32xf32>
    %1062 = arith.mulf %1061, %964 : vector<4x32xf32>
    %1063 = arith.addf %1057, %1062 : vector<4x32xf32>
    %cst_404 = arith.constant -6.000000e-01 : f32
    %1064 = vector.broadcast %cst_404 : f32 to vector<4x32xf32>
    %1065 = arith.subf %823, %1064 : vector<4x32xf32>
    %cst_405 = arith.constant 8.000000e-01 : f32
    %1066 = vector.broadcast %cst_405 : f32 to vector<4x32xf32>
    %1067 = arith.divf %1065, %1066 : vector<4x32xf32>
    %1068 = arith.mulf %1067, %964 : vector<4x32xf32>
    %cst_406 = arith.constant 6.000000e-01 : f32
    %1069 = vector.broadcast %cst_406 : f32 to vector<4x32xf32>
    %1070 = arith.subf %1069, %823 : vector<4x32xf32>
    %cst_407 = arith.constant 8.000000e-01 : f32
    %1071 = vector.broadcast %cst_407 : f32 to vector<4x32xf32>
    %1072 = arith.divf %1070, %1071 : vector<4x32xf32>
    %1073 = arith.mulf %1072, %975 : vector<4x32xf32>
    %1074 = arith.addf %1068, %1073 : vector<4x32xf32>
    %cst_408 = arith.constant -2.000000e-01 : f32
    %1075 = vector.broadcast %cst_408 : f32 to vector<4x32xf32>
    %1076 = arith.subf %823, %1075 : vector<4x32xf32>
    %cst_409 = arith.constant 8.000000e-01 : f32
    %1077 = vector.broadcast %cst_409 : f32 to vector<4x32xf32>
    %1078 = arith.divf %1076, %1077 : vector<4x32xf32>
    %1079 = arith.mulf %1078, %975 : vector<4x32xf32>
    %cst_410 = arith.constant 1.000000e+00 : f32
    %1080 = vector.broadcast %cst_410 : f32 to vector<4x32xf32>
    %1081 = arith.subf %1080, %823 : vector<4x32xf32>
    %cst_411 = arith.constant 8.000000e-01 : f32
    %1082 = vector.broadcast %cst_411 : f32 to vector<4x32xf32>
    %1083 = arith.divf %1081, %1082 : vector<4x32xf32>
    %1084 = arith.mulf %1083, %986 : vector<4x32xf32>
    %1085 = arith.addf %1079, %1084 : vector<4x32xf32>
    %cst_412 = arith.constant 2.000000e-01 : f32
    %1086 = vector.broadcast %cst_412 : f32 to vector<4x32xf32>
    %1087 = arith.subf %823, %1086 : vector<4x32xf32>
    %cst_413 = arith.constant 8.000000e-01 : f32
    %1088 = vector.broadcast %cst_413 : f32 to vector<4x32xf32>
    %1089 = arith.divf %1087, %1088 : vector<4x32xf32>
    %1090 = arith.mulf %1089, %986 : vector<4x32xf32>
    %cst_414 = arith.constant 1.400000e+00 : f32
    %1091 = vector.broadcast %cst_414 : f32 to vector<4x32xf32>
    %1092 = arith.subf %1091, %823 : vector<4x32xf32>
    %cst_415 = arith.constant 0.799999952 : f32
    %1093 = vector.broadcast %cst_415 : f32 to vector<4x32xf32>
    %1094 = arith.divf %1092, %1093 : vector<4x32xf32>
    %1095 = arith.mulf %1094, %997 : vector<4x32xf32>
    %1096 = arith.addf %1090, %1095 : vector<4x32xf32>
    %cst_416 = arith.constant 6.000000e-01 : f32
    %1097 = vector.broadcast %cst_416 : f32 to vector<4x32xf32>
    %1098 = arith.subf %823, %1097 : vector<4x32xf32>
    %cst_417 = arith.constant 0.799999952 : f32
    %1099 = vector.broadcast %cst_417 : f32 to vector<4x32xf32>
    %1100 = arith.divf %1098, %1099 : vector<4x32xf32>
    %1101 = arith.mulf %1100, %997 : vector<4x32xf32>
    %cst_418 = arith.constant 1.800000e+00 : f32
    %1102 = vector.broadcast %cst_418 : f32 to vector<4x32xf32>
    %1103 = arith.subf %1102, %823 : vector<4x32xf32>
    %cst_419 = arith.constant 0.799999952 : f32
    %1104 = vector.broadcast %cst_419 : f32 to vector<4x32xf32>
    %1105 = arith.divf %1103, %1104 : vector<4x32xf32>
    %1106 = arith.mulf %1105, %1008 : vector<4x32xf32>
    %1107 = arith.addf %1101, %1106 : vector<4x32xf32>
    %cst_420 = arith.constant 1.000000e+00 : f32
    %1108 = vector.broadcast %cst_420 : f32 to vector<4x32xf32>
    %1109 = arith.subf %823, %1108 : vector<4x32xf32>
    %cst_421 = arith.constant 0.799999952 : f32
    %1110 = vector.broadcast %cst_421 : f32 to vector<4x32xf32>
    %1111 = arith.divf %1109, %1110 : vector<4x32xf32>
    %1112 = arith.mulf %1111, %1008 : vector<4x32xf32>
    %cst_422 = arith.constant 2.200000e+00 : f32
    %1113 = vector.broadcast %cst_422 : f32 to vector<4x32xf32>
    %1114 = arith.subf %1113, %823 : vector<4x32xf32>
    %cst_423 = arith.constant 0.800000071 : f32
    %1115 = vector.broadcast %cst_423 : f32 to vector<4x32xf32>
    %1116 = arith.divf %1114, %1115 : vector<4x32xf32>
    %1117 = arith.mulf %1116, %1019 : vector<4x32xf32>
    %1118 = arith.addf %1112, %1117 : vector<4x32xf32>
    %cst_424 = arith.constant -2.200000e+00 : f32
    %1119 = vector.broadcast %cst_424 : f32 to vector<4x32xf32>
    %1120 = arith.subf %823, %1119 : vector<4x32xf32>
    %cst_425 = arith.constant 1.200000e+00 : f32
    %1121 = vector.broadcast %cst_425 : f32 to vector<4x32xf32>
    %1122 = arith.divf %1120, %1121 : vector<4x32xf32>
    %1123 = arith.mulf %1122, %1030 : vector<4x32xf32>
    %cst_426 = arith.constant -6.000000e-01 : f32
    %1124 = vector.broadcast %cst_426 : f32 to vector<4x32xf32>
    %1125 = arith.subf %1124, %823 : vector<4x32xf32>
    %cst_427 = arith.constant 1.19999993 : f32
    %1126 = vector.broadcast %cst_427 : f32 to vector<4x32xf32>
    %1127 = arith.divf %1125, %1126 : vector<4x32xf32>
    %1128 = arith.mulf %1127, %1041 : vector<4x32xf32>
    %1129 = arith.addf %1123, %1128 : vector<4x32xf32>
    %cst_428 = arith.constant -1.800000e+00 : f32
    %1130 = vector.broadcast %cst_428 : f32 to vector<4x32xf32>
    %1131 = arith.subf %823, %1130 : vector<4x32xf32>
    %cst_429 = arith.constant 1.19999993 : f32
    %1132 = vector.broadcast %cst_429 : f32 to vector<4x32xf32>
    %1133 = arith.divf %1131, %1132 : vector<4x32xf32>
    %1134 = arith.mulf %1133, %1041 : vector<4x32xf32>
    %cst_430 = arith.constant -2.000000e-01 : f32
    %1135 = vector.broadcast %cst_430 : f32 to vector<4x32xf32>
    %1136 = arith.subf %1135, %823 : vector<4x32xf32>
    %cst_431 = arith.constant 1.19999993 : f32
    %1137 = vector.broadcast %cst_431 : f32 to vector<4x32xf32>
    %1138 = arith.divf %1136, %1137 : vector<4x32xf32>
    %1139 = arith.mulf %1138, %1052 : vector<4x32xf32>
    %1140 = arith.addf %1134, %1139 : vector<4x32xf32>
    %cst_432 = arith.constant -1.400000e+00 : f32
    %1141 = vector.broadcast %cst_432 : f32 to vector<4x32xf32>
    %1142 = arith.subf %823, %1141 : vector<4x32xf32>
    %cst_433 = arith.constant 1.19999993 : f32
    %1143 = vector.broadcast %cst_433 : f32 to vector<4x32xf32>
    %1144 = arith.divf %1142, %1143 : vector<4x32xf32>
    %1145 = arith.mulf %1144, %1052 : vector<4x32xf32>
    %cst_434 = arith.constant 2.000000e-01 : f32
    %1146 = vector.broadcast %cst_434 : f32 to vector<4x32xf32>
    %1147 = arith.subf %1146, %823 : vector<4x32xf32>
    %cst_435 = arith.constant 1.200000e+00 : f32
    %1148 = vector.broadcast %cst_435 : f32 to vector<4x32xf32>
    %1149 = arith.divf %1147, %1148 : vector<4x32xf32>
    %1150 = arith.mulf %1149, %1063 : vector<4x32xf32>
    %1151 = arith.addf %1145, %1150 : vector<4x32xf32>
    %cst_436 = arith.constant -1.000000e+00 : f32
    %1152 = vector.broadcast %cst_436 : f32 to vector<4x32xf32>
    %1153 = arith.subf %823, %1152 : vector<4x32xf32>
    %cst_437 = arith.constant 1.200000e+00 : f32
    %1154 = vector.broadcast %cst_437 : f32 to vector<4x32xf32>
    %1155 = arith.divf %1153, %1154 : vector<4x32xf32>
    %1156 = arith.mulf %1155, %1063 : vector<4x32xf32>
    %cst_438 = arith.constant 6.000000e-01 : f32
    %1157 = vector.broadcast %cst_438 : f32 to vector<4x32xf32>
    %1158 = arith.subf %1157, %823 : vector<4x32xf32>
    %cst_439 = arith.constant 1.200000e+00 : f32
    %1159 = vector.broadcast %cst_439 : f32 to vector<4x32xf32>
    %1160 = arith.divf %1158, %1159 : vector<4x32xf32>
    %1161 = arith.mulf %1160, %1074 : vector<4x32xf32>
    %1162 = arith.addf %1156, %1161 : vector<4x32xf32>
    %cst_440 = arith.constant -6.000000e-01 : f32
    %1163 = vector.broadcast %cst_440 : f32 to vector<4x32xf32>
    %1164 = arith.subf %823, %1163 : vector<4x32xf32>
    %cst_441 = arith.constant 1.200000e+00 : f32
    %1165 = vector.broadcast %cst_441 : f32 to vector<4x32xf32>
    %1166 = arith.divf %1164, %1165 : vector<4x32xf32>
    %1167 = arith.mulf %1166, %1074 : vector<4x32xf32>
    %cst_442 = arith.constant 1.000000e+00 : f32
    %1168 = vector.broadcast %cst_442 : f32 to vector<4x32xf32>
    %1169 = arith.subf %1168, %823 : vector<4x32xf32>
    %cst_443 = arith.constant 1.200000e+00 : f32
    %1170 = vector.broadcast %cst_443 : f32 to vector<4x32xf32>
    %1171 = arith.divf %1169, %1170 : vector<4x32xf32>
    %1172 = arith.mulf %1171, %1085 : vector<4x32xf32>
    %1173 = arith.addf %1167, %1172 : vector<4x32xf32>
    %cst_444 = arith.constant -2.000000e-01 : f32
    %1174 = vector.broadcast %cst_444 : f32 to vector<4x32xf32>
    %1175 = arith.subf %823, %1174 : vector<4x32xf32>
    %cst_445 = arith.constant 1.200000e+00 : f32
    %1176 = vector.broadcast %cst_445 : f32 to vector<4x32xf32>
    %1177 = arith.divf %1175, %1176 : vector<4x32xf32>
    %1178 = arith.mulf %1177, %1085 : vector<4x32xf32>
    %cst_446 = arith.constant 1.400000e+00 : f32
    %1179 = vector.broadcast %cst_446 : f32 to vector<4x32xf32>
    %1180 = arith.subf %1179, %823 : vector<4x32xf32>
    %cst_447 = arith.constant 1.19999993 : f32
    %1181 = vector.broadcast %cst_447 : f32 to vector<4x32xf32>
    %1182 = arith.divf %1180, %1181 : vector<4x32xf32>
    %1183 = arith.mulf %1182, %1096 : vector<4x32xf32>
    %1184 = arith.addf %1178, %1183 : vector<4x32xf32>
    %cst_448 = arith.constant 2.000000e-01 : f32
    %1185 = vector.broadcast %cst_448 : f32 to vector<4x32xf32>
    %1186 = arith.subf %823, %1185 : vector<4x32xf32>
    %cst_449 = arith.constant 1.19999993 : f32
    %1187 = vector.broadcast %cst_449 : f32 to vector<4x32xf32>
    %1188 = arith.divf %1186, %1187 : vector<4x32xf32>
    %1189 = arith.mulf %1188, %1096 : vector<4x32xf32>
    %cst_450 = arith.constant 1.800000e+00 : f32
    %1190 = vector.broadcast %cst_450 : f32 to vector<4x32xf32>
    %1191 = arith.subf %1190, %823 : vector<4x32xf32>
    %cst_451 = arith.constant 1.19999993 : f32
    %1192 = vector.broadcast %cst_451 : f32 to vector<4x32xf32>
    %1193 = arith.divf %1191, %1192 : vector<4x32xf32>
    %1194 = arith.mulf %1193, %1107 : vector<4x32xf32>
    %1195 = arith.addf %1189, %1194 : vector<4x32xf32>
    %cst_452 = arith.constant 6.000000e-01 : f32
    %1196 = vector.broadcast %cst_452 : f32 to vector<4x32xf32>
    %1197 = arith.subf %823, %1196 : vector<4x32xf32>
    %cst_453 = arith.constant 1.19999993 : f32
    %1198 = vector.broadcast %cst_453 : f32 to vector<4x32xf32>
    %1199 = arith.divf %1197, %1198 : vector<4x32xf32>
    %1200 = arith.mulf %1199, %1107 : vector<4x32xf32>
    %cst_454 = arith.constant 2.200000e+00 : f32
    %1201 = vector.broadcast %cst_454 : f32 to vector<4x32xf32>
    %1202 = arith.subf %1201, %823 : vector<4x32xf32>
    %cst_455 = arith.constant 1.200000e+00 : f32
    %1203 = vector.broadcast %cst_455 : f32 to vector<4x32xf32>
    %1204 = arith.divf %1202, %1203 : vector<4x32xf32>
    %1205 = arith.mulf %1204, %1118 : vector<4x32xf32>
    %1206 = arith.addf %1200, %1205 : vector<4x32xf32>
    %c0_456 = arith.constant 0 : index
    %c32_457 = arith.constant 32 : index
    %1207 = vector.load %arg11[%c0_456, %c32_457] : memref<4x288xf32, #tpu.memory_space<vmem>>, vector<4x32xf32>
    tpu.vector_store %arg11[%c0_456, %c32_457], %1129 {strides = array<i32>} : memref<4x288xf32, #tpu.memory_space<vmem>>, vector<4x32xf32>,
    %c0_458 = arith.constant 0 : index
    %c64_459 = arith.constant 64 : index
    %1208 = vector.load %arg11[%c0_458, %c64_459] : memref<4x288xf32, #tpu.memory_space<vmem>>, vector<4x32xf32>
    tpu.vector_store %arg11[%c0_458, %c64_459], %1140 {strides = array<i32>} : memref<4x288xf32, #tpu.memory_space<vmem>>, vector<4x32xf32>,
    %c0_460 = arith.constant 0 : index
    %c96_461 = arith.constant 96 : index
    %1209 = vector.load %arg11[%c0_460, %c96_461] : memref<4x288xf32, #tpu.memory_space<vmem>>, vector<4x32xf32>
    tpu.vector_store %arg11[%c0_460, %c96_461], %1151 {strides = array<i32>} : memref<4x288xf32, #tpu.memory_space<vmem>>, vector<4x32xf32>,
    %c0_462 = arith.constant 0 : index
    %c128_463 = arith.constant 128 : index
    %1210 = vector.load %arg11[%c0_462, %c128_463] : memref<4x288xf32, #tpu.memory_space<vmem>>, vector<4x32xf32>
    tpu.vector_store %arg11[%c0_462, %c128_463], %1162 {strides = array<i32>} : memref<4x288xf32, #tpu.memory_space<vmem>>, vector<4x32xf32>,
    %c0_464 = arith.constant 0 : index
    %c160_465 = arith.constant 160 : index
    %1211 = vector.load %arg11[%c0_464, %c160_465] : memref<4x288xf32, #tpu.memory_space<vmem>>, vector<4x32xf32>
    tpu.vector_store %arg11[%c0_464, %c160_465], %1173 {strides = array<i32>} : memref<4x288xf32, #tpu.memory_space<vmem>>, vector<4x32xf32>,
    %c0_466 = arith.constant 0 : index
    %c192_467 = arith.constant 192 : index
    %1212 = vector.load %arg11[%c0_466, %c192_467] : memref<4x288xf32, #tpu.memory_space<vmem>>, vector<4x32xf32>
    tpu.vector_store %arg11[%c0_466, %c192_467], %1184 {strides = array<i32>} : memref<4x288xf32, #tpu.memory_space<vmem>>, vector<4x32xf32>,
    %c0_468 = arith.constant 0 : index
    %c224_469 = arith.constant 224 : index
    %1213 = vector.load %arg11[%c0_468, %c224_469] : memref<4x288xf32, #tpu.memory_space<vmem>>, vector<4x32xf32>
    tpu.vector_store %arg11[%c0_468, %c224_469], %1195 {strides = array<i32>} : memref<4x288xf32, #tpu.memory_space<vmem>>, vector<4x32xf32>,
    %c0_470 = arith.constant 0 : index
    %c256_471 = arith.constant 256 : index
    %1214 = vector.load %arg11[%c0_470, %c256_471] : memref<4x288xf32, #tpu.memory_space<vmem>>, vector<4x32xf32>
    tpu.vector_store %arg11[%c0_470, %c256_471], %1206 {strides = array<i32>} : memref<4x288xf32, #tpu.memory_space<vmem>>, vector<4x32xf32>,
    %c0_472 = arith.constant 0 : index
    %c0_473 = arith.constant 0 : index
    %1215 = vector.load %arg11[%c0_472, %c0_473] : memref<4x288xf32, #tpu.memory_space<vmem>>, vector<4x288xf32>
    %c0_474 = arith.constant 0 : index
    %c0_475 = arith.constant 0 : index
    %1216 = vector.load %arg5[%c0_474, %c0_475] : memref<288x24xf32, #tpu.memory_space<vmem>>, vector<288x24xf32>
    %cst_476 = arith.constant dense<0.000000e+00> : vector<4x24xf32>
    %1217 = tpu.matmul %1215, %1216, %cst_476 {dimension_numbers = #tpu.dot_dimension_numbers<[1], [0], [0], [1], [0, 0, 1, 1], [], []>} : vector<4x288xf32>, vector<288x24xf32>, vector<4x24xf32> -> vector<4x24xf32>
    %1218 = vector.extract_strided_slice %1217 {offsets = [0, 0], sizes = [4, 16], strides = [1, 1]} : vector<4x24xf32> to vector<4x16xf32>
    %1219 = vector.extract_strided_slice %1217 {offsets = [0, 16], sizes = [4, 8], strides = [1, 1]} : vector<4x24xf32> to vector<4x8xf32>
    %1220 = arith.subf %0, %1218 : vector<4x16xf32>
    %1221 = arith.mulf %1220, %1 : vector<4x16xf32>
    %1222 = arith.addf %2, %1219 : vector<4x8xf32>
    %1223 = vector.extract_strided_slice %1221 {offsets = [0, 0], sizes = [4, 4], strides = [1, 1]} : vector<4x16xf32> to vector<4x4xf32>
    %cst_477 = arith.constant dense<0xFF800000> : vector<4xf32>
    %1224 = vector.multi_reduction <maximumf>, %1223, %cst_477 [1] : vector<4x4xf32> to vector<4xf32>
    %1225 = vector.shape_cast %1224 : vector<4xf32> to vector<4x1xf32>
    %c0_478 = arith.constant 0 : index
    %c0_479 = arith.constant 0 : index
    %1226 = vector.load %arg10[%c0_478, %c0_479] : memref<4x8xf32, #tpu.memory_space<vmem>>, vector<4x1xf32>
    tpu.vector_store %arg10[%c0_478, %c0_479], %1225 {strides = array<i32>} : memref<4x8xf32, #tpu.memory_space<vmem>>, vector<4x1xf32>,
    %1227 = vector.extract_strided_slice %1221 {offsets = [0, 4], sizes = [4, 4], strides = [1, 1]} : vector<4x16xf32> to vector<4x4xf32>
    %cst_480 = arith.constant dense<0xFF800000> : vector<4xf32>
    %1228 = vector.multi_reduction <maximumf>, %1227, %cst_480 [1] : vector<4x4xf32> to vector<4xf32>
    %1229 = vector.shape_cast %1228 : vector<4xf32> to vector<4x1xf32>
    %c0_481 = arith.constant 0 : index
    %c1_482 = arith.constant 1 : index
    %1230 = vector.load %arg10[%c0_481, %c1_482] : memref<4x8xf32, #tpu.memory_space<vmem>>, vector<4x1xf32>
    tpu.vector_store %arg10[%c0_481, %c1_482], %1229 {strides = array<i32>} : memref<4x8xf32, #tpu.memory_space<vmem>>, vector<4x1xf32>,
    %1231 = vector.extract_strided_slice %1221 {offsets = [0, 8], sizes = [4, 4], strides = [1, 1]} : vector<4x16xf32> to vector<4x4xf32>
    %cst_483 = arith.constant dense<0xFF800000> : vector<4xf32>
    %1232 = vector.multi_reduction <maximumf>, %1231, %cst_483 [1] : vector<4x4xf32> to vector<4xf32>
    %1233 = vector.shape_cast %1232 : vector<4xf32> to vector<4x1xf32>
    %c0_484 = arith.constant 0 : index
    %c2_485 = arith.constant 2 : index
    %1234 = vector.load %arg10[%c0_484, %c2_485] : memref<4x8xf32, #tpu.memory_space<vmem>>, vector<4x1xf32>
    tpu.vector_store %arg10[%c0_484, %c2_485], %1233 {strides = array<i32>} : memref<4x8xf32, #tpu.memory_space<vmem>>, vector<4x1xf32>,
    %1235 = vector.extract_strided_slice %1221 {offsets = [0, 12], sizes = [4, 4], strides = [1, 1]} : vector<4x16xf32> to vector<4x4xf32>
    %cst_486 = arith.constant dense<0xFF800000> : vector<4xf32>
    %1236 = vector.multi_reduction <maximumf>, %1235, %cst_486 [1] : vector<4x4xf32> to vector<4xf32>
    %1237 = vector.shape_cast %1236 : vector<4xf32> to vector<4x1xf32>
    %c0_487 = arith.constant 0 : index
    %c3_488 = arith.constant 3 : index
    %1238 = vector.load %arg10[%c0_487, %c3_488] : memref<4x8xf32, #tpu.memory_space<vmem>>, vector<4x1xf32>
    tpu.vector_store %arg10[%c0_487, %c3_488], %1237 {strides = array<i32>} : memref<4x8xf32, #tpu.memory_space<vmem>>, vector<4x1xf32>,
    %c0_489 = arith.constant 0 : index
    %c0_490 = arith.constant 0 : index
    %1239 = vector.load %arg10[%c0_489, %c0_490] : memref<4x8xf32, #tpu.memory_space<vmem>>, vector<4x4xf32>
    %cst_491 = arith.constant 0.000000e+00 : f32
    %1240 = vector.broadcast %cst_491 : f32 to vector<4x4xf32>
    %1241 = arith.subf %1240, %1239 : vector<4x4xf32>
    %1242 = math.exp %1241 : vector<4x4xf32>
    %cst_492 = arith.constant 1.000000e+00 : f32
    %1243 = vector.broadcast %cst_492 : f32 to vector<4x4xf32>
    %1244 = arith.addf %1243, %1242 : vector<4x4xf32>
    %cst_493 = arith.constant 1.000000e+00 : f32
    %1245 = vector.broadcast %cst_493 : f32 to vector<4x4xf32>
    %1246 = arith.divf %1245, %1244 : vector<4x4xf32>
    %1247 = arith.mulf %1239, %1246 : vector<4x4xf32>
    %c0_494 = arith.constant 0 : index
    %c0_495 = arith.constant 0 : index
    %1248 = vector.load %arg11[%c0_494, %c0_495] : memref<4x288xf32, #tpu.memory_space<vmem>>, vector<4x4xf32>
    tpu.vector_store %arg11[%c0_494, %c0_495], %1247 {strides = array<i32>} : memref<4x288xf32, #tpu.memory_space<vmem>>, vector<4x4xf32>,
    %cst_496 = arith.constant -2.200000e+00 : f32
    %1249 = vector.broadcast %cst_496 : f32 to vector<4x4xf32>
    %1250 = arith.cmpf oge, %1239, %1249 : vector<4x4xf32>
    %cst_497 = arith.constant -1.800000e+00 : f32
    %1251 = vector.broadcast %cst_497 : f32 to vector<4x4xf32>
    %1252 = arith.cmpf olt, %1239, %1251 : vector<4x4xf32>
    %1253 = arith.andi %1250, %1252 : vector<4x4xi1>
    %1254 = arith.extui %1253 : vector<4x4xi1> to vector<4x4xi32>
    %1255 = arith.sitofp %1254 : vector<4x4xi32> to vector<4x4xf32>
    %cst_498 = arith.constant -1.800000e+00 : f32
    %1256 = vector.broadcast %cst_498 : f32 to vector<4x4xf32>
    %1257 = arith.cmpf oge, %1239, %1256 : vector<4x4xf32>
    %cst_499 = arith.constant -1.400000e+00 : f32
    %1258 = vector.broadcast %cst_499 : f32 to vector<4x4xf32>
    %1259 = arith.cmpf olt, %1239, %1258 : vector<4x4xf32>
    %1260 = arith.andi %1257, %1259 : vector<4x4xi1>
    %1261 = arith.extui %1260 : vector<4x4xi1> to vector<4x4xi32>
    %1262 = arith.sitofp %1261 : vector<4x4xi32> to vector<4x4xf32>
    %cst_500 = arith.constant -1.400000e+00 : f32
    %1263 = vector.broadcast %cst_500 : f32 to vector<4x4xf32>
    %1264 = arith.cmpf oge, %1239, %1263 : vector<4x4xf32>
    %cst_501 = arith.constant -1.000000e+00 : f32
    %1265 = vector.broadcast %cst_501 : f32 to vector<4x4xf32>
    %1266 = arith.cmpf olt, %1239, %1265 : vector<4x4xf32>
    %1267 = arith.andi %1264, %1266 : vector<4x4xi1>
    %1268 = arith.extui %1267 : vector<4x4xi1> to vector<4x4xi32>
    %1269 = arith.sitofp %1268 : vector<4x4xi32> to vector<4x4xf32>
    %cst_502 = arith.constant -1.000000e+00 : f32
    %1270 = vector.broadcast %cst_502 : f32 to vector<4x4xf32>
    %1271 = arith.cmpf oge, %1239, %1270 : vector<4x4xf32>
    %cst_503 = arith.constant -6.000000e-01 : f32
    %1272 = vector.broadcast %cst_503 : f32 to vector<4x4xf32>
    %1273 = arith.cmpf olt, %1239, %1272 : vector<4x4xf32>
    %1274 = arith.andi %1271, %1273 : vector<4x4xi1>
    %1275 = arith.extui %1274 : vector<4x4xi1> to vector<4x4xi32>
    %1276 = arith.sitofp %1275 : vector<4x4xi32> to vector<4x4xf32>
    %cst_504 = arith.constant -6.000000e-01 : f32
    %1277 = vector.broadcast %cst_504 : f32 to vector<4x4xf32>
    %1278 = arith.cmpf oge, %1239, %1277 : vector<4x4xf32>
    %cst_505 = arith.constant -2.000000e-01 : f32
    %1279 = vector.broadcast %cst_505 : f32 to vector<4x4xf32>
    %1280 = arith.cmpf olt, %1239, %1279 : vector<4x4xf32>
    %1281 = arith.andi %1278, %1280 : vector<4x4xi1>
    %1282 = arith.extui %1281 : vector<4x4xi1> to vector<4x4xi32>
    %1283 = arith.sitofp %1282 : vector<4x4xi32> to vector<4x4xf32>
    %cst_506 = arith.constant -2.000000e-01 : f32
    %1284 = vector.broadcast %cst_506 : f32 to vector<4x4xf32>
    %1285 = arith.cmpf oge, %1239, %1284 : vector<4x4xf32>
    %cst_507 = arith.constant 2.000000e-01 : f32
    %1286 = vector.broadcast %cst_507 : f32 to vector<4x4xf32>
    %1287 = arith.cmpf olt, %1239, %1286 : vector<4x4xf32>
    %1288 = arith.andi %1285, %1287 : vector<4x4xi1>
    %1289 = arith.extui %1288 : vector<4x4xi1> to vector<4x4xi32>
    %1290 = arith.sitofp %1289 : vector<4x4xi32> to vector<4x4xf32>
    %cst_508 = arith.constant 2.000000e-01 : f32
    %1291 = vector.broadcast %cst_508 : f32 to vector<4x4xf32>
    %1292 = arith.cmpf oge, %1239, %1291 : vector<4x4xf32>
    %cst_509 = arith.constant 6.000000e-01 : f32
    %1293 = vector.broadcast %cst_509 : f32 to vector<4x4xf32>
    %1294 = arith.cmpf olt, %1239, %1293 : vector<4x4xf32>
    %1295 = arith.andi %1292, %1294 : vector<4x4xi1>
    %1296 = arith.extui %1295 : vector<4x4xi1> to vector<4x4xi32>
    %1297 = arith.sitofp %1296 : vector<4x4xi32> to vector<4x4xf32>
    %cst_510 = arith.constant 6.000000e-01 : f32
    %1298 = vector.broadcast %cst_510 : f32 to vector<4x4xf32>
    %1299 = arith.cmpf oge, %1239, %1298 : vector<4x4xf32>
    %cst_511 = arith.constant 1.000000e+00 : f32
    %1300 = vector.broadcast %cst_511 : f32 to vector<4x4xf32>
    %1301 = arith.cmpf olt, %1239, %1300 : vector<4x4xf32>
    %1302 = arith.andi %1299, %1301 : vector<4x4xi1>
    %1303 = arith.extui %1302 : vector<4x4xi1> to vector<4x4xi32>
    %1304 = arith.sitofp %1303 : vector<4x4xi32> to vector<4x4xf32>
    %cst_512 = arith.constant 1.000000e+00 : f32
    %1305 = vector.broadcast %cst_512 : f32 to vector<4x4xf32>
    %1306 = arith.cmpf oge, %1239, %1305 : vector<4x4xf32>
    %cst_513 = arith.constant 1.400000e+00 : f32
    %1307 = vector.broadcast %cst_513 : f32 to vector<4x4xf32>
    %1308 = arith.cmpf olt, %1239, %1307 : vector<4x4xf32>
    %1309 = arith.andi %1306, %1308 : vector<4x4xi1>
    %1310 = arith.extui %1309 : vector<4x4xi1> to vector<4x4xi32>
    %1311 = arith.sitofp %1310 : vector<4x4xi32> to vector<4x4xf32>
    %cst_514 = arith.constant 1.400000e+00 : f32
    %1312 = vector.broadcast %cst_514 : f32 to vector<4x4xf32>
    %1313 = arith.cmpf oge, %1239, %1312 : vector<4x4xf32>
    %cst_515 = arith.constant 1.800000e+00 : f32
    %1314 = vector.broadcast %cst_515 : f32 to vector<4x4xf32>
    %1315 = arith.cmpf olt, %1239, %1314 : vector<4x4xf32>
    %1316 = arith.andi %1313, %1315 : vector<4x4xi1>
    %1317 = arith.extui %1316 : vector<4x4xi1> to vector<4x4xi32>
    %1318 = arith.sitofp %1317 : vector<4x4xi32> to vector<4x4xf32>
    %cst_516 = arith.constant 1.800000e+00 : f32
    %1319 = vector.broadcast %cst_516 : f32 to vector<4x4xf32>
    %1320 = arith.cmpf oge, %1239, %1319 : vector<4x4xf32>
    %cst_517 = arith.constant 2.200000e+00 : f32
    %1321 = vector.broadcast %cst_517 : f32 to vector<4x4xf32>
    %1322 = arith.cmpf olt, %1239, %1321 : vector<4x4xf32>
    %1323 = arith.andi %1320, %1322 : vector<4x4xi1>
    %1324 = arith.extui %1323 : vector<4x4xi1> to vector<4x4xi32>
    %1325 = arith.sitofp %1324 : vector<4x4xi32> to vector<4x4xf32>
    %cst_518 = arith.constant -2.200000e+00 : f32
    %1326 = vector.broadcast %cst_518 : f32 to vector<4x4xf32>
    %1327 = arith.subf %1239, %1326 : vector<4x4xf32>
    %cst_519 = arith.constant 0.400000095 : f32
    %1328 = vector.broadcast %cst_519 : f32 to vector<4x4xf32>
    %1329 = arith.divf %1327, %1328 : vector<4x4xf32>
    %1330 = arith.mulf %1329, %1255 : vector<4x4xf32>
    %cst_520 = arith.constant -1.400000e+00 : f32
    %1331 = vector.broadcast %cst_520 : f32 to vector<4x4xf32>
    %1332 = arith.subf %1331, %1239 : vector<4x4xf32>
    %cst_521 = arith.constant 0.399999976 : f32
    %1333 = vector.broadcast %cst_521 : f32 to vector<4x4xf32>
    %1334 = arith.divf %1332, %1333 : vector<4x4xf32>
    %1335 = arith.mulf %1334, %1262 : vector<4x4xf32>
    %1336 = arith.addf %1330, %1335 : vector<4x4xf32>
    %cst_522 = arith.constant -1.800000e+00 : f32
    %1337 = vector.broadcast %cst_522 : f32 to vector<4x4xf32>
    %1338 = arith.subf %1239, %1337 : vector<4x4xf32>
    %cst_523 = arith.constant 0.399999976 : f32
    %1339 = vector.broadcast %cst_523 : f32 to vector<4x4xf32>
    %1340 = arith.divf %1338, %1339 : vector<4x4xf32>
    %1341 = arith.mulf %1340, %1262 : vector<4x4xf32>
    %cst_524 = arith.constant -1.000000e+00 : f32
    %1342 = vector.broadcast %cst_524 : f32 to vector<4x4xf32>
    %1343 = arith.subf %1342, %1239 : vector<4x4xf32>
    %cst_525 = arith.constant 0.399999976 : f32
    %1344 = vector.broadcast %cst_525 : f32 to vector<4x4xf32>
    %1345 = arith.divf %1343, %1344 : vector<4x4xf32>
    %1346 = arith.mulf %1345, %1269 : vector<4x4xf32>
    %1347 = arith.addf %1341, %1346 : vector<4x4xf32>
    %cst_526 = arith.constant -1.400000e+00 : f32
    %1348 = vector.broadcast %cst_526 : f32 to vector<4x4xf32>
    %1349 = arith.subf %1239, %1348 : vector<4x4xf32>
    %cst_527 = arith.constant 0.399999976 : f32
    %1350 = vector.broadcast %cst_527 : f32 to vector<4x4xf32>
    %1351 = arith.divf %1349, %1350 : vector<4x4xf32>
    %1352 = arith.mulf %1351, %1269 : vector<4x4xf32>
    %cst_528 = arith.constant -6.000000e-01 : f32
    %1353 = vector.broadcast %cst_528 : f32 to vector<4x4xf32>
    %1354 = arith.subf %1353, %1239 : vector<4x4xf32>
    %cst_529 = arith.constant 0.399999976 : f32
    %1355 = vector.broadcast %cst_529 : f32 to vector<4x4xf32>
    %1356 = arith.divf %1354, %1355 : vector<4x4xf32>
    %1357 = arith.mulf %1356, %1276 : vector<4x4xf32>
    %1358 = arith.addf %1352, %1357 : vector<4x4xf32>
    %cst_530 = arith.constant -1.000000e+00 : f32
    %1359 = vector.broadcast %cst_530 : f32 to vector<4x4xf32>
    %1360 = arith.subf %1239, %1359 : vector<4x4xf32>
    %cst_531 = arith.constant 0.399999976 : f32
    %1361 = vector.broadcast %cst_531 : f32 to vector<4x4xf32>
    %1362 = arith.divf %1360, %1361 : vector<4x4xf32>
    %1363 = arith.mulf %1362, %1276 : vector<4x4xf32>
    %cst_532 = arith.constant -2.000000e-01 : f32
    %1364 = vector.broadcast %cst_532 : f32 to vector<4x4xf32>
    %1365 = arith.subf %1364, %1239 : vector<4x4xf32>
    %cst_533 = arith.constant 0.400000036 : f32
    %1366 = vector.broadcast %cst_533 : f32 to vector<4x4xf32>
    %1367 = arith.divf %1365, %1366 : vector<4x4xf32>
    %1368 = arith.mulf %1367, %1283 : vector<4x4xf32>
    %1369 = arith.addf %1363, %1368 : vector<4x4xf32>
    %cst_534 = arith.constant -6.000000e-01 : f32
    %1370 = vector.broadcast %cst_534 : f32 to vector<4x4xf32>
    %1371 = arith.subf %1239, %1370 : vector<4x4xf32>
    %cst_535 = arith.constant 0.400000036 : f32
    %1372 = vector.broadcast %cst_535 : f32 to vector<4x4xf32>
    %1373 = arith.divf %1371, %1372 : vector<4x4xf32>
    %1374 = arith.mulf %1373, %1283 : vector<4x4xf32>
    %cst_536 = arith.constant 2.000000e-01 : f32
    %1375 = vector.broadcast %cst_536 : f32 to vector<4x4xf32>
    %1376 = arith.subf %1375, %1239 : vector<4x4xf32>
    %cst_537 = arith.constant 4.000000e-01 : f32
    %1377 = vector.broadcast %cst_537 : f32 to vector<4x4xf32>
    %1378 = arith.divf %1376, %1377 : vector<4x4xf32>
    %1379 = arith.mulf %1378, %1290 : vector<4x4xf32>
    %1380 = arith.addf %1374, %1379 : vector<4x4xf32>
    %cst_538 = arith.constant -2.000000e-01 : f32
    %1381 = vector.broadcast %cst_538 : f32 to vector<4x4xf32>
    %1382 = arith.subf %1239, %1381 : vector<4x4xf32>
    %cst_539 = arith.constant 4.000000e-01 : f32
    %1383 = vector.broadcast %cst_539 : f32 to vector<4x4xf32>
    %1384 = arith.divf %1382, %1383 : vector<4x4xf32>
    %1385 = arith.mulf %1384, %1290 : vector<4x4xf32>
    %cst_540 = arith.constant 6.000000e-01 : f32
    %1386 = vector.broadcast %cst_540 : f32 to vector<4x4xf32>
    %1387 = arith.subf %1386, %1239 : vector<4x4xf32>
    %cst_541 = arith.constant 0.400000036 : f32
    %1388 = vector.broadcast %cst_541 : f32 to vector<4x4xf32>
    %1389 = arith.divf %1387, %1388 : vector<4x4xf32>
    %1390 = arith.mulf %1389, %1297 : vector<4x4xf32>
    %1391 = arith.addf %1385, %1390 : vector<4x4xf32>
    %cst_542 = arith.constant 2.000000e-01 : f32
    %1392 = vector.broadcast %cst_542 : f32 to vector<4x4xf32>
    %1393 = arith.subf %1239, %1392 : vector<4x4xf32>
    %cst_543 = arith.constant 0.400000036 : f32
    %1394 = vector.broadcast %cst_543 : f32 to vector<4x4xf32>
    %1395 = arith.divf %1393, %1394 : vector<4x4xf32>
    %1396 = arith.mulf %1395, %1297 : vector<4x4xf32>
    %cst_544 = arith.constant 1.000000e+00 : f32
    %1397 = vector.broadcast %cst_544 : f32 to vector<4x4xf32>
    %1398 = arith.subf %1397, %1239 : vector<4x4xf32>
    %cst_545 = arith.constant 0.399999976 : f32
    %1399 = vector.broadcast %cst_545 : f32 to vector<4x4xf32>
    %1400 = arith.divf %1398, %1399 : vector<4x4xf32>
    %1401 = arith.mulf %1400, %1304 : vector<4x4xf32>
    %1402 = arith.addf %1396, %1401 : vector<4x4xf32>
    %cst_546 = arith.constant 6.000000e-01 : f32
    %1403 = vector.broadcast %cst_546 : f32 to vector<4x4xf32>
    %1404 = arith.subf %1239, %1403 : vector<4x4xf32>
    %cst_547 = arith.constant 0.399999976 : f32
    %1405 = vector.broadcast %cst_547 : f32 to vector<4x4xf32>
    %1406 = arith.divf %1404, %1405 : vector<4x4xf32>
    %1407 = arith.mulf %1406, %1304 : vector<4x4xf32>
    %cst_548 = arith.constant 1.400000e+00 : f32
    %1408 = vector.broadcast %cst_548 : f32 to vector<4x4xf32>
    %1409 = arith.subf %1408, %1239 : vector<4x4xf32>
    %cst_549 = arith.constant 0.399999976 : f32
    %1410 = vector.broadcast %cst_549 : f32 to vector<4x4xf32>
    %1411 = arith.divf %1409, %1410 : vector<4x4xf32>
    %1412 = arith.mulf %1411, %1311 : vector<4x4xf32>
    %1413 = arith.addf %1407, %1412 : vector<4x4xf32>
    %cst_550 = arith.constant 1.000000e+00 : f32
    %1414 = vector.broadcast %cst_550 : f32 to vector<4x4xf32>
    %1415 = arith.subf %1239, %1414 : vector<4x4xf32>
    %cst_551 = arith.constant 0.399999976 : f32
    %1416 = vector.broadcast %cst_551 : f32 to vector<4x4xf32>
    %1417 = arith.divf %1415, %1416 : vector<4x4xf32>
    %1418 = arith.mulf %1417, %1311 : vector<4x4xf32>
    %cst_552 = arith.constant 1.800000e+00 : f32
    %1419 = vector.broadcast %cst_552 : f32 to vector<4x4xf32>
    %1420 = arith.subf %1419, %1239 : vector<4x4xf32>
    %cst_553 = arith.constant 0.399999976 : f32
    %1421 = vector.broadcast %cst_553 : f32 to vector<4x4xf32>
    %1422 = arith.divf %1420, %1421 : vector<4x4xf32>
    %1423 = arith.mulf %1422, %1318 : vector<4x4xf32>
    %1424 = arith.addf %1418, %1423 : vector<4x4xf32>
    %cst_554 = arith.constant 1.400000e+00 : f32
    %1425 = vector.broadcast %cst_554 : f32 to vector<4x4xf32>
    %1426 = arith.subf %1239, %1425 : vector<4x4xf32>
    %cst_555 = arith.constant 0.399999976 : f32
    %1427 = vector.broadcast %cst_555 : f32 to vector<4x4xf32>
    %1428 = arith.divf %1426, %1427 : vector<4x4xf32>
    %1429 = arith.mulf %1428, %1318 : vector<4x4xf32>
    %cst_556 = arith.constant 2.200000e+00 : f32
    %1430 = vector.broadcast %cst_556 : f32 to vector<4x4xf32>
    %1431 = arith.subf %1430, %1239 : vector<4x4xf32>
    %cst_557 = arith.constant 0.400000095 : f32
    %1432 = vector.broadcast %cst_557 : f32 to vector<4x4xf32>
    %1433 = arith.divf %1431, %1432 : vector<4x4xf32>
    %1434 = arith.mulf %1433, %1325 : vector<4x4xf32>
    %1435 = arith.addf %1429, %1434 : vector<4x4xf32>
    %cst_558 = arith.constant -2.200000e+00 : f32
    %1436 = vector.broadcast %cst_558 : f32 to vector<4x4xf32>
    %1437 = arith.subf %1239, %1436 : vector<4x4xf32>
    %cst_559 = arith.constant 0.800000071 : f32
    %1438 = vector.broadcast %cst_559 : f32 to vector<4x4xf32>
    %1439 = arith.divf %1437, %1438 : vector<4x4xf32>
    %1440 = arith.mulf %1439, %1336 : vector<4x4xf32>
    %cst_560 = arith.constant -1.000000e+00 : f32
    %1441 = vector.broadcast %cst_560 : f32 to vector<4x4xf32>
    %1442 = arith.subf %1441, %1239 : vector<4x4xf32>
    %cst_561 = arith.constant 0.799999952 : f32
    %1443 = vector.broadcast %cst_561 : f32 to vector<4x4xf32>
    %1444 = arith.divf %1442, %1443 : vector<4x4xf32>
    %1445 = arith.mulf %1444, %1347 : vector<4x4xf32>
    %1446 = arith.addf %1440, %1445 : vector<4x4xf32>
    %cst_562 = arith.constant -1.800000e+00 : f32
    %1447 = vector.broadcast %cst_562 : f32 to vector<4x4xf32>
    %1448 = arith.subf %1239, %1447 : vector<4x4xf32>
    %cst_563 = arith.constant 0.799999952 : f32
    %1449 = vector.broadcast %cst_563 : f32 to vector<4x4xf32>
    %1450 = arith.divf %1448, %1449 : vector<4x4xf32>
    %1451 = arith.mulf %1450, %1347 : vector<4x4xf32>
    %cst_564 = arith.constant -6.000000e-01 : f32
    %1452 = vector.broadcast %cst_564 : f32 to vector<4x4xf32>
    %1453 = arith.subf %1452, %1239 : vector<4x4xf32>
    %cst_565 = arith.constant 0.799999952 : f32
    %1454 = vector.broadcast %cst_565 : f32 to vector<4x4xf32>
    %1455 = arith.divf %1453, %1454 : vector<4x4xf32>
    %1456 = arith.mulf %1455, %1358 : vector<4x4xf32>
    %1457 = arith.addf %1451, %1456 : vector<4x4xf32>
    %cst_566 = arith.constant -1.400000e+00 : f32
    %1458 = vector.broadcast %cst_566 : f32 to vector<4x4xf32>
    %1459 = arith.subf %1239, %1458 : vector<4x4xf32>
    %cst_567 = arith.constant 0.799999952 : f32
    %1460 = vector.broadcast %cst_567 : f32 to vector<4x4xf32>
    %1461 = arith.divf %1459, %1460 : vector<4x4xf32>
    %1462 = arith.mulf %1461, %1358 : vector<4x4xf32>
    %cst_568 = arith.constant -2.000000e-01 : f32
    %1463 = vector.broadcast %cst_568 : f32 to vector<4x4xf32>
    %1464 = arith.subf %1463, %1239 : vector<4x4xf32>
    %cst_569 = arith.constant 8.000000e-01 : f32
    %1465 = vector.broadcast %cst_569 : f32 to vector<4x4xf32>
    %1466 = arith.divf %1464, %1465 : vector<4x4xf32>
    %1467 = arith.mulf %1466, %1369 : vector<4x4xf32>
    %1468 = arith.addf %1462, %1467 : vector<4x4xf32>
    %cst_570 = arith.constant -1.000000e+00 : f32
    %1469 = vector.broadcast %cst_570 : f32 to vector<4x4xf32>
    %1470 = arith.subf %1239, %1469 : vector<4x4xf32>
    %cst_571 = arith.constant 8.000000e-01 : f32
    %1471 = vector.broadcast %cst_571 : f32 to vector<4x4xf32>
    %1472 = arith.divf %1470, %1471 : vector<4x4xf32>
    %1473 = arith.mulf %1472, %1369 : vector<4x4xf32>
    %cst_572 = arith.constant 2.000000e-01 : f32
    %1474 = vector.broadcast %cst_572 : f32 to vector<4x4xf32>
    %1475 = arith.subf %1474, %1239 : vector<4x4xf32>
    %cst_573 = arith.constant 8.000000e-01 : f32
    %1476 = vector.broadcast %cst_573 : f32 to vector<4x4xf32>
    %1477 = arith.divf %1475, %1476 : vector<4x4xf32>
    %1478 = arith.mulf %1477, %1380 : vector<4x4xf32>
    %1479 = arith.addf %1473, %1478 : vector<4x4xf32>
    %cst_574 = arith.constant -6.000000e-01 : f32
    %1480 = vector.broadcast %cst_574 : f32 to vector<4x4xf32>
    %1481 = arith.subf %1239, %1480 : vector<4x4xf32>
    %cst_575 = arith.constant 8.000000e-01 : f32
    %1482 = vector.broadcast %cst_575 : f32 to vector<4x4xf32>
    %1483 = arith.divf %1481, %1482 : vector<4x4xf32>
    %1484 = arith.mulf %1483, %1380 : vector<4x4xf32>
    %cst_576 = arith.constant 6.000000e-01 : f32
    %1485 = vector.broadcast %cst_576 : f32 to vector<4x4xf32>
    %1486 = arith.subf %1485, %1239 : vector<4x4xf32>
    %cst_577 = arith.constant 8.000000e-01 : f32
    %1487 = vector.broadcast %cst_577 : f32 to vector<4x4xf32>
    %1488 = arith.divf %1486, %1487 : vector<4x4xf32>
    %1489 = arith.mulf %1488, %1391 : vector<4x4xf32>
    %1490 = arith.addf %1484, %1489 : vector<4x4xf32>
    %cst_578 = arith.constant -2.000000e-01 : f32
    %1491 = vector.broadcast %cst_578 : f32 to vector<4x4xf32>
    %1492 = arith.subf %1239, %1491 : vector<4x4xf32>
    %cst_579 = arith.constant 8.000000e-01 : f32
    %1493 = vector.broadcast %cst_579 : f32 to vector<4x4xf32>
    %1494 = arith.divf %1492, %1493 : vector<4x4xf32>
    %1495 = arith.mulf %1494, %1391 : vector<4x4xf32>
    %cst_580 = arith.constant 1.000000e+00 : f32
    %1496 = vector.broadcast %cst_580 : f32 to vector<4x4xf32>
    %1497 = arith.subf %1496, %1239 : vector<4x4xf32>
    %cst_581 = arith.constant 8.000000e-01 : f32
    %1498 = vector.broadcast %cst_581 : f32 to vector<4x4xf32>
    %1499 = arith.divf %1497, %1498 : vector<4x4xf32>
    %1500 = arith.mulf %1499, %1402 : vector<4x4xf32>
    %1501 = arith.addf %1495, %1500 : vector<4x4xf32>
    %cst_582 = arith.constant 2.000000e-01 : f32
    %1502 = vector.broadcast %cst_582 : f32 to vector<4x4xf32>
    %1503 = arith.subf %1239, %1502 : vector<4x4xf32>
    %cst_583 = arith.constant 8.000000e-01 : f32
    %1504 = vector.broadcast %cst_583 : f32 to vector<4x4xf32>
    %1505 = arith.divf %1503, %1504 : vector<4x4xf32>
    %1506 = arith.mulf %1505, %1402 : vector<4x4xf32>
    %cst_584 = arith.constant 1.400000e+00 : f32
    %1507 = vector.broadcast %cst_584 : f32 to vector<4x4xf32>
    %1508 = arith.subf %1507, %1239 : vector<4x4xf32>
    %cst_585 = arith.constant 0.799999952 : f32
    %1509 = vector.broadcast %cst_585 : f32 to vector<4x4xf32>
    %1510 = arith.divf %1508, %1509 : vector<4x4xf32>
    %1511 = arith.mulf %1510, %1413 : vector<4x4xf32>
    %1512 = arith.addf %1506, %1511 : vector<4x4xf32>
    %cst_586 = arith.constant 6.000000e-01 : f32
    %1513 = vector.broadcast %cst_586 : f32 to vector<4x4xf32>
    %1514 = arith.subf %1239, %1513 : vector<4x4xf32>
    %cst_587 = arith.constant 0.799999952 : f32
    %1515 = vector.broadcast %cst_587 : f32 to vector<4x4xf32>
    %1516 = arith.divf %1514, %1515 : vector<4x4xf32>
    %1517 = arith.mulf %1516, %1413 : vector<4x4xf32>
    %cst_588 = arith.constant 1.800000e+00 : f32
    %1518 = vector.broadcast %cst_588 : f32 to vector<4x4xf32>
    %1519 = arith.subf %1518, %1239 : vector<4x4xf32>
    %cst_589 = arith.constant 0.799999952 : f32
    %1520 = vector.broadcast %cst_589 : f32 to vector<4x4xf32>
    %1521 = arith.divf %1519, %1520 : vector<4x4xf32>
    %1522 = arith.mulf %1521, %1424 : vector<4x4xf32>
    %1523 = arith.addf %1517, %1522 : vector<4x4xf32>
    %cst_590 = arith.constant 1.000000e+00 : f32
    %1524 = vector.broadcast %cst_590 : f32 to vector<4x4xf32>
    %1525 = arith.subf %1239, %1524 : vector<4x4xf32>
    %cst_591 = arith.constant 0.799999952 : f32
    %1526 = vector.broadcast %cst_591 : f32 to vector<4x4xf32>
    %1527 = arith.divf %1525, %1526 : vector<4x4xf32>
    %1528 = arith.mulf %1527, %1424 : vector<4x4xf32>
    %cst_592 = arith.constant 2.200000e+00 : f32
    %1529 = vector.broadcast %cst_592 : f32 to vector<4x4xf32>
    %1530 = arith.subf %1529, %1239 : vector<4x4xf32>
    %cst_593 = arith.constant 0.800000071 : f32
    %1531 = vector.broadcast %cst_593 : f32 to vector<4x4xf32>
    %1532 = arith.divf %1530, %1531 : vector<4x4xf32>
    %1533 = arith.mulf %1532, %1435 : vector<4x4xf32>
    %1534 = arith.addf %1528, %1533 : vector<4x4xf32>
    %cst_594 = arith.constant -2.200000e+00 : f32
    %1535 = vector.broadcast %cst_594 : f32 to vector<4x4xf32>
    %1536 = arith.subf %1239, %1535 : vector<4x4xf32>
    %cst_595 = arith.constant 1.200000e+00 : f32
    %1537 = vector.broadcast %cst_595 : f32 to vector<4x4xf32>
    %1538 = arith.divf %1536, %1537 : vector<4x4xf32>
    %1539 = arith.mulf %1538, %1446 : vector<4x4xf32>
    %cst_596 = arith.constant -6.000000e-01 : f32
    %1540 = vector.broadcast %cst_596 : f32 to vector<4x4xf32>
    %1541 = arith.subf %1540, %1239 : vector<4x4xf32>
    %cst_597 = arith.constant 1.19999993 : f32
    %1542 = vector.broadcast %cst_597 : f32 to vector<4x4xf32>
    %1543 = arith.divf %1541, %1542 : vector<4x4xf32>
    %1544 = arith.mulf %1543, %1457 : vector<4x4xf32>
    %1545 = arith.addf %1539, %1544 : vector<4x4xf32>
    %cst_598 = arith.constant -1.800000e+00 : f32
    %1546 = vector.broadcast %cst_598 : f32 to vector<4x4xf32>
    %1547 = arith.subf %1239, %1546 : vector<4x4xf32>
    %cst_599 = arith.constant 1.19999993 : f32
    %1548 = vector.broadcast %cst_599 : f32 to vector<4x4xf32>
    %1549 = arith.divf %1547, %1548 : vector<4x4xf32>
    %1550 = arith.mulf %1549, %1457 : vector<4x4xf32>
    %cst_600 = arith.constant -2.000000e-01 : f32
    %1551 = vector.broadcast %cst_600 : f32 to vector<4x4xf32>
    %1552 = arith.subf %1551, %1239 : vector<4x4xf32>
    %cst_601 = arith.constant 1.19999993 : f32
    %1553 = vector.broadcast %cst_601 : f32 to vector<4x4xf32>
    %1554 = arith.divf %1552, %1553 : vector<4x4xf32>
    %1555 = arith.mulf %1554, %1468 : vector<4x4xf32>
    %1556 = arith.addf %1550, %1555 : vector<4x4xf32>
    %cst_602 = arith.constant -1.400000e+00 : f32
    %1557 = vector.broadcast %cst_602 : f32 to vector<4x4xf32>
    %1558 = arith.subf %1239, %1557 : vector<4x4xf32>
    %cst_603 = arith.constant 1.19999993 : f32
    %1559 = vector.broadcast %cst_603 : f32 to vector<4x4xf32>
    %1560 = arith.divf %1558, %1559 : vector<4x4xf32>
    %1561 = arith.mulf %1560, %1468 : vector<4x4xf32>
    %cst_604 = arith.constant 2.000000e-01 : f32
    %1562 = vector.broadcast %cst_604 : f32 to vector<4x4xf32>
    %1563 = arith.subf %1562, %1239 : vector<4x4xf32>
    %cst_605 = arith.constant 1.200000e+00 : f32
    %1564 = vector.broadcast %cst_605 : f32 to vector<4x4xf32>
    %1565 = arith.divf %1563, %1564 : vector<4x4xf32>
    %1566 = arith.mulf %1565, %1479 : vector<4x4xf32>
    %1567 = arith.addf %1561, %1566 : vector<4x4xf32>
    %cst_606 = arith.constant -1.000000e+00 : f32
    %1568 = vector.broadcast %cst_606 : f32 to vector<4x4xf32>
    %1569 = arith.subf %1239, %1568 : vector<4x4xf32>
    %cst_607 = arith.constant 1.200000e+00 : f32
    %1570 = vector.broadcast %cst_607 : f32 to vector<4x4xf32>
    %1571 = arith.divf %1569, %1570 : vector<4x4xf32>
    %1572 = arith.mulf %1571, %1479 : vector<4x4xf32>
    %cst_608 = arith.constant 6.000000e-01 : f32
    %1573 = vector.broadcast %cst_608 : f32 to vector<4x4xf32>
    %1574 = arith.subf %1573, %1239 : vector<4x4xf32>
    %cst_609 = arith.constant 1.200000e+00 : f32
    %1575 = vector.broadcast %cst_609 : f32 to vector<4x4xf32>
    %1576 = arith.divf %1574, %1575 : vector<4x4xf32>
    %1577 = arith.mulf %1576, %1490 : vector<4x4xf32>
    %1578 = arith.addf %1572, %1577 : vector<4x4xf32>
    %cst_610 = arith.constant -6.000000e-01 : f32
    %1579 = vector.broadcast %cst_610 : f32 to vector<4x4xf32>
    %1580 = arith.subf %1239, %1579 : vector<4x4xf32>
    %cst_611 = arith.constant 1.200000e+00 : f32
    %1581 = vector.broadcast %cst_611 : f32 to vector<4x4xf32>
    %1582 = arith.divf %1580, %1581 : vector<4x4xf32>
    %1583 = arith.mulf %1582, %1490 : vector<4x4xf32>
    %cst_612 = arith.constant 1.000000e+00 : f32
    %1584 = vector.broadcast %cst_612 : f32 to vector<4x4xf32>
    %1585 = arith.subf %1584, %1239 : vector<4x4xf32>
    %cst_613 = arith.constant 1.200000e+00 : f32
    %1586 = vector.broadcast %cst_613 : f32 to vector<4x4xf32>
    %1587 = arith.divf %1585, %1586 : vector<4x4xf32>
    %1588 = arith.mulf %1587, %1501 : vector<4x4xf32>
    %1589 = arith.addf %1583, %1588 : vector<4x4xf32>
    %cst_614 = arith.constant -2.000000e-01 : f32
    %1590 = vector.broadcast %cst_614 : f32 to vector<4x4xf32>
    %1591 = arith.subf %1239, %1590 : vector<4x4xf32>
    %cst_615 = arith.constant 1.200000e+00 : f32
    %1592 = vector.broadcast %cst_615 : f32 to vector<4x4xf32>
    %1593 = arith.divf %1591, %1592 : vector<4x4xf32>
    %1594 = arith.mulf %1593, %1501 : vector<4x4xf32>
    %cst_616 = arith.constant 1.400000e+00 : f32
    %1595 = vector.broadcast %cst_616 : f32 to vector<4x4xf32>
    %1596 = arith.subf %1595, %1239 : vector<4x4xf32>
    %cst_617 = arith.constant 1.19999993 : f32
    %1597 = vector.broadcast %cst_617 : f32 to vector<4x4xf32>
    %1598 = arith.divf %1596, %1597 : vector<4x4xf32>
    %1599 = arith.mulf %1598, %1512 : vector<4x4xf32>
    %1600 = arith.addf %1594, %1599 : vector<4x4xf32>
    %cst_618 = arith.constant 2.000000e-01 : f32
    %1601 = vector.broadcast %cst_618 : f32 to vector<4x4xf32>
    %1602 = arith.subf %1239, %1601 : vector<4x4xf32>
    %cst_619 = arith.constant 1.19999993 : f32
    %1603 = vector.broadcast %cst_619 : f32 to vector<4x4xf32>
    %1604 = arith.divf %1602, %1603 : vector<4x4xf32>
    %1605 = arith.mulf %1604, %1512 : vector<4x4xf32>
    %cst_620 = arith.constant 1.800000e+00 : f32
    %1606 = vector.broadcast %cst_620 : f32 to vector<4x4xf32>
    %1607 = arith.subf %1606, %1239 : vector<4x4xf32>
    %cst_621 = arith.constant 1.19999993 : f32
    %1608 = vector.broadcast %cst_621 : f32 to vector<4x4xf32>
    %1609 = arith.divf %1607, %1608 : vector<4x4xf32>
    %1610 = arith.mulf %1609, %1523 : vector<4x4xf32>
    %1611 = arith.addf %1605, %1610 : vector<4x4xf32>
    %cst_622 = arith.constant 6.000000e-01 : f32
    %1612 = vector.broadcast %cst_622 : f32 to vector<4x4xf32>
    %1613 = arith.subf %1239, %1612 : vector<4x4xf32>
    %cst_623 = arith.constant 1.19999993 : f32
    %1614 = vector.broadcast %cst_623 : f32 to vector<4x4xf32>
    %1615 = arith.divf %1613, %1614 : vector<4x4xf32>
    %1616 = arith.mulf %1615, %1523 : vector<4x4xf32>
    %cst_624 = arith.constant 2.200000e+00 : f32
    %1617 = vector.broadcast %cst_624 : f32 to vector<4x4xf32>
    %1618 = arith.subf %1617, %1239 : vector<4x4xf32>
    %cst_625 = arith.constant 1.200000e+00 : f32
    %1619 = vector.broadcast %cst_625 : f32 to vector<4x4xf32>
    %1620 = arith.divf %1618, %1619 : vector<4x4xf32>
    %1621 = arith.mulf %1620, %1534 : vector<4x4xf32>
    %1622 = arith.addf %1616, %1621 : vector<4x4xf32>
    %c0_626 = arith.constant 0 : index
    %c4_627 = arith.constant 4 : index
    %1623 = vector.load %arg11[%c0_626, %c4_627] : memref<4x288xf32, #tpu.memory_space<vmem>>, vector<4x4xf32>
    tpu.vector_store %arg11[%c0_626, %c4_627], %1545 {strides = array<i32>} : memref<4x288xf32, #tpu.memory_space<vmem>>, vector<4x4xf32>,
    %c0_628 = arith.constant 0 : index
    %c8_629 = arith.constant 8 : index
    %1624 = vector.load %arg11[%c0_628, %c8_629] : memref<4x288xf32, #tpu.memory_space<vmem>>, vector<4x4xf32>
    tpu.vector_store %arg11[%c0_628, %c8_629], %1556 {strides = array<i32>} : memref<4x288xf32, #tpu.memory_space<vmem>>, vector<4x4xf32>,
    %c0_630 = arith.constant 0 : index
    %c12 = arith.constant 12 : index
    %1625 = vector.load %arg11[%c0_630, %c12] : memref<4x288xf32, #tpu.memory_space<vmem>>, vector<4x4xf32>
    tpu.vector_store %arg11[%c0_630, %c12], %1567 {strides = array<i32>} : memref<4x288xf32, #tpu.memory_space<vmem>>, vector<4x4xf32>,
    %c0_631 = arith.constant 0 : index
    %c16_632 = arith.constant 16 : index
    %1626 = vector.load %arg11[%c0_631, %c16_632] : memref<4x288xf32, #tpu.memory_space<vmem>>, vector<4x4xf32>
    tpu.vector_store %arg11[%c0_631, %c16_632], %1578 {strides = array<i32>} : memref<4x288xf32, #tpu.memory_space<vmem>>, vector<4x4xf32>,
    %c0_633 = arith.constant 0 : index
    %c20 = arith.constant 20 : index
    %1627 = vector.load %arg11[%c0_633, %c20] : memref<4x288xf32, #tpu.memory_space<vmem>>, vector<4x4xf32>
    tpu.vector_store %arg11[%c0_633, %c20], %1589 {strides = array<i32>} : memref<4x288xf32, #tpu.memory_space<vmem>>, vector<4x4xf32>,
    %c0_634 = arith.constant 0 : index
    %c24_635 = arith.constant 24 : index
    %1628 = vector.load %arg11[%c0_634, %c24_635] : memref<4x288xf32, #tpu.memory_space<vmem>>, vector<4x4xf32>
    tpu.vector_store %arg11[%c0_634, %c24_635], %1600 {strides = array<i32>} : memref<4x288xf32, #tpu.memory_space<vmem>>, vector<4x4xf32>,
    %c0_636 = arith.constant 0 : index
    %c28 = arith.constant 28 : index
    %1629 = vector.load %arg11[%c0_636, %c28] : memref<4x288xf32, #tpu.memory_space<vmem>>, vector<4x4xf32>
    tpu.vector_store %arg11[%c0_636, %c28], %1611 {strides = array<i32>} : memref<4x288xf32, #tpu.memory_space<vmem>>, vector<4x4xf32>,
    %c0_637 = arith.constant 0 : index
    %c32_638 = arith.constant 32 : index
    %1630 = vector.load %arg11[%c0_637, %c32_638] : memref<4x288xf32, #tpu.memory_space<vmem>>, vector<4x4xf32>
    tpu.vector_store %arg11[%c0_637, %c32_638], %1622 {strides = array<i32>} : memref<4x288xf32, #tpu.memory_space<vmem>>, vector<4x4xf32>,
    %c0_639 = arith.constant 0 : index
    %c0_640 = arith.constant 0 : index
    %1631 = vector.load %arg11[%c0_639, %c0_640] : memref<4x288xf32, #tpu.memory_space<vmem>>, vector<4x36xf32>
    %c0_641 = arith.constant 0 : index
    %c0_642 = arith.constant 0 : index
    %1632 = vector.load %arg6[%c0_641, %c0_642] : memref<36x32xf32, #tpu.memory_space<vmem>>, vector<36x32xf32>
    %cst_643 = arith.constant dense<0.000000e+00> : vector<4x32xf32>
    %1633 = tpu.matmul %1631, %1632, %cst_643 {dimension_numbers = #tpu.dot_dimension_numbers<[1], [0], [0], [1], [0, 0, 1, 1], [], []>} : vector<4x36xf32>, vector<36x32xf32>, vector<4x32xf32> -> vector<4x32xf32>
    %cst_644 = arith.constant 0.000000e+00 : f32
    %1634 = vector.broadcast %cst_644 : f32 to vector<4x32xf32>
    %1635 = arith.subf %1634, %1633 : vector<4x32xf32>
    %1636 = math.exp %1635 : vector<4x32xf32>
    %cst_645 = arith.constant 1.000000e+00 : f32
    %1637 = vector.broadcast %cst_645 : f32 to vector<4x32xf32>
    %1638 = arith.addf %1637, %1636 : vector<4x32xf32>
    %cst_646 = arith.constant 1.000000e+00 : f32
    %1639 = vector.broadcast %cst_646 : f32 to vector<4x32xf32>
    %1640 = arith.divf %1639, %1638 : vector<4x32xf32>
    %1641 = arith.mulf %1633, %1640 : vector<4x32xf32>
    %c0_647 = arith.constant 0 : index
    %c0_648 = arith.constant 0 : index
    %1642 = vector.load %arg11[%c0_647, %c0_648] : memref<4x288xf32, #tpu.memory_space<vmem>>, vector<4x32xf32>
    tpu.vector_store %arg11[%c0_647, %c0_648], %1641 {strides = array<i32>} : memref<4x288xf32, #tpu.memory_space<vmem>>, vector<4x32xf32>,
    %cst_649 = arith.constant -2.200000e+00 : f32
    %1643 = vector.broadcast %cst_649 : f32 to vector<4x32xf32>
    %1644 = arith.cmpf oge, %1633, %1643 : vector<4x32xf32>
    %cst_650 = arith.constant -1.800000e+00 : f32
    %1645 = vector.broadcast %cst_650 : f32 to vector<4x32xf32>
    %1646 = arith.cmpf olt, %1633, %1645 : vector<4x32xf32>
    %1647 = arith.andi %1644, %1646 : vector<4x32xi1>
    %1648 = arith.extui %1647 : vector<4x32xi1> to vector<4x32xi32>
    %1649 = arith.sitofp %1648 : vector<4x32xi32> to vector<4x32xf32>
    %cst_651 = arith.constant -1.800000e+00 : f32
    %1650 = vector.broadcast %cst_651 : f32 to vector<4x32xf32>
    %1651 = arith.cmpf oge, %1633, %1650 : vector<4x32xf32>
    %cst_652 = arith.constant -1.400000e+00 : f32
    %1652 = vector.broadcast %cst_652 : f32 to vector<4x32xf32>
    %1653 = arith.cmpf olt, %1633, %1652 : vector<4x32xf32>
    %1654 = arith.andi %1651, %1653 : vector<4x32xi1>
    %1655 = arith.extui %1654 : vector<4x32xi1> to vector<4x32xi32>
    %1656 = arith.sitofp %1655 : vector<4x32xi32> to vector<4x32xf32>
    %cst_653 = arith.constant -1.400000e+00 : f32
    %1657 = vector.broadcast %cst_653 : f32 to vector<4x32xf32>
    %1658 = arith.cmpf oge, %1633, %1657 : vector<4x32xf32>
    %cst_654 = arith.constant -1.000000e+00 : f32
    %1659 = vector.broadcast %cst_654 : f32 to vector<4x32xf32>
    %1660 = arith.cmpf olt, %1633, %1659 : vector<4x32xf32>
    %1661 = arith.andi %1658, %1660 : vector<4x32xi1>
    %1662 = arith.extui %1661 : vector<4x32xi1> to vector<4x32xi32>
    %1663 = arith.sitofp %1662 : vector<4x32xi32> to vector<4x32xf32>
    %cst_655 = arith.constant -1.000000e+00 : f32
    %1664 = vector.broadcast %cst_655 : f32 to vector<4x32xf32>
    %1665 = arith.cmpf oge, %1633, %1664 : vector<4x32xf32>
    %cst_656 = arith.constant -6.000000e-01 : f32
    %1666 = vector.broadcast %cst_656 : f32 to vector<4x32xf32>
    %1667 = arith.cmpf olt, %1633, %1666 : vector<4x32xf32>
    %1668 = arith.andi %1665, %1667 : vector<4x32xi1>
    %1669 = arith.extui %1668 : vector<4x32xi1> to vector<4x32xi32>
    %1670 = arith.sitofp %1669 : vector<4x32xi32> to vector<4x32xf32>
    %cst_657 = arith.constant -6.000000e-01 : f32
    %1671 = vector.broadcast %cst_657 : f32 to vector<4x32xf32>
    %1672 = arith.cmpf oge, %1633, %1671 : vector<4x32xf32>
    %cst_658 = arith.constant -2.000000e-01 : f32
    %1673 = vector.broadcast %cst_658 : f32 to vector<4x32xf32>
    %1674 = arith.cmpf olt, %1633, %1673 : vector<4x32xf32>
    %1675 = arith.andi %1672, %1674 : vector<4x32xi1>
    %1676 = arith.extui %1675 : vector<4x32xi1> to vector<4x32xi32>
    %1677 = arith.sitofp %1676 : vector<4x32xi32> to vector<4x32xf32>
    %cst_659 = arith.constant -2.000000e-01 : f32
    %1678 = vector.broadcast %cst_659 : f32 to vector<4x32xf32>
    %1679 = arith.cmpf oge, %1633, %1678 : vector<4x32xf32>
    %cst_660 = arith.constant 2.000000e-01 : f32
    %1680 = vector.broadcast %cst_660 : f32 to vector<4x32xf32>
    %1681 = arith.cmpf olt, %1633, %1680 : vector<4x32xf32>
    %1682 = arith.andi %1679, %1681 : vector<4x32xi1>
    %1683 = arith.extui %1682 : vector<4x32xi1> to vector<4x32xi32>
    %1684 = arith.sitofp %1683 : vector<4x32xi32> to vector<4x32xf32>
    %cst_661 = arith.constant 2.000000e-01 : f32
    %1685 = vector.broadcast %cst_661 : f32 to vector<4x32xf32>
    %1686 = arith.cmpf oge, %1633, %1685 : vector<4x32xf32>
    %cst_662 = arith.constant 6.000000e-01 : f32
    %1687 = vector.broadcast %cst_662 : f32 to vector<4x32xf32>
    %1688 = arith.cmpf olt, %1633, %1687 : vector<4x32xf32>
    %1689 = arith.andi %1686, %1688 : vector<4x32xi1>
    %1690 = arith.extui %1689 : vector<4x32xi1> to vector<4x32xi32>
    %1691 = arith.sitofp %1690 : vector<4x32xi32> to vector<4x32xf32>
    %cst_663 = arith.constant 6.000000e-01 : f32
    %1692 = vector.broadcast %cst_663 : f32 to vector<4x32xf32>
    %1693 = arith.cmpf oge, %1633, %1692 : vector<4x32xf32>
    %cst_664 = arith.constant 1.000000e+00 : f32
    %1694 = vector.broadcast %cst_664 : f32 to vector<4x32xf32>
    %1695 = arith.cmpf olt, %1633, %1694 : vector<4x32xf32>
    %1696 = arith.andi %1693, %1695 : vector<4x32xi1>
    %1697 = arith.extui %1696 : vector<4x32xi1> to vector<4x32xi32>
    %1698 = arith.sitofp %1697 : vector<4x32xi32> to vector<4x32xf32>
    %cst_665 = arith.constant 1.000000e+00 : f32
    %1699 = vector.broadcast %cst_665 : f32 to vector<4x32xf32>
    %1700 = arith.cmpf oge, %1633, %1699 : vector<4x32xf32>
    %cst_666 = arith.constant 1.400000e+00 : f32
    %1701 = vector.broadcast %cst_666 : f32 to vector<4x32xf32>
    %1702 = arith.cmpf olt, %1633, %1701 : vector<4x32xf32>
    %1703 = arith.andi %1700, %1702 : vector<4x32xi1>
    %1704 = arith.extui %1703 : vector<4x32xi1> to vector<4x32xi32>
    %1705 = arith.sitofp %1704 : vector<4x32xi32> to vector<4x32xf32>
    %cst_667 = arith.constant 1.400000e+00 : f32
    %1706 = vector.broadcast %cst_667 : f32 to vector<4x32xf32>
    %1707 = arith.cmpf oge, %1633, %1706 : vector<4x32xf32>
    %cst_668 = arith.constant 1.800000e+00 : f32
    %1708 = vector.broadcast %cst_668 : f32 to vector<4x32xf32>
    %1709 = arith.cmpf olt, %1633, %1708 : vector<4x32xf32>
    %1710 = arith.andi %1707, %1709 : vector<4x32xi1>
    %1711 = arith.extui %1710 : vector<4x32xi1> to vector<4x32xi32>
    %1712 = arith.sitofp %1711 : vector<4x32xi32> to vector<4x32xf32>
    %cst_669 = arith.constant 1.800000e+00 : f32
    %1713 = vector.broadcast %cst_669 : f32 to vector<4x32xf32>
    %1714 = arith.cmpf oge, %1633, %1713 : vector<4x32xf32>
    %cst_670 = arith.constant 2.200000e+00 : f32
    %1715 = vector.broadcast %cst_670 : f32 to vector<4x32xf32>
    %1716 = arith.cmpf olt, %1633, %1715 : vector<4x32xf32>
    %1717 = arith.andi %1714, %1716 : vector<4x32xi1>
    %1718 = arith.extui %1717 : vector<4x32xi1> to vector<4x32xi32>
    %1719 = arith.sitofp %1718 : vector<4x32xi32> to vector<4x32xf32>
    %cst_671 = arith.constant -2.200000e+00 : f32
    %1720 = vector.broadcast %cst_671 : f32 to vector<4x32xf32>
    %1721 = arith.subf %1633, %1720 : vector<4x32xf32>
    %cst_672 = arith.constant 0.400000095 : f32
    %1722 = vector.broadcast %cst_672 : f32 to vector<4x32xf32>
    %1723 = arith.divf %1721, %1722 : vector<4x32xf32>
    %1724 = arith.mulf %1723, %1649 : vector<4x32xf32>
    %cst_673 = arith.constant -1.400000e+00 : f32
    %1725 = vector.broadcast %cst_673 : f32 to vector<4x32xf32>
    %1726 = arith.subf %1725, %1633 : vector<4x32xf32>
    %cst_674 = arith.constant 0.399999976 : f32
    %1727 = vector.broadcast %cst_674 : f32 to vector<4x32xf32>
    %1728 = arith.divf %1726, %1727 : vector<4x32xf32>
    %1729 = arith.mulf %1728, %1656 : vector<4x32xf32>
    %1730 = arith.addf %1724, %1729 : vector<4x32xf32>
    %cst_675 = arith.constant -1.800000e+00 : f32
    %1731 = vector.broadcast %cst_675 : f32 to vector<4x32xf32>
    %1732 = arith.subf %1633, %1731 : vector<4x32xf32>
    %cst_676 = arith.constant 0.399999976 : f32
    %1733 = vector.broadcast %cst_676 : f32 to vector<4x32xf32>
    %1734 = arith.divf %1732, %1733 : vector<4x32xf32>
    %1735 = arith.mulf %1734, %1656 : vector<4x32xf32>
    %cst_677 = arith.constant -1.000000e+00 : f32
    %1736 = vector.broadcast %cst_677 : f32 to vector<4x32xf32>
    %1737 = arith.subf %1736, %1633 : vector<4x32xf32>
    %cst_678 = arith.constant 0.399999976 : f32
    %1738 = vector.broadcast %cst_678 : f32 to vector<4x32xf32>
    %1739 = arith.divf %1737, %1738 : vector<4x32xf32>
    %1740 = arith.mulf %1739, %1663 : vector<4x32xf32>
    %1741 = arith.addf %1735, %1740 : vector<4x32xf32>
    %cst_679 = arith.constant -1.400000e+00 : f32
    %1742 = vector.broadcast %cst_679 : f32 to vector<4x32xf32>
    %1743 = arith.subf %1633, %1742 : vector<4x32xf32>
    %cst_680 = arith.constant 0.399999976 : f32
    %1744 = vector.broadcast %cst_680 : f32 to vector<4x32xf32>
    %1745 = arith.divf %1743, %1744 : vector<4x32xf32>
    %1746 = arith.mulf %1745, %1663 : vector<4x32xf32>
    %cst_681 = arith.constant -6.000000e-01 : f32
    %1747 = vector.broadcast %cst_681 : f32 to vector<4x32xf32>
    %1748 = arith.subf %1747, %1633 : vector<4x32xf32>
    %cst_682 = arith.constant 0.399999976 : f32
    %1749 = vector.broadcast %cst_682 : f32 to vector<4x32xf32>
    %1750 = arith.divf %1748, %1749 : vector<4x32xf32>
    %1751 = arith.mulf %1750, %1670 : vector<4x32xf32>
    %1752 = arith.addf %1746, %1751 : vector<4x32xf32>
    %cst_683 = arith.constant -1.000000e+00 : f32
    %1753 = vector.broadcast %cst_683 : f32 to vector<4x32xf32>
    %1754 = arith.subf %1633, %1753 : vector<4x32xf32>
    %cst_684 = arith.constant 0.399999976 : f32
    %1755 = vector.broadcast %cst_684 : f32 to vector<4x32xf32>
    %1756 = arith.divf %1754, %1755 : vector<4x32xf32>
    %1757 = arith.mulf %1756, %1670 : vector<4x32xf32>
    %cst_685 = arith.constant -2.000000e-01 : f32
    %1758 = vector.broadcast %cst_685 : f32 to vector<4x32xf32>
    %1759 = arith.subf %1758, %1633 : vector<4x32xf32>
    %cst_686 = arith.constant 0.400000036 : f32
    %1760 = vector.broadcast %cst_686 : f32 to vector<4x32xf32>
    %1761 = arith.divf %1759, %1760 : vector<4x32xf32>
    %1762 = arith.mulf %1761, %1677 : vector<4x32xf32>
    %1763 = arith.addf %1757, %1762 : vector<4x32xf32>
    %cst_687 = arith.constant -6.000000e-01 : f32
    %1764 = vector.broadcast %cst_687 : f32 to vector<4x32xf32>
    %1765 = arith.subf %1633, %1764 : vector<4x32xf32>
    %cst_688 = arith.constant 0.400000036 : f32
    %1766 = vector.broadcast %cst_688 : f32 to vector<4x32xf32>
    %1767 = arith.divf %1765, %1766 : vector<4x32xf32>
    %1768 = arith.mulf %1767, %1677 : vector<4x32xf32>
    %cst_689 = arith.constant 2.000000e-01 : f32
    %1769 = vector.broadcast %cst_689 : f32 to vector<4x32xf32>
    %1770 = arith.subf %1769, %1633 : vector<4x32xf32>
    %cst_690 = arith.constant 4.000000e-01 : f32
    %1771 = vector.broadcast %cst_690 : f32 to vector<4x32xf32>
    %1772 = arith.divf %1770, %1771 : vector<4x32xf32>
    %1773 = arith.mulf %1772, %1684 : vector<4x32xf32>
    %1774 = arith.addf %1768, %1773 : vector<4x32xf32>
    %cst_691 = arith.constant -2.000000e-01 : f32
    %1775 = vector.broadcast %cst_691 : f32 to vector<4x32xf32>
    %1776 = arith.subf %1633, %1775 : vector<4x32xf32>
    %cst_692 = arith.constant 4.000000e-01 : f32
    %1777 = vector.broadcast %cst_692 : f32 to vector<4x32xf32>
    %1778 = arith.divf %1776, %1777 : vector<4x32xf32>
    %1779 = arith.mulf %1778, %1684 : vector<4x32xf32>
    %cst_693 = arith.constant 6.000000e-01 : f32
    %1780 = vector.broadcast %cst_693 : f32 to vector<4x32xf32>
    %1781 = arith.subf %1780, %1633 : vector<4x32xf32>
    %cst_694 = arith.constant 0.400000036 : f32
    %1782 = vector.broadcast %cst_694 : f32 to vector<4x32xf32>
    %1783 = arith.divf %1781, %1782 : vector<4x32xf32>
    %1784 = arith.mulf %1783, %1691 : vector<4x32xf32>
    %1785 = arith.addf %1779, %1784 : vector<4x32xf32>
    %cst_695 = arith.constant 2.000000e-01 : f32
    %1786 = vector.broadcast %cst_695 : f32 to vector<4x32xf32>
    %1787 = arith.subf %1633, %1786 : vector<4x32xf32>
    %cst_696 = arith.constant 0.400000036 : f32
    %1788 = vector.broadcast %cst_696 : f32 to vector<4x32xf32>
    %1789 = arith.divf %1787, %1788 : vector<4x32xf32>
    %1790 = arith.mulf %1789, %1691 : vector<4x32xf32>
    %cst_697 = arith.constant 1.000000e+00 : f32
    %1791 = vector.broadcast %cst_697 : f32 to vector<4x32xf32>
    %1792 = arith.subf %1791, %1633 : vector<4x32xf32>
    %cst_698 = arith.constant 0.399999976 : f32
    %1793 = vector.broadcast %cst_698 : f32 to vector<4x32xf32>
    %1794 = arith.divf %1792, %1793 : vector<4x32xf32>
    %1795 = arith.mulf %1794, %1698 : vector<4x32xf32>
    %1796 = arith.addf %1790, %1795 : vector<4x32xf32>
    %cst_699 = arith.constant 6.000000e-01 : f32
    %1797 = vector.broadcast %cst_699 : f32 to vector<4x32xf32>
    %1798 = arith.subf %1633, %1797 : vector<4x32xf32>
    %cst_700 = arith.constant 0.399999976 : f32
    %1799 = vector.broadcast %cst_700 : f32 to vector<4x32xf32>
    %1800 = arith.divf %1798, %1799 : vector<4x32xf32>
    %1801 = arith.mulf %1800, %1698 : vector<4x32xf32>
    %cst_701 = arith.constant 1.400000e+00 : f32
    %1802 = vector.broadcast %cst_701 : f32 to vector<4x32xf32>
    %1803 = arith.subf %1802, %1633 : vector<4x32xf32>
    %cst_702 = arith.constant 0.399999976 : f32
    %1804 = vector.broadcast %cst_702 : f32 to vector<4x32xf32>
    %1805 = arith.divf %1803, %1804 : vector<4x32xf32>
    %1806 = arith.mulf %1805, %1705 : vector<4x32xf32>
    %1807 = arith.addf %1801, %1806 : vector<4x32xf32>
    %cst_703 = arith.constant 1.000000e+00 : f32
    %1808 = vector.broadcast %cst_703 : f32 to vector<4x32xf32>
    %1809 = arith.subf %1633, %1808 : vector<4x32xf32>
    %cst_704 = arith.constant 0.399999976 : f32
    %1810 = vector.broadcast %cst_704 : f32 to vector<4x32xf32>
    %1811 = arith.divf %1809, %1810 : vector<4x32xf32>
    %1812 = arith.mulf %1811, %1705 : vector<4x32xf32>
    %cst_705 = arith.constant 1.800000e+00 : f32
    %1813 = vector.broadcast %cst_705 : f32 to vector<4x32xf32>
    %1814 = arith.subf %1813, %1633 : vector<4x32xf32>
    %cst_706 = arith.constant 0.399999976 : f32
    %1815 = vector.broadcast %cst_706 : f32 to vector<4x32xf32>
    %1816 = arith.divf %1814, %1815 : vector<4x32xf32>
    %1817 = arith.mulf %1816, %1712 : vector<4x32xf32>
    %1818 = arith.addf %1812, %1817 : vector<4x32xf32>
    %cst_707 = arith.constant 1.400000e+00 : f32
    %1819 = vector.broadcast %cst_707 : f32 to vector<4x32xf32>
    %1820 = arith.subf %1633, %1819 : vector<4x32xf32>
    %cst_708 = arith.constant 0.399999976 : f32
    %1821 = vector.broadcast %cst_708 : f32 to vector<4x32xf32>
    %1822 = arith.divf %1820, %1821 : vector<4x32xf32>
    %1823 = arith.mulf %1822, %1712 : vector<4x32xf32>
    %cst_709 = arith.constant 2.200000e+00 : f32
    %1824 = vector.broadcast %cst_709 : f32 to vector<4x32xf32>
    %1825 = arith.subf %1824, %1633 : vector<4x32xf32>
    %cst_710 = arith.constant 0.400000095 : f32
    %1826 = vector.broadcast %cst_710 : f32 to vector<4x32xf32>
    %1827 = arith.divf %1825, %1826 : vector<4x32xf32>
    %1828 = arith.mulf %1827, %1719 : vector<4x32xf32>
    %1829 = arith.addf %1823, %1828 : vector<4x32xf32>
    %cst_711 = arith.constant -2.200000e+00 : f32
    %1830 = vector.broadcast %cst_711 : f32 to vector<4x32xf32>
    %1831 = arith.subf %1633, %1830 : vector<4x32xf32>
    %cst_712 = arith.constant 0.800000071 : f32
    %1832 = vector.broadcast %cst_712 : f32 to vector<4x32xf32>
    %1833 = arith.divf %1831, %1832 : vector<4x32xf32>
    %1834 = arith.mulf %1833, %1730 : vector<4x32xf32>
    %cst_713 = arith.constant -1.000000e+00 : f32
    %1835 = vector.broadcast %cst_713 : f32 to vector<4x32xf32>
    %1836 = arith.subf %1835, %1633 : vector<4x32xf32>
    %cst_714 = arith.constant 0.799999952 : f32
    %1837 = vector.broadcast %cst_714 : f32 to vector<4x32xf32>
    %1838 = arith.divf %1836, %1837 : vector<4x32xf32>
    %1839 = arith.mulf %1838, %1741 : vector<4x32xf32>
    %1840 = arith.addf %1834, %1839 : vector<4x32xf32>
    %cst_715 = arith.constant -1.800000e+00 : f32
    %1841 = vector.broadcast %cst_715 : f32 to vector<4x32xf32>
    %1842 = arith.subf %1633, %1841 : vector<4x32xf32>
    %cst_716 = arith.constant 0.799999952 : f32
    %1843 = vector.broadcast %cst_716 : f32 to vector<4x32xf32>
    %1844 = arith.divf %1842, %1843 : vector<4x32xf32>
    %1845 = arith.mulf %1844, %1741 : vector<4x32xf32>
    %cst_717 = arith.constant -6.000000e-01 : f32
    %1846 = vector.broadcast %cst_717 : f32 to vector<4x32xf32>
    %1847 = arith.subf %1846, %1633 : vector<4x32xf32>
    %cst_718 = arith.constant 0.799999952 : f32
    %1848 = vector.broadcast %cst_718 : f32 to vector<4x32xf32>
    %1849 = arith.divf %1847, %1848 : vector<4x32xf32>
    %1850 = arith.mulf %1849, %1752 : vector<4x32xf32>
    %1851 = arith.addf %1845, %1850 : vector<4x32xf32>
    %cst_719 = arith.constant -1.400000e+00 : f32
    %1852 = vector.broadcast %cst_719 : f32 to vector<4x32xf32>
    %1853 = arith.subf %1633, %1852 : vector<4x32xf32>
    %cst_720 = arith.constant 0.799999952 : f32
    %1854 = vector.broadcast %cst_720 : f32 to vector<4x32xf32>
    %1855 = arith.divf %1853, %1854 : vector<4x32xf32>
    %1856 = arith.mulf %1855, %1752 : vector<4x32xf32>
    %cst_721 = arith.constant -2.000000e-01 : f32
    %1857 = vector.broadcast %cst_721 : f32 to vector<4x32xf32>
    %1858 = arith.subf %1857, %1633 : vector<4x32xf32>
    %cst_722 = arith.constant 8.000000e-01 : f32
    %1859 = vector.broadcast %cst_722 : f32 to vector<4x32xf32>
    %1860 = arith.divf %1858, %1859 : vector<4x32xf32>
    %1861 = arith.mulf %1860, %1763 : vector<4x32xf32>
    %1862 = arith.addf %1856, %1861 : vector<4x32xf32>
    %cst_723 = arith.constant -1.000000e+00 : f32
    %1863 = vector.broadcast %cst_723 : f32 to vector<4x32xf32>
    %1864 = arith.subf %1633, %1863 : vector<4x32xf32>
    %cst_724 = arith.constant 8.000000e-01 : f32
    %1865 = vector.broadcast %cst_724 : f32 to vector<4x32xf32>
    %1866 = arith.divf %1864, %1865 : vector<4x32xf32>
    %1867 = arith.mulf %1866, %1763 : vector<4x32xf32>
    %cst_725 = arith.constant 2.000000e-01 : f32
    %1868 = vector.broadcast %cst_725 : f32 to vector<4x32xf32>
    %1869 = arith.subf %1868, %1633 : vector<4x32xf32>
    %cst_726 = arith.constant 8.000000e-01 : f32
    %1870 = vector.broadcast %cst_726 : f32 to vector<4x32xf32>
    %1871 = arith.divf %1869, %1870 : vector<4x32xf32>
    %1872 = arith.mulf %1871, %1774 : vector<4x32xf32>
    %1873 = arith.addf %1867, %1872 : vector<4x32xf32>
    %cst_727 = arith.constant -6.000000e-01 : f32
    %1874 = vector.broadcast %cst_727 : f32 to vector<4x32xf32>
    %1875 = arith.subf %1633, %1874 : vector<4x32xf32>
    %cst_728 = arith.constant 8.000000e-01 : f32
    %1876 = vector.broadcast %cst_728 : f32 to vector<4x32xf32>
    %1877 = arith.divf %1875, %1876 : vector<4x32xf32>
    %1878 = arith.mulf %1877, %1774 : vector<4x32xf32>
    %cst_729 = arith.constant 6.000000e-01 : f32
    %1879 = vector.broadcast %cst_729 : f32 to vector<4x32xf32>
    %1880 = arith.subf %1879, %1633 : vector<4x32xf32>
    %cst_730 = arith.constant 8.000000e-01 : f32
    %1881 = vector.broadcast %cst_730 : f32 to vector<4x32xf32>
    %1882 = arith.divf %1880, %1881 : vector<4x32xf32>
    %1883 = arith.mulf %1882, %1785 : vector<4x32xf32>
    %1884 = arith.addf %1878, %1883 : vector<4x32xf32>
    %cst_731 = arith.constant -2.000000e-01 : f32
    %1885 = vector.broadcast %cst_731 : f32 to vector<4x32xf32>
    %1886 = arith.subf %1633, %1885 : vector<4x32xf32>
    %cst_732 = arith.constant 8.000000e-01 : f32
    %1887 = vector.broadcast %cst_732 : f32 to vector<4x32xf32>
    %1888 = arith.divf %1886, %1887 : vector<4x32xf32>
    %1889 = arith.mulf %1888, %1785 : vector<4x32xf32>
    %cst_733 = arith.constant 1.000000e+00 : f32
    %1890 = vector.broadcast %cst_733 : f32 to vector<4x32xf32>
    %1891 = arith.subf %1890, %1633 : vector<4x32xf32>
    %cst_734 = arith.constant 8.000000e-01 : f32
    %1892 = vector.broadcast %cst_734 : f32 to vector<4x32xf32>
    %1893 = arith.divf %1891, %1892 : vector<4x32xf32>
    %1894 = arith.mulf %1893, %1796 : vector<4x32xf32>
    %1895 = arith.addf %1889, %1894 : vector<4x32xf32>
    %cst_735 = arith.constant 2.000000e-01 : f32
    %1896 = vector.broadcast %cst_735 : f32 to vector<4x32xf32>
    %1897 = arith.subf %1633, %1896 : vector<4x32xf32>
    %cst_736 = arith.constant 8.000000e-01 : f32
    %1898 = vector.broadcast %cst_736 : f32 to vector<4x32xf32>
    %1899 = arith.divf %1897, %1898 : vector<4x32xf32>
    %1900 = arith.mulf %1899, %1796 : vector<4x32xf32>
    %cst_737 = arith.constant 1.400000e+00 : f32
    %1901 = vector.broadcast %cst_737 : f32 to vector<4x32xf32>
    %1902 = arith.subf %1901, %1633 : vector<4x32xf32>
    %cst_738 = arith.constant 0.799999952 : f32
    %1903 = vector.broadcast %cst_738 : f32 to vector<4x32xf32>
    %1904 = arith.divf %1902, %1903 : vector<4x32xf32>
    %1905 = arith.mulf %1904, %1807 : vector<4x32xf32>
    %1906 = arith.addf %1900, %1905 : vector<4x32xf32>
    %cst_739 = arith.constant 6.000000e-01 : f32
    %1907 = vector.broadcast %cst_739 : f32 to vector<4x32xf32>
    %1908 = arith.subf %1633, %1907 : vector<4x32xf32>
    %cst_740 = arith.constant 0.799999952 : f32
    %1909 = vector.broadcast %cst_740 : f32 to vector<4x32xf32>
    %1910 = arith.divf %1908, %1909 : vector<4x32xf32>
    %1911 = arith.mulf %1910, %1807 : vector<4x32xf32>
    %cst_741 = arith.constant 1.800000e+00 : f32
    %1912 = vector.broadcast %cst_741 : f32 to vector<4x32xf32>
    %1913 = arith.subf %1912, %1633 : vector<4x32xf32>
    %cst_742 = arith.constant 0.799999952 : f32
    %1914 = vector.broadcast %cst_742 : f32 to vector<4x32xf32>
    %1915 = arith.divf %1913, %1914 : vector<4x32xf32>
    %1916 = arith.mulf %1915, %1818 : vector<4x32xf32>
    %1917 = arith.addf %1911, %1916 : vector<4x32xf32>
    %cst_743 = arith.constant 1.000000e+00 : f32
    %1918 = vector.broadcast %cst_743 : f32 to vector<4x32xf32>
    %1919 = arith.subf %1633, %1918 : vector<4x32xf32>
    %cst_744 = arith.constant 0.799999952 : f32
    %1920 = vector.broadcast %cst_744 : f32 to vector<4x32xf32>
    %1921 = arith.divf %1919, %1920 : vector<4x32xf32>
    %1922 = arith.mulf %1921, %1818 : vector<4x32xf32>
    %cst_745 = arith.constant 2.200000e+00 : f32
    %1923 = vector.broadcast %cst_745 : f32 to vector<4x32xf32>
    %1924 = arith.subf %1923, %1633 : vector<4x32xf32>
    %cst_746 = arith.constant 0.800000071 : f32
    %1925 = vector.broadcast %cst_746 : f32 to vector<4x32xf32>
    %1926 = arith.divf %1924, %1925 : vector<4x32xf32>
    %1927 = arith.mulf %1926, %1829 : vector<4x32xf32>
    %1928 = arith.addf %1922, %1927 : vector<4x32xf32>
    %cst_747 = arith.constant -2.200000e+00 : f32
    %1929 = vector.broadcast %cst_747 : f32 to vector<4x32xf32>
    %1930 = arith.subf %1633, %1929 : vector<4x32xf32>
    %cst_748 = arith.constant 1.200000e+00 : f32
    %1931 = vector.broadcast %cst_748 : f32 to vector<4x32xf32>
    %1932 = arith.divf %1930, %1931 : vector<4x32xf32>
    %1933 = arith.mulf %1932, %1840 : vector<4x32xf32>
    %cst_749 = arith.constant -6.000000e-01 : f32
    %1934 = vector.broadcast %cst_749 : f32 to vector<4x32xf32>
    %1935 = arith.subf %1934, %1633 : vector<4x32xf32>
    %cst_750 = arith.constant 1.19999993 : f32
    %1936 = vector.broadcast %cst_750 : f32 to vector<4x32xf32>
    %1937 = arith.divf %1935, %1936 : vector<4x32xf32>
    %1938 = arith.mulf %1937, %1851 : vector<4x32xf32>
    %1939 = arith.addf %1933, %1938 : vector<4x32xf32>
    %cst_751 = arith.constant -1.800000e+00 : f32
    %1940 = vector.broadcast %cst_751 : f32 to vector<4x32xf32>
    %1941 = arith.subf %1633, %1940 : vector<4x32xf32>
    %cst_752 = arith.constant 1.19999993 : f32
    %1942 = vector.broadcast %cst_752 : f32 to vector<4x32xf32>
    %1943 = arith.divf %1941, %1942 : vector<4x32xf32>
    %1944 = arith.mulf %1943, %1851 : vector<4x32xf32>
    %cst_753 = arith.constant -2.000000e-01 : f32
    %1945 = vector.broadcast %cst_753 : f32 to vector<4x32xf32>
    %1946 = arith.subf %1945, %1633 : vector<4x32xf32>
    %cst_754 = arith.constant 1.19999993 : f32
    %1947 = vector.broadcast %cst_754 : f32 to vector<4x32xf32>
    %1948 = arith.divf %1946, %1947 : vector<4x32xf32>
    %1949 = arith.mulf %1948, %1862 : vector<4x32xf32>
    %1950 = arith.addf %1944, %1949 : vector<4x32xf32>
    %cst_755 = arith.constant -1.400000e+00 : f32
    %1951 = vector.broadcast %cst_755 : f32 to vector<4x32xf32>
    %1952 = arith.subf %1633, %1951 : vector<4x32xf32>
    %cst_756 = arith.constant 1.19999993 : f32
    %1953 = vector.broadcast %cst_756 : f32 to vector<4x32xf32>
    %1954 = arith.divf %1952, %1953 : vector<4x32xf32>
    %1955 = arith.mulf %1954, %1862 : vector<4x32xf32>
    %cst_757 = arith.constant 2.000000e-01 : f32
    %1956 = vector.broadcast %cst_757 : f32 to vector<4x32xf32>
    %1957 = arith.subf %1956, %1633 : vector<4x32xf32>
    %cst_758 = arith.constant 1.200000e+00 : f32
    %1958 = vector.broadcast %cst_758 : f32 to vector<4x32xf32>
    %1959 = arith.divf %1957, %1958 : vector<4x32xf32>
    %1960 = arith.mulf %1959, %1873 : vector<4x32xf32>
    %1961 = arith.addf %1955, %1960 : vector<4x32xf32>
    %cst_759 = arith.constant -1.000000e+00 : f32
    %1962 = vector.broadcast %cst_759 : f32 to vector<4x32xf32>
    %1963 = arith.subf %1633, %1962 : vector<4x32xf32>
    %cst_760 = arith.constant 1.200000e+00 : f32
    %1964 = vector.broadcast %cst_760 : f32 to vector<4x32xf32>
    %1965 = arith.divf %1963, %1964 : vector<4x32xf32>
    %1966 = arith.mulf %1965, %1873 : vector<4x32xf32>
    %cst_761 = arith.constant 6.000000e-01 : f32
    %1967 = vector.broadcast %cst_761 : f32 to vector<4x32xf32>
    %1968 = arith.subf %1967, %1633 : vector<4x32xf32>
    %cst_762 = arith.constant 1.200000e+00 : f32
    %1969 = vector.broadcast %cst_762 : f32 to vector<4x32xf32>
    %1970 = arith.divf %1968, %1969 : vector<4x32xf32>
    %1971 = arith.mulf %1970, %1884 : vector<4x32xf32>
    %1972 = arith.addf %1966, %1971 : vector<4x32xf32>
    %cst_763 = arith.constant -6.000000e-01 : f32
    %1973 = vector.broadcast %cst_763 : f32 to vector<4x32xf32>
    %1974 = arith.subf %1633, %1973 : vector<4x32xf32>
    %cst_764 = arith.constant 1.200000e+00 : f32
    %1975 = vector.broadcast %cst_764 : f32 to vector<4x32xf32>
    %1976 = arith.divf %1974, %1975 : vector<4x32xf32>
    %1977 = arith.mulf %1976, %1884 : vector<4x32xf32>
    %cst_765 = arith.constant 1.000000e+00 : f32
    %1978 = vector.broadcast %cst_765 : f32 to vector<4x32xf32>
    %1979 = arith.subf %1978, %1633 : vector<4x32xf32>
    %cst_766 = arith.constant 1.200000e+00 : f32
    %1980 = vector.broadcast %cst_766 : f32 to vector<4x32xf32>
    %1981 = arith.divf %1979, %1980 : vector<4x32xf32>
    %1982 = arith.mulf %1981, %1895 : vector<4x32xf32>
    %1983 = arith.addf %1977, %1982 : vector<4x32xf32>
    %cst_767 = arith.constant -2.000000e-01 : f32
    %1984 = vector.broadcast %cst_767 : f32 to vector<4x32xf32>
    %1985 = arith.subf %1633, %1984 : vector<4x32xf32>
    %cst_768 = arith.constant 1.200000e+00 : f32
    %1986 = vector.broadcast %cst_768 : f32 to vector<4x32xf32>
    %1987 = arith.divf %1985, %1986 : vector<4x32xf32>
    %1988 = arith.mulf %1987, %1895 : vector<4x32xf32>
    %cst_769 = arith.constant 1.400000e+00 : f32
    %1989 = vector.broadcast %cst_769 : f32 to vector<4x32xf32>
    %1990 = arith.subf %1989, %1633 : vector<4x32xf32>
    %cst_770 = arith.constant 1.19999993 : f32
    %1991 = vector.broadcast %cst_770 : f32 to vector<4x32xf32>
    %1992 = arith.divf %1990, %1991 : vector<4x32xf32>
    %1993 = arith.mulf %1992, %1906 : vector<4x32xf32>
    %1994 = arith.addf %1988, %1993 : vector<4x32xf32>
    %cst_771 = arith.constant 2.000000e-01 : f32
    %1995 = vector.broadcast %cst_771 : f32 to vector<4x32xf32>
    %1996 = arith.subf %1633, %1995 : vector<4x32xf32>
    %cst_772 = arith.constant 1.19999993 : f32
    %1997 = vector.broadcast %cst_772 : f32 to vector<4x32xf32>
    %1998 = arith.divf %1996, %1997 : vector<4x32xf32>
    %1999 = arith.mulf %1998, %1906 : vector<4x32xf32>
    %cst_773 = arith.constant 1.800000e+00 : f32
    %2000 = vector.broadcast %cst_773 : f32 to vector<4x32xf32>
    %2001 = arith.subf %2000, %1633 : vector<4x32xf32>
    %cst_774 = arith.constant 1.19999993 : f32
    %2002 = vector.broadcast %cst_774 : f32 to vector<4x32xf32>
    %2003 = arith.divf %2001, %2002 : vector<4x32xf32>
    %2004 = arith.mulf %2003, %1917 : vector<4x32xf32>
    %2005 = arith.addf %1999, %2004 : vector<4x32xf32>
    %cst_775 = arith.constant 6.000000e-01 : f32
    %2006 = vector.broadcast %cst_775 : f32 to vector<4x32xf32>
    %2007 = arith.subf %1633, %2006 : vector<4x32xf32>
    %cst_776 = arith.constant 1.19999993 : f32
    %2008 = vector.broadcast %cst_776 : f32 to vector<4x32xf32>
    %2009 = arith.divf %2007, %2008 : vector<4x32xf32>
    %2010 = arith.mulf %2009, %1917 : vector<4x32xf32>
    %cst_777 = arith.constant 2.200000e+00 : f32
    %2011 = vector.broadcast %cst_777 : f32 to vector<4x32xf32>
    %2012 = arith.subf %2011, %1633 : vector<4x32xf32>
    %cst_778 = arith.constant 1.200000e+00 : f32
    %2013 = vector.broadcast %cst_778 : f32 to vector<4x32xf32>
    %2014 = arith.divf %2012, %2013 : vector<4x32xf32>
    %2015 = arith.mulf %2014, %1928 : vector<4x32xf32>
    %2016 = arith.addf %2010, %2015 : vector<4x32xf32>
    %c0_779 = arith.constant 0 : index
    %c32_780 = arith.constant 32 : index
    %2017 = vector.load %arg11[%c0_779, %c32_780] : memref<4x288xf32, #tpu.memory_space<vmem>>, vector<4x32xf32>
    tpu.vector_store %arg11[%c0_779, %c32_780], %1939 {strides = array<i32>} : memref<4x288xf32, #tpu.memory_space<vmem>>, vector<4x32xf32>,
    %c0_781 = arith.constant 0 : index
    %c64_782 = arith.constant 64 : index
    %2018 = vector.load %arg11[%c0_781, %c64_782] : memref<4x288xf32, #tpu.memory_space<vmem>>, vector<4x32xf32>
    tpu.vector_store %arg11[%c0_781, %c64_782], %1950 {strides = array<i32>} : memref<4x288xf32, #tpu.memory_space<vmem>>, vector<4x32xf32>,
    %c0_783 = arith.constant 0 : index
    %c96_784 = arith.constant 96 : index
    %2019 = vector.load %arg11[%c0_783, %c96_784] : memref<4x288xf32, #tpu.memory_space<vmem>>, vector<4x32xf32>
    tpu.vector_store %arg11[%c0_783, %c96_784], %1961 {strides = array<i32>} : memref<4x288xf32, #tpu.memory_space<vmem>>, vector<4x32xf32>,
    %c0_785 = arith.constant 0 : index
    %c128_786 = arith.constant 128 : index
    %2020 = vector.load %arg11[%c0_785, %c128_786] : memref<4x288xf32, #tpu.memory_space<vmem>>, vector<4x32xf32>
    tpu.vector_store %arg11[%c0_785, %c128_786], %1972 {strides = array<i32>} : memref<4x288xf32, #tpu.memory_space<vmem>>, vector<4x32xf32>,
    %c0_787 = arith.constant 0 : index
    %c160_788 = arith.constant 160 : index
    %2021 = vector.load %arg11[%c0_787, %c160_788] : memref<4x288xf32, #tpu.memory_space<vmem>>, vector<4x32xf32>
    tpu.vector_store %arg11[%c0_787, %c160_788], %1983 {strides = array<i32>} : memref<4x288xf32, #tpu.memory_space<vmem>>, vector<4x32xf32>,
    %c0_789 = arith.constant 0 : index
    %c192_790 = arith.constant 192 : index
    %2022 = vector.load %arg11[%c0_789, %c192_790] : memref<4x288xf32, #tpu.memory_space<vmem>>, vector<4x32xf32>
    tpu.vector_store %arg11[%c0_789, %c192_790], %1994 {strides = array<i32>} : memref<4x288xf32, #tpu.memory_space<vmem>>, vector<4x32xf32>,
    %c0_791 = arith.constant 0 : index
    %c224_792 = arith.constant 224 : index
    %2023 = vector.load %arg11[%c0_791, %c224_792] : memref<4x288xf32, #tpu.memory_space<vmem>>, vector<4x32xf32>
    tpu.vector_store %arg11[%c0_791, %c224_792], %2005 {strides = array<i32>} : memref<4x288xf32, #tpu.memory_space<vmem>>, vector<4x32xf32>,
    %c0_793 = arith.constant 0 : index
    %c256_794 = arith.constant 256 : index
    %2024 = vector.load %arg11[%c0_793, %c256_794] : memref<4x288xf32, #tpu.memory_space<vmem>>, vector<4x32xf32>
    tpu.vector_store %arg11[%c0_793, %c256_794], %2016 {strides = array<i32>} : memref<4x288xf32, #tpu.memory_space<vmem>>, vector<4x32xf32>,
    %c0_795 = arith.constant 0 : index
    %c0_796 = arith.constant 0 : index
    %2025 = vector.load %arg11[%c0_795, %c0_796] : memref<4x288xf32, #tpu.memory_space<vmem>>, vector<4x288xf32>
    %c0_797 = arith.constant 0 : index
    %c0_798 = arith.constant 0 : index
    %2026 = vector.load %arg7[%c0_797, %c0_798] : memref<288x32xf32, #tpu.memory_space<vmem>>, vector<288x32xf32>
    %cst_799 = arith.constant dense<0.000000e+00> : vector<4x32xf32>
    %2027 = tpu.matmul %2025, %2026, %cst_799 {dimension_numbers = #tpu.dot_dimension_numbers<[1], [0], [0], [1], [0, 0, 1, 1], [], []>} : vector<4x288xf32>, vector<288x32xf32>, vector<4x32xf32> -> vector<4x32xf32>
    %cst_800 = arith.constant 0.000000e+00 : f32
    %2028 = vector.broadcast %cst_800 : f32 to vector<4x32xf32>
    %2029 = arith.subf %2028, %2027 : vector<4x32xf32>
    %2030 = math.exp %2029 : vector<4x32xf32>
    %cst_801 = arith.constant 1.000000e+00 : f32
    %2031 = vector.broadcast %cst_801 : f32 to vector<4x32xf32>
    %2032 = arith.addf %2031, %2030 : vector<4x32xf32>
    %cst_802 = arith.constant 1.000000e+00 : f32
    %2033 = vector.broadcast %cst_802 : f32 to vector<4x32xf32>
    %2034 = arith.divf %2033, %2032 : vector<4x32xf32>
    %2035 = arith.mulf %2027, %2034 : vector<4x32xf32>
    %c0_803 = arith.constant 0 : index
    %c0_804 = arith.constant 0 : index
    %2036 = vector.load %arg11[%c0_803, %c0_804] : memref<4x288xf32, #tpu.memory_space<vmem>>, vector<4x32xf32>
    tpu.vector_store %arg11[%c0_803, %c0_804], %2035 {strides = array<i32>} : memref<4x288xf32, #tpu.memory_space<vmem>>, vector<4x32xf32>,
    %cst_805 = arith.constant -2.200000e+00 : f32
    %2037 = vector.broadcast %cst_805 : f32 to vector<4x32xf32>
    %2038 = arith.cmpf oge, %2027, %2037 : vector<4x32xf32>
    %cst_806 = arith.constant -1.800000e+00 : f32
    %2039 = vector.broadcast %cst_806 : f32 to vector<4x32xf32>
    %2040 = arith.cmpf olt, %2027, %2039 : vector<4x32xf32>
    %2041 = arith.andi %2038, %2040 : vector<4x32xi1>
    %2042 = arith.extui %2041 : vector<4x32xi1> to vector<4x32xi32>
    %2043 = arith.sitofp %2042 : vector<4x32xi32> to vector<4x32xf32>
    %cst_807 = arith.constant -1.800000e+00 : f32
    %2044 = vector.broadcast %cst_807 : f32 to vector<4x32xf32>
    %2045 = arith.cmpf oge, %2027, %2044 : vector<4x32xf32>
    %cst_808 = arith.constant -1.400000e+00 : f32
    %2046 = vector.broadcast %cst_808 : f32 to vector<4x32xf32>
    %2047 = arith.cmpf olt, %2027, %2046 : vector<4x32xf32>
    %2048 = arith.andi %2045, %2047 : vector<4x32xi1>
    %2049 = arith.extui %2048 : vector<4x32xi1> to vector<4x32xi32>
    %2050 = arith.sitofp %2049 : vector<4x32xi32> to vector<4x32xf32>
    %cst_809 = arith.constant -1.400000e+00 : f32
    %2051 = vector.broadcast %cst_809 : f32 to vector<4x32xf32>
    %2052 = arith.cmpf oge, %2027, %2051 : vector<4x32xf32>
    %cst_810 = arith.constant -1.000000e+00 : f32
    %2053 = vector.broadcast %cst_810 : f32 to vector<4x32xf32>
    %2054 = arith.cmpf olt, %2027, %2053 : vector<4x32xf32>
    %2055 = arith.andi %2052, %2054 : vector<4x32xi1>
    %2056 = arith.extui %2055 : vector<4x32xi1> to vector<4x32xi32>
    %2057 = arith.sitofp %2056 : vector<4x32xi32> to vector<4x32xf32>
    %cst_811 = arith.constant -1.000000e+00 : f32
    %2058 = vector.broadcast %cst_811 : f32 to vector<4x32xf32>
    %2059 = arith.cmpf oge, %2027, %2058 : vector<4x32xf32>
    %cst_812 = arith.constant -6.000000e-01 : f32
    %2060 = vector.broadcast %cst_812 : f32 to vector<4x32xf32>
    %2061 = arith.cmpf olt, %2027, %2060 : vector<4x32xf32>
    %2062 = arith.andi %2059, %2061 : vector<4x32xi1>
    %2063 = arith.extui %2062 : vector<4x32xi1> to vector<4x32xi32>
    %2064 = arith.sitofp %2063 : vector<4x32xi32> to vector<4x32xf32>
    %cst_813 = arith.constant -6.000000e-01 : f32
    %2065 = vector.broadcast %cst_813 : f32 to vector<4x32xf32>
    %2066 = arith.cmpf oge, %2027, %2065 : vector<4x32xf32>
    %cst_814 = arith.constant -2.000000e-01 : f32
    %2067 = vector.broadcast %cst_814 : f32 to vector<4x32xf32>
    %2068 = arith.cmpf olt, %2027, %2067 : vector<4x32xf32>
    %2069 = arith.andi %2066, %2068 : vector<4x32xi1>
    %2070 = arith.extui %2069 : vector<4x32xi1> to vector<4x32xi32>
    %2071 = arith.sitofp %2070 : vector<4x32xi32> to vector<4x32xf32>
    %cst_815 = arith.constant -2.000000e-01 : f32
    %2072 = vector.broadcast %cst_815 : f32 to vector<4x32xf32>
    %2073 = arith.cmpf oge, %2027, %2072 : vector<4x32xf32>
    %cst_816 = arith.constant 2.000000e-01 : f32
    %2074 = vector.broadcast %cst_816 : f32 to vector<4x32xf32>
    %2075 = arith.cmpf olt, %2027, %2074 : vector<4x32xf32>
    %2076 = arith.andi %2073, %2075 : vector<4x32xi1>
    %2077 = arith.extui %2076 : vector<4x32xi1> to vector<4x32xi32>
    %2078 = arith.sitofp %2077 : vector<4x32xi32> to vector<4x32xf32>
    %cst_817 = arith.constant 2.000000e-01 : f32
    %2079 = vector.broadcast %cst_817 : f32 to vector<4x32xf32>
    %2080 = arith.cmpf oge, %2027, %2079 : vector<4x32xf32>
    %cst_818 = arith.constant 6.000000e-01 : f32
    %2081 = vector.broadcast %cst_818 : f32 to vector<4x32xf32>
    %2082 = arith.cmpf olt, %2027, %2081 : vector<4x32xf32>
    %2083 = arith.andi %2080, %2082 : vector<4x32xi1>
    %2084 = arith.extui %2083 : vector<4x32xi1> to vector<4x32xi32>
    %2085 = arith.sitofp %2084 : vector<4x32xi32> to vector<4x32xf32>
    %cst_819 = arith.constant 6.000000e-01 : f32
    %2086 = vector.broadcast %cst_819 : f32 to vector<4x32xf32>
    %2087 = arith.cmpf oge, %2027, %2086 : vector<4x32xf32>
    %cst_820 = arith.constant 1.000000e+00 : f32
    %2088 = vector.broadcast %cst_820 : f32 to vector<4x32xf32>
    %2089 = arith.cmpf olt, %2027, %2088 : vector<4x32xf32>
    %2090 = arith.andi %2087, %2089 : vector<4x32xi1>
    %2091 = arith.extui %2090 : vector<4x32xi1> to vector<4x32xi32>
    %2092 = arith.sitofp %2091 : vector<4x32xi32> to vector<4x32xf32>
    %cst_821 = arith.constant 1.000000e+00 : f32
    %2093 = vector.broadcast %cst_821 : f32 to vector<4x32xf32>
    %2094 = arith.cmpf oge, %2027, %2093 : vector<4x32xf32>
    %cst_822 = arith.constant 1.400000e+00 : f32
    %2095 = vector.broadcast %cst_822 : f32 to vector<4x32xf32>
    %2096 = arith.cmpf olt, %2027, %2095 : vector<4x32xf32>
    %2097 = arith.andi %2094, %2096 : vector<4x32xi1>
    %2098 = arith.extui %2097 : vector<4x32xi1> to vector<4x32xi32>
    %2099 = arith.sitofp %2098 : vector<4x32xi32> to vector<4x32xf32>
    %cst_823 = arith.constant 1.400000e+00 : f32
    %2100 = vector.broadcast %cst_823 : f32 to vector<4x32xf32>
    %2101 = arith.cmpf oge, %2027, %2100 : vector<4x32xf32>
    %cst_824 = arith.constant 1.800000e+00 : f32
    %2102 = vector.broadcast %cst_824 : f32 to vector<4x32xf32>
    %2103 = arith.cmpf olt, %2027, %2102 : vector<4x32xf32>
    %2104 = arith.andi %2101, %2103 : vector<4x32xi1>
    %2105 = arith.extui %2104 : vector<4x32xi1> to vector<4x32xi32>
    %2106 = arith.sitofp %2105 : vector<4x32xi32> to vector<4x32xf32>
    %cst_825 = arith.constant 1.800000e+00 : f32
    %2107 = vector.broadcast %cst_825 : f32 to vector<4x32xf32>
    %2108 = arith.cmpf oge, %2027, %2107 : vector<4x32xf32>
    %cst_826 = arith.constant 2.200000e+00 : f32
    %2109 = vector.broadcast %cst_826 : f32 to vector<4x32xf32>
    %2110 = arith.cmpf olt, %2027, %2109 : vector<4x32xf32>
    %2111 = arith.andi %2108, %2110 : vector<4x32xi1>
    %2112 = arith.extui %2111 : vector<4x32xi1> to vector<4x32xi32>
    %2113 = arith.sitofp %2112 : vector<4x32xi32> to vector<4x32xf32>
    %cst_827 = arith.constant -2.200000e+00 : f32
    %2114 = vector.broadcast %cst_827 : f32 to vector<4x32xf32>
    %2115 = arith.subf %2027, %2114 : vector<4x32xf32>
    %cst_828 = arith.constant 0.400000095 : f32
    %2116 = vector.broadcast %cst_828 : f32 to vector<4x32xf32>
    %2117 = arith.divf %2115, %2116 : vector<4x32xf32>
    %2118 = arith.mulf %2117, %2043 : vector<4x32xf32>
    %cst_829 = arith.constant -1.400000e+00 : f32
    %2119 = vector.broadcast %cst_829 : f32 to vector<4x32xf32>
    %2120 = arith.subf %2119, %2027 : vector<4x32xf32>
    %cst_830 = arith.constant 0.399999976 : f32
    %2121 = vector.broadcast %cst_830 : f32 to vector<4x32xf32>
    %2122 = arith.divf %2120, %2121 : vector<4x32xf32>
    %2123 = arith.mulf %2122, %2050 : vector<4x32xf32>
    %2124 = arith.addf %2118, %2123 : vector<4x32xf32>
    %cst_831 = arith.constant -1.800000e+00 : f32
    %2125 = vector.broadcast %cst_831 : f32 to vector<4x32xf32>
    %2126 = arith.subf %2027, %2125 : vector<4x32xf32>
    %cst_832 = arith.constant 0.399999976 : f32
    %2127 = vector.broadcast %cst_832 : f32 to vector<4x32xf32>
    %2128 = arith.divf %2126, %2127 : vector<4x32xf32>
    %2129 = arith.mulf %2128, %2050 : vector<4x32xf32>
    %cst_833 = arith.constant -1.000000e+00 : f32
    %2130 = vector.broadcast %cst_833 : f32 to vector<4x32xf32>
    %2131 = arith.subf %2130, %2027 : vector<4x32xf32>
    %cst_834 = arith.constant 0.399999976 : f32
    %2132 = vector.broadcast %cst_834 : f32 to vector<4x32xf32>
    %2133 = arith.divf %2131, %2132 : vector<4x32xf32>
    %2134 = arith.mulf %2133, %2057 : vector<4x32xf32>
    %2135 = arith.addf %2129, %2134 : vector<4x32xf32>
    %cst_835 = arith.constant -1.400000e+00 : f32
    %2136 = vector.broadcast %cst_835 : f32 to vector<4x32xf32>
    %2137 = arith.subf %2027, %2136 : vector<4x32xf32>
    %cst_836 = arith.constant 0.399999976 : f32
    %2138 = vector.broadcast %cst_836 : f32 to vector<4x32xf32>
    %2139 = arith.divf %2137, %2138 : vector<4x32xf32>
    %2140 = arith.mulf %2139, %2057 : vector<4x32xf32>
    %cst_837 = arith.constant -6.000000e-01 : f32
    %2141 = vector.broadcast %cst_837 : f32 to vector<4x32xf32>
    %2142 = arith.subf %2141, %2027 : vector<4x32xf32>
    %cst_838 = arith.constant 0.399999976 : f32
    %2143 = vector.broadcast %cst_838 : f32 to vector<4x32xf32>
    %2144 = arith.divf %2142, %2143 : vector<4x32xf32>
    %2145 = arith.mulf %2144, %2064 : vector<4x32xf32>
    %2146 = arith.addf %2140, %2145 : vector<4x32xf32>
    %cst_839 = arith.constant -1.000000e+00 : f32
    %2147 = vector.broadcast %cst_839 : f32 to vector<4x32xf32>
    %2148 = arith.subf %2027, %2147 : vector<4x32xf32>
    %cst_840 = arith.constant 0.399999976 : f32
    %2149 = vector.broadcast %cst_840 : f32 to vector<4x32xf32>
    %2150 = arith.divf %2148, %2149 : vector<4x32xf32>
    %2151 = arith.mulf %2150, %2064 : vector<4x32xf32>
    %cst_841 = arith.constant -2.000000e-01 : f32
    %2152 = vector.broadcast %cst_841 : f32 to vector<4x32xf32>
    %2153 = arith.subf %2152, %2027 : vector<4x32xf32>
    %cst_842 = arith.constant 0.400000036 : f32
    %2154 = vector.broadcast %cst_842 : f32 to vector<4x32xf32>
    %2155 = arith.divf %2153, %2154 : vector<4x32xf32>
    %2156 = arith.mulf %2155, %2071 : vector<4x32xf32>
    %2157 = arith.addf %2151, %2156 : vector<4x32xf32>
    %cst_843 = arith.constant -6.000000e-01 : f32
    %2158 = vector.broadcast %cst_843 : f32 to vector<4x32xf32>
    %2159 = arith.subf %2027, %2158 : vector<4x32xf32>
    %cst_844 = arith.constant 0.400000036 : f32
    %2160 = vector.broadcast %cst_844 : f32 to vector<4x32xf32>
    %2161 = arith.divf %2159, %2160 : vector<4x32xf32>
    %2162 = arith.mulf %2161, %2071 : vector<4x32xf32>
    %cst_845 = arith.constant 2.000000e-01 : f32
    %2163 = vector.broadcast %cst_845 : f32 to vector<4x32xf32>
    %2164 = arith.subf %2163, %2027 : vector<4x32xf32>
    %cst_846 = arith.constant 4.000000e-01 : f32
    %2165 = vector.broadcast %cst_846 : f32 to vector<4x32xf32>
    %2166 = arith.divf %2164, %2165 : vector<4x32xf32>
    %2167 = arith.mulf %2166, %2078 : vector<4x32xf32>
    %2168 = arith.addf %2162, %2167 : vector<4x32xf32>
    %cst_847 = arith.constant -2.000000e-01 : f32
    %2169 = vector.broadcast %cst_847 : f32 to vector<4x32xf32>
    %2170 = arith.subf %2027, %2169 : vector<4x32xf32>
    %cst_848 = arith.constant 4.000000e-01 : f32
    %2171 = vector.broadcast %cst_848 : f32 to vector<4x32xf32>
    %2172 = arith.divf %2170, %2171 : vector<4x32xf32>
    %2173 = arith.mulf %2172, %2078 : vector<4x32xf32>
    %cst_849 = arith.constant 6.000000e-01 : f32
    %2174 = vector.broadcast %cst_849 : f32 to vector<4x32xf32>
    %2175 = arith.subf %2174, %2027 : vector<4x32xf32>
    %cst_850 = arith.constant 0.400000036 : f32
    %2176 = vector.broadcast %cst_850 : f32 to vector<4x32xf32>
    %2177 = arith.divf %2175, %2176 : vector<4x32xf32>
    %2178 = arith.mulf %2177, %2085 : vector<4x32xf32>
    %2179 = arith.addf %2173, %2178 : vector<4x32xf32>
    %cst_851 = arith.constant 2.000000e-01 : f32
    %2180 = vector.broadcast %cst_851 : f32 to vector<4x32xf32>
    %2181 = arith.subf %2027, %2180 : vector<4x32xf32>
    %cst_852 = arith.constant 0.400000036 : f32
    %2182 = vector.broadcast %cst_852 : f32 to vector<4x32xf32>
    %2183 = arith.divf %2181, %2182 : vector<4x32xf32>
    %2184 = arith.mulf %2183, %2085 : vector<4x32xf32>
    %cst_853 = arith.constant 1.000000e+00 : f32
    %2185 = vector.broadcast %cst_853 : f32 to vector<4x32xf32>
    %2186 = arith.subf %2185, %2027 : vector<4x32xf32>
    %cst_854 = arith.constant 0.399999976 : f32
    %2187 = vector.broadcast %cst_854 : f32 to vector<4x32xf32>
    %2188 = arith.divf %2186, %2187 : vector<4x32xf32>
    %2189 = arith.mulf %2188, %2092 : vector<4x32xf32>
    %2190 = arith.addf %2184, %2189 : vector<4x32xf32>
    %cst_855 = arith.constant 6.000000e-01 : f32
    %2191 = vector.broadcast %cst_855 : f32 to vector<4x32xf32>
    %2192 = arith.subf %2027, %2191 : vector<4x32xf32>
    %cst_856 = arith.constant 0.399999976 : f32
    %2193 = vector.broadcast %cst_856 : f32 to vector<4x32xf32>
    %2194 = arith.divf %2192, %2193 : vector<4x32xf32>
    %2195 = arith.mulf %2194, %2092 : vector<4x32xf32>
    %cst_857 = arith.constant 1.400000e+00 : f32
    %2196 = vector.broadcast %cst_857 : f32 to vector<4x32xf32>
    %2197 = arith.subf %2196, %2027 : vector<4x32xf32>
    %cst_858 = arith.constant 0.399999976 : f32
    %2198 = vector.broadcast %cst_858 : f32 to vector<4x32xf32>
    %2199 = arith.divf %2197, %2198 : vector<4x32xf32>
    %2200 = arith.mulf %2199, %2099 : vector<4x32xf32>
    %2201 = arith.addf %2195, %2200 : vector<4x32xf32>
    %cst_859 = arith.constant 1.000000e+00 : f32
    %2202 = vector.broadcast %cst_859 : f32 to vector<4x32xf32>
    %2203 = arith.subf %2027, %2202 : vector<4x32xf32>
    %cst_860 = arith.constant 0.399999976 : f32
    %2204 = vector.broadcast %cst_860 : f32 to vector<4x32xf32>
    %2205 = arith.divf %2203, %2204 : vector<4x32xf32>
    %2206 = arith.mulf %2205, %2099 : vector<4x32xf32>
    %cst_861 = arith.constant 1.800000e+00 : f32
    %2207 = vector.broadcast %cst_861 : f32 to vector<4x32xf32>
    %2208 = arith.subf %2207, %2027 : vector<4x32xf32>
    %cst_862 = arith.constant 0.399999976 : f32
    %2209 = vector.broadcast %cst_862 : f32 to vector<4x32xf32>
    %2210 = arith.divf %2208, %2209 : vector<4x32xf32>
    %2211 = arith.mulf %2210, %2106 : vector<4x32xf32>
    %2212 = arith.addf %2206, %2211 : vector<4x32xf32>
    %cst_863 = arith.constant 1.400000e+00 : f32
    %2213 = vector.broadcast %cst_863 : f32 to vector<4x32xf32>
    %2214 = arith.subf %2027, %2213 : vector<4x32xf32>
    %cst_864 = arith.constant 0.399999976 : f32
    %2215 = vector.broadcast %cst_864 : f32 to vector<4x32xf32>
    %2216 = arith.divf %2214, %2215 : vector<4x32xf32>
    %2217 = arith.mulf %2216, %2106 : vector<4x32xf32>
    %cst_865 = arith.constant 2.200000e+00 : f32
    %2218 = vector.broadcast %cst_865 : f32 to vector<4x32xf32>
    %2219 = arith.subf %2218, %2027 : vector<4x32xf32>
    %cst_866 = arith.constant 0.400000095 : f32
    %2220 = vector.broadcast %cst_866 : f32 to vector<4x32xf32>
    %2221 = arith.divf %2219, %2220 : vector<4x32xf32>
    %2222 = arith.mulf %2221, %2113 : vector<4x32xf32>
    %2223 = arith.addf %2217, %2222 : vector<4x32xf32>
    %cst_867 = arith.constant -2.200000e+00 : f32
    %2224 = vector.broadcast %cst_867 : f32 to vector<4x32xf32>
    %2225 = arith.subf %2027, %2224 : vector<4x32xf32>
    %cst_868 = arith.constant 0.800000071 : f32
    %2226 = vector.broadcast %cst_868 : f32 to vector<4x32xf32>
    %2227 = arith.divf %2225, %2226 : vector<4x32xf32>
    %2228 = arith.mulf %2227, %2124 : vector<4x32xf32>
    %cst_869 = arith.constant -1.000000e+00 : f32
    %2229 = vector.broadcast %cst_869 : f32 to vector<4x32xf32>
    %2230 = arith.subf %2229, %2027 : vector<4x32xf32>
    %cst_870 = arith.constant 0.799999952 : f32
    %2231 = vector.broadcast %cst_870 : f32 to vector<4x32xf32>
    %2232 = arith.divf %2230, %2231 : vector<4x32xf32>
    %2233 = arith.mulf %2232, %2135 : vector<4x32xf32>
    %2234 = arith.addf %2228, %2233 : vector<4x32xf32>
    %cst_871 = arith.constant -1.800000e+00 : f32
    %2235 = vector.broadcast %cst_871 : f32 to vector<4x32xf32>
    %2236 = arith.subf %2027, %2235 : vector<4x32xf32>
    %cst_872 = arith.constant 0.799999952 : f32
    %2237 = vector.broadcast %cst_872 : f32 to vector<4x32xf32>
    %2238 = arith.divf %2236, %2237 : vector<4x32xf32>
    %2239 = arith.mulf %2238, %2135 : vector<4x32xf32>
    %cst_873 = arith.constant -6.000000e-01 : f32
    %2240 = vector.broadcast %cst_873 : f32 to vector<4x32xf32>
    %2241 = arith.subf %2240, %2027 : vector<4x32xf32>
    %cst_874 = arith.constant 0.799999952 : f32
    %2242 = vector.broadcast %cst_874 : f32 to vector<4x32xf32>
    %2243 = arith.divf %2241, %2242 : vector<4x32xf32>
    %2244 = arith.mulf %2243, %2146 : vector<4x32xf32>
    %2245 = arith.addf %2239, %2244 : vector<4x32xf32>
    %cst_875 = arith.constant -1.400000e+00 : f32
    %2246 = vector.broadcast %cst_875 : f32 to vector<4x32xf32>
    %2247 = arith.subf %2027, %2246 : vector<4x32xf32>
    %cst_876 = arith.constant 0.799999952 : f32
    %2248 = vector.broadcast %cst_876 : f32 to vector<4x32xf32>
    %2249 = arith.divf %2247, %2248 : vector<4x32xf32>
    %2250 = arith.mulf %2249, %2146 : vector<4x32xf32>
    %cst_877 = arith.constant -2.000000e-01 : f32
    %2251 = vector.broadcast %cst_877 : f32 to vector<4x32xf32>
    %2252 = arith.subf %2251, %2027 : vector<4x32xf32>
    %cst_878 = arith.constant 8.000000e-01 : f32
    %2253 = vector.broadcast %cst_878 : f32 to vector<4x32xf32>
    %2254 = arith.divf %2252, %2253 : vector<4x32xf32>
    %2255 = arith.mulf %2254, %2157 : vector<4x32xf32>
    %2256 = arith.addf %2250, %2255 : vector<4x32xf32>
    %cst_879 = arith.constant -1.000000e+00 : f32
    %2257 = vector.broadcast %cst_879 : f32 to vector<4x32xf32>
    %2258 = arith.subf %2027, %2257 : vector<4x32xf32>
    %cst_880 = arith.constant 8.000000e-01 : f32
    %2259 = vector.broadcast %cst_880 : f32 to vector<4x32xf32>
    %2260 = arith.divf %2258, %2259 : vector<4x32xf32>
    %2261 = arith.mulf %2260, %2157 : vector<4x32xf32>
    %cst_881 = arith.constant 2.000000e-01 : f32
    %2262 = vector.broadcast %cst_881 : f32 to vector<4x32xf32>
    %2263 = arith.subf %2262, %2027 : vector<4x32xf32>
    %cst_882 = arith.constant 8.000000e-01 : f32
    %2264 = vector.broadcast %cst_882 : f32 to vector<4x32xf32>
    %2265 = arith.divf %2263, %2264 : vector<4x32xf32>
    %2266 = arith.mulf %2265, %2168 : vector<4x32xf32>
    %2267 = arith.addf %2261, %2266 : vector<4x32xf32>
    %cst_883 = arith.constant -6.000000e-01 : f32
    %2268 = vector.broadcast %cst_883 : f32 to vector<4x32xf32>
    %2269 = arith.subf %2027, %2268 : vector<4x32xf32>
    %cst_884 = arith.constant 8.000000e-01 : f32
    %2270 = vector.broadcast %cst_884 : f32 to vector<4x32xf32>
    %2271 = arith.divf %2269, %2270 : vector<4x32xf32>
    %2272 = arith.mulf %2271, %2168 : vector<4x32xf32>
    %cst_885 = arith.constant 6.000000e-01 : f32
    %2273 = vector.broadcast %cst_885 : f32 to vector<4x32xf32>
    %2274 = arith.subf %2273, %2027 : vector<4x32xf32>
    %cst_886 = arith.constant 8.000000e-01 : f32
    %2275 = vector.broadcast %cst_886 : f32 to vector<4x32xf32>
    %2276 = arith.divf %2274, %2275 : vector<4x32xf32>
    %2277 = arith.mulf %2276, %2179 : vector<4x32xf32>
    %2278 = arith.addf %2272, %2277 : vector<4x32xf32>
    %cst_887 = arith.constant -2.000000e-01 : f32
    %2279 = vector.broadcast %cst_887 : f32 to vector<4x32xf32>
    %2280 = arith.subf %2027, %2279 : vector<4x32xf32>
    %cst_888 = arith.constant 8.000000e-01 : f32
    %2281 = vector.broadcast %cst_888 : f32 to vector<4x32xf32>
    %2282 = arith.divf %2280, %2281 : vector<4x32xf32>
    %2283 = arith.mulf %2282, %2179 : vector<4x32xf32>
    %cst_889 = arith.constant 1.000000e+00 : f32
    %2284 = vector.broadcast %cst_889 : f32 to vector<4x32xf32>
    %2285 = arith.subf %2284, %2027 : vector<4x32xf32>
    %cst_890 = arith.constant 8.000000e-01 : f32
    %2286 = vector.broadcast %cst_890 : f32 to vector<4x32xf32>
    %2287 = arith.divf %2285, %2286 : vector<4x32xf32>
    %2288 = arith.mulf %2287, %2190 : vector<4x32xf32>
    %2289 = arith.addf %2283, %2288 : vector<4x32xf32>
    %cst_891 = arith.constant 2.000000e-01 : f32
    %2290 = vector.broadcast %cst_891 : f32 to vector<4x32xf32>
    %2291 = arith.subf %2027, %2290 : vector<4x32xf32>
    %cst_892 = arith.constant 8.000000e-01 : f32
    %2292 = vector.broadcast %cst_892 : f32 to vector<4x32xf32>
    %2293 = arith.divf %2291, %2292 : vector<4x32xf32>
    %2294 = arith.mulf %2293, %2190 : vector<4x32xf32>
    %cst_893 = arith.constant 1.400000e+00 : f32
    %2295 = vector.broadcast %cst_893 : f32 to vector<4x32xf32>
    %2296 = arith.subf %2295, %2027 : vector<4x32xf32>
    %cst_894 = arith.constant 0.799999952 : f32
    %2297 = vector.broadcast %cst_894 : f32 to vector<4x32xf32>
    %2298 = arith.divf %2296, %2297 : vector<4x32xf32>
    %2299 = arith.mulf %2298, %2201 : vector<4x32xf32>
    %2300 = arith.addf %2294, %2299 : vector<4x32xf32>
    %cst_895 = arith.constant 6.000000e-01 : f32
    %2301 = vector.broadcast %cst_895 : f32 to vector<4x32xf32>
    %2302 = arith.subf %2027, %2301 : vector<4x32xf32>
    %cst_896 = arith.constant 0.799999952 : f32
    %2303 = vector.broadcast %cst_896 : f32 to vector<4x32xf32>
    %2304 = arith.divf %2302, %2303 : vector<4x32xf32>
    %2305 = arith.mulf %2304, %2201 : vector<4x32xf32>
    %cst_897 = arith.constant 1.800000e+00 : f32
    %2306 = vector.broadcast %cst_897 : f32 to vector<4x32xf32>
    %2307 = arith.subf %2306, %2027 : vector<4x32xf32>
    %cst_898 = arith.constant 0.799999952 : f32
    %2308 = vector.broadcast %cst_898 : f32 to vector<4x32xf32>
    %2309 = arith.divf %2307, %2308 : vector<4x32xf32>
    %2310 = arith.mulf %2309, %2212 : vector<4x32xf32>
    %2311 = arith.addf %2305, %2310 : vector<4x32xf32>
    %cst_899 = arith.constant 1.000000e+00 : f32
    %2312 = vector.broadcast %cst_899 : f32 to vector<4x32xf32>
    %2313 = arith.subf %2027, %2312 : vector<4x32xf32>
    %cst_900 = arith.constant 0.799999952 : f32
    %2314 = vector.broadcast %cst_900 : f32 to vector<4x32xf32>
    %2315 = arith.divf %2313, %2314 : vector<4x32xf32>
    %2316 = arith.mulf %2315, %2212 : vector<4x32xf32>
    %cst_901 = arith.constant 2.200000e+00 : f32
    %2317 = vector.broadcast %cst_901 : f32 to vector<4x32xf32>
    %2318 = arith.subf %2317, %2027 : vector<4x32xf32>
    %cst_902 = arith.constant 0.800000071 : f32
    %2319 = vector.broadcast %cst_902 : f32 to vector<4x32xf32>
    %2320 = arith.divf %2318, %2319 : vector<4x32xf32>
    %2321 = arith.mulf %2320, %2223 : vector<4x32xf32>
    %2322 = arith.addf %2316, %2321 : vector<4x32xf32>
    %cst_903 = arith.constant -2.200000e+00 : f32
    %2323 = vector.broadcast %cst_903 : f32 to vector<4x32xf32>
    %2324 = arith.subf %2027, %2323 : vector<4x32xf32>
    %cst_904 = arith.constant 1.200000e+00 : f32
    %2325 = vector.broadcast %cst_904 : f32 to vector<4x32xf32>
    %2326 = arith.divf %2324, %2325 : vector<4x32xf32>
    %2327 = arith.mulf %2326, %2234 : vector<4x32xf32>
    %cst_905 = arith.constant -6.000000e-01 : f32
    %2328 = vector.broadcast %cst_905 : f32 to vector<4x32xf32>
    %2329 = arith.subf %2328, %2027 : vector<4x32xf32>
    %cst_906 = arith.constant 1.19999993 : f32
    %2330 = vector.broadcast %cst_906 : f32 to vector<4x32xf32>
    %2331 = arith.divf %2329, %2330 : vector<4x32xf32>
    %2332 = arith.mulf %2331, %2245 : vector<4x32xf32>
    %2333 = arith.addf %2327, %2332 : vector<4x32xf32>
    %cst_907 = arith.constant -1.800000e+00 : f32
    %2334 = vector.broadcast %cst_907 : f32 to vector<4x32xf32>
    %2335 = arith.subf %2027, %2334 : vector<4x32xf32>
    %cst_908 = arith.constant 1.19999993 : f32
    %2336 = vector.broadcast %cst_908 : f32 to vector<4x32xf32>
    %2337 = arith.divf %2335, %2336 : vector<4x32xf32>
    %2338 = arith.mulf %2337, %2245 : vector<4x32xf32>
    %cst_909 = arith.constant -2.000000e-01 : f32
    %2339 = vector.broadcast %cst_909 : f32 to vector<4x32xf32>
    %2340 = arith.subf %2339, %2027 : vector<4x32xf32>
    %cst_910 = arith.constant 1.19999993 : f32
    %2341 = vector.broadcast %cst_910 : f32 to vector<4x32xf32>
    %2342 = arith.divf %2340, %2341 : vector<4x32xf32>
    %2343 = arith.mulf %2342, %2256 : vector<4x32xf32>
    %2344 = arith.addf %2338, %2343 : vector<4x32xf32>
    %cst_911 = arith.constant -1.400000e+00 : f32
    %2345 = vector.broadcast %cst_911 : f32 to vector<4x32xf32>
    %2346 = arith.subf %2027, %2345 : vector<4x32xf32>
    %cst_912 = arith.constant 1.19999993 : f32
    %2347 = vector.broadcast %cst_912 : f32 to vector<4x32xf32>
    %2348 = arith.divf %2346, %2347 : vector<4x32xf32>
    %2349 = arith.mulf %2348, %2256 : vector<4x32xf32>
    %cst_913 = arith.constant 2.000000e-01 : f32
    %2350 = vector.broadcast %cst_913 : f32 to vector<4x32xf32>
    %2351 = arith.subf %2350, %2027 : vector<4x32xf32>
    %cst_914 = arith.constant 1.200000e+00 : f32
    %2352 = vector.broadcast %cst_914 : f32 to vector<4x32xf32>
    %2353 = arith.divf %2351, %2352 : vector<4x32xf32>
    %2354 = arith.mulf %2353, %2267 : vector<4x32xf32>
    %2355 = arith.addf %2349, %2354 : vector<4x32xf32>
    %cst_915 = arith.constant -1.000000e+00 : f32
    %2356 = vector.broadcast %cst_915 : f32 to vector<4x32xf32>
    %2357 = arith.subf %2027, %2356 : vector<4x32xf32>
    %cst_916 = arith.constant 1.200000e+00 : f32
    %2358 = vector.broadcast %cst_916 : f32 to vector<4x32xf32>
    %2359 = arith.divf %2357, %2358 : vector<4x32xf32>
    %2360 = arith.mulf %2359, %2267 : vector<4x32xf32>
    %cst_917 = arith.constant 6.000000e-01 : f32
    %2361 = vector.broadcast %cst_917 : f32 to vector<4x32xf32>
    %2362 = arith.subf %2361, %2027 : vector<4x32xf32>
    %cst_918 = arith.constant 1.200000e+00 : f32
    %2363 = vector.broadcast %cst_918 : f32 to vector<4x32xf32>
    %2364 = arith.divf %2362, %2363 : vector<4x32xf32>
    %2365 = arith.mulf %2364, %2278 : vector<4x32xf32>
    %2366 = arith.addf %2360, %2365 : vector<4x32xf32>
    %cst_919 = arith.constant -6.000000e-01 : f32
    %2367 = vector.broadcast %cst_919 : f32 to vector<4x32xf32>
    %2368 = arith.subf %2027, %2367 : vector<4x32xf32>
    %cst_920 = arith.constant 1.200000e+00 : f32
    %2369 = vector.broadcast %cst_920 : f32 to vector<4x32xf32>
    %2370 = arith.divf %2368, %2369 : vector<4x32xf32>
    %2371 = arith.mulf %2370, %2278 : vector<4x32xf32>
    %cst_921 = arith.constant 1.000000e+00 : f32
    %2372 = vector.broadcast %cst_921 : f32 to vector<4x32xf32>
    %2373 = arith.subf %2372, %2027 : vector<4x32xf32>
    %cst_922 = arith.constant 1.200000e+00 : f32
    %2374 = vector.broadcast %cst_922 : f32 to vector<4x32xf32>
    %2375 = arith.divf %2373, %2374 : vector<4x32xf32>
    %2376 = arith.mulf %2375, %2289 : vector<4x32xf32>
    %2377 = arith.addf %2371, %2376 : vector<4x32xf32>
    %cst_923 = arith.constant -2.000000e-01 : f32
    %2378 = vector.broadcast %cst_923 : f32 to vector<4x32xf32>
    %2379 = arith.subf %2027, %2378 : vector<4x32xf32>
    %cst_924 = arith.constant 1.200000e+00 : f32
    %2380 = vector.broadcast %cst_924 : f32 to vector<4x32xf32>
    %2381 = arith.divf %2379, %2380 : vector<4x32xf32>
    %2382 = arith.mulf %2381, %2289 : vector<4x32xf32>
    %cst_925 = arith.constant 1.400000e+00 : f32
    %2383 = vector.broadcast %cst_925 : f32 to vector<4x32xf32>
    %2384 = arith.subf %2383, %2027 : vector<4x32xf32>
    %cst_926 = arith.constant 1.19999993 : f32
    %2385 = vector.broadcast %cst_926 : f32 to vector<4x32xf32>
    %2386 = arith.divf %2384, %2385 : vector<4x32xf32>
    %2387 = arith.mulf %2386, %2300 : vector<4x32xf32>
    %2388 = arith.addf %2382, %2387 : vector<4x32xf32>
    %cst_927 = arith.constant 2.000000e-01 : f32
    %2389 = vector.broadcast %cst_927 : f32 to vector<4x32xf32>
    %2390 = arith.subf %2027, %2389 : vector<4x32xf32>
    %cst_928 = arith.constant 1.19999993 : f32
    %2391 = vector.broadcast %cst_928 : f32 to vector<4x32xf32>
    %2392 = arith.divf %2390, %2391 : vector<4x32xf32>
    %2393 = arith.mulf %2392, %2300 : vector<4x32xf32>
    %cst_929 = arith.constant 1.800000e+00 : f32
    %2394 = vector.broadcast %cst_929 : f32 to vector<4x32xf32>
    %2395 = arith.subf %2394, %2027 : vector<4x32xf32>
    %cst_930 = arith.constant 1.19999993 : f32
    %2396 = vector.broadcast %cst_930 : f32 to vector<4x32xf32>
    %2397 = arith.divf %2395, %2396 : vector<4x32xf32>
    %2398 = arith.mulf %2397, %2311 : vector<4x32xf32>
    %2399 = arith.addf %2393, %2398 : vector<4x32xf32>
    %cst_931 = arith.constant 6.000000e-01 : f32
    %2400 = vector.broadcast %cst_931 : f32 to vector<4x32xf32>
    %2401 = arith.subf %2027, %2400 : vector<4x32xf32>
    %cst_932 = arith.constant 1.19999993 : f32
    %2402 = vector.broadcast %cst_932 : f32 to vector<4x32xf32>
    %2403 = arith.divf %2401, %2402 : vector<4x32xf32>
    %2404 = arith.mulf %2403, %2311 : vector<4x32xf32>
    %cst_933 = arith.constant 2.200000e+00 : f32
    %2405 = vector.broadcast %cst_933 : f32 to vector<4x32xf32>
    %2406 = arith.subf %2405, %2027 : vector<4x32xf32>
    %cst_934 = arith.constant 1.200000e+00 : f32
    %2407 = vector.broadcast %cst_934 : f32 to vector<4x32xf32>
    %2408 = arith.divf %2406, %2407 : vector<4x32xf32>
    %2409 = arith.mulf %2408, %2322 : vector<4x32xf32>
    %2410 = arith.addf %2404, %2409 : vector<4x32xf32>
    %c0_935 = arith.constant 0 : index
    %c32_936 = arith.constant 32 : index
    %2411 = vector.load %arg11[%c0_935, %c32_936] : memref<4x288xf32, #tpu.memory_space<vmem>>, vector<4x32xf32>
    tpu.vector_store %arg11[%c0_935, %c32_936], %2333 {strides = array<i32>} : memref<4x288xf32, #tpu.memory_space<vmem>>, vector<4x32xf32>,
    %c0_937 = arith.constant 0 : index
    %c64_938 = arith.constant 64 : index
    %2412 = vector.load %arg11[%c0_937, %c64_938] : memref<4x288xf32, #tpu.memory_space<vmem>>, vector<4x32xf32>
    tpu.vector_store %arg11[%c0_937, %c64_938], %2344 {strides = array<i32>} : memref<4x288xf32, #tpu.memory_space<vmem>>, vector<4x32xf32>,
    %c0_939 = arith.constant 0 : index
    %c96_940 = arith.constant 96 : index
    %2413 = vector.load %arg11[%c0_939, %c96_940] : memref<4x288xf32, #tpu.memory_space<vmem>>, vector<4x32xf32>
    tpu.vector_store %arg11[%c0_939, %c96_940], %2355 {strides = array<i32>} : memref<4x288xf32, #tpu.memory_space<vmem>>, vector<4x32xf32>,
    %c0_941 = arith.constant 0 : index
    %c128_942 = arith.constant 128 : index
    %2414 = vector.load %arg11[%c0_941, %c128_942] : memref<4x288xf32, #tpu.memory_space<vmem>>, vector<4x32xf32>
    tpu.vector_store %arg11[%c0_941, %c128_942], %2366 {strides = array<i32>} : memref<4x288xf32, #tpu.memory_space<vmem>>, vector<4x32xf32>,
    %c0_943 = arith.constant 0 : index
    %c160_944 = arith.constant 160 : index
    %2415 = vector.load %arg11[%c0_943, %c160_944] : memref<4x288xf32, #tpu.memory_space<vmem>>, vector<4x32xf32>
    tpu.vector_store %arg11[%c0_943, %c160_944], %2377 {strides = array<i32>} : memref<4x288xf32, #tpu.memory_space<vmem>>, vector<4x32xf32>,
    %c0_945 = arith.constant 0 : index
    %c192_946 = arith.constant 192 : index
    %2416 = vector.load %arg11[%c0_945, %c192_946] : memref<4x288xf32, #tpu.memory_space<vmem>>, vector<4x32xf32>
    tpu.vector_store %arg11[%c0_945, %c192_946], %2388 {strides = array<i32>} : memref<4x288xf32, #tpu.memory_space<vmem>>, vector<4x32xf32>,
    %c0_947 = arith.constant 0 : index
    %c224_948 = arith.constant 224 : index
    %2417 = vector.load %arg11[%c0_947, %c224_948] : memref<4x288xf32, #tpu.memory_space<vmem>>, vector<4x32xf32>
    tpu.vector_store %arg11[%c0_947, %c224_948], %2399 {strides = array<i32>} : memref<4x288xf32, #tpu.memory_space<vmem>>, vector<4x32xf32>,
    %c0_949 = arith.constant 0 : index
    %c256_950 = arith.constant 256 : index
    %2418 = vector.load %arg11[%c0_949, %c256_950] : memref<4x288xf32, #tpu.memory_space<vmem>>, vector<4x32xf32>
    tpu.vector_store %arg11[%c0_949, %c256_950], %2410 {strides = array<i32>} : memref<4x288xf32, #tpu.memory_space<vmem>>, vector<4x32xf32>,
    %c0_951 = arith.constant 0 : index
    %c0_952 = arith.constant 0 : index
    %2419 = vector.load %arg11[%c0_951, %c0_952] : memref<4x288xf32, #tpu.memory_space<vmem>>, vector<4x288xf32>
    %c0_953 = arith.constant 0 : index
    %c0_954 = arith.constant 0 : index
    %2420 = vector.load %arg8[%c0_953, %c0_954] : memref<288x24xf32, #tpu.memory_space<vmem>>, vector<288x24xf32>
    %cst_955 = arith.constant dense<0.000000e+00> : vector<4x24xf32>
    %2421 = tpu.matmul %2419, %2420, %cst_955 {dimension_numbers = #tpu.dot_dimension_numbers<[1], [0], [0], [1], [0, 0, 1, 1], [], []>} : vector<4x288xf32>, vector<288x24xf32>, vector<4x24xf32> -> vector<4x24xf32>
    %2422 = vector.extract_strided_slice %2421 {offsets = [0, 16], sizes = [4, 8], strides = [1, 1]} : vector<4x24xf32> to vector<4x8xf32>
    %2423 = arith.addf %1222, %2422 : vector<4x8xf32>
    %c0_956 = arith.constant 0 : index
    %c0_957 = arith.constant 0 : index
    %2424 = vector.load %arg9[%c0_956, %c0_957] : memref<4x8xf32, #tpu.memory_space<vmem>>, vector<4x8xf32>
    tpu.vector_store %arg9[%c0_956, %c0_957], %2423 {strides = array<i32>} : memref<4x8xf32, #tpu.memory_space<vmem>>, vector<4x8xf32>,
    return
  }
}

</mosaic_0001>

<llo_original>
// kernel: nhits_forward.1
$region0: #{nhits_forward.1}
  #allocation0 [shape = 'u32[]', space=smem, size = 0x4, offset = 0x4, fixed_abs, tag = 'smem constant byte address 0x4 - core index']
  #allocation1 [shape = 'u32[144,128]{1,0:T(1,128)}', space=vmem, size = 0x12000, scoped, tag = 'internal scratch']
  #allocation2 [shape = 'f32[4,8]{1,0:T(4,128)}', space=vmem, size = 0x800, scoped, tag = 'scratch operand']
  #allocation3 [shape = 'f32[4,288]{1,0:T(4,128)}', space=vmem, size = 0x1800, scoped, tag = 'scratch operand']
  %s0 = inlined_call_operand.vmem [shape: f32[4,16], index: 0, kind: input, shape index: {}]
  %s1 = inlined_call_operand.vmem [shape: f32[4,16], index: 1, kind: input, shape index: {}]
  %s2 = inlined_call_operand.vmem [shape: f32[4,8], index: 2, kind: input, shape index: {}]
  %s3 = inlined_call_operand.vmem [shape: f32[72,32], index: 3, kind: input, shape index: {}]
  %s4 = inlined_call_operand.vmem [shape: f32[288,32], index: 4, kind: input, shape index: {}]
  %s5 = inlined_call_operand.vmem [shape: f32[288,24], index: 5, kind: input, shape index: {}]
  %s6 = inlined_call_operand.vmem [shape: f32[36,32], index: 6, kind: input, shape index: {}]
  %s7 = inlined_call_operand.vmem [shape: f32[288,32], index: 7, kind: input, shape index: {}]
  %s8 = inlined_call_operand.vmem [shape: f32[288,24], index: 8, kind: input, shape index: {}]
  %s9 = inlined_call_operand.hbm [shape: f32[4,8], index: 9, kind: output, shape index: {}]
  %s10 = sld [smem:[#allocation0]]
  $region46: #{nhits_forward.1} parent=0
    _
  %s12 = ssub.s32 1, %s10
  %s13 = scalar_select 0, %s12, %s10
  $region1: #{nhits_forward.1} parent=0
    #allocation4 [shape = 'u8[2048]{0}', space=vmem, size = 0x800, scoped, tag = 'output window, operand 0, single buffered']
    #allocation5 [shape = 's32[1]{0}', space=sflag, size = 0x4, scoped, tag = 'scoped memory for nhits_forward.1']
    %14 = vsyncpa [#allocation5], 0
    // Predicated region
    $region2: #{nhits_forward.1} parent=1 // pred_check
      _
    $region3: #{nhits_forward.1} parent=1 // pred_check_branch
      %16 = sbr.rel (0) target = $region5
    $region4: #{nhits_forward.1} parent=1 // pred_region
      _
    $region5: #{nhits_forward.1} parent=1 // pred_fallthru
      _
    // Predicated region
    $region6: #{nhits_forward.1} parent=1 // pred_check
      _
    $region7: #{nhits_forward.1} parent=1 // pred_check_branch
      %18 = sbr.rel (0) target = $region9
    $region8: #{nhits_forward.1} parent=1 // pred_region
      _
    $region9: #{nhits_forward.1} parent=1 // pred_fallthru
      _
    // Predicated region
    $region10: #{nhits_forward.1} parent=1 // pred_check
      _
    $region11: #{nhits_forward.1} parent=1 // pred_check_branch
      %20 = sbr.rel (0) target = $region13
    $region12: #{nhits_forward.1} parent=1 // pred_region
      _
    $region13: #{nhits_forward.1} parent=1 // pred_fallthru
      _
    // Predicated region
    $region14: #{nhits_forward.1} parent=1 // pred_check
      _
    $region15: #{nhits_forward.1} parent=1 // pred_check_branch
      %22 = sbr.rel (0) target = $region17
    $region16: #{nhits_forward.1} parent=1 // pred_region
      _
    $region17: #{nhits_forward.1} parent=1 // pred_fallthru
      _
    // Predicated region
    $region18: #{nhits_forward.1} parent=1 // pred_check
      _
    $region19: #{nhits_forward.1} parent=1 // pred_check_branch
      %24 = sbr.rel (0) target = $region21
    $region20: #{nhits_forward.1} parent=1 // pred_region
      _
    $region21: #{nhits_forward.1} parent=1 // pred_fallthru
      _
    // Predicated region
    $region22: #{nhits_forward.1} parent=1 // pred_check
      _
    $region23: #{nhits_forward.1} parent=1 // pred_check_branch
      %26 = sbr.rel (0) target = $region25
    $region24: #{nhits_forward.1} parent=1 // pred_region
      _
    $region25: #{nhits_forward.1} parent=1 // pred_fallthru
      _
    // Predicated region
    $region26: #{nhits_forward.1} parent=1 // pred_check
      _
    $region27: #{nhits_forward.1} parent=1 // pred_check_branch
      %28 = sbr.rel (0) target = $region29
    $region28: #{nhits_forward.1} parent=1 // pred_region
      _
    $region29: #{nhits_forward.1} parent=1 // pred_fallthru
      _
    // Predicated region
    $region30: #{nhits_forward.1} parent=1 // pred_check
      _
    $region31: #{nhits_forward.1} parent=1 // pred_check_branch
      %30 = sbr.rel (0) target = $region33
    $region32: #{nhits_forward.1} parent=1 // pred_region
      _
    $region33: #{nhits_forward.1} parent=1 // pred_fallthru
      _
    // Predicated region
    $region34: #{nhits_forward.1} parent=1 // pred_check
      _
    $region35: #{nhits_forward.1} parent=1 // pred_check_branch
      %32 = sbr.rel (0) target = $region37
    $region36: #{nhits_forward.1} parent=1 // pred_region
      _
    $region37: #{nhits_forward.1} parent=1 // pred_fallthru
      _
    %v33 = vld [vmem:[%s0] sm:$0xf]
    %v34 = vld [vmem:[%s1] sm:$0xf]
    %v35 = vld [vmem:[%s2] sm:$0xf]
    %vm36 = vcmask 11264
    %v37 = vsel %vm36, %v33, -inf
    %38 = vmax.xlane.f32.xlu0 %v37
    %v39 = vpop.xlane.xlu0 %38
    %vm40 = vcmask 3072
    %41 = vst.msk [vmem:[#allocation2] sm:$0xf] %vm40, %v39
    %vm42 = vcmask 27664
    %v43 = vsel %vm42, %v33, -inf
    %44 = vmax.xlane.f32.xlu0 %v43
    %v45 = vpop.xlane.xlu0 %44
    %vm46 = vcmask 11272
    %47 = vst.msk [vmem:[#allocation2] sm:$0xf] %vm46, %v45
    %vm48 = vcmask 44064
    %v49 = vsel %vm48, %v33, -inf
    %50 = vmax.xlane.f32.xlu0 %v49
    %v51 = vpop.xlane.xlu0 %50
    %vm52 = vcmask 19472
    %53 = vst.msk [vmem:[#allocation2] sm:$0xf] %vm52, %v51
    %vm54 = vcmask 60464
    %v55 = vsel %vm54, %v33, -inf
    %56 = vmax.xlane.f32.xlu0 %v55
    %v57 = vpop.xlane.xlu0 %56
    %vm58 = vcmask 27672
    %59 = vst.msk [vmem:[#allocation2] sm:$0xf] %vm58, %v57
    %vm60 = vcmask 76864
    %v61 = vsel %vm60, %v33, -inf
    %62 = vmax.xlane.f32.xlu0 %v61
    %v63 = vpop.xlane.xlu0 %62
    %vm64 = vcmask 35872
    %65 = vst.msk [vmem:[#allocation2] sm:$0xf] %vm64, %v63
    %vm66 = vcmask 93264
    %v67 = vsel %vm66, %v33, -inf
    %68 = vmax.xlane.f32.xlu0 %v67
    %v69 = vpop.xlane.xlu0 %68
    %vm70 = vcmask 44072
    %71 = vst.msk [vmem:[#allocation2] sm:$0xf] %vm70, %v69
    %vm72 = vcmask 109664
    %v73 = vsel %vm72, %v33, -inf
    %74 = vmax.xlane.f32.xlu0 %v73
    %v75 = vpop.xlane.xlu0 %74
    %vm76 = vcmask 52272
    %77 = vst.msk [vmem:[#allocation2] sm:$0xf] %vm76, %v75
    %vm78 = vcmask 126064
    %v79 = vsel %vm78, %v33, -inf
    %80 = vmax.xlane.f32.xlu0 %v79
    %v81 = vpop.xlane.xlu0 %80
    %vm82 = vcmask 60472
    %83 = vst.msk [vmem:[#allocation2] sm:$0xf] %vm82, %v81
    %v84 = vld [vmem:[#allocation2] sm:$0xf]
    %v85 = vsub.f32 0.0, %v84
    %v86 = vmul.f32 %v85, 1.442695
    %v87 = vpow.pop %v86
    %v88 = vadd.f32 %v87, 1.0
    %v89 = vrcp.pop %v88
    %v90 = vmul.f32 1.0, %v89
    %v91 = vmul.f32 %v84, %v90
    %vm92 = vcmask 60416
    %93 = vst.msk [vmem:[#allocation3] sm:$0xf] %vm92, %v91
    %vm94 = vcmp.ge.f32.partialorder %v84, -2.2
    %vm95 = vcmp.lt.f32.partialorder %v84, -1.8
    %vm96 = vmand %vm94, %vm95
    %v97 = vsel %vm96, 1, 0
    %v98 = vcvt.s32.f32 %v97
    %vm99 = vcmp.ge.f32.partialorder %v84, -1.8
    %vm100 = vcmp.lt.f32.partialorder %v84, -1.4
    %vm101 = vmand %vm99, %vm100
    %v102 = vsel %vm101, 1, 0
    %v103 = vcvt.s32.f32 %v102
    %vm104 = vcmp.ge.f32.partialorder %v84, -1.4
    %vm105 = vcmp.lt.f32.partialorder %v84, -1.0
    %vm106 = vmand %vm104, %vm105
    %v107 = vsel %vm106, 1, 0
    %v108 = vcvt.s32.f32 %v107
    %vm109 = vcmp.ge.f32.partialorder %v84, -1.0
    %vm110 = vcmp.lt.f32.partialorder %v84, -0.6
    %vm111 = vmand %vm109, %vm110
    %v112 = vsel %vm111, 1, 0
    %v113 = vcvt.s32.f32 %v112
    %vm114 = vcmp.ge.f32.partialorder %v84, -0.6
    %vm115 = vcmp.lt.f32.partialorder %v84, -0.2
    %vm116 = vmand %vm114, %vm115
    %v117 = vsel %vm116, 1, 0
    %v118 = vcvt.s32.f32 %v117
    %vm119 = vcmp.ge.f32.partialorder %v84, -0.2
    %vm120 = vcmp.lt.f32.partialorder %v84, 0.2
    %vm121 = vmand %vm119, %vm120
    %v122 = vsel %vm121, 1, 0
    %v123 = vcvt.s32.f32 %v122
    %vm124 = vcmp.ge.f32.partialorder %v84, 0.2
    %vm125 = vcmp.lt.f32.partialorder %v84, 0.6
    %vm126 = vmand %vm124, %vm125
    %v127 = vsel %vm126, 1, 0
    %v128 = vcvt.s32.f32 %v127
    %vm129 = vcmp.ge.f32.partialorder %v84, 0.6
    %vm130 = vcmp.lt.f32.partialorder %v84, 1.0
    %vm131 = vmand %vm129, %vm130
    %v132 = vsel %vm131, 1, 0
    %v133 = vcvt.s32.f32 %v132
    %vm134 = vcmp.ge.f32.partialorder %v84, 1.0
    %vm135 = vcmp.lt.f32.partialorder %v84, 1.4
    %vm136 = vmand %vm134, %vm135
    %v137 = vsel %vm136, 1, 0
    %v138 = vcvt.s32.f32 %v137
    %vm139 = vcmp.ge.f32.partialorder %v84, 1.4
    %vm140 = vcmp.lt.f32.partialorder %v84, 1.8
    %vm141 = vmand %vm139, %vm140
    %v142 = vsel %vm141, 1, 0
    %v143 = vcvt.s32.f32 %v142
    %vm144 = vcmp.ge.f32.partialorder %v84, 1.8
    %vm145 = vcmp.lt.f32.partialorder %v84, 2.2
    %vm146 = vmand %vm144, %vm145
    %v147 = vsel %vm146, 1, 0
    %v148 = vcvt.s32.f32 %v147
    %v149 = vsub.f32 %v84, -2.2
    %v150 = vrcp.pop 0.4000001
    %v151 = vmul.f32 %v149, %v150
    %v152 = vmul.f32 %v151, %v98
    %v153 = vsub.f32 -1.4, %v84
    %v154 = vrcp.pop 0.39999998
    %v155 = vmul.f32 %v153, %v154
    %v156 = vmul.f32 %v155, %v103
    %v157 = vadd.f32 %v152, %v156
    %v158 = vsub.f32 %v84, -1.8
    %v159 = vmul.f32 %v158, %v154
    %v160 = vmul.f32 %v159, %v103
    %v161 = vsub.f32 -1.0, %v84
    %v162 = vmul.f32 %v161, %v154
    %v163 = vmul.f32 %v162, %v108
    %v164 = vadd.f32 %v160, %v163
    %v165 = vsub.f32 %v84, -1.4
    %v166 = vmul.f32 %v165, %v154
    %v167 = vmul.f32 %v166, %v108
    %v168 = vsub.f32 -0.6, %v84
    %v169 = vmul.f32 %v168, %v154
    %v170 = vmul.f32 %v169, %v113
    %v171 = vadd.f32 %v167, %v170
    %v172 = vsub.f32 %v84, -1.0
    %v173 = vmul.f32 %v172, %v154
    %v174 = vmul.f32 %v173, %v113
    %v175 = vsub.f32 -0.2, %v84
    %v176 = vrcp.pop 0.40000004
    %v177 = vmul.f32 %v175, %v176
    %v178 = vmul.f32 %v177, %v118
    %v179 = vadd.f32 %v174, %v178
    %v180 = vsub.f32 %v84, -0.6
    %v181 = vmul.f32 %v180, %v176
    %v182 = vmul.f32 %v181, %v118
    %v183 = vsub.f32 0.2, %v84
    %v184 = vrcp.pop 0.4
    %v185 = vmul.f32 %v183, %v184
    %v186 = vmul.f32 %v185, %v123
    %v187 = vadd.f32 %v182, %v186
    %v188 = vsub.f32 %v84, -0.2
    %v189 = vmul.f32 %v188, %v184
    %v190 = vmul.f32 %v189, %v123
    %v191 = vsub.f32 0.6, %v84
    %v192 = vmul.f32 %v191, %v176
    %v193 = vmul.f32 %v192, %v128
    %v194 = vadd.f32 %v190, %v193
    %v195 = vsub.f32 %v84, 0.2
    %v196 = vmul.f32 %v195, %v176
    %v197 = vmul.f32 %v196, %v128
    %v198 = vsub.f32 1.0, %v84
    %v199 = vmul.f32 %v198, %v154
    %v200 = vmul.f32 %v199, %v133
    %v201 = vadd.f32 %v197, %v200
    %v202 = vsub.f32 %v84, 0.6
    %v203 = vmul.f32 %v202, %v154
    %v204 = vmul.f32 %v203, %v133
    %v205 = vsub.f32 1.4, %v84
    %v206 = vmul.f32 %v205, %v154
    %v207 = vmul.f32 %v206, %v138
    %v208 = vadd.f32 %v204, %v207
    %v209 = vsub.f32 %v84, 1.0
    %v210 = vmul.f32 %v209, %v154
    %v211 = vmul.f32 %v210, %v138
    %v212 = vsub.f32 1.8, %v84
    %v213 = vmul.f32 %v212, %v154
    %v214 = vmul.f32 %v213, %v143
    %v215 = vadd.f32 %v211, %v214
    %v216 = vsub.f32 %v84, 1.4
    %v217 = vmul.f32 %v216, %v154
    %v218 = vmul.f32 %v217, %v143
    %v219 = vsub.f32 2.2, %v84
    %v220 = vmul.f32 %v219, %v150
    %v221 = vmul.f32 %v220, %v148
    %v222 = vadd.f32 %v218, %v221
    %v223 = vrcp.pop 0.8000001
    %v224 = vmul.f32 %v149, %v223
    %v225 = vmul.f32 %v224, %v157
    %v226 = vrcp.pop 0.79999995
    %v227 = vmul.f32 %v161, %v226
    %v228 = vmul.f32 %v227, %v164
    %v229 = vadd.f32 %v225, %v228
    %v230 = vmul.f32 %v158, %v226
    %v231 = vmul.f32 %v230, %v164
    %v232 = vmul.f32 %v168, %v226
    %v233 = vmul.f32 %v232, %v171
    %v234 = vadd.f32 %v231, %v233
    %v235 = vmul.f32 %v165, %v226
    %v236 = vmul.f32 %v235, %v171
    %v237 = vrcp.pop 0.8
    %v238 = vmul.f32 %v175, %v237
    %v239 = vmul.f32 %v238, %v179
    %v240 = vadd.f32 %v236, %v239
    %v241 = vmul.f32 %v172, %v237
    %v242 = vmul.f32 %v241, %v179
    %v243 = vmul.f32 %v183, %v237
    %v244 = vmul.f32 %v243, %v187
    %v245 = vadd.f32 %v242, %v244
    %v246 = vmul.f32 %v180, %v237
    %v247 = vmul.f32 %v246, %v187
    %v248 = vmul.f32 %v191, %v237
    %v249 = vmul.f32 %v248, %v194
    %v250 = vadd.f32 %v247, %v249
    %v251 = vmul.f32 %v188, %v237
    %v252 = vmul.f32 %v251, %v194
    %v253 = vmul.f32 %v198, %v237
    %v254 = vmul.f32 %v253, %v201
    %v255 = vadd.f32 %v252, %v254
    %v256 = vmul.f32 %v195, %v237
    %v257 = vmul.f32 %v256, %v201
    %v258 = vmul.f32 %v205, %v226
    %v259 = vmul.f32 %v258, %v208
    %v260 = vadd.f32 %v257, %v259
    %v261 = vmul.f32 %v202, %v226
    %v262 = vmul.f32 %v261, %v208
    %v263 = vmul.f32 %v212, %v226
    %v264 = vmul.f32 %v263, %v215
    %v265 = vadd.f32 %v262, %v264
    %v266 = vmul.f32 %v209, %v226
    %v267 = vmul.f32 %v266, %v215
    %v268 = vmul.f32 %v219, %v223
    %v269 = vmul.f32 %v268, %v222
    %v270 = vadd.f32 %v267, %v269
    %v271 = vrcp.pop 1.2
    %v272 = vmul.f32 %v149, %v271
    %v273 = vmul.f32 %v272, %v229
    %v274 = vrcp.pop 1.1999999
    %v275 = vmul.f32 %v168, %v274
    %v276 = vmul.f32 %v275, %v234
    %v277 = vadd.f32 %v273, %v276
    %v278 = vmul.f32 %v158, %v274
    %v279 = vmul.f32 %v278, %v234
    %v280 = vmul.f32 %v175, %v274
    %v281 = vmul.f32 %v280, %v240
    %v282 = vadd.f32 %v279, %v281
    %v283 = vmul.f32 %v165, %v274
    %v284 = vmul.f32 %v283, %v240
    %v285 = vmul.f32 %v183, %v271
    %v286 = vmul.f32 %v285, %v245
    %v287 = vadd.f32 %v284, %v286
    %v288 = vmul.f32 %v172, %v271
    %v289 = vmul.f32 %v288, %v245
    %v290 = vmul.f32 %v191, %v271
    %v291 = vmul.f32 %v290, %v250
    %v292 = vadd.f32 %v289, %v291
    %v293 = vmul.f32 %v180, %v271
    %v294 = vmul.f32 %v293, %v250
    %v295 = vmul.f32 %v198, %v271
    %v296 = vmul.f32 %v295, %v255
    %v297 = vadd.f32 %v294, %v296
    %v298 = vmul.f32 %v188, %v271
    %v299 = vmul.f32 %v298, %v255
    %v300 = vmul.f32 %v205, %v274
    %v301 = vmul.f32 %v300, %v260
    %v302 = vadd.f32 %v299, %v301
    %v303 = vmul.f32 %v195, %v274
    %v304 = vmul.f32 %v303, %v260
    %v305 = vmul.f32 %v212, %v274
    %v306 = vmul.f32 %v305, %v265
    %v307 = vadd.f32 %v304, %v306
    %v308 = vmul.f32 %v202, %v274
    %v309 = vmul.f32 %v308, %v265
    %v310 = vmul.f32 %v219, %v271
    %v311 = vmul.f32 %v310, %v270
    %v312 = vadd.f32 %v309, %v311
    %314 = vrot.lane.b32.xlu0 %v277, 8
    %v315 = vpop.permute.xlu0 %314
    %vm317 = vcmask 126016
    %318 = vst.msk [vmem:[#allocation3] sm:$0xf] %vm317, %v315
    %320 = vrot.lane.b32.xlu0 %v282, 16
    %v321 = vpop.permute.xlu0 %320
    %vm323 = vcmask 191616
    %324 = vst.msk [vmem:[#allocation3] sm:$0xf] %vm323, %v321
    %326 = vrot.lane.b32.xlu0 %v287, 24
    %v327 = vpop.permute.xlu0 %326
    %vm329 = vcmask 257216
    %330 = vst.msk [vmem:[#allocation3] sm:$0xf] %vm329, %v327
    %332 = vrot.lane.b32.xlu0 %v292, 32
    %v333 = vpop.permute.xlu0 %332
    %vm335 = vcmask 322816
    %336 = vst.msk [vmem:[#allocation3] sm:$0xf] %vm335, %v333
    %338 = vrot.lane.b32.xlu0 %v297, 40
    %v339 = vpop.permute.xlu0 %338
    %vm341 = vcmask 388416
    %342 = vst.msk [vmem:[#allocation3] sm:$0xf] %vm341, %v339
    %344 = vrot.lane.b32.xlu0 %v302, 48
    %v345 = vpop.permute.xlu0 %344
    %vm347 = vcmask 454016
    %348 = vst.msk [vmem:[#allocation3] sm:$0xf] %vm347, %v345
    %350 = vrot.lane.b32.xlu0 %v307, 56
    %v351 = vpop.permute.xlu0 %350
    %vm353 = vcmask 519616
    %354 = vst.msk [vmem:[#allocation3] sm:$0xf] %vm353, %v351
    %356 = vrot.lane.b32.xlu0 %v312, 64
    %v357 = vpop.permute.xlu0 %356
    %vm359 = vcmask 585216
    %360 = vst.msk [vmem:[#allocation3] sm:$0xf] %vm359, %v357
    %v361 = vld [vmem:[#allocation3] sm:$0xf]
    %v362 = vld [vmem:[%s3] sm:$0xff]
    %v363 = vld [vmem:[%s3 + $0x8] sm:$0xff]
    %v364 = vld [vmem:[%s3 + $0x10] sm:$0xff]
    %v365 = vld [vmem:[%s3 + $0x18] sm:$0xff]
    %v366 = vld [vmem:[%s3 + $0x20] sm:$0xff]
    %v367 = vld [vmem:[%s3 + $0x28] sm:$0xff]
    %v368 = vld [vmem:[%s3 + $0x30] sm:$0xff]
    %v369 = vld [vmem:[%s3 + $0x38] sm:$0xff]
    %v370 = vld [vmem:[%s3 + $0x40] sm:$0xff]
    %vm371 = vcmask 588800
    %v373 = vsel %vm371, %v361, 0
    %375 = vmatprep.subr.mxu0 0.0
    %376 = vmatpush1.msra.mxu0 0.0
    %377 = vmatprep.subr.mxu0 0.0
    %378 = vmatpush1.msra.mxu0 0.0
    %379 = vmatprep.subr.mxu0 0.0
    %380 = vmatpush1.msra.mxu0 0.0
    %381 = vmatprep.subr.mxu0 0.0
    %382 = vmatpush1.msra.mxu0 0.0
    %383 = vmatprep.subr.mxu0 0.0
    %384 = vmatpush1.msra.mxu0 0.0
    %385 = vmatprep.subr.mxu0 0.0
    %386 = vmatpush1.msra.mxu0 0.0
    %387 = vmatprep.subr.mxu0 0.0
    %388 = vmatpush1.msra.mxu0 0.0
    %389 = vmatprep.subr.mxu0 0.0
    %390 = vmatpush1.msra.mxu0 %v370
    %391 = vmatprep.subr.mxu0 0.0
    %392 = vmatpush1.msra.mxu0 %v369
    %393 = vmatprep.subr.mxu0 0.0
    %394 = vmatpush1.msra.mxu0 %v368
    %395 = vmatprep.subr.mxu0 0.0
    %396 = vmatpush1.msra.mxu0 %v367
    %397 = vmatprep.subr.mxu0 0.0
    %398 = vmatpush1.msra.mxu0 %v366
    %399 = vmatprep.subr.mxu0 0.0
    %400 = vmatpush1.msra.mxu0 %v365
    %401 = vmatprep.subr.mxu0 0.0
    %402 = vmatpush1.msra.mxu0 %v364
    %403 = vmatprep.subr.mxu0 0.0
    %404 = vmatpush1.msra.mxu0 %v363
    %405 = vmatprep.subr.mxu0 0.0
    %406 = vmatpush1.msra.mxu0 %v362
    %407 = vmatprep.subr.mxu0 0.0
    %408 = vmatpush2.msra.mxu0 0.0
    %409 = vmatprep.subr.mxu0 0.0
    %410 = vmatpush2.msra.mxu0 0.0
    %411 = vmatprep.subr.mxu0 0.0
    %412 = vmatpush2.msra.mxu0 0.0
    %413 = vmatprep.subr.mxu0 0.0
    %414 = vmatpush2.msra.mxu0 0.0
    %415 = vmatprep.subr.mxu0 0.0
    %416 = vmatpush2.msra.mxu0 0.0
    %417 = vmatprep.subr.mxu0 0.0
    %418 = vmatpush2.msra.mxu0 0.0
    %419 = vmatprep.subr.mxu0 0.0
    %420 = vmatpush2.msra.mxu0 0.0
    %421 = vmatprep.subr.mxu0 0.0
    %422 = vmatpush2.msra.mxu0 0.0
    %423 = vmatprep.subr.mxu0 0.0
    %424 = vmatpush2.msra.mxu0 0.0
    %425 = vmatprep.subr.mxu0 0.0
    %426 = vmatpush2.msra.mxu0 0.0
    %427 = vmatprep.subr.mxu0 0.0
    %428 = vmatpush2.msra.mxu0 0.0
    %429 = vmatprep.subr.mxu0 0.0
    %430 = vmatpush2.msra.mxu0 0.0
    %431 = vmatprep.subr.mxu0 0.0
    %432 = vmatpush2.msra.mxu0 0.0
    %433 = vmatprep.subr.mxu0 0.0
    %434 = vmatpush2.msra.mxu0 0.0
    %435 = vmatprep.subr.mxu0 0.0
    %436 = vmatpush2.msra.mxu0 0.0
    %437 = vmatprep.subr.mxu0 0.0
    %438 = vmatpush2.msra.mxu0 0.0
    %439 = vmatprep.mubr.f32.mxu0 0.0
    %440 = vmatmul.mubr.f32.gmra.mxu0 %v373
    %v441 = vpop.f32.mrf.mxu0
    %v442 = vadd.f32 0.0, %v441
    %v443 = vpop.f32.mrf.mxu0
    %444 = vdwg.mxu0
    %v445 = vsub.f32 0.0, %v442
    %v446 = vmul.f32 %v445, 1.442695
    %v447 = vpow.pop %v446
    %v448 = vadd.f32 %v447, 1.0
    %v449 = vrcp.pop %v448
    %v450 = vmul.f32 1.0, %v449
    %v451 = vmul.f32 %v442, %v450
    %vm452 = vcmask 257024
    %453 = vst.msk [vmem:[#allocation3] sm:$0xf] %vm452, %v451
    %vm454 = vcmp.ge.f32.partialorder %v442, -2.2
    %vm455 = vcmp.lt.f32.partialorder %v442, -1.8
    %vm456 = vmand %vm454, %vm455
    %v457 = vsel %vm456, 1, 0
    %v458 = vcvt.s32.f32 %v457
    %vm459 = vcmp.ge.f32.partialorder %v442, -1.8
    %vm460 = vcmp.lt.f32.partialorder %v442, -1.4
    %vm461 = vmand %vm459, %vm460
    %v462 = vsel %vm461, 1, 0
    %v463 = vcvt.s32.f32 %v462
    %vm464 = vcmp.ge.f32.partialorder %v442, -1.4
    %vm465 = vcmp.lt.f32.partialorder %v442, -1.0
    %vm466 = vmand %vm464, %vm465
    %v467 = vsel %vm466, 1, 0
    %v468 = vcvt.s32.f32 %v467
    %vm469 = vcmp.ge.f32.partialorder %v442, -1.0
    %vm470 = vcmp.lt.f32.partialorder %v442, -0.6
    %vm471 = vmand %vm469, %vm470
    %v472 = vsel %vm471, 1, 0
    %v473 = vcvt.s32.f32 %v472
    %vm474 = vcmp.ge.f32.partialorder %v442, -0.6
    %vm475 = vcmp.lt.f32.partialorder %v442, -0.2
    %vm476 = vmand %vm474, %vm475
    %v477 = vsel %vm476, 1, 0
    %v478 = vcvt.s32.f32 %v477
    %vm479 = vcmp.ge.f32.partialorder %v442, -0.2
    %vm480 = vcmp.lt.f32.partialorder %v442, 0.2
    %vm481 = vmand %vm479, %vm480
    %v482 = vsel %vm481, 1, 0
    %v483 = vcvt.s32.f32 %v482
    %vm484 = vcmp.ge.f32.partialorder %v442, 0.2
    %vm485 = vcmp.lt.f32.partialorder %v442, 0.6
    %vm486 = vmand %vm484, %vm485
    %v487 = vsel %vm486, 1, 0
    %v488 = vcvt.s32.f32 %v487
    %vm489 = vcmp.ge.f32.partialorder %v442, 0.6
    %vm490 = vcmp.lt.f32.partialorder %v442, 1.0
    %vm491 = vmand %vm489, %vm490
    %v492 = vsel %vm491, 1, 0
    %v493 = vcvt.s32.f32 %v492
    %vm494 = vcmp.ge.f32.partialorder %v442, 1.0
    %vm495 = vcmp.lt.f32.partialorder %v442, 1.4
    %vm496 = vmand %vm494, %vm495
    %v497 = vsel %vm496, 1, 0
    %v498 = vcvt.s32.f32 %v497
    %vm499 = vcmp.ge.f32.partialorder %v442, 1.4
    %vm500 = vcmp.lt.f32.partialorder %v442, 1.8
    %vm501 = vmand %vm499, %vm500
    %v502 = vsel %vm501, 1, 0
    %v503 = vcvt.s32.f32 %v502
    %vm504 = vcmp.ge.f32.partialorder %v442, 1.8
    %vm505 = vcmp.lt.f32.partialorder %v442, 2.2
    %vm506 = vmand %vm504, %vm505
    %v507 = vsel %vm506, 1, 0
    %v508 = vcvt.s32.f32 %v507
    %v509 = vsub.f32 %v442, -2.2
    %v510 = vmul.f32 %v509, %v150
    %v511 = vmul.f32 %v510, %v458
    %v512 = vsub.f32 -1.4, %v442
    %v513 = vmul.f32 %v512, %v154
    %v514 = vmul.f32 %v513, %v463
    %v515 = vadd.f32 %v511, %v514
    %v516 = vsub.f32 %v442, -1.8
    %v517 = vmul.f32 %v516, %v154
    %v518 = vmul.f32 %v517, %v463
    %v519 = vsub.f32 -1.0, %v442
    %v520 = vmul.f32 %v519, %v154
    %v521 = vmul.f32 %v520, %v468
    %v522 = vadd.f32 %v518, %v521
    %v523 = vsub.f32 %v442, -1.4
    %v524 = vmul.f32 %v523, %v154
    %v525 = vmul.f32 %v524, %v468
    %v526 = vsub.f32 -0.6, %v442
    %v527 = vmul.f32 %v526, %v154
    %v528 = vmul.f32 %v527, %v473
    %v529 = vadd.f32 %v525, %v528
    %v530 = vsub.f32 %v442, -1.0
    %v531 = vmul.f32 %v530, %v154
    %v532 = vmul.f32 %v531, %v473
    %v533 = vsub.f32 -0.2, %v442
    %v534 = vmul.f32 %v533, %v176
    %v535 = vmul.f32 %v534, %v478
    %v536 = vadd.f32 %v532, %v535
    %v537 = vsub.f32 %v442, -0.6
    %v538 = vmul.f32 %v537, %v176
    %v539 = vmul.f32 %v538, %v478
    %v540 = vsub.f32 0.2, %v442
    %v541 = vmul.f32 %v540, %v184
    %v542 = vmul.f32 %v541, %v483
    %v543 = vadd.f32 %v539, %v542
    %v544 = vsub.f32 %v442, -0.2
    %v545 = vmul.f32 %v544, %v184
    %v546 = vmul.f32 %v545, %v483
    %v547 = vsub.f32 0.6, %v442
    %v548 = vmul.f32 %v547, %v176
    %v549 = vmul.f32 %v548, %v488
    %v550 = vadd.f32 %v546, %v549
    %v551 = vsub.f32 %v442, 0.2
    %v552 = vmul.f32 %v551, %v176
    %v553 = vmul.f32 %v552, %v488
    %v554 = vsub.f32 1.0, %v442
    %v555 = vmul.f32 %v554, %v154
    %v556 = vmul.f32 %v555, %v493
    %v557 = vadd.f32 %v553, %v556
    %v558 = vsub.f32 %v442, 0.6
    %v559 = vmul.f32 %v558, %v154
    %v560 = vmul.f32 %v559, %v493
    %v561 = vsub.f32 1.4, %v442
    %v562 = vmul.f32 %v561, %v154
    %v563 = vmul.f32 %v562, %v498
    %v564 = vadd.f32 %v560, %v563
    %v565 = vsub.f32 %v442, 1.0
    %v566 = vmul.f32 %v565, %v154
    %v567 = vmul.f32 %v566, %v498
    %v568 = vsub.f32 1.8, %v442
    %v569 = vmul.f32 %v568, %v154
    %v570 = vmul.f32 %v569, %v503
    %v571 = vadd.f32 %v567, %v570
    %v572 = vsub.f32 %v442, 1.4
    %v573 = vmul.f32 %v572, %v154
    %v574 = vmul.f32 %v573, %v503
    %v575 = vsub.f32 2.2, %v442
    %v576 = vmul.f32 %v575, %v150
    %v577 = vmul.f32 %v576, %v508
    %v578 = vadd.f32 %v574, %v577
    %v579 = vmul.f32 %v509, %v223
    %v580 = vmul.f32 %v579, %v515
    %v581 = vmul.f32 %v519, %v226
    %v582 = vmul.f32 %v581, %v522
    %v583 = vadd.f32 %v580, %v582
    %v584 = vmul.f32 %v516, %v226
    %v585 = vmul.f32 %v584, %v522
    %v586 = vmul.f32 %v526, %v226
    %v587 = vmul.f32 %v586, %v529
    %v588 = vadd.f32 %v585, %v587
    %v589 = vmul.f32 %v523, %v226
    %v590 = vmul.f32 %v589, %v529
    %v591 = vmul.f32 %v533, %v237
    %v592 = vmul.f32 %v591, %v536
    %v593 = vadd.f32 %v590, %v592
    %v594 = vmul.f32 %v530, %v237
    %v595 = vmul.f32 %v594, %v536
    %v596 = vmul.f32 %v540, %v237
    %v597 = vmul.f32 %v596, %v543
    %v598 = vadd.f32 %v595, %v597
    %v599 = vmul.f32 %v537, %v237
    %v600 = vmul.f32 %v599, %v543
    %v601 = vmul.f32 %v547, %v237
    %v602 = vmul.f32 %v601, %v550
    %v603 = vadd.f32 %v600, %v602
    %v604 = vmul.f32 %v544, %v237
    %v605 = vmul.f32 %v604, %v550
    %v606 = vmul.f32 %v554, %v237
    %v607 = vmul.f32 %v606, %v557
    %v608 = vadd.f32 %v605, %v607
    %v609 = vmul.f32 %v551, %v237
    %v610 = vmul.f32 %v609, %v557
    %v611 = vmul.f32 %v561, %v226
    %v612 = vmul.f32 %v611, %v564
    %v613 = vadd.f32 %v610, %v612
    %v614 = vmul.f32 %v558, %v226
    %v615 = vmul.f32 %v614, %v564
    %v616 = vmul.f32 %v568, %v226
    %v617 = vmul.f32 %v616, %v571
    %v618 = vadd.f32 %v615, %v617
    %v619 = vmul.f32 %v565, %v226
    %v620 = vmul.f32 %v619, %v571
    %v621 = vmul.f32 %v575, %v223
    %v622 = vmul.f32 %v621, %v578
    %v623 = vadd.f32 %v620, %v622
    %v624 = vmul.f32 %v509, %v271
    %v625 = vmul.f32 %v624, %v583
    %v626 = vmul.f32 %v526, %v274
    %v627 = vmul.f32 %v626, %v588
    %v628 = vadd.f32 %v625, %v627
    %v629 = vmul.f32 %v516, %v274
    %v630 = vmul.f32 %v629, %v588
    %v631 = vmul.f32 %v533, %v274
    %v632 = vmul.f32 %v631, %v593
    %v633 = vadd.f32 %v630, %v632
    %v634 = vmul.f32 %v523, %v274
    %v635 = vmul.f32 %v634, %v593
    %v636 = vmul.f32 %v540, %v271
    %v637 = vmul.f32 %v636, %v598
    %v638 = vadd.f32 %v635, %v637
    %v639 = vmul.f32 %v530, %v271
    %v640 = vmul.f32 %v639, %v598
    %v641 = vmul.f32 %v547, %v271
    %v642 = vmul.f32 %v641, %v603
    %v643 = vadd.f32 %v640, %v642
    %v644 = vmul.f32 %v537, %v271
    %v645 = vmul.f32 %v644, %v603
    %v646 = vmul.f32 %v554, %v271
    %v647 = vmul.f32 %v646, %v608
    %v648 = vadd.f32 %v645, %v647
    %v649 = vmul.f32 %v544, %v271
    %v650 = vmul.f32 %v649, %v608
    %v651 = vmul.f32 %v561, %v274
    %v652 = vmul.f32 %v651, %v613
    %v653 = vadd.f32 %v650, %v652
    %v654 = vmul.f32 %v551, %v274
    %v655 = vmul.f32 %v654, %v613
    %v656 = vmul.f32 %v568, %v274
    %v657 = vmul.f32 %v656, %v618
    %v658 = vadd.f32 %v655, %v657
    %v659 = vmul.f32 %v558, %v274
    %v660 = vmul.f32 %v659, %v618
    %v661 = vmul.f32 %v575, %v271
    %v662 = vmul.f32 %v661, %v623
    %v663 = vadd.f32 %v660, %v662
    %665 = vrot.lane.b32.xlu0 %v628, 32
    %v666 = vpop.permute.xlu0 %665
    %vm668 = vcmask 519424
    %669 = vst.msk [vmem:[#allocation3] sm:$0xf] %vm668, %v666
    %671 = vrot.lane.b32.xlu0 %v633, 64
    %v672 = vpop.permute.xlu0 %671
    %vm674 = vcmask 781824
    %675 = vst.msk [vmem:[#allocation3] sm:$0xf] %vm674, %v672
    %677 = vrot.lane.b32.xlu0 %v638, 96
    %v678 = vpop.permute.xlu0 %677
    %vm680 = vcmask 1044224
    %681 = vst.msk [vmem:[#allocation3] sm:$0xf] %vm680, %v678
    %682 = vst.msk [vmem:[#allocation3 + $0x4] sm:$0xf] %vm452, %v643
    %684 = vrot.lane.b32.xlu0 %v648, 32
    %v685 = vpop.permute.xlu0 %684
    %687 = vst.msk [vmem:[#allocation3 + $0x4] sm:$0xf] %vm668, %v685
    %689 = vrot.lane.b32.xlu0 %v653, 64
    %v690 = vpop.permute.xlu0 %689
    %692 = vst.msk [vmem:[#allocation3 + $0x4] sm:$0xf] %vm674, %v690
    %694 = vrot.lane.b32.xlu0 %v658, 96
    %v695 = vpop.permute.xlu0 %694
    %697 = vst.msk [vmem:[#allocation3 + $0x4] sm:$0xf] %vm680, %v695
    %698 = vst.msk [vmem:[#allocation3 + $0x8] sm:$0xf] %vm452, %v663
    %v699 = vld [vmem:[#allocation3] sm:$0xff]
    %v700 = vld [vmem:[#allocation3 + $0x8] sm:$0xf]
    %v701 = vld [vmem:[%s4] sm:$0xff]
    %v702 = vld [vmem:[%s4 + $0x8] sm:$0xff]
    %v703 = vld [vmem:[%s4 + $0x10] sm:$0xff]
    %v704 = vld [vmem:[%s4 + $0x18] sm:$0xff]
    %v705 = vld [vmem:[%s4 + $0x20] sm:$0xff]
    %v706 = vld [vmem:[%s4 + $0x28] sm:$0xff]
    %v707 = vld [vmem:[%s4 + $0x30] sm:$0xff]
    %v708 = vld [vmem:[%s4 + $0x38] sm:$0xff]
    %v709 = vld [vmem:[%s4 + $0x40] sm:$0xff]
    %v710 = vld [vmem:[%s4 + $0x48] sm:$0xff]
    %v711 = vld [vmem:[%s4 + $0x50] sm:$0xff]
    %v712 = vld [vmem:[%s4 + $0x58] sm:$0xff]
    %v713 = vld [vmem:[%s4 + $0x60] sm:$0xff]
    %v714 = vld [vmem:[%s4 + $0x68] sm:$0xff]
    %v715 = vld [vmem:[%s4 + $0x70] sm:$0xff]
    %v716 = vld [vmem:[%s4 + $0x78] sm:$0xff]
    %v717 = vld [vmem:[%s4 + $0x80] sm:$0xff]
    %v718 = vld [vmem:[%s4 + $0x88] sm:$0xff]
    %v719 = vld [vmem:[%s4 + $0x90] sm:$0xff]
    %v720 = vld [vmem:[%s4 + $0x98] sm:$0xff]
    %v721 = vld [vmem:[%s4 + $0xa0] sm:$0xff]
    %v722 = vld [vmem:[%s4 + $0xa8] sm:$0xff]
    %v723 = vld [vmem:[%s4 + $0xb0] sm:$0xff]
    %v724 = vld [vmem:[%s4 + $0xb8] sm:$0xff]
    %v725 = vld [vmem:[%s4 + $0xc0] sm:$0xff]
    %v726 = vld [vmem:[%s4 + $0xc8] sm:$0xff]
    %v727 = vld [vmem:[%s4 + $0xd0] sm:$0xff]
    %v728 = vld [vmem:[%s4 + $0xd8] sm:$0xff]
    %v729 = vld [vmem:[%s4 + $0xe0] sm:$0xff]
    %v730 = vld [vmem:[%s4 + $0xe8] sm:$0xff]
    %v731 = vld [vmem:[%s4 + $0xf0] sm:$0xff]
    %v732 = vld [vmem:[%s4 + $0xf8] sm:$0xff]
    %v733 = vld [vmem:[%s4 + $0x100] sm:$0xff]
    %v734 = vld [vmem:[%s4 + $0x108] sm:$0xff]
    %v735 = vld [vmem:[%s4 + $0x110] sm:$0xff]
    %v736 = vld [vmem:[%s4 + $0x118] sm:$0xff]
    %v739 = vcombine.high %v699, %v699
    %vm741 = vcmask 261120
    %v742 = vsel %vm741, %v700, 0
    %744 = vmatprep.subr.mxu0 0.0
    %745 = vmatpush1.msra.mxu0 %v716
    %746 = vmatprep.subr.mxu0 0.0
    %747 = vmatpush1.msra.mxu0 %v715
    %748 = vmatprep.subr.mxu0 0.0
    %749 = vmatpush1.msra.mxu0 %v714
    %750 = vmatprep.subr.mxu0 0.0
    %751 = vmatpush1.msra.mxu0 %v713
    %752 = vmatprep.subr.mxu0 0.0
    %753 = vmatpush1.msra.mxu0 %v712
    %754 = vmatprep.subr.mxu0 0.0
    %755 = vmatpush1.msra.mxu0 %v711
    %756 = vmatprep.subr.mxu0 0.0
    %757 = vmatpush1.msra.mxu0 %v710
    %758 = vmatprep.subr.mxu0 0.0
    %759 = vmatpush1.msra.mxu0 %v709
    %760 = vmatprep.subr.mxu0 0.0
    %761 = vmatpush1.msra.mxu0 %v708
    %762 = vmatprep.subr.mxu0 0.0
    %763 = vmatpush1.msra.mxu0 %v707
    %764 = vmatprep.subr.mxu0 0.0
    %765 = vmatpush1.msra.mxu0 %v706
    %766 = vmatprep.subr.mxu0 0.0
    %767 = vmatpush1.msra.mxu0 %v705
    %768 = vmatprep.subr.mxu0 0.0
    %769 = vmatpush1.msra.mxu0 %v704
    %770 = vmatprep.subr.mxu0 0.0
    %771 = vmatpush1.msra.mxu0 %v703
    %772 = vmatprep.subr.mxu0 0.0
    %773 = vmatpush1.msra.mxu0 %v702
    %774 = vmatprep.subr.mxu0 0.0
    %775 = vmatpush1.msra.mxu0 %v701
    %776 = vmatprep.subr.mxu0 0.0
    %777 = vmatpush2.msra.mxu0 %v732
    %778 = vmatprep.subr.mxu0 0.0
    %779 = vmatpush2.msra.mxu0 %v731
    %780 = vmatprep.subr.mxu0 0.0
    %781 = vmatpush2.msra.mxu0 %v730
    %782 = vmatprep.subr.mxu0 0.0
    %783 = vmatpush2.msra.mxu0 %v729
    %784 = vmatprep.subr.mxu0 0.0
    %785 = vmatpush2.msra.mxu0 %v728
    %786 = vmatprep.subr.mxu0 0.0
    %787 = vmatpush2.msra.mxu0 %v727
    %788 = vmatprep.subr.mxu0 0.0
    %789 = vmatpush2.msra.mxu0 %v726
    %790 = vmatprep.subr.mxu0 0.0
    %791 = vmatpush2.msra.mxu0 %v725
    %792 = vmatprep.subr.mxu0 0.0
    %793 = vmatpush2.msra.mxu0 %v724
    %794 = vmatprep.subr.mxu0 0.0
    %795 = vmatpush2.msra.mxu0 %v723
    %796 = vmatprep.subr.mxu0 0.0
    %797 = vmatpush2.msra.mxu0 %v722
    %798 = vmatprep.subr.mxu0 0.0
    %799 = vmatpush2.msra.mxu0 %v721
    %800 = vmatprep.subr.mxu0 0.0
    %801 = vmatpush2.msra.mxu0 %v720
    %802 = vmatprep.subr.mxu0 0.0
    %803 = vmatpush2.msra.mxu0 %v719
    %804 = vmatprep.subr.mxu0 0.0
    %805 = vmatpush2.msra.mxu0 %v718
    %806 = vmatprep.subr.mxu0 0.0
    %807 = vmatpush2.msra.mxu0 %v717
    %808 = vmatprep.mubr.f32.mxu0 %v739
    %809 = vmatmul.mubr.f32.gmra.mxu0 %v699
    %v810 = vpop.f32.mrf.mxu0
    %v811 = vadd.f32 0.0, %v810
    %v812 = vpop.f32.mrf.mxu0
    %813 = vdwg.mxu0
    %814 = vmatprep.subr.mxu0 0.0
    %815 = vmatpush1.msra.mxu0 0.0
    %816 = vmatprep.subr.mxu0 0.0
    %817 = vmatpush1.msra.mxu0 0.0
    %818 = vmatprep.subr.mxu0 0.0
    %819 = vmatpush1.msra.mxu0 0.0
    %820 = vmatprep.subr.mxu0 0.0
    %821 = vmatpush1.msra.mxu0 0.0
    %822 = vmatprep.subr.mxu0 0.0
    %823 = vmatpush1.msra.mxu0 0.0
    %824 = vmatprep.subr.mxu0 0.0
    %825 = vmatpush1.msra.mxu0 0.0
    %826 = vmatprep.subr.mxu0 0.0
    %827 = vmatpush1.msra.mxu0 0.0
    %828 = vmatprep.subr.mxu0 0.0
    %829 = vmatpush1.msra.mxu0 0.0
    %830 = vmatprep.subr.mxu0 0.0
    %831 = vmatpush1.msra.mxu0 0.0
    %832 = vmatprep.subr.mxu0 0.0
    %833 = vmatpush1.msra.mxu0 0.0
    %834 = vmatprep.subr.mxu0 0.0
    %835 = vmatpush1.msra.mxu0 0.0
    %836 = vmatprep.subr.mxu0 0.0
    %837 = vmatpush1.msra.mxu0 0.0
    %838 = vmatprep.subr.mxu0 0.0
    %839 = vmatpush1.msra.mxu0 %v736
    %840 = vmatprep.subr.mxu0 0.0
    %841 = vmatpush1.msra.mxu0 %v735
    %842 = vmatprep.subr.mxu0 0.0
    %843 = vmatpush1.msra.mxu0 %v734
    %844 = vmatprep.subr.mxu0 0.0
    %845 = vmatpush1.msra.mxu0 %v733
    %846 = vmatprep.subr.mxu0 0.0
    %847 = vmatpush2.msra.mxu0 0.0
    %848 = vmatprep.subr.mxu0 0.0
    %849 = vmatpush2.msra.mxu0 0.0
    %850 = vmatprep.subr.mxu0 0.0
    %851 = vmatpush2.msra.mxu0 0.0
    %852 = vmatprep.subr.mxu0 0.0
    %853 = vmatpush2.msra.mxu0 0.0
    %854 = vmatprep.subr.mxu0 0.0
    %855 = vmatpush2.msra.mxu0 0.0
    %856 = vmatprep.subr.mxu0 0.0
    %857 = vmatpush2.msra.mxu0 0.0
    %858 = vmatprep.subr.mxu0 0.0
    %859 = vmatpush2.msra.mxu0 0.0
    %860 = vmatprep.subr.mxu0 0.0
    %861 = vmatpush2.msra.mxu0 0.0
    %862 = vmatprep.subr.mxu0 0.0
    %863 = vmatpush2.msra.mxu0 0.0
    %864 = vmatprep.subr.mxu0 0.0
    %865 = vmatpush2.msra.mxu0 0.0
    %866 = vmatprep.subr.mxu0 0.0
    %867 = vmatpush2.msra.mxu0 0.0
    %868 = vmatprep.subr.mxu0 0.0
    %869 = vmatpush2.msra.mxu0 0.0
    %870 = vmatprep.subr.mxu0 0.0
    %871 = vmatpush2.msra.mxu0 0.0
    %872 = vmatprep.subr.mxu0 0.0
    %873 = vmatpush2.msra.mxu0 0.0
    %874 = vmatprep.subr.mxu0 0.0
    %875 = vmatpush2.msra.mxu0 0.0
    %876 = vmatprep.subr.mxu0 0.0
    %877 = vmatpush2.msra.mxu0 0.0
    %878 = vmatprep.mubr.f32.mxu0 0.0
    %879 = vmatmul.mubr.f32.gmra.mxu0 %v742
    %v880 = vpop.f32.mrf.mxu0
    %v881 = vadd.f32 %v811, %v880
    %v882 = vpop.f32.mrf.mxu0
    %883 = vdwg.mxu0
    %v884 = vsub.f32 0.0, %v881
    %v885 = vmul.f32 %v884, 1.442695
    %v886 = vpow.pop %v885
    %v887 = vadd.f32 %v886, 1.0
    %v888 = vrcp.pop %v887
    %v889 = vmul.f32 1.0, %v888
    %v890 = vmul.f32 %v881, %v889
    %891 = vst.msk [vmem:[#allocation3] sm:$0xf] %vm452, %v890
    %vm892 = vcmp.ge.f32.partialorder %v881, -2.2
    %vm893 = vcmp.lt.f32.partialorder %v881, -1.8
    %vm894 = vmand %vm892, %vm893
    %v895 = vsel %vm894, 1, 0
    %v896 = vcvt.s32.f32 %v895
    %vm897 = vcmp.ge.f32.partialorder %v881, -1.8
    %vm898 = vcmp.lt.f32.partialorder %v881, -1.4
    %vm899 = vmand %vm897, %vm898
    %v900 = vsel %vm899, 1, 0
    %v901 = vcvt.s32.f32 %v900
    %vm902 = vcmp.ge.f32.partialorder %v881, -1.4
    %vm903 = vcmp.lt.f32.partialorder %v881, -1.0
    %vm904 = vmand %vm902, %vm903
    %v905 = vsel %vm904, 1, 0
    %v906 = vcvt.s32.f32 %v905
    %vm907 = vcmp.ge.f32.partialorder %v881, -1.0
    %vm908 = vcmp.lt.f32.partialorder %v881, -0.6
    %vm909 = vmand %vm907, %vm908
    %v910 = vsel %vm909, 1, 0
    %v911 = vcvt.s32.f32 %v910
    %vm912 = vcmp.ge.f32.partialorder %v881, -0.6
    %vm913 = vcmp.lt.f32.partialorder %v881, -0.2
    %vm914 = vmand %vm912, %vm913
    %v915 = vsel %vm914, 1, 0
    %v916 = vcvt.s32.f32 %v915
    %vm917 = vcmp.ge.f32.partialorder %v881, -0.2
    %vm918 = vcmp.lt.f32.partialorder %v881, 0.2
    %vm919 = vmand %vm917, %vm918
    %v920 = vsel %vm919, 1, 0
    %v921 = vcvt.s32.f32 %v920
    %vm922 = vcmp.ge.f32.partialorder %v881, 0.2
    %vm923 = vcmp.lt.f32.partialorder %v881, 0.6
    %vm924 = vmand %vm922, %vm923
    %v925 = vsel %vm924, 1, 0
    %v926 = vcvt.s32.f32 %v925
    %vm927 = vcmp.ge.f32.partialorder %v881, 0.6
    %vm928 = vcmp.lt.f32.partialorder %v881, 1.0
    %vm929 = vmand %vm927, %vm928
    %v930 = vsel %vm929, 1, 0
    %v931 = vcvt.s32.f32 %v930
    %vm932 = vcmp.ge.f32.partialorder %v881, 1.0
    %vm933 = vcmp.lt.f32.partialorder %v881, 1.4
    %vm934 = vmand %vm932, %vm933
    %v935 = vsel %vm934, 1, 0
    %v936 = vcvt.s32.f32 %v935
    %vm937 = vcmp.ge.f32.partialorder %v881, 1.4
    %vm938 = vcmp.lt.f32.partialorder %v881, 1.8
    %vm939 = vmand %vm937, %vm938
    %v940 = vsel %vm939, 1, 0
    %v941 = vcvt.s32.f32 %v940
    %vm942 = vcmp.ge.f32.partialorder %v881, 1.8
    %vm943 = vcmp.lt.f32.partialorder %v881, 2.2
    %vm944 = vmand %vm942, %vm943
    %v945 = vsel %vm944, 1, 0
    %v946 = vcvt.s32.f32 %v945
    %v947 = vsub.f32 %v881, -2.2
    %v948 = vmul.f32 %v947, %v150
    %v949 = vmul.f32 %v948, %v896
    %v950 = vsub.f32 -1.4, %v881
    %v951 = vmul.f32 %v950, %v154
    %v952 = vmul.f32 %v951, %v901
    %v953 = vadd.f32 %v949, %v952
    %v954 = vsub.f32 %v881, -1.8
    %v955 = vmul.f32 %v954, %v154
    %v956 = vmul.f32 %v955, %v901
    %v957 = vsub.f32 -1.0, %v881
    %v958 = vmul.f32 %v957, %v154
    %v959 = vmul.f32 %v958, %v906
    %v960 = vadd.f32 %v956, %v959
    %v961 = vsub.f32 %v881, -1.4
    %v962 = vmul.f32 %v961, %v154
    %v963 = vmul.f32 %v962, %v906
    %v964 = vsub.f32 -0.6, %v881
    %v965 = vmul.f32 %v964, %v154
    %v966 = vmul.f32 %v965, %v911
    %v967 = vadd.f32 %v963, %v966
    %v968 = vsub.f32 %v881, -1.0
    %v969 = vmul.f32 %v968, %v154
    %v970 = vmul.f32 %v969, %v911
    %v971 = vsub.f32 -0.2, %v881
    %v972 = vmul.f32 %v971, %v176
    %v973 = vmul.f32 %v972, %v916
    %v974 = vadd.f32 %v970, %v973
    %v975 = vsub.f32 %v881, -0.6
    %v976 = vmul.f32 %v975, %v176
    %v977 = vmul.f32 %v976, %v916
    %v978 = vsub.f32 0.2, %v881
    %v979 = vmul.f32 %v978, %v184
    %v980 = vmul.f32 %v979, %v921
    %v981 = vadd.f32 %v977, %v980
    %v982 = vsub.f32 %v881, -0.2
    %v983 = vmul.f32 %v982, %v184
    %v984 = vmul.f32 %v983, %v921
    %v985 = vsub.f32 0.6, %v881
    %v986 = vmul.f32 %v985, %v176
    %v987 = vmul.f32 %v986, %v926
    %v988 = vadd.f32 %v984, %v987
    %v989 = vsub.f32 %v881, 0.2
    %v990 = vmul.f32 %v989, %v176
    %v991 = vmul.f32 %v990, %v926
    %v992 = vsub.f32 1.0, %v881
    %v993 = vmul.f32 %v992, %v154
    %v994 = vmul.f32 %v993, %v931
    %v995 = vadd.f32 %v991, %v994
    %v996 = vsub.f32 %v881, 0.6
    %v997 = vmul.f32 %v996, %v154
    %v998 = vmul.f32 %v997, %v931
    %v999 = vsub.f32 1.4, %v881
    %v1000 = vmul.f32 %v999, %v154
    %v1001 = vmul.f32 %v1000, %v936
    %v1002 = vadd.f32 %v998, %v1001
    %v1003 = vsub.f32 %v881, 1.0
    %v1004 = vmul.f32 %v1003, %v154
    %v1005 = vmul.f32 %v1004, %v936
    %v1006 = vsub.f32 1.8, %v881
    %v1007 = vmul.f32 %v1006, %v154
    %v1008 = vmul.f32 %v1007, %v941
    %v1009 = vadd.f32 %v1005, %v1008
    %v1010 = vsub.f32 %v881, 1.4
    %v1011 = vmul.f32 %v1010, %v154
    %v1012 = vmul.f32 %v1011, %v941
    %v1013 = vsub.f32 2.2, %v881
    %v1014 = vmul.f32 %v1013, %v150
    %v1015 = vmul.f32 %v1014, %v946
    %v1016 = vadd.f32 %v1012, %v1015
    %v1017 = vmul.f32 %v947, %v223
    %v1018 = vmul.f32 %v1017, %v953
    %v1019 = vmul.f32 %v957, %v226
    %v1020 = vmul.f32 %v1019, %v960
    %v1021 = vadd.f32 %v1018, %v1020
    %v1022 = vmul.f32 %v954, %v226
    %v1023 = vmul.f32 %v1022, %v960
    %v1024 = vmul.f32 %v964, %v226
    %v1025 = vmul.f32 %v1024, %v967
    %v1026 = vadd.f32 %v1023, %v1025
    %v1027 = vmul.f32 %v961, %v226
    %v1028 = vmul.f32 %v1027, %v967
    %v1029 = vmul.f32 %v971, %v237
    %v1030 = vmul.f32 %v1029, %v974
    %v1031 = vadd.f32 %v1028, %v1030
    %v1032 = vmul.f32 %v968, %v237
    %v1033 = vmul.f32 %v1032, %v974
    %v1034 = vmul.f32 %v978, %v237
    %v1035 = vmul.f32 %v1034, %v981
    %v1036 = vadd.f32 %v1033, %v1035
    %v1037 = vmul.f32 %v975, %v237
    %v1038 = vmul.f32 %v1037, %v981
    %v1039 = vmul.f32 %v985, %v237
    %v1040 = vmul.f32 %v1039, %v988
    %v1041 = vadd.f32 %v1038, %v1040
    %v1042 = vmul.f32 %v982, %v237
    %v1043 = vmul.f32 %v1042, %v988
    %v1044 = vmul.f32 %v992, %v237
    %v1045 = vmul.f32 %v1044, %v995
    %v1046 = vadd.f32 %v1043, %v1045
    %v1047 = vmul.f32 %v989, %v237
    %v1048 = vmul.f32 %v1047, %v995
    %v1049 = vmul.f32 %v999, %v226
    %v1050 = vmul.f32 %v1049, %v1002
    %v1051 = vadd.f32 %v1048, %v1050
    %v1052 = vmul.f32 %v996, %v226
    %v1053 = vmul.f32 %v1052, %v1002
    %v1054 = vmul.f32 %v1006, %v226
    %v1055 = vmul.f32 %v1054, %v1009
    %v1056 = vadd.f32 %v1053, %v1055
    %v1057 = vmul.f32 %v1003, %v226
    %v1058 = vmul.f32 %v1057, %v1009
    %v1059 = vmul.f32 %v1013, %v223
    %v1060 = vmul.f32 %v1059, %v1016
    %v1061 = vadd.f32 %v1058, %v1060
    %v1062 = vmul.f32 %v947, %v271
    %v1063 = vmul.f32 %v1062, %v1021
    %v1064 = vmul.f32 %v964, %v274
    %v1065 = vmul.f32 %v1064, %v1026
    %v1066 = vadd.f32 %v1063, %v1065
    %v1067 = vmul.f32 %v954, %v274
    %v1068 = vmul.f32 %v1067, %v1026
    %v1069 = vmul.f32 %v971, %v274
    %v1070 = vmul.f32 %v1069, %v1031
    %v1071 = vadd.f32 %v1068, %v1070
    %v1072 = vmul.f32 %v961, %v274
    %v1073 = vmul.f32 %v1072, %v1031
    %v1074 = vmul.f32 %v978, %v271
    %v1075 = vmul.f32 %v1074, %v1036
    %v1076 = vadd.f32 %v1073, %v1075
    %v1077 = vmul.f32 %v968, %v271
    %v1078 = vmul.f32 %v1077, %v1036
    %v1079 = vmul.f32 %v985, %v271
    %v1080 = vmul.f32 %v1079, %v1041
    %v1081 = vadd.f32 %v1078, %v1080
    %v1082 = vmul.f32 %v975, %v271
    %v1083 = vmul.f32 %v1082, %v1041
    %v1084 = vmul.f32 %v992, %v271
    %v1085 = vmul.f32 %v1084, %v1046
    %v1086 = vadd.f32 %v1083, %v1085
    %v1087 = vmul.f32 %v982, %v271
    %v1088 = vmul.f32 %v1087, %v1046
    %v1089 = vmul.f32 %v999, %v274
    %v1090 = vmul.f32 %v1089, %v1051
    %v1091 = vadd.f32 %v1088, %v1090
    %v1092 = vmul.f32 %v989, %v274
    %v1093 = vmul.f32 %v1092, %v1051
    %v1094 = vmul.f32 %v1006, %v274
    %v1095 = vmul.f32 %v1094, %v1056
    %v1096 = vadd.f32 %v1093, %v1095
    %v1097 = vmul.f32 %v996, %v274
    %v1098 = vmul.f32 %v1097, %v1056
    %v1099 = vmul.f32 %v1013, %v271
    %v1100 = vmul.f32 %v1099, %v1061
    %v1101 = vadd.f32 %v1098, %v1100
    %1103 = vrot.lane.b32.xlu0 %v1066, 32
    %v1104 = vpop.permute.xlu0 %1103
    %1106 = vst.msk [vmem:[#allocation3] sm:$0xf] %vm668, %v1104
    %1108 = vrot.lane.b32.xlu0 %v1071, 64
    %v1109 = vpop.permute.xlu0 %1108
    %1111 = vst.msk [vmem:[#allocation3] sm:$0xf] %vm674, %v1109
    %1113 = vrot.lane.b32.xlu0 %v1076, 96
    %v1114 = vpop.permute.xlu0 %1113
    %1116 = vst.msk [vmem:[#allocation3] sm:$0xf] %vm680, %v1114
    %1117 = vst.msk [vmem:[#allocation3 + $0x4] sm:$0xf] %vm452, %v1081
    %1119 = vrot.lane.b32.xlu0 %v1086, 32
    %v1120 = vpop.permute.xlu0 %1119
    %1122 = vst.msk [vmem:[#allocation3 + $0x4] sm:$0xf] %vm668, %v1120
    %1124 = vrot.lane.b32.xlu0 %v1091, 64
    %v1125 = vpop.permute.xlu0 %1124
    %1127 = vst.msk [vmem:[#allocation3 + $0x4] sm:$0xf] %vm674, %v1125
    %1129 = vrot.lane.b32.xlu0 %v1096, 96
    %v1130 = vpop.permute.xlu0 %1129
    %1132 = vst.msk [vmem:[#allocation3 + $0x4] sm:$0xf] %vm680, %v1130
    %1133 = vst.msk [vmem:[#allocation3 + $0x8] sm:$0xf] %vm452, %v1101
    %v1134 = vld [vmem:[#allocation3] sm:$0xff]
    %v1135 = vld [vmem:[#allocation3 + $0x8] sm:$0xf]
    %v1136 = vld [vmem:[%s5] sm:$0xff]
    %v1137 = vld [vmem:[%s5 + $0x8] sm:$0xff]
    %v1138 = vld [vmem:[%s5 + $0x10] sm:$0xff]
    %v1139 = vld [vmem:[%s5 + $0x18] sm:$0xff]
    %v1140 = vld [vmem:[%s5 + $0x20] sm:$0xff]
    %v1141 = vld [vmem:[%s5 + $0x28] sm:$0xff]
    %v1142 = vld [vmem:[%s5 + $0x30] sm:$0xff]
    %v1143 = vld [vmem:[%s5 + $0x38] sm:$0xff]
    %v1144 = vld [vmem:[%s5 + $0x40] sm:$0xff]
    %v1145 = vld [vmem:[%s5 + $0x48] sm:$0xff]
    %v1146 = vld [vmem:[%s5 + $0x50] sm:$0xff]
    %v1147 = vld [vmem:[%s5 + $0x58] sm:$0xff]
    %v1148 = vld [vmem:[%s5 + $0x60] sm:$0xff]
    %v1149 = vld [vmem:[%s5 + $0x68] sm:$0xff]
    %v1150 = vld [vmem:[%s5 + $0x70] sm:$0xff]
    %v1151 = vld [vmem:[%s5 + $0x78] sm:$0xff]
    %v1152 = vld [vmem:[%s5 + $0x80] sm:$0xff]
    %v1153 = vld [vmem:[%s5 + $0x88] sm:$0xff]
    %v1154 = vld [vmem:[%s5 + $0x90] sm:$0xff]
    %v1155 = vld [vmem:[%s5 + $0x98] sm:$0xff]
    %v1156 = vld [vmem:[%s5 + $0xa0] sm:$0xff]
    %v1157 = vld [vmem:[%s5 + $0xa8] sm:$0xff]
    %v1158 = vld [vmem:[%s5 + $0xb0] sm:$0xff]
    %v1159 = vld [vmem:[%s5 + $0xb8] sm:$0xff]
    %v1160 = vld [vmem:[%s5 + $0xc0] sm:$0xff]
    %v1161 = vld [vmem:[%s5 + $0xc8] sm:$0xff]
    %v1162 = vld [vmem:[%s5 + $0xd0] sm:$0xff]
    %v1163 = vld [vmem:[%s5 + $0xd8] sm:$0xff]
    %v1164 = vld [vmem:[%s5 + $0xe0] sm:$0xff]
    %v1165 = vld [vmem:[%s5 + $0xe8] sm:$0xff]
    %v1166 = vld [vmem:[%s5 + $0xf0] sm:$0xff]
    %v1167 = vld [vmem:[%s5 + $0xf8] sm:$0xff]
    %v1168 = vld [vmem:[%s5 + $0x100] sm:$0xff]
    %v1169 = vld [vmem:[%s5 + $0x108] sm:$0xff]
    %v1170 = vld [vmem:[%s5 + $0x110] sm:$0xff]
    %v1171 = vld [vmem:[%s5 + $0x118] sm:$0xff]
    %v1174 = vcombine.high %v1134, %v1134
    %v1176 = vsel %vm741, %v1135, 0
    %1178 = vmatprep.subr.mxu0 0.0
    %1179 = vmatpush1.msra.mxu0 %v1151
    %1180 = vmatprep.subr.mxu0 0.0
    %1181 = vmatpush1.msra.mxu0 %v1150
    %1182 = vmatprep.subr.mxu0 0.0
    %1183 = vmatpush1.msra.mxu0 %v1149
    %1184 = vmatprep.subr.mxu0 0.0
    %1185 = vmatpush1.msra.mxu0 %v1148
    %1186 = vmatprep.subr.mxu0 0.0
    %1187 = vmatpush1.msra.mxu0 %v1147
    %1188 = vmatprep.subr.mxu0 0.0
    %1189 = vmatpush1.msra.mxu0 %v1146
    %1190 = vmatprep.subr.mxu0 0.0
    %1191 = vmatpush1.msra.mxu0 %v1145
    %1192 = vmatprep.subr.mxu0 0.0
    %1193 = vmatpush1.msra.mxu0 %v1144
    %1194 = vmatprep.subr.mxu0 0.0
    %1195 = vmatpush1.msra.mxu0 %v1143
    %1196 = vmatprep.subr.mxu0 0.0
    %1197 = vmatpush1.msra.mxu0 %v1142
    %1198 = vmatprep.subr.mxu0 0.0
    %1199 = vmatpush1.msra.mxu0 %v1141
    %1200 = vmatprep.subr.mxu0 0.0
    %1201 = vmatpush1.msra.mxu0 %v1140
    %1202 = vmatprep.subr.mxu0 0.0
    %1203 = vmatpush1.msra.mxu0 %v1139
    %1204 = vmatprep.subr.mxu0 0.0
    %1205 = vmatpush1.msra.mxu0 %v1138
    %1206 = vmatprep.subr.mxu0 0.0
    %1207 = vmatpush1.msra.mxu0 %v1137
    %1208 = vmatprep.subr.mxu0 0.0
    %1209 = vmatpush1.msra.mxu0 %v1136
    %1210 = vmatprep.subr.mxu0 0.0
    %1211 = vmatpush2.msra.mxu0 %v1167
    %1212 = vmatprep.subr.mxu0 0.0
    %1213 = vmatpush2.msra.mxu0 %v1166
    %1214 = vmatprep.subr.mxu0 0.0
    %1215 = vmatpush2.msra.mxu0 %v1165
    %1216 = vmatprep.subr.mxu0 0.0
    %1217 = vmatpush2.msra.mxu0 %v1164
    %1218 = vmatprep.subr.mxu0 0.0
    %1219 = vmatpush2.msra.mxu0 %v1163
    %1220 = vmatprep.subr.mxu0 0.0
    %1221 = vmatpush2.msra.mxu0 %v1162
    %1222 = vmatprep.subr.mxu0 0.0
    %1223 = vmatpush2.msra.mxu0 %v1161
    %1224 = vmatprep.subr.mxu0 0.0
    %1225 = vmatpush2.msra.mxu0 %v1160
    %1226 = vmatprep.subr.mxu0 0.0
    %1227 = vmatpush2.msra.mxu0 %v1159
    %1228 = vmatprep.subr.mxu0 0.0
    %1229 = vmatpush2.msra.mxu0 %v1158
    %1230 = vmatprep.subr.mxu0 0.0
    %1231 = vmatpush2.msra.mxu0 %v1157
    %1232 = vmatprep.subr.mxu0 0.0
    %1233 = vmatpush2.msra.mxu0 %v1156
    %1234 = vmatprep.subr.mxu0 0.0
    %1235 = vmatpush2.msra.mxu0 %v1155
    %1236 = vmatprep.subr.mxu0 0.0
    %1237 = vmatpush2.msra.mxu0 %v1154
    %1238 = vmatprep.subr.mxu0 0.0
    %1239 = vmatpush2.msra.mxu0 %v1153
    %1240 = vmatprep.subr.mxu0 0.0
    %1241 = vmatpush2.msra.mxu0 %v1152
    %1242 = vmatprep.mubr.f32.mxu0 %v1174
    %1243 = vmatmul.mubr.f32.gmra.mxu0 %v1134
    %v1244 = vpop.f32.mrf.mxu0
    %v1245 = vadd.f32 0.0, %v1244
    %v1246 = vpop.f32.mrf.mxu0
    %1247 = vdwg.mxu0
    %1248 = vmatprep.subr.mxu0 0.0
    %1249 = vmatpush1.msra.mxu0 0.0
    %1250 = vmatprep.subr.mxu0 0.0
    %1251 = vmatpush1.msra.mxu0 0.0
    %1252 = vmatprep.subr.mxu0 0.0
    %1253 = vmatpush1.msra.mxu0 0.0
    %1254 = vmatprep.subr.mxu0 0.0
    %1255 = vmatpush1.msra.mxu0 0.0
    %1256 = vmatprep.subr.mxu0 0.0
    %1257 = vmatpush1.msra.mxu0 0.0
    %1258 = vmatprep.subr.mxu0 0.0
    %1259 = vmatpush1.msra.mxu0 0.0
    %1260 = vmatprep.subr.mxu0 0.0
    %1261 = vmatpush1.msra.mxu0 0.0
    %1262 = vmatprep.subr.mxu0 0.0
    %1263 = vmatpush1.msra.mxu0 0.0
    %1264 = vmatprep.subr.mxu0 0.0
    %1265 = vmatpush1.msra.mxu0 0.0
    %1266 = vmatprep.subr.mxu0 0.0
    %1267 = vmatpush1.msra.mxu0 0.0
    %1268 = vmatprep.subr.mxu0 0.0
    %1269 = vmatpush1.msra.mxu0 0.0
    %1270 = vmatprep.subr.mxu0 0.0
    %1271 = vmatpush1.msra.mxu0 0.0
    %1272 = vmatprep.subr.mxu0 0.0
    %1273 = vmatpush1.msra.mxu0 %v1171
    %1274 = vmatprep.subr.mxu0 0.0
    %1275 = vmatpush1.msra.mxu0 %v1170
    %1276 = vmatprep.subr.mxu0 0.0
    %1277 = vmatpush1.msra.mxu0 %v1169
    %1278 = vmatprep.subr.mxu0 0.0
    %1279 = vmatpush1.msra.mxu0 %v1168
    %1280 = vmatprep.subr.mxu0 0.0
    %1281 = vmatpush2.msra.mxu0 0.0
    %1282 = vmatprep.subr.mxu0 0.0
    %1283 = vmatpush2.msra.mxu0 0.0
    %1284 = vmatprep.subr.mxu0 0.0
    %1285 = vmatpush2.msra.mxu0 0.0
    %1286 = vmatprep.subr.mxu0 0.0
    %1287 = vmatpush2.msra.mxu0 0.0
    %1288 = vmatprep.subr.mxu0 0.0
    %1289 = vmatpush2.msra.mxu0 0.0
    %1290 = vmatprep.subr.mxu0 0.0
    %1291 = vmatpush2.msra.mxu0 0.0
    %1292 = vmatprep.subr.mxu0 0.0
    %1293 = vmatpush2.msra.mxu0 0.0
    %1294 = vmatprep.subr.mxu0 0.0
    %1295 = vmatpush2.msra.mxu0 0.0
    %1296 = vmatprep.subr.mxu0 0.0
    %1297 = vmatpush2.msra.mxu0 0.0
    %1298 = vmatprep.subr.mxu0 0.0
    %1299 = vmatpush2.msra.mxu0 0.0
    %1300 = vmatprep.subr.mxu0 0.0
    %1301 = vmatpush2.msra.mxu0 0.0
    %1302 = vmatprep.subr.mxu0 0.0
    %1303 = vmatpush2.msra.mxu0 0.0
    %1304 = vmatprep.subr.mxu0 0.0
    %1305 = vmatpush2.msra.mxu0 0.0
    %1306 = vmatprep.subr.mxu0 0.0
    %1307 = vmatpush2.msra.mxu0 0.0
    %1308 = vmatprep.subr.mxu0 0.0
    %1309 = vmatpush2.msra.mxu0 0.0
    %1310 = vmatprep.subr.mxu0 0.0
    %1311 = vmatpush2.msra.mxu0 0.0
    %1312 = vmatprep.mubr.f32.mxu0 0.0
    %1313 = vmatmul.mubr.f32.gmra.mxu0 %v1176
    %v1314 = vpop.f32.mrf.mxu0
    %v1315 = vadd.f32 %v1245, %v1314
    %v1316 = vpop.f32.mrf.mxu0
    %1317 = vdwg.mxu0
    %v1318 = vsub.f32 %v33, %v1315
    %v1319 = vmul.f32 %v1318, %v34
    %1321 = vrot.lane.b32.xlu0 %v1315, 112
    %v1322 = vpop.permute.xlu0 %1321
    %v1324 = vadd.f32 %v35, %v1322
    %vm1325 = vcmask 27648
    %v1326 = vsel %vm1325, %v1319, -inf
    %1327 = vmax.xlane.f32.xlu0 %v1326
    %v1328 = vpop.xlane.xlu0 %1327
    %1329 = vst.msk [vmem:[#allocation2] sm:$0xf] %vm40, %v1328
    %vm1330 = vcmask 60448
    %v1331 = vsel %vm1330, %v1319, -inf
    %1332 = vmax.xlane.f32.xlu0 %v1331
    %v1333 = vpop.xlane.xlu0 %1332
    %1334 = vst.msk [vmem:[#allocation2] sm:$0xf] %vm46, %v1333
    %vm1335 = vcmask 93248
    %v1336 = vsel %vm1335, %v1319, -inf
    %1337 = vmax.xlane.f32.xlu0 %v1336
    %v1338 = vpop.xlane.xlu0 %1337
    %1339 = vst.msk [vmem:[#allocation2] sm:$0xf] %vm52, %v1338
    %vm1340 = vcmask 126048
    %v1341 = vsel %vm1340, %v1319, -inf
    %1342 = vmax.xlane.f32.xlu0 %v1341
    %v1343 = vpop.xlane.xlu0 %1342
    %1344 = vst.msk [vmem:[#allocation2] sm:$0xf] %vm58, %v1343
    %v1345 = vld [vmem:[#allocation2] sm:$0xf]
    %v1346 = vsub.f32 0.0, %v1345
    %v1347 = vmul.f32 %v1346, 1.442695
    %v1348 = vpow.pop %v1347
    %v1349 = vadd.f32 %v1348, 1.0
    %v1350 = vrcp.pop %v1349
    %v1351 = vmul.f32 1.0, %v1350
    %v1352 = vmul.f32 %v1345, %v1351
    %1353 = vst.msk [vmem:[#allocation3] sm:$0xf] %vm1325, %v1352
    %vm1354 = vcmp.ge.f32.partialorder %v1345, -2.2
    %vm1355 = vcmp.lt.f32.partialorder %v1345, -1.8
    %vm1356 = vmand %vm1354, %vm1355
    %v1357 = vsel %vm1356, 1, 0
    %v1358 = vcvt.s32.f32 %v1357
    %vm1359 = vcmp.ge.f32.partialorder %v1345, -1.8
    %vm1360 = vcmp.lt.f32.partialorder %v1345, -1.4
    %vm1361 = vmand %vm1359, %vm1360
    %v1362 = vsel %vm1361, 1, 0
    %v1363 = vcvt.s32.f32 %v1362
    %vm1364 = vcmp.ge.f32.partialorder %v1345, -1.4
    %vm1365 = vcmp.lt.f32.partialorder %v1345, -1.0
    %vm1366 = vmand %vm1364, %vm1365
    %v1367 = vsel %vm1366, 1, 0
    %v1368 = vcvt.s32.f32 %v1367
    %vm1369 = vcmp.ge.f32.partialorder %v1345, -1.0
    %vm1370 = vcmp.lt.f32.partialorder %v1345, -0.6
    %vm1371 = vmand %vm1369, %vm1370
    %v1372 = vsel %vm1371, 1, 0
    %v1373 = vcvt.s32.f32 %v1372
    %vm1374 = vcmp.ge.f32.partialorder %v1345, -0.6
    %vm1375 = vcmp.lt.f32.partialorder %v1345, -0.2
    %vm1376 = vmand %vm1374, %vm1375
    %v1377 = vsel %vm1376, 1, 0
    %v1378 = vcvt.s32.f32 %v1377
    %vm1379 = vcmp.ge.f32.partialorder %v1345, -0.2
    %vm1380 = vcmp.lt.f32.partialorder %v1345, 0.2
    %vm1381 = vmand %vm1379, %vm1380
    %v1382 = vsel %vm1381, 1, 0
    %v1383 = vcvt.s32.f32 %v1382
    %vm1384 = vcmp.ge.f32.partialorder %v1345, 0.2
    %vm1385 = vcmp.lt.f32.partialorder %v1345, 0.6
    %vm1386 = vmand %vm1384, %vm1385
    %v1387 = vsel %vm1386, 1, 0
    %v1388 = vcvt.s32.f32 %v1387
    %vm1389 = vcmp.ge.f32.partialorder %v1345, 0.6
    %vm1390 = vcmp.lt.f32.partialorder %v1345, 1.0
    %vm1391 = vmand %vm1389, %vm1390
    %v1392 = vsel %vm1391, 1, 0
    %v1393 = vcvt.s32.f32 %v1392
    %vm1394 = vcmp.ge.f32.partialorder %v1345, 1.0
    %vm1395 = vcmp.lt.f32.partialorder %v1345, 1.4
    %vm1396 = vmand %vm1394, %vm1395
    %v1397 = vsel %vm1396, 1, 0
    %v1398 = vcvt.s32.f32 %v1397
    %vm1399 = vcmp.ge.f32.partialorder %v1345, 1.4
    %vm1400 = vcmp.lt.f32.partialorder %v1345, 1.8
    %vm1401 = vmand %vm1399, %vm1400
    %v1402 = vsel %vm1401, 1, 0
    %v1403 = vcvt.s32.f32 %v1402
    %vm1404 = vcmp.ge.f32.partialorder %v1345, 1.8
    %vm1405 = vcmp.lt.f32.partialorder %v1345, 2.2
    %vm1406 = vmand %vm1404, %vm1405
    %v1407 = vsel %vm1406, 1, 0
    %v1408 = vcvt.s32.f32 %v1407
    %v1409 = vsub.f32 %v1345, -2.2
    %v1410 = vmul.f32 %v1409, %v150
    %v1411 = vmul.f32 %v1410, %v1358
    %v1412 = vsub.f32 -1.4, %v1345
    %v1413 = vmul.f32 %v1412, %v154
    %v1414 = vmul.f32 %v1413, %v1363
    %v1415 = vadd.f32 %v1411, %v1414
    %v1416 = vsub.f32 %v1345, -1.8
    %v1417 = vmul.f32 %v1416, %v154
    %v1418 = vmul.f32 %v1417, %v1363
    %v1419 = vsub.f32 -1.0, %v1345
    %v1420 = vmul.f32 %v1419, %v154
    %v1421 = vmul.f32 %v1420, %v1368
    %v1422 = vadd.f32 %v1418, %v1421
    %v1423 = vsub.f32 %v1345, -1.4
    %v1424 = vmul.f32 %v1423, %v154
    %v1425 = vmul.f32 %v1424, %v1368
    %v1426 = vsub.f32 -0.6, %v1345
    %v1427 = vmul.f32 %v1426, %v154
    %v1428 = vmul.f32 %v1427, %v1373
    %v1429 = vadd.f32 %v1425, %v1428
    %v1430 = vsub.f32 %v1345, -1.0
    %v1431 = vmul.f32 %v1430, %v154
    %v1432 = vmul.f32 %v1431, %v1373
    %v1433 = vsub.f32 -0.2, %v1345
    %v1434 = vmul.f32 %v1433, %v176
    %v1435 = vmul.f32 %v1434, %v1378
    %v1436 = vadd.f32 %v1432, %v1435
    %v1437 = vsub.f32 %v1345, -0.6
    %v1438 = vmul.f32 %v1437, %v176
    %v1439 = vmul.f32 %v1438, %v1378
    %v1440 = vsub.f32 0.2, %v1345
    %v1441 = vmul.f32 %v1440, %v184
    %v1442 = vmul.f32 %v1441, %v1383
    %v1443 = vadd.f32 %v1439, %v1442
    %v1444 = vsub.f32 %v1345, -0.2
    %v1445 = vmul.f32 %v1444, %v184
    %v1446 = vmul.f32 %v1445, %v1383
    %v1447 = vsub.f32 0.6, %v1345
    %v1448 = vmul.f32 %v1447, %v176
    %v1449 = vmul.f32 %v1448, %v1388
    %v1450 = vadd.f32 %v1446, %v1449
    %v1451 = vsub.f32 %v1345, 0.2
    %v1452 = vmul.f32 %v1451, %v176
    %v1453 = vmul.f32 %v1452, %v1388
    %v1454 = vsub.f32 1.0, %v1345
    %v1455 = vmul.f32 %v1454, %v154
    %v1456 = vmul.f32 %v1455, %v1393
    %v1457 = vadd.f32 %v1453, %v1456
    %v1458 = vsub.f32 %v1345, 0.6
    %v1459 = vmul.f32 %v1458, %v154
    %v1460 = vmul.f32 %v1459, %v1393
    %v1461 = vsub.f32 1.4, %v1345
    %v1462 = vmul.f32 %v1461, %v154
    %v1463 = vmul.f32 %v1462, %v1398
    %v1464 = vadd.f32 %v1460, %v1463
    %v1465 = vsub.f32 %v1345, 1.0
    %v1466 = vmul.f32 %v1465, %v154
    %v1467 = vmul.f32 %v1466, %v1398
    %v1468 = vsub.f32 1.8, %v1345
    %v1469 = vmul.f32 %v1468, %v154
    %v1470 = vmul.f32 %v1469, %v1403
    %v1471 = vadd.f32 %v1467, %v1470
    %v1472 = vsub.f32 %v1345, 1.4
    %v1473 = vmul.f32 %v1472, %v154
    %v1474 = vmul.f32 %v1473, %v1403
    %v1475 = vsub.f32 2.2, %v1345
    %v1476 = vmul.f32 %v1475, %v150
    %v1477 = vmul.f32 %v1476, %v1408
    %v1478 = vadd.f32 %v1474, %v1477
    %v1479 = vmul.f32 %v1409, %v223
    %v1480 = vmul.f32 %v1479, %v1415
    %v1481 = vmul.f32 %v1419, %v226
    %v1482 = vmul.f32 %v1481, %v1422
    %v1483 = vadd.f32 %v1480, %v1482
    %v1484 = vmul.f32 %v1416, %v226
    %v1485 = vmul.f32 %v1484, %v1422
    %v1486 = vmul.f32 %v1426, %v226
    %v1487 = vmul.f32 %v1486, %v1429
    %v1488 = vadd.f32 %v1485, %v1487
    %v1489 = vmul.f32 %v1423, %v226
    %v1490 = vmul.f32 %v1489, %v1429
    %v1491 = vmul.f32 %v1433, %v237
    %v1492 = vmul.f32 %v1491, %v1436
    %v1493 = vadd.f32 %v1490, %v1492
    %v1494 = vmul.f32 %v1430, %v237
    %v1495 = vmul.f32 %v1494, %v1436
    %v1496 = vmul.f32 %v1440, %v237
    %v1497 = vmul.f32 %v1496, %v1443
    %v1498 = vadd.f32 %v1495, %v1497
    %v1499 = vmul.f32 %v1437, %v237
    %v1500 = vmul.f32 %v1499, %v1443
    %v1501 = vmul.f32 %v1447, %v237
    %v1502 = vmul.f32 %v1501, %v1450
    %v1503 = vadd.f32 %v1500, %v1502
    %v1504 = vmul.f32 %v1444, %v237
    %v1505 = vmul.f32 %v1504, %v1450
    %v1506 = vmul.f32 %v1454, %v237
    %v1507 = vmul.f32 %v1506, %v1457
    %v1508 = vadd.f32 %v1505, %v1507
    %v1509 = vmul.f32 %v1451, %v237
    %v1510 = vmul.f32 %v1509, %v1457
    %v1511 = vmul.f32 %v1461, %v226
    %v1512 = vmul.f32 %v1511, %v1464
    %v1513 = vadd.f32 %v1510, %v1512
    %v1514 = vmul.f32 %v1458, %v226
    %v1515 = vmul.f32 %v1514, %v1464
    %v1516 = vmul.f32 %v1468, %v226
    %v1517 = vmul.f32 %v1516, %v1471
    %v1518 = vadd.f32 %v1515, %v1517
    %v1519 = vmul.f32 %v1465, %v226
    %v1520 = vmul.f32 %v1519, %v1471
    %v1521 = vmul.f32 %v1475, %v223
    %v1522 = vmul.f32 %v1521, %v1478
    %v1523 = vadd.f32 %v1520, %v1522
    %v1524 = vmul.f32 %v1409, %v271
    %v1525 = vmul.f32 %v1524, %v1483
    %v1526 = vmul.f32 %v1426, %v274
    %v1527 = vmul.f32 %v1526, %v1488
    %v1528 = vadd.f32 %v1525, %v1527
    %v1529 = vmul.f32 %v1416, %v274
    %v1530 = vmul.f32 %v1529, %v1488
    %v1531 = vmul.f32 %v1433, %v274
    %v1532 = vmul.f32 %v1531, %v1493
    %v1533 = vadd.f32 %v1530, %v1532
    %v1534 = vmul.f32 %v1423, %v274
    %v1535 = vmul.f32 %v1534, %v1493
    %v1536 = vmul.f32 %v1440, %v271
    %v1537 = vmul.f32 %v1536, %v1498
    %v1538 = vadd.f32 %v1535, %v1537
    %v1539 = vmul.f32 %v1430, %v271
    %v1540 = vmul.f32 %v1539, %v1498
    %v1541 = vmul.f32 %v1447, %v271
    %v1542 = vmul.f32 %v1541, %v1503
    %v1543 = vadd.f32 %v1540, %v1542
    %v1544 = vmul.f32 %v1437, %v271
    %v1545 = vmul.f32 %v1544, %v1503
    %v1546 = vmul.f32 %v1454, %v271
    %v1547 = vmul.f32 %v1546, %v1508
    %v1548 = vadd.f32 %v1545, %v1547
    %v1549 = vmul.f32 %v1444, %v271
    %v1550 = vmul.f32 %v1549, %v1508
    %v1551 = vmul.f32 %v1461, %v274
    %v1552 = vmul.f32 %v1551, %v1513
    %v1553 = vadd.f32 %v1550, %v1552
    %v1554 = vmul.f32 %v1451, %v274
    %v1555 = vmul.f32 %v1554, %v1513
    %v1556 = vmul.f32 %v1468, %v274
    %v1557 = vmul.f32 %v1556, %v1518
    %v1558 = vadd.f32 %v1555, %v1557
    %v1559 = vmul.f32 %v1458, %v274
    %v1560 = vmul.f32 %v1559, %v1518
    %v1561 = vmul.f32 %v1475, %v271
    %v1562 = vmul.f32 %v1561, %v1523
    %v1563 = vadd.f32 %v1560, %v1562
    %1565 = vrot.lane.b32.xlu0 %v1528, 4
    %v1566 = vpop.permute.xlu0 %1565
    %1568 = vst.msk [vmem:[#allocation3] sm:$0xf] %vm1330, %v1566
    %1570 = vrot.lane.b32.xlu0 %v1533, 8
    %v1571 = vpop.permute.xlu0 %1570
    %1573 = vst.msk [vmem:[#allocation3] sm:$0xf] %vm1335, %v1571
    %1575 = vrot.lane.b32.xlu0 %v1538, 12
    %v1576 = vpop.permute.xlu0 %1575
    %1578 = vst.msk [vmem:[#allocation3] sm:$0xf] %vm1340, %v1576
    %1580 = vrot.lane.b32.xlu0 %v1543, 16
    %v1581 = vpop.permute.xlu0 %1580
    %vm1583 = vcmask 158848
    %1584 = vst.msk [vmem:[#allocation3] sm:$0xf] %vm1583, %v1581
    %1586 = vrot.lane.b32.xlu0 %v1548, 20
    %v1587 = vpop.permute.xlu0 %1586
    %vm1589 = vcmask 191648
    %1590 = vst.msk [vmem:[#allocation3] sm:$0xf] %vm1589, %v1587
    %1592 = vrot.lane.b32.xlu0 %v1553, 24
    %v1593 = vpop.permute.xlu0 %1592
    %vm1595 = vcmask 224448
    %1596 = vst.msk [vmem:[#allocation3] sm:$0xf] %vm1595, %v1593
    %1598 = vrot.lane.b32.xlu0 %v1558, 28
    %v1599 = vpop.permute.xlu0 %1598
    %vm1601 = vcmask 257248
    %1602 = vst.msk [vmem:[#allocation3] sm:$0xf] %vm1601, %v1599
    %1604 = vrot.lane.b32.xlu0 %v1563, 32
    %v1605 = vpop.permute.xlu0 %1604
    %vm1607 = vcmask 290048
    %1608 = vst.msk [vmem:[#allocation3] sm:$0xf] %vm1607, %v1605
    %v1609 = vld [vmem:[#allocation3] sm:$0xf]
    %v1610 = vld [vmem:[%s6] sm:$0xff]
    %v1611 = vld [vmem:[%s6 + $0x8] sm:$0xff]
    %v1612 = vld [vmem:[%s6 + $0x10] sm:$0xff]
    %v1613 = vld [vmem:[%s6 + $0x18] sm:$0xff]
    %v1614 = vld [vmem:[%s6 + $0x20] sm:$0xf]
    %vm1615 = vcmask 293888
    %v1617 = vsel %vm1615, %v1609, 0
    %vm1619 = vcmask 1043456
    %v1621 = vsel %vm1619, %v1614, 0
    %1623 = vmatprep.subr.mxu0 0.0
    %1624 = vmatpush1.msra.mxu0 0.0
    %1625 = vmatprep.subr.mxu0 0.0
    %1626 = vmatpush1.msra.mxu0 0.0
    %1627 = vmatprep.subr.mxu0 0.0
    %1628 = vmatpush1.msra.mxu0 0.0
    %1629 = vmatprep.subr.mxu0 0.0
    %1630 = vmatpush1.msra.mxu0 0.0
    %1631 = vmatprep.subr.mxu0 0.0
    %1632 = vmatpush1.msra.mxu0 0.0
    %1633 = vmatprep.subr.mxu0 0.0
    %1634 = vmatpush1.msra.mxu0 0.0
    %1635 = vmatprep.subr.mxu0 0.0
    %1636 = vmatpush1.msra.mxu0 0.0
    %1637 = vmatprep.subr.mxu0 0.0
    %1638 = vmatpush1.msra.mxu0 0.0
    %1639 = vmatprep.subr.mxu0 0.0
    %1640 = vmatpush1.msra.mxu0 0.0
    %1641 = vmatprep.subr.mxu0 0.0
    %1642 = vmatpush1.msra.mxu0 0.0
    %1643 = vmatprep.subr.mxu0 0.0
    %1644 = vmatpush1.msra.mxu0 0.0
    %1645 = vmatprep.subr.mxu0 0.0
    %1646 = vmatpush1.msra.mxu0 %v1621
    %1647 = vmatprep.subr.mxu0 0.0
    %1648 = vmatpush1.msra.mxu0 %v1613
    %1649 = vmatprep.subr.mxu0 0.0
    %1650 = vmatpush1.msra.mxu0 %v1612
    %1651 = vmatprep.subr.mxu0 0.0
    %1652 = vmatpush1.msra.mxu0 %v1611
    %1653 = vmatprep.subr.mxu0 0.0
    %1654 = vmatpush1.msra.mxu0 %v1610
    %1655 = vmatprep.subr.mxu0 0.0
    %1656 = vmatpush2.msra.mxu0 0.0
    %1657 = vmatprep.subr.mxu0 0.0
    %1658 = vmatpush2.msra.mxu0 0.0
    %1659 = vmatprep.subr.mxu0 0.0
    %1660 = vmatpush2.msra.mxu0 0.0
    %1661 = vmatprep.subr.mxu0 0.0
    %1662 = vmatpush2.msra.mxu0 0.0
    %1663 = vmatprep.subr.mxu0 0.0
    %1664 = vmatpush2.msra.mxu0 0.0
    %1665 = vmatprep.subr.mxu0 0.0
    %1666 = vmatpush2.msra.mxu0 0.0
    %1667 = vmatprep.subr.mxu0 0.0
    %1668 = vmatpush2.msra.mxu0 0.0
    %1669 = vmatprep.subr.mxu0 0.0
    %1670 = vmatpush2.msra.mxu0 0.0
    %1671 = vmatprep.subr.mxu0 0.0
    %1672 = vmatpush2.msra.mxu0 0.0
    %1673 = vmatprep.subr.mxu0 0.0
    %1674 = vmatpush2.msra.mxu0 0.0
    %1675 = vmatprep.subr.mxu0 0.0
    %1676 = vmatpush2.msra.mxu0 0.0
    %1677 = vmatprep.subr.mxu0 0.0
    %1678 = vmatpush2.msra.mxu0 0.0
    %1679 = vmatprep.subr.mxu0 0.0
    %1680 = vmatpush2.msra.mxu0 0.0
    %1681 = vmatprep.subr.mxu0 0.0
    %1682 = vmatpush2.msra.mxu0 0.0
    %1683 = vmatprep.subr.mxu0 0.0
    %1684 = vmatpush2.msra.mxu0 0.0
    %1685 = vmatprep.subr.mxu0 0.0
    %1686 = vmatpush2.msra.mxu0 0.0
    %1687 = vmatprep.mubr.f32.mxu0 0.0
    %1688 = vmatmul.mubr.f32.gmra.mxu0 %v1617
    %v1689 = vpop.f32.mrf.mxu0
    %v1690 = vadd.f32 0.0, %v1689
    %v1691 = vpop.f32.mrf.mxu0
    %1692 = vdwg.mxu0
    %v1693 = vsub.f32 0.0, %v1690
    %v1694 = vmul.f32 %v1693, 1.442695
    %v1695 = vpow.pop %v1694
    %v1696 = vadd.f32 %v1695, 1.0
    %v1697 = vrcp.pop %v1696
    %v1698 = vmul.f32 1.0, %v1697
    %v1699 = vmul.f32 %v1690, %v1698
    %1700 = vst.msk [vmem:[#allocation3] sm:$0xf] %vm452, %v1699
    %vm1701 = vcmp.ge.f32.partialorder %v1690, -2.2
    %vm1702 = vcmp.lt.f32.partialorder %v1690, -1.8
    %vm1703 = vmand %vm1701, %vm1702
    %v1704 = vsel %vm1703, 1, 0
    %v1705 = vcvt.s32.f32 %v1704
    %vm1706 = vcmp.ge.f32.partialorder %v1690, -1.8
    %vm1707 = vcmp.lt.f32.partialorder %v1690, -1.4
    %vm1708 = vmand %vm1706, %vm1707
    %v1709 = vsel %vm1708, 1, 0
    %v1710 = vcvt.s32.f32 %v1709
    %vm1711 = vcmp.ge.f32.partialorder %v1690, -1.4
    %vm1712 = vcmp.lt.f32.partialorder %v1690, -1.0
    %vm1713 = vmand %vm1711, %vm1712
    %v1714 = vsel %vm1713, 1, 0
    %v1715 = vcvt.s32.f32 %v1714
    %vm1716 = vcmp.ge.f32.partialorder %v1690, -1.0
    %vm1717 = vcmp.lt.f32.partialorder %v1690, -0.6
    %vm1718 = vmand %vm1716, %vm1717
    %v1719 = vsel %vm1718, 1, 0
    %v1720 = vcvt.s32.f32 %v1719
    %vm1721 = vcmp.ge.f32.partialorder %v1690, -0.6
    %vm1722 = vcmp.lt.f32.partialorder %v1690, -0.2
    %vm1723 = vmand %vm1721, %vm1722
    %v1724 = vsel %vm1723, 1, 0
    %v1725 = vcvt.s32.f32 %v1724
    %vm1726 = vcmp.ge.f32.partialorder %v1690, -0.2
    %vm1727 = vcmp.lt.f32.partialorder %v1690, 0.2
    %vm1728 = vmand %vm1726, %vm1727
    %v1729 = vsel %vm1728, 1, 0
    %v1730 = vcvt.s32.f32 %v1729
    %vm1731 = vcmp.ge.f32.partialorder %v1690, 0.2
    %vm1732 = vcmp.lt.f32.partialorder %v1690, 0.6
    %vm1733 = vmand %vm1731, %vm1732
    %v1734 = vsel %vm1733, 1, 0
    %v1735 = vcvt.s32.f32 %v1734
    %vm1736 = vcmp.ge.f32.partialorder %v1690, 0.6
    %vm1737 = vcmp.lt.f32.partialorder %v1690, 1.0
    %vm1738 = vmand %vm1736, %vm1737
    %v1739 = vsel %vm1738, 1, 0
    %v1740 = vcvt.s32.f32 %v1739
    %vm1741 = vcmp.ge.f32.partialorder %v1690, 1.0
    %vm1742 = vcmp.lt.f32.partialorder %v1690, 1.4
    %vm1743 = vmand %vm1741, %vm1742
    %v1744 = vsel %vm1743, 1, 0
    %v1745 = vcvt.s32.f32 %v1744
    %vm1746 = vcmp.ge.f32.partialorder %v1690, 1.4
    %vm1747 = vcmp.lt.f32.partialorder %v1690, 1.8
    %vm1748 = vmand %vm1746, %vm1747
    %v1749 = vsel %vm1748, 1, 0
    %v1750 = vcvt.s32.f32 %v1749
    %vm1751 = vcmp.ge.f32.partialorder %v1690, 1.8
    %vm1752 = vcmp.lt.f32.partialorder %v1690, 2.2
    %vm1753 = vmand %vm1751, %vm1752
    %v1754 = vsel %vm1753, 1, 0
    %v1755 = vcvt.s32.f32 %v1754
    %v1756 = vsub.f32 %v1690, -2.2
    %v1757 = vmul.f32 %v1756, %v150
    %v1758 = vmul.f32 %v1757, %v1705
    %v1759 = vsub.f32 -1.4, %v1690
    %v1760 = vmul.f32 %v1759, %v154
    %v1761 = vmul.f32 %v1760, %v1710
    %v1762 = vadd.f32 %v1758, %v1761
    %v1763 = vsub.f32 %v1690, -1.8
    %v1764 = vmul.f32 %v1763, %v154
    %v1765 = vmul.f32 %v1764, %v1710
    %v1766 = vsub.f32 -1.0, %v1690
    %v1767 = vmul.f32 %v1766, %v154
    %v1768 = vmul.f32 %v1767, %v1715
    %v1769 = vadd.f32 %v1765, %v1768
    %v1770 = vsub.f32 %v1690, -1.4
    %v1771 = vmul.f32 %v1770, %v154
    %v1772 = vmul.f32 %v1771, %v1715
    %v1773 = vsub.f32 -0.6, %v1690
    %v1774 = vmul.f32 %v1773, %v154
    %v1775 = vmul.f32 %v1774, %v1720
    %v1776 = vadd.f32 %v1772, %v1775
    %v1777 = vsub.f32 %v1690, -1.0
    %v1778 = vmul.f32 %v1777, %v154
    %v1779 = vmul.f32 %v1778, %v1720
    %v1780 = vsub.f32 -0.2, %v1690
    %v1781 = vmul.f32 %v1780, %v176
    %v1782 = vmul.f32 %v1781, %v1725
    %v1783 = vadd.f32 %v1779, %v1782
    %v1784 = vsub.f32 %v1690, -0.6
    %v1785 = vmul.f32 %v1784, %v176
    %v1786 = vmul.f32 %v1785, %v1725
    %v1787 = vsub.f32 0.2, %v1690
    %v1788 = vmul.f32 %v1787, %v184
    %v1789 = vmul.f32 %v1788, %v1730
    %v1790 = vadd.f32 %v1786, %v1789
    %v1791 = vsub.f32 %v1690, -0.2
    %v1792 = vmul.f32 %v1791, %v184
    %v1793 = vmul.f32 %v1792, %v1730
    %v1794 = vsub.f32 0.6, %v1690
    %v1795 = vmul.f32 %v1794, %v176
    %v1796 = vmul.f32 %v1795, %v1735
    %v1797 = vadd.f32 %v1793, %v1796
    %v1798 = vsub.f32 %v1690, 0.2
    %v1799 = vmul.f32 %v1798, %v176
    %v1800 = vmul.f32 %v1799, %v1735
    %v1801 = vsub.f32 1.0, %v1690
    %v1802 = vmul.f32 %v1801, %v154
    %v1803 = vmul.f32 %v1802, %v1740
    %v1804 = vadd.f32 %v1800, %v1803
    %v1805 = vsub.f32 %v1690, 0.6
    %v1806 = vmul.f32 %v1805, %v154
    %v1807 = vmul.f32 %v1806, %v1740
    %v1808 = vsub.f32 1.4, %v1690
    %v1809 = vmul.f32 %v1808, %v154
    %v1810 = vmul.f32 %v1809, %v1745
    %v1811 = vadd.f32 %v1807, %v1810
    %v1812 = vsub.f32 %v1690, 1.0
    %v1813 = vmul.f32 %v1812, %v154
    %v1814 = vmul.f32 %v1813, %v1745
    %v1815 = vsub.f32 1.8, %v1690
    %v1816 = vmul.f32 %v1815, %v154
    %v1817 = vmul.f32 %v1816, %v1750
    %v1818 = vadd.f32 %v1814, %v1817
    %v1819 = vsub.f32 %v1690, 1.4
    %v1820 = vmul.f32 %v1819, %v154
    %v1821 = vmul.f32 %v1820, %v1750
    %v1822 = vsub.f32 2.2, %v1690
    %v1823 = vmul.f32 %v1822, %v150
    %v1824 = vmul.f32 %v1823, %v1755
    %v1825 = vadd.f32 %v1821, %v1824
    %v1826 = vmul.f32 %v1756, %v223
    %v1827 = vmul.f32 %v1826, %v1762
    %v1828 = vmul.f32 %v1766, %v226
    %v1829 = vmul.f32 %v1828, %v1769
    %v1830 = vadd.f32 %v1827, %v1829
    %v1831 = vmul.f32 %v1763, %v226
    %v1832 = vmul.f32 %v1831, %v1769
    %v1833 = vmul.f32 %v1773, %v226
    %v1834 = vmul.f32 %v1833, %v1776
    %v1835 = vadd.f32 %v1832, %v1834
    %v1836 = vmul.f32 %v1770, %v226
    %v1837 = vmul.f32 %v1836, %v1776
    %v1838 = vmul.f32 %v1780, %v237
    %v1839 = vmul.f32 %v1838, %v1783
    %v1840 = vadd.f32 %v1837, %v1839
    %v1841 = vmul.f32 %v1777, %v237
    %v1842 = vmul.f32 %v1841, %v1783
    %v1843 = vmul.f32 %v1787, %v237
    %v1844 = vmul.f32 %v1843, %v1790
    %v1845 = vadd.f32 %v1842, %v1844
    %v1846 = vmul.f32 %v1784, %v237
    %v1847 = vmul.f32 %v1846, %v1790
    %v1848 = vmul.f32 %v1794, %v237
    %v1849 = vmul.f32 %v1848, %v1797
    %v1850 = vadd.f32 %v1847, %v1849
    %v1851 = vmul.f32 %v1791, %v237
    %v1852 = vmul.f32 %v1851, %v1797
    %v1853 = vmul.f32 %v1801, %v237
    %v1854 = vmul.f32 %v1853, %v1804
    %v1855 = vadd.f32 %v1852, %v1854
    %v1856 = vmul.f32 %v1798, %v237
    %v1857 = vmul.f32 %v1856, %v1804
    %v1858 = vmul.f32 %v1808, %v226
    %v1859 = vmul.f32 %v1858, %v1811
    %v1860 = vadd.f32 %v1857, %v1859
    %v1861 = vmul.f32 %v1805, %v226
    %v1862 = vmul.f32 %v1861, %v1811
    %v1863 = vmul.f32 %v1815, %v226
    %v1864 = vmul.f32 %v1863, %v1818
    %v1865 = vadd.f32 %v1862, %v1864
    %v1866 = vmul.f32 %v1812, %v226
    %v1867 = vmul.f32 %v1866, %v1818
    %v1868 = vmul.f32 %v1822, %v223
    %v1869 = vmul.f32 %v1868, %v1825
    %v1870 = vadd.f32 %v1867, %v1869
    %v1871 = vmul.f32 %v1756, %v271
    %v1872 = vmul.f32 %v1871, %v1830
    %v1873 = vmul.f32 %v1773, %v274
    %v1874 = vmul.f32 %v1873, %v1835
    %v1875 = vadd.f32 %v1872, %v1874
    %v1876 = vmul.f32 %v1763, %v274
    %v1877 = vmul.f32 %v1876, %v1835
    %v1878 = vmul.f32 %v1780, %v274
    %v1879 = vmul.f32 %v1878, %v1840
    %v1880 = vadd.f32 %v1877, %v1879
    %v1881 = vmul.f32 %v1770, %v274
    %v1882 = vmul.f32 %v1881, %v1840
    %v1883 = vmul.f32 %v1787, %v271
    %v1884 = vmul.f32 %v1883, %v1845
    %v1885 = vadd.f32 %v1882, %v1884
    %v1886 = vmul.f32 %v1777, %v271
    %v1887 = vmul.f32 %v1886, %v1845
    %v1888 = vmul.f32 %v1794, %v271
    %v1889 = vmul.f32 %v1888, %v1850
    %v1890 = vadd.f32 %v1887, %v1889
    %v1891 = vmul.f32 %v1784, %v271
    %v1892 = vmul.f32 %v1891, %v1850
    %v1893 = vmul.f32 %v1801, %v271
    %v1894 = vmul.f32 %v1893, %v1855
    %v1895 = vadd.f32 %v1892, %v1894
    %v1896 = vmul.f32 %v1791, %v271
    %v1897 = vmul.f32 %v1896, %v1855
    %v1898 = vmul.f32 %v1808, %v274
    %v1899 = vmul.f32 %v1898, %v1860
    %v1900 = vadd.f32 %v1897, %v1899
    %v1901 = vmul.f32 %v1798, %v274
    %v1902 = vmul.f32 %v1901, %v1860
    %v1903 = vmul.f32 %v1815, %v274
    %v1904 = vmul.f32 %v1903, %v1865
    %v1905 = vadd.f32 %v1902, %v1904
    %v1906 = vmul.f32 %v1805, %v274
    %v1907 = vmul.f32 %v1906, %v1865
    %v1908 = vmul.f32 %v1822, %v271
    %v1909 = vmul.f32 %v1908, %v1870
    %v1910 = vadd.f32 %v1907, %v1909
    %1912 = vrot.lane.b32.xlu0 %v1875, 32
    %v1913 = vpop.permute.xlu0 %1912
    %1915 = vst.msk [vmem:[#allocation3] sm:$0xf] %vm668, %v1913
    %1917 = vrot.lane.b32.xlu0 %v1880, 64
    %v1918 = vpop.permute.xlu0 %1917
    %1920 = vst.msk [vmem:[#allocation3] sm:$0xf] %vm674, %v1918
    %1922 = vrot.lane.b32.xlu0 %v1885, 96
    %v1923 = vpop.permute.xlu0 %1922
    %1925 = vst.msk [vmem:[#allocation3] sm:$0xf] %vm680, %v1923
    %1926 = vst.msk [vmem:[#allocation3 + $0x4] sm:$0xf] %vm452, %v1890
    %1928 = vrot.lane.b32.xlu0 %v1895, 32
    %v1929 = vpop.permute.xlu0 %1928
    %1931 = vst.msk [vmem:[#allocation3 + $0x4] sm:$0xf] %vm668, %v1929
    %1933 = vrot.lane.b32.xlu0 %v1900, 64
    %v1934 = vpop.permute.xlu0 %1933
    %1936 = vst.msk [vmem:[#allocation3 + $0x4] sm:$0xf] %vm674, %v1934
    %1938 = vrot.lane.b32.xlu0 %v1905, 96
    %v1939 = vpop.permute.xlu0 %1938
    %1941 = vst.msk [vmem:[#allocation3 + $0x4] sm:$0xf] %vm680, %v1939
    %1942 = vst.msk [vmem:[#allocation3 + $0x8] sm:$0xf] %vm452, %v1910
    %v1943 = vld [vmem:[#allocation3] sm:$0xff]
    %v1944 = vld [vmem:[#allocation3 + $0x8] sm:$0xf]
    %v1945 = vld [vmem:[%s7] sm:$0xff]
    %v1946 = vld [vmem:[%s7 + $0x8] sm:$0xff]
    %v1947 = vld [vmem:[%s7 + $0x10] sm:$0xff]
    %v1948 = vld [vmem:[%s7 + $0x18] sm:$0xff]
    %v1949 = vld [vmem:[%s7 + $0x20] sm:$0xff]
    %v1950 = vld [vmem:[%s7 + $0x28] sm:$0xff]
    %v1951 = vld [vmem:[%s7 + $0x30] sm:$0xff]
    %v1952 = vld [vmem:[%s7 + $0x38] sm:$0xff]
    %v1953 = vld [vmem:[%s7 + $0x40] sm:$0xff]
    %v1954 = vld [vmem:[%s7 + $0x48] sm:$0xff]
    %v1955 = vld [vmem:[%s7 + $0x50] sm:$0xff]
    %v1956 = vld [vmem:[%s7 + $0x58] sm:$0xff]
    %v1957 = vld [vmem:[%s7 + $0x60] sm:$0xff]
    %v1958 = vld [vmem:[%s7 + $0x68] sm:$0xff]
    %v1959 = vld [vmem:[%s7 + $0x70] sm:$0xff]
    %v1960 = vld [vmem:[%s7 + $0x78] sm:$0xff]
    %v1961 = vld [vmem:[%s7 + $0x80] sm:$0xff]
    %v1962 = vld [vmem:[%s7 + $0x88] sm:$0xff]
    %v1963 = vld [vmem:[%s7 + $0x90] sm:$0xff]
    %v1964 = vld [vmem:[%s7 + $0x98] sm:$0xff]
    %v1965 = vld [vmem:[%s7 + $0xa0] sm:$0xff]
    %v1966 = vld [vmem:[%s7 + $0xa8] sm:$0xff]
    %v1967 = vld [vmem:[%s7 + $0xb0] sm:$0xff]
    %v1968 = vld [vmem:[%s7 + $0xb8] sm:$0xff]
    %v1969 = vld [vmem:[%s7 + $0xc0] sm:$0xff]
    %v1970 = vld [vmem:[%s7 + $0xc8] sm:$0xff]
    %v1971 = vld [vmem:[%s7 + $0xd0] sm:$0xff]
    %v1972 = vld [vmem:[%s7 + $0xd8] sm:$0xff]
    %v1973 = vld [vmem:[%s7 + $0xe0] sm:$0xff]
    %v1974 = vld [vmem:[%s7 + $0xe8] sm:$0xff]
    %v1975 = vld [vmem:[%s7 + $0xf0] sm:$0xff]
    %v1976 = vld [vmem:[%s7 + $0xf8] sm:$0xff]
    %v1977 = vld [vmem:[%s7 + $0x100] sm:$0xff]
    %v1978 = vld [vmem:[%s7 + $0x108] sm:$0xff]
    %v1979 = vld [vmem:[%s7 + $0x110] sm:$0xff]
    %v1980 = vld [vmem:[%s7 + $0x118] sm:$0xff]
    %v1983 = vcombine.high %v1943, %v1943
    %v1985 = vsel %vm741, %v1944, 0
    %1987 = vmatprep.subr.mxu0 0.0
    %1988 = vmatpush1.msra.mxu0 %v1960
    %1989 = vmatprep.subr.mxu0 0.0
    %1990 = vmatpush1.msra.mxu0 %v1959
    %1991 = vmatprep.subr.mxu0 0.0
    %1992 = vmatpush1.msra.mxu0 %v1958
    %1993 = vmatprep.subr.mxu0 0.0
    %1994 = vmatpush1.msra.mxu0 %v1957
    %1995 = vmatprep.subr.mxu0 0.0
    %1996 = vmatpush1.msra.mxu0 %v1956
    %1997 = vmatprep.subr.mxu0 0.0
    %1998 = vmatpush1.msra.mxu0 %v1955
    %1999 = vmatprep.subr.mxu0 0.0
    %2000 = vmatpush1.msra.mxu0 %v1954
    %2001 = vmatprep.subr.mxu0 0.0
    %2002 = vmatpush1.msra.mxu0 %v1953
    %2003 = vmatprep.subr.mxu0 0.0
    %2004 = vmatpush1.msra.mxu0 %v1952
    %2005 = vmatprep.subr.mxu0 0.0
    %2006 = vmatpush1.msra.mxu0 %v1951
    %2007 = vmatprep.subr.mxu0 0.0
    %2008 = vmatpush1.msra.mxu0 %v1950
    %2009 = vmatprep.subr.mxu0 0.0
    %2010 = vmatpush1.msra.mxu0 %v1949
    %2011 = vmatprep.subr.mxu0 0.0
    %2012 = vmatpush1.msra.mxu0 %v1948
    %2013 = vmatprep.subr.mxu0 0.0
    %2014 = vmatpush1.msra.mxu0 %v1947
    %2015 = vmatprep.subr.mxu0 0.0
    %2016 = vmatpush1.msra.mxu0 %v1946
    %2017 = vmatprep.subr.mxu0 0.0
    %2018 = vmatpush1.msra.mxu0 %v1945
    %2019 = vmatprep.subr.mxu0 0.0
    %2020 = vmatpush2.msra.mxu0 %v1976
    %2021 = vmatprep.subr.mxu0 0.0
    %2022 = vmatpush2.msra.mxu0 %v1975
    %2023 = vmatprep.subr.mxu0 0.0
    %2024 = vmatpush2.msra.mxu0 %v1974
    %2025 = vmatprep.subr.mxu0 0.0
    %2026 = vmatpush2.msra.mxu0 %v1973
    %2027 = vmatprep.subr.mxu0 0.0
    %2028 = vmatpush2.msra.mxu0 %v1972
    %2029 = vmatprep.subr.mxu0 0.0
    %2030 = vmatpush2.msra.mxu0 %v1971
    %2031 = vmatprep.subr.mxu0 0.0
    %2032 = vmatpush2.msra.mxu0 %v1970
    %2033 = vmatprep.subr.mxu0 0.0
    %2034 = vmatpush2.msra.mxu0 %v1969
    %2035 = vmatprep.subr.mxu0 0.0
    %2036 = vmatpush2.msra.mxu0 %v1968
    %2037 = vmatprep.subr.mxu0 0.0
    %2038 = vmatpush2.msra.mxu0 %v1967
    %2039 = vmatprep.subr.mxu0 0.0
    %2040 = vmatpush2.msra.mxu0 %v1966
    %2041 = vmatprep.subr.mxu0 0.0
    %2042 = vmatpush2.msra.mxu0 %v1965
    %2043 = vmatprep.subr.mxu0 0.0
    %2044 = vmatpush2.msra.mxu0 %v1964
    %2045 = vmatprep.subr.mxu0 0.0
    %2046 = vmatpush2.msra.mxu0 %v1963
    %2047 = vmatprep.subr.mxu0 0.0
    %2048 = vmatpush2.msra.mxu0 %v1962
    %2049 = vmatprep.subr.mxu0 0.0
    %2050 = vmatpush2.msra.mxu0 %v1961
    %2051 = vmatprep.mubr.f32.mxu0 %v1983
    %2052 = vmatmul.mubr.f32.gmra.mxu0 %v1943
    %v2053 = vpop.f32.mrf.mxu0
    %v2054 = vadd.f32 0.0, %v2053
    %v2055 = vpop.f32.mrf.mxu0
    %2056 = vdwg.mxu0
    %2057 = vmatprep.subr.mxu0 0.0
    %2058 = vmatpush1.msra.mxu0 0.0
    %2059 = vmatprep.subr.mxu0 0.0
    %2060 = vmatpush1.msra.mxu0 0.0
    %2061 = vmatprep.subr.mxu0 0.0
    %2062 = vmatpush1.msra.mxu0 0.0
    %2063 = vmatprep.subr.mxu0 0.0
    %2064 = vmatpush1.msra.mxu0 0.0
    %2065 = vmatprep.subr.mxu0 0.0
    %2066 = vmatpush1.msra.mxu0 0.0
    %2067 = vmatprep.subr.mxu0 0.0
    %2068 = vmatpush1.msra.mxu0 0.0
    %2069 = vmatprep.subr.mxu0 0.0
    %2070 = vmatpush1.msra.mxu0 0.0
    %2071 = vmatprep.subr.mxu0 0.0
    %2072 = vmatpush1.msra.mxu0 0.0
    %2073 = vmatprep.subr.mxu0 0.0
    %2074 = vmatpush1.msra.mxu0 0.0
    %2075 = vmatprep.subr.mxu0 0.0
    %2076 = vmatpush1.msra.mxu0 0.0
    %2077 = vmatprep.subr.mxu0 0.0
    %2078 = vmatpush1.msra.mxu0 0.0
    %2079 = vmatprep.subr.mxu0 0.0
    %2080 = vmatpush1.msra.mxu0 0.0
    %2081 = vmatprep.subr.mxu0 0.0
    %2082 = vmatpush1.msra.mxu0 %v1980
    %2083 = vmatprep.subr.mxu0 0.0
    %2084 = vmatpush1.msra.mxu0 %v1979
    %2085 = vmatprep.subr.mxu0 0.0
    %2086 = vmatpush1.msra.mxu0 %v1978
    %2087 = vmatprep.subr.mxu0 0.0
    %2088 = vmatpush1.msra.mxu0 %v1977
    %2089 = vmatprep.subr.mxu0 0.0
    %2090 = vmatpush2.msra.mxu0 0.0
    %2091 = vmatprep.subr.mxu0 0.0
    %2092 = vmatpush2.msra.mxu0 0.0
    %2093 = vmatprep.subr.mxu0 0.0
    %2094 = vmatpush2.msra.mxu0 0.0
    %2095 = vmatprep.subr.mxu0 0.0
    %2096 = vmatpush2.msra.mxu0 0.0
    %2097 = vmatprep.subr.mxu0 0.0
    %2098 = vmatpush2.msra.mxu0 0.0
    %2099 = vmatprep.subr.mxu0 0.0
    %2100 = vmatpush2.msra.mxu0 0.0
    %2101 = vmatprep.subr.mxu0 0.0
    %2102 = vmatpush2.msra.mxu0 0.0
    %2103 = vmatprep.subr.mxu0 0.0
    %2104 = vmatpush2.msra.mxu0 0.0
    %2105 = vmatprep.subr.mxu0 0.0
    %2106 = vmatpush2.msra.mxu0 0.0
    %2107 = vmatprep.subr.mxu0 0.0
    %2108 = vmatpush2.msra.mxu0 0.0
    %2109 = vmatprep.subr.mxu0 0.0
    %2110 = vmatpush2.msra.mxu0 0.0
    %2111 = vmatprep.subr.mxu0 0.0
    %2112 = vmatpush2.msra.mxu0 0.0
    %2113 = vmatprep.subr.mxu0 0.0
    %2114 = vmatpush2.msra.mxu0 0.0
    %2115 = vmatprep.subr.mxu0 0.0
    %2116 = vmatpush2.msra.mxu0 0.0
    %2117 = vmatprep.subr.mxu0 0.0
    %2118 = vmatpush2.msra.mxu0 0.0
    %2119 = vmatprep.subr.mxu0 0.0
    %2120 = vmatpush2.msra.mxu0 0.0
    %2121 = vmatprep.mubr.f32.mxu0 0.0
    %2122 = vmatmul.mubr.f32.gmra.mxu0 %v1985
    %v2123 = vpop.f32.mrf.mxu0
    %v2124 = vadd.f32 %v2054, %v2123
    %v2125 = vpop.f32.mrf.mxu0
    %2126 = vdwg.mxu0
    %v2127 = vsub.f32 0.0, %v2124
    %v2128 = vmul.f32 %v2127, 1.442695
    %v2129 = vpow.pop %v2128
    %v2130 = vadd.f32 %v2129, 1.0
    %v2131 = vrcp.pop %v2130
    %v2132 = vmul.f32 1.0, %v2131
    %v2133 = vmul.f32 %v2124, %v2132
    %2134 = vst.msk [vmem:[#allocation3] sm:$0xf] %vm452, %v2133
    %vm2135 = vcmp.ge.f32.partialorder %v2124, -2.2
    %vm2136 = vcmp.lt.f32.partialorder %v2124, -1.8
    %vm2137 = vmand %vm2135, %vm2136
    %v2138 = vsel %vm2137, 1, 0
    %v2139 = vcvt.s32.f32 %v2138
    %vm2140 = vcmp.ge.f32.partialorder %v2124, -1.8
    %vm2141 = vcmp.lt.f32.partialorder %v2124, -1.4
    %vm2142 = vmand %vm2140, %vm2141
    %v2143 = vsel %vm2142, 1, 0
    %v2144 = vcvt.s32.f32 %v2143
    %vm2145 = vcmp.ge.f32.partialorder %v2124, -1.4
    %vm2146 = vcmp.lt.f32.partialorder %v2124, -1.0
    %vm2147 = vmand %vm2145, %vm2146
    %v2148 = vsel %vm2147, 1, 0
    %v2149 = vcvt.s32.f32 %v2148
    %vm2150 = vcmp.ge.f32.partialorder %v2124, -1.0
    %vm2151 = vcmp.lt.f32.partialorder %v2124, -0.6
    %vm2152 = vmand %vm2150, %vm2151
    %v2153 = vsel %vm2152, 1, 0
    %v2154 = vcvt.s32.f32 %v2153
    %vm2155 = vcmp.ge.f32.partialorder %v2124, -0.6
    %vm2156 = vcmp.lt.f32.partialorder %v2124, -0.2
    %vm2157 = vmand %vm2155, %vm2156
    %v2158 = vsel %vm2157, 1, 0
    %v2159 = vcvt.s32.f32 %v2158
    %vm2160 = vcmp.ge.f32.partialorder %v2124, -0.2
    %vm2161 = vcmp.lt.f32.partialorder %v2124, 0.2
    %vm2162 = vmand %vm2160, %vm2161
    %v2163 = vsel %vm2162, 1, 0
    %v2164 = vcvt.s32.f32 %v2163
    %vm2165 = vcmp.ge.f32.partialorder %v2124, 0.2
    %vm2166 = vcmp.lt.f32.partialorder %v2124, 0.6
    %vm2167 = vmand %vm2165, %vm2166
    %v2168 = vsel %vm2167, 1, 0
    %v2169 = vcvt.s32.f32 %v2168
    %vm2170 = vcmp.ge.f32.partialorder %v2124, 0.6
    %vm2171 = vcmp.lt.f32.partialorder %v2124, 1.0
    %vm2172 = vmand %vm2170, %vm2171
    %v2173 = vsel %vm2172, 1, 0
    %v2174 = vcvt.s32.f32 %v2173
    %vm2175 = vcmp.ge.f32.partialorder %v2124, 1.0
    %vm2176 = vcmp.lt.f32.partialorder %v2124, 1.4
    %vm2177 = vmand %vm2175, %vm2176
    %v2178 = vsel %vm2177, 1, 0
    %v2179 = vcvt.s32.f32 %v2178
    %vm2180 = vcmp.ge.f32.partialorder %v2124, 1.4
    %vm2181 = vcmp.lt.f32.partialorder %v2124, 1.8
    %vm2182 = vmand %vm2180, %vm2181
    %v2183 = vsel %vm2182, 1, 0
    %v2184 = vcvt.s32.f32 %v2183
    %vm2185 = vcmp.ge.f32.partialorder %v2124, 1.8
    %vm2186 = vcmp.lt.f32.partialorder %v2124, 2.2
    %vm2187 = vmand %vm2185, %vm2186
    %v2188 = vsel %vm2187, 1, 0
    %v2189 = vcvt.s32.f32 %v2188
    %v2190 = vsub.f32 %v2124, -2.2
    %v2191 = vmul.f32 %v2190, %v150
    %v2192 = vmul.f32 %v2191, %v2139
    %v2193 = vsub.f32 -1.4, %v2124
    %v2194 = vmul.f32 %v2193, %v154
    %v2195 = vmul.f32 %v2194, %v2144
    %v2196 = vadd.f32 %v2192, %v2195
    %v2197 = vsub.f32 %v2124, -1.8
    %v2198 = vmul.f32 %v2197, %v154
    %v2199 = vmul.f32 %v2198, %v2144
    %v2200 = vsub.f32 -1.0, %v2124
    %v2201 = vmul.f32 %v2200, %v154
    %v2202 = vmul.f32 %v2201, %v2149
    %v2203 = vadd.f32 %v2199, %v2202
    %v2204 = vsub.f32 %v2124, -1.4
    %v2205 = vmul.f32 %v2204, %v154
    %v2206 = vmul.f32 %v2205, %v2149
    %v2207 = vsub.f32 -0.6, %v2124
    %v2208 = vmul.f32 %v2207, %v154
    %v2209 = vmul.f32 %v2208, %v2154
    %v2210 = vadd.f32 %v2206, %v2209
    %v2211 = vsub.f32 %v2124, -1.0
    %v2212 = vmul.f32 %v2211, %v154
    %v2213 = vmul.f32 %v2212, %v2154
    %v2214 = vsub.f32 -0.2, %v2124
    %v2215 = vmul.f32 %v2214, %v176
    %v2216 = vmul.f32 %v2215, %v2159
    %v2217 = vadd.f32 %v2213, %v2216
    %v2218 = vsub.f32 %v2124, -0.6
    %v2219 = vmul.f32 %v2218, %v176
    %v2220 = vmul.f32 %v2219, %v2159
    %v2221 = vsub.f32 0.2, %v2124
    %v2222 = vmul.f32 %v2221, %v184
    %v2223 = vmul.f32 %v2222, %v2164
    %v2224 = vadd.f32 %v2220, %v2223
    %v2225 = vsub.f32 %v2124, -0.2
    %v2226 = vmul.f32 %v2225, %v184
    %v2227 = vmul.f32 %v2226, %v2164
    %v2228 = vsub.f32 0.6, %v2124
    %v2229 = vmul.f32 %v2228, %v176
    %v2230 = vmul.f32 %v2229, %v2169
    %v2231 = vadd.f32 %v2227, %v2230
    %v2232 = vsub.f32 %v2124, 0.2
    %v2233 = vmul.f32 %v2232, %v176
    %v2234 = vmul.f32 %v2233, %v2169
    %v2235 = vsub.f32 1.0, %v2124
    %v2236 = vmul.f32 %v2235, %v154
    %v2237 = vmul.f32 %v2236, %v2174
    %v2238 = vadd.f32 %v2234, %v2237
    %v2239 = vsub.f32 %v2124, 0.6
    %v2240 = vmul.f32 %v2239, %v154
    %v2241 = vmul.f32 %v2240, %v2174
    %v2242 = vsub.f32 1.4, %v2124
    %v2243 = vmul.f32 %v2242, %v154
    %v2244 = vmul.f32 %v2243, %v2179
    %v2245 = vadd.f32 %v2241, %v2244
    %v2246 = vsub.f32 %v2124, 1.0
    %v2247 = vmul.f32 %v2246, %v154
    %v2248 = vmul.f32 %v2247, %v2179
    %v2249 = vsub.f32 1.8, %v2124
    %v2250 = vmul.f32 %v2249, %v154
    %v2251 = vmul.f32 %v2250, %v2184
    %v2252 = vadd.f32 %v2248, %v2251
    %v2253 = vsub.f32 %v2124, 1.4
    %v2254 = vmul.f32 %v2253, %v154
    %v2255 = vmul.f32 %v2254, %v2184
    %v2256 = vsub.f32 2.2, %v2124
    %v2257 = vmul.f32 %v2256, %v150
    %v2258 = vmul.f32 %v2257, %v2189
    %v2259 = vadd.f32 %v2255, %v2258
    %v2260 = vmul.f32 %v2190, %v223
    %v2261 = vmul.f32 %v2260, %v2196
    %v2262 = vmul.f32 %v2200, %v226
    %v2263 = vmul.f32 %v2262, %v2203
    %v2264 = vadd.f32 %v2261, %v2263
    %v2265 = vmul.f32 %v2197, %v226
    %v2266 = vmul.f32 %v2265, %v2203
    %v2267 = vmul.f32 %v2207, %v226
    %v2268 = vmul.f32 %v2267, %v2210
    %v2269 = vadd.f32 %v2266, %v2268
    %v2270 = vmul.f32 %v2204, %v226
    %v2271 = vmul.f32 %v2270, %v2210
    %v2272 = vmul.f32 %v2214, %v237
    %v2273 = vmul.f32 %v2272, %v2217
    %v2274 = vadd.f32 %v2271, %v2273
    %v2275 = vmul.f32 %v2211, %v237
    %v2276 = vmul.f32 %v2275, %v2217
    %v2277 = vmul.f32 %v2221, %v237
    %v2278 = vmul.f32 %v2277, %v2224
    %v2279 = vadd.f32 %v2276, %v2278
    %v2280 = vmul.f32 %v2218, %v237
    %v2281 = vmul.f32 %v2280, %v2224
    %v2282 = vmul.f32 %v2228, %v237
    %v2283 = vmul.f32 %v2282, %v2231
    %v2284 = vadd.f32 %v2281, %v2283
    %v2285 = vmul.f32 %v2225, %v237
    %v2286 = vmul.f32 %v2285, %v2231
    %v2287 = vmul.f32 %v2235, %v237
    %v2288 = vmul.f32 %v2287, %v2238
    %v2289 = vadd.f32 %v2286, %v2288
    %v2290 = vmul.f32 %v2232, %v237
    %v2291 = vmul.f32 %v2290, %v2238
    %v2292 = vmul.f32 %v2242, %v226
    %v2293 = vmul.f32 %v2292, %v2245
    %v2294 = vadd.f32 %v2291, %v2293
    %v2295 = vmul.f32 %v2239, %v226
    %v2296 = vmul.f32 %v2295, %v2245
    %v2297 = vmul.f32 %v2249, %v226
    %v2298 = vmul.f32 %v2297, %v2252
    %v2299 = vadd.f32 %v2296, %v2298
    %v2300 = vmul.f32 %v2246, %v226
    %v2301 = vmul.f32 %v2300, %v2252
    %v2302 = vmul.f32 %v2256, %v223
    %v2303 = vmul.f32 %v2302, %v2259
    %v2304 = vadd.f32 %v2301, %v2303
    %v2305 = vmul.f32 %v2190, %v271
    %v2306 = vmul.f32 %v2305, %v2264
    %v2307 = vmul.f32 %v2207, %v274
    %v2308 = vmul.f32 %v2307, %v2269
    %v2309 = vadd.f32 %v2306, %v2308
    %v2310 = vmul.f32 %v2197, %v274
    %v2311 = vmul.f32 %v2310, %v2269
    %v2312 = vmul.f32 %v2214, %v274
    %v2313 = vmul.f32 %v2312, %v2274
    %v2314 = vadd.f32 %v2311, %v2313
    %v2315 = vmul.f32 %v2204, %v274
    %v2316 = vmul.f32 %v2315, %v2274
    %v2317 = vmul.f32 %v2221, %v271
    %v2318 = vmul.f32 %v2317, %v2279
    %v2319 = vadd.f32 %v2316, %v2318
    %v2320 = vmul.f32 %v2211, %v271
    %v2321 = vmul.f32 %v2320, %v2279
    %v2322 = vmul.f32 %v2228, %v271
    %v2323 = vmul.f32 %v2322, %v2284
    %v2324 = vadd.f32 %v2321, %v2323
    %v2325 = vmul.f32 %v2218, %v271
    %v2326 = vmul.f32 %v2325, %v2284
    %v2327 = vmul.f32 %v2235, %v271
    %v2328 = vmul.f32 %v2327, %v2289
    %v2329 = vadd.f32 %v2326, %v2328
    %v2330 = vmul.f32 %v2225, %v271
    %v2331 = vmul.f32 %v2330, %v2289
    %v2332 = vmul.f32 %v2242, %v274
    %v2333 = vmul.f32 %v2332, %v2294
    %v2334 = vadd.f32 %v2331, %v2333
    %v2335 = vmul.f32 %v2232, %v274
    %v2336 = vmul.f32 %v2335, %v2294
    %v2337 = vmul.f32 %v2249, %v274
    %v2338 = vmul.f32 %v2337, %v2299
    %v2339 = vadd.f32 %v2336, %v2338
    %v2340 = vmul.f32 %v2239, %v274
    %v2341 = vmul.f32 %v2340, %v2299
    %v2342 = vmul.f32 %v2256, %v271
    %v2343 = vmul.f32 %v2342, %v2304
    %v2344 = vadd.f32 %v2341, %v2343
    %2346 = vrot.lane.b32.xlu0 %v2309, 32
    %v2347 = vpop.permute.xlu0 %2346
    %2349 = vst.msk [vmem:[#allocation3] sm:$0xf] %vm668, %v2347
    %2351 = vrot.lane.b32.xlu0 %v2314, 64
    %v2352 = vpop.permute.xlu0 %2351
    %2354 = vst.msk [vmem:[#allocation3] sm:$0xf] %vm674, %v2352
    %2356 = vrot.lane.b32.xlu0 %v2319, 96
    %v2357 = vpop.permute.xlu0 %2356
    %2359 = vst.msk [vmem:[#allocation3] sm:$0xf] %vm680, %v2357
    %2360 = vst.msk [vmem:[#allocation3 + $0x4] sm:$0xf] %vm452, %v2324
    %2362 = vrot.lane.b32.xlu0 %v2329, 32
    %v2363 = vpop.permute.xlu0 %2362
    %2365 = vst.msk [vmem:[#allocation3 + $0x4] sm:$0xf] %vm668, %v2363
    %2367 = vrot.lane.b32.xlu0 %v2334, 64
    %v2368 = vpop.permute.xlu0 %2367
    %2370 = vst.msk [vmem:[#allocation3 + $0x4] sm:$0xf] %vm674, %v2368
    %2372 = vrot.lane.b32.xlu0 %v2339, 96
    %v2373 = vpop.permute.xlu0 %2372
    %2375 = vst.msk [vmem:[#allocation3 + $0x4] sm:$0xf] %vm680, %v2373
    %2376 = vst.msk [vmem:[#allocation3 + $0x8] sm:$0xf] %vm452, %v2344
    %v2377 = vld [vmem:[#allocation3] sm:$0xff]
    %v2378 = vld [vmem:[#allocation3 + $0x8] sm:$0xf]
    %v2379 = vld [vmem:[%s8] sm:$0xff]
    %v2380 = vld [vmem:[%s8 + $0x8] sm:$0xff]
    %v2381 = vld [vmem:[%s8 + $0x10] sm:$0xff]
    %v2382 = vld [vmem:[%s8 + $0x18] sm:$0xff]
    %v2383 = vld [vmem:[%s8 + $0x20] sm:$0xff]
    %v2384 = vld [vmem:[%s8 + $0x28] sm:$0xff]
    %v2385 = vld [vmem:[%s8 + $0x30] sm:$0xff]
    %v2386 = vld [vmem:[%s8 + $0x38] sm:$0xff]
    %v2387 = vld [vmem:[%s8 + $0x40] sm:$0xff]
    %v2388 = vld [vmem:[%s8 + $0x48] sm:$0xff]
    %v2389 = vld [vmem:[%s8 + $0x50] sm:$0xff]
    %v2390 = vld [vmem:[%s8 + $0x58] sm:$0xff]
    %v2391 = vld [vmem:[%s8 + $0x60] sm:$0xff]
    %v2392 = vld [vmem:[%s8 + $0x68] sm:$0xff]
    %v2393 = vld [vmem:[%s8 + $0x70] sm:$0xff]
    %v2394 = vld [vmem:[%s8 + $0x78] sm:$0xff]
    %v2395 = vld [vmem:[%s8 + $0x80] sm:$0xff]
    %v2396 = vld [vmem:[%s8 + $0x88] sm:$0xff]
    %v2397 = vld [vmem:[%s8 + $0x90] sm:$0xff]
    %v2398 = vld [vmem:[%s8 + $0x98] sm:$0xff]
    %v2399 = vld [vmem:[%s8 + $0xa0] sm:$0xff]
    %v2400 = vld [vmem:[%s8 + $0xa8] sm:$0xff]
    %v2401 = vld [vmem:[%s8 + $0xb0] sm:$0xff]
    %v2402 = vld [vmem:[%s8 + $0xb8] sm:$0xff]
    %v2403 = vld [vmem:[%s8 + $0xc0] sm:$0xff]
    %v2404 = vld [vmem:[%s8 + $0xc8] sm:$0xff]
    %v2405 = vld [vmem:[%s8 + $0xd0] sm:$0xff]
    %v2406 = vld [vmem:[%s8 + $0xd8] sm:$0xff]
    %v2407 = vld [vmem:[%s8 + $0xe0] sm:$0xff]
    %v2408 = vld [vmem:[%s8 + $0xe8] sm:$0xff]
    %v2409 = vld [vmem:[%s8 + $0xf0] sm:$0xff]
    %v2410 = vld [vmem:[%s8 + $0xf8] sm:$0xff]
    %v2411 = vld [vmem:[%s8 + $0x100] sm:$0xff]
    %v2412 = vld [vmem:[%s8 + $0x108] sm:$0xff]
    %v2413 = vld [vmem:[%s8 + $0x110] sm:$0xff]
    %v2414 = vld [vmem:[%s8 + $0x118] sm:$0xff]
    %v2417 = vcombine.high %v2377, %v2377
    %v2419 = vsel %vm741, %v2378, 0
    %2421 = vmatprep.subr.mxu0 0.0
    %2422 = vmatpush1.msra.mxu0 %v2394
    %2423 = vmatprep.subr.mxu0 0.0
    %2424 = vmatpush1.msra.mxu0 %v2393
    %2425 = vmatprep.subr.mxu0 0.0
    %2426 = vmatpush1.msra.mxu0 %v2392
    %2427 = vmatprep.subr.mxu0 0.0
    %2428 = vmatpush1.msra.mxu0 %v2391
    %2429 = vmatprep.subr.mxu0 0.0
    %2430 = vmatpush1.msra.mxu0 %v2390
    %2431 = vmatprep.subr.mxu0 0.0
    %2432 = vmatpush1.msra.mxu0 %v2389
    %2433 = vmatprep.subr.mxu0 0.0
    %2434 = vmatpush1.msra.mxu0 %v2388
    %2435 = vmatprep.subr.mxu0 0.0
    %2436 = vmatpush1.msra.mxu0 %v2387
    %2437 = vmatprep.subr.mxu0 0.0
    %2438 = vmatpush1.msra.mxu0 %v2386
    %2439 = vmatprep.subr.mxu0 0.0
    %2440 = vmatpush1.msra.mxu0 %v2385
    %2441 = vmatprep.subr.mxu0 0.0
    %2442 = vmatpush1.msra.mxu0 %v2384
    %2443 = vmatprep.subr.mxu0 0.0
    %2444 = vmatpush1.msra.mxu0 %v2383
    %2445 = vmatprep.subr.mxu0 0.0
    %2446 = vmatpush1.msra.mxu0 %v2382
    %2447 = vmatprep.subr.mxu0 0.0
    %2448 = vmatpush1.msra.mxu0 %v2381
    %2449 = vmatprep.subr.mxu0 0.0
    %2450 = vmatpush1.msra.mxu0 %v2380
    %2451 = vmatprep.subr.mxu0 0.0
    %2452 = vmatpush1.msra.mxu0 %v2379
    %2453 = vmatprep.subr.mxu0 0.0
    %2454 = vmatpush2.msra.mxu0 %v2410
    %2455 = vmatprep.subr.mxu0 0.0
    %2456 = vmatpush2.msra.mxu0 %v2409
    %2457 = vmatprep.subr.mxu0 0.0
    %2458 = vmatpush2.msra.mxu0 %v2408
    %2459 = vmatprep.subr.mxu0 0.0
    %2460 = vmatpush2.msra.mxu0 %v2407
    %2461 = vmatprep.subr.mxu0 0.0
    %2462 = vmatpush2.msra.mxu0 %v2406
    %2463 = vmatprep.subr.mxu0 0.0
    %2464 = vmatpush2.msra.mxu0 %v2405
    %2465 = vmatprep.subr.mxu0 0.0
    %2466 = vmatpush2.msra.mxu0 %v2404
    %2467 = vmatprep.subr.mxu0 0.0
    %2468 = vmatpush2.msra.mxu0 %v2403
    %2469 = vmatprep.subr.mxu0 0.0
    %2470 = vmatpush2.msra.mxu0 %v2402
    %2471 = vmatprep.subr.mxu0 0.0
    %2472 = vmatpush2.msra.mxu0 %v2401
    %2473 = vmatprep.subr.mxu0 0.0
    %2474 = vmatpush2.msra.mxu0 %v2400
    %2475 = vmatprep.subr.mxu0 0.0
    %2476 = vmatpush2.msra.mxu0 %v2399
    %2477 = vmatprep.subr.mxu0 0.0
    %2478 = vmatpush2.msra.mxu0 %v2398
    %2479 = vmatprep.subr.mxu0 0.0
    %2480 = vmatpush2.msra.mxu0 %v2397
    %2481 = vmatprep.subr.mxu0 0.0
    %2482 = vmatpush2.msra.mxu0 %v2396
    %2483 = vmatprep.subr.mxu0 0.0
    %2484 = vmatpush2.msra.mxu0 %v2395
    %2485 = vmatprep.mubr.f32.mxu0 %v2417
    %2486 = vmatmul.mubr.f32.gmra.mxu0 %v2377
    %v2487 = vpop.f32.mrf.mxu0
    %v2488 = vadd.f32 0.0, %v2487
    %v2489 = vpop.f32.mrf.mxu0
    %2490 = vdwg.mxu0
    %2491 = vmatprep.subr.mxu0 0.0
    %2492 = vmatpush1.msra.mxu0 0.0
    %2493 = vmatprep.subr.mxu0 0.0
    %2494 = vmatpush1.msra.mxu0 0.0
    %2495 = vmatprep.subr.mxu0 0.0
    %2496 = vmatpush1.msra.mxu0 0.0
    %2497 = vmatprep.subr.mxu0 0.0
    %2498 = vmatpush1.msra.mxu0 0.0
    %2499 = vmatprep.subr.mxu0 0.0
    %2500 = vmatpush1.msra.mxu0 0.0
    %2501 = vmatprep.subr.mxu0 0.0
    %2502 = vmatpush1.msra.mxu0 0.0
    %2503 = vmatprep.subr.mxu0 0.0
    %2504 = vmatpush1.msra.mxu0 0.0
    %2505 = vmatprep.subr.mxu0 0.0
    %2506 = vmatpush1.msra.mxu0 0.0
    %2507 = vmatprep.subr.mxu0 0.0
    %2508 = vmatpush1.msra.mxu0 0.0
    %2509 = vmatprep.subr.mxu0 0.0
    %2510 = vmatpush1.msra.mxu0 0.0
    %2511 = vmatprep.subr.mxu0 0.0
    %2512 = vmatpush1.msra.mxu0 0.0
    %2513 = vmatprep.subr.mxu0 0.0
    %2514 = vmatpush1.msra.mxu0 0.0
    %2515 = vmatprep.subr.mxu0 0.0
    %2516 = vmatpush1.msra.mxu0 %v2414
    %2517 = vmatprep.subr.mxu0 0.0
    %2518 = vmatpush1.msra.mxu0 %v2413
    %2519 = vmatprep.subr.mxu0 0.0
    %2520 = vmatpush1.msra.mxu0 %v2412
    %2521 = vmatprep.subr.mxu0 0.0
    %2522 = vmatpush1.msra.mxu0 %v2411
    %2523 = vmatprep.subr.mxu0 0.0
    %2524 = vmatpush2.msra.mxu0 0.0
    %2525 = vmatprep.subr.mxu0 0.0
    %2526 = vmatpush2.msra.mxu0 0.0
    %2527 = vmatprep.subr.mxu0 0.0
    %2528 = vmatpush2.msra.mxu0 0.0
    %2529 = vmatprep.subr.mxu0 0.0
    %2530 = vmatpush2.msra.mxu0 0.0
    %2531 = vmatprep.subr.mxu0 0.0
    %2532 = vmatpush2.msra.mxu0 0.0
    %2533 = vmatprep.subr.mxu0 0.0
    %2534 = vmatpush2.msra.mxu0 0.0
    %2535 = vmatprep.subr.mxu0 0.0
    %2536 = vmatpush2.msra.mxu0 0.0
    %2537 = vmatprep.subr.mxu0 0.0
    %2538 = vmatpush2.msra.mxu0 0.0
    %2539 = vmatprep.subr.mxu0 0.0
    %2540 = vmatpush2.msra.mxu0 0.0
    %2541 = vmatprep.subr.mxu0 0.0
    %2542 = vmatpush2.msra.mxu0 0.0
    %2543 = vmatprep.subr.mxu0 0.0
    %2544 = vmatpush2.msra.mxu0 0.0
    %2545 = vmatprep.subr.mxu0 0.0
    %2546 = vmatpush2.msra.mxu0 0.0
    %2547 = vmatprep.subr.mxu0 0.0
    %2548 = vmatpush2.msra.mxu0 0.0
    %2549 = vmatprep.subr.mxu0 0.0
    %2550 = vmatpush2.msra.mxu0 0.0
    %2551 = vmatprep.subr.mxu0 0.0
    %2552 = vmatpush2.msra.mxu0 0.0
    %2553 = vmatprep.subr.mxu0 0.0
    %2554 = vmatpush2.msra.mxu0 0.0
    %2555 = vmatprep.mubr.f32.mxu0 0.0
    %2556 = vmatmul.mubr.f32.gmra.mxu0 %v2419
    %v2557 = vpop.f32.mrf.mxu0
    %v2558 = vadd.f32 %v2488, %v2557
    %v2559 = vpop.f32.mrf.mxu0
    %2560 = vdwg.mxu0
    %2562 = vrot.lane.b32.xlu0 %v2558, 112
    %v2563 = vpop.permute.xlu0 %2562
    %v2565 = vadd.f32 %v1324, %v2563
    %2566 = vst.msk [vmem:[#allocation4] sm:$0xf] %vm92, %v2565
    // Predicated region
    $region38: #{nhits_forward.1} parent=1 // pred_check
      _
    $region39: #{nhits_forward.1} parent=1 // pred_check_branch
      %2568 = sbr.rel (0) target = $region41
    $region40: #{nhits_forward.1} parent=1 // pred_region
      %s2570 = ssub.s32 64, 64
      %2571 = vsyncadd [#allocation5], %s2570
      %s2573 = sshll.u32 [#allocation4], 4
      %s2574 = int_to_ptr.vmem [resolvable:$true] %s2573
      %2576 = dma.vmem_to_hbm [thread:$0]  %s2574, 64, %s9, [#allocation5]
    $region41: #{nhits_forward.1} parent=1 // pred_fallthru
      _
    // Predicated region
    $region42: #{nhits_forward.1} parent=1 // pred_check
      _
    $region43: #{nhits_forward.1} parent=1 // pred_check_branch
      %2578 = sbr.rel (0) target = $region45
    $region44: #{nhits_forward.1} parent=1 // pred_region
      %2579 = dma.done [#allocation5], 64
    $region45: #{nhits_forward.1} parent=1 // pred_fallthru
      _
    %2580 = vsyncpa [#allocation5], 1

</llo_original>
